<compile_context>
chip_gen: v7x
topology: tpu7x:2x2x1
jax: 0.10.0
libtpu: 0.0.40
codegen_flags: <defaults>
</compile_context>

<pallas_src>
import functools

import numpy as np
import jax
import jax.numpy as jnp
from jax import lax
from jax.experimental import pallas as pl
from jax.experimental.pallas import tpu as pltpu


# ---------------------------------------------------------------------------
# Static layer configuration (mirrors Model.__init__)
# ---------------------------------------------------------------------------
def layer_configs(segments):
    cfgs = [dict(cin=segments, cout=128, k=2, s=2, p=1, pool=False)]
    cfgs += [dict(cin=128, cout=128, k=2, s=1, p=1, pool=True) for _ in range(6)]
    cfgs += [dict(cin=128, cout=256, k=2, s=1, p=1, pool=True)]
    cfgs += [dict(cin=256, cout=256, k=2, s=1, p=1, pool=True) for _ in range(8)]
    cfgs += [dict(cin=256, cout=512, k=2, s=1, p=1, pool=True)]
    cfgs += [dict(cin=512, cout=512, k=1, s=1, p=0, pool=False)]   # 1x1 conv, no BN/ReLU
    return cfgs


# ---------------------------------------------------------------------------
# In-kernel building blocks
# ---------------------------------------------------------------------------
def _conv_bn_relu_pool(a, w0, w1, scale, shift):
    """Conv1d(k=2, s=1, p=1) + folded BN + ReLU + MaxPool1d(2) on an (L, C) tile."""
    L, C = a.shape
    zero = jnp.zeros((1, C), jnp.float32)
    ap = jnp.concatenate([zero, a, zero], axis=0)                  # (L+2, C) padded
    y = jnp.dot(ap[:-1, :], w0, preferred_element_type=jnp.float32)
    y = y + jnp.dot(ap[1:, :], w1, preferred_element_type=jnp.float32)
    y = jnp.maximum(y * scale + shift, 0.0)                        # (Lc, Cout), Lc = L+1
    Lc = L + 1
    Lout = Lc // 2
    m = jnp.maximum(y[:-1, :], y[1:, :])                           # m[t] = max(y[t], y[t+1])
    if Lout == 1:
        return m[:1, :]                                            # max(y[0], y[1])
    # MaxPool1d(2): out[j] = m[2j].  Exact 0/1 selection matmul (MXU) instead of
    # a stride-2 slice, so the kernel only uses ops that lower unconditionally.
    r = lax.broadcasted_iota(jnp.int32, (Lout, Lc - 1), 0)
    c = lax.broadcasted_iota(jnp.int32, (Lout, Lc - 1), 1)
    sel = (c == 2 * r).astype(jnp.float32)
    return jnp.dot(sel, m, preferred_element_type=jnp.float32)


def _fused_net_kernel(*refs, n_mid):
    """Entire network for one batch row; all weights resident in VMEM.

    refs layout (inputs, then output):
      [x0_taps, x1_taps,
       (w01, scale_shift) x 17 k=2 layers,
       w_1x1, b_1x1,
       fc_w_padded, fc_b_padded,
       out]
    """
    x0 = refs[0][0]                       # (Lc1, C0) taps at even padded positions
    x1 = refs[1][0]                       # (Lc1, C0) taps at odd  padded positions
    o_ref = refs[-1]
    i = 2

    # -- layer 1: Conv1d(segments, 128, k=2, s=2, p=1) + BN + ReLU (no pool) --
    w0, w1 = refs[i][0], refs[i][1]
    sc, sh = refs[i + 1][0:1, :], refs[i + 1][1:2, :]
    i += 2
    a = jnp.dot(x0, w0, preferred_element_type=jnp.float32)
    a = a + jnp.dot(x1, w1, preferred_element_type=jnp.float32)
    a = jnp.maximum(a * sc + sh, 0.0)

    # -- 16 middle layers: Conv1d(k=2, s=1, p=1) + BN + ReLU + MaxPool(2) -----
    for _ in range(n_mid):
        w0, w1 = refs[i][0], refs[i][1]
        sc, sh = refs[i + 1][0:1, :], refs[i + 1][1:2, :]
        i += 2
        a = _conv_bn_relu_pool(a, w0, w1, sc, sh)

    # -- last conv: Conv1d(512, 512, k=1) + bias; Dropout(0.5) == identity ----
    w, b = refs[i][...], refs[i + 1][...]
    i += 2
    a = jnp.dot(a, w, preferred_element_type=jnp.float32) + b      # (1, 512)

    # -- fc: Linear(512, num_labels) + Sigmoid (output lane-padded to 128) ----
    fcw, fcb = refs[i][...], refs[i + 1][...]
    y = jnp.dot(a, fcw, preferred_element_type=jnp.float32) + fcb
    o_ref[0] = 1.0 / (1.0 + jnp.exp(-y))


# ---------------------------------------------------------------------------
# Deterministic parameter construction (same shapes/folding as the nn.Module)
# ---------------------------------------------------------------------------
def make_params(key, segments, num_labels):
    eps = 1e-5
    conv_params = []
    for cfg in layer_configs(segments):
        cin, cout, k = cfg["cin"], cfg["cout"], cfg["k"]
        key, kw, kb, kg, kbe, km, kv = jax.random.split(key, 7)
        bound = 1.0 / np.sqrt(cin * k)
        w = jax.random.uniform(kw, (cout, cin, k), jnp.float32, -bound, bound)  # torch layout
        b = jax.random.uniform(kb, (cout,), jnp.float32, -bound, bound)
        if k == 2:
            # eval-mode BatchNorm folded into per-channel scale / shift
            gamma = jax.random.uniform(kg, (cout,), jnp.float32, 0.5, 1.5)
            beta = jax.random.uniform(kbe, (cout,), jnp.float32, -0.1, 0.1)
            rmean = jax.random.uniform(km, (cout,), jnp.float32, -0.1, 0.1)
            rvar = jax.random.uniform(kv, (cout,), jnp.float32, 0.5, 1.5)
            scale = gamma / jnp.sqrt(rvar + eps)
            shift = beta + (b - rmean) * scale
            w01 = jnp.stack([jnp.transpose(w[:, :, 0]),
                             jnp.transpose(w[:, :, 1])], axis=0)    # (2, Cin, Cout)
            ss = jnp.stack([scale, shift], axis=0)                  # (2, Cout)
            conv_params.append((w01, ss))
        else:  # final 1x1 conv: no BatchNorm, no ReLU
            conv_params.append((jnp.transpose(w[:, :, 0]), b.reshape(1, cout)))

    key, kfw, kfb = jax.random.split(key, 3)
    bound = 1.0 / np.sqrt(512)
    fc_w = jax.random.uniform(kfw, (512, num_labels), jnp.float32, -bound, bound)
    fc_b = jax.random.uniform(kfb, (num_labels,), jnp.float32, -bound, bound)
    return conv_params, fc_w, fc_b


# ---------------------------------------------------------------------------
# Forward pass: one fused pallas_call for the whole network
# ---------------------------------------------------------------------------
def _const_spec(arr):
    zeros = (0,) * arr.ndim
    return pl.BlockSpec(arr.shape, lambda n, _z=zeros: _z)


@jax.jit
def model_forward(x_ncl, conv_params, fc_w, fc_b):
    """x_ncl: (N, segments, samples) as in PyTorch; returns (N, num_labels)."""
    cfgs = layer_configs(x_ncl.shape[1])
    n_mid = len(cfgs) - 2
    assert all(c["k"] == 2 and c["pool"] for c in cfgs[1:-1])

    x = jnp.transpose(x_ncl, (0, 2, 1)).astype(jnp.float32)        # (N, L, C0)
    N, L, C0 = x.shape

    # Layer-1 taps (stride-2 conv, padding=1) gathered ONCE outside the kernel.
    xp = jnp.pad(x, ((0, 0), (1, 1), (0, 0)))                      # (N, L+2, C0)
    Lc1 = (L + 2 * cfgs[0]["p"] - cfgs[0]["k"]) // cfgs[0]["s"] + 1
    x0 = xp[:, 0:2 * Lc1:2, :]                                     # (N, Lc1, C0)
    x1 = xp[:, 1:2 * Lc1 + 1:2, :]                                 # (N, Lc1, C0)

    # Spatial length must shrink to 1 (matches torch's x.view(-1, 1, 512)).
    Lcur = Lc1
    for _ in cfgs[1:-1]:
        Lcur = (Lcur + 1) // 2
    assert Lcur == 1, Lcur

    # Lane-pad the FC so the final store is lane-dense; slice outside.
    num_labels = fc_w.shape[1]
    nl_pad = ((num_labels + 127) // 128) * 128
    fcw_p = jnp.pad(fc_w, ((0, 0), (0, nl_pad - num_labels)))
    fcb_p = jnp.pad(fc_b.reshape(1, -1), ((0, 0), (0, nl_pad - num_labels)))

    tap_spec = pl.BlockSpec((1, Lc1, C0), lambda n: (n, 0, 0))
    flat_in = [x0, x1]
    in_specs = [tap_spec, tap_spec]
    for p in conv_params:
        for arr in p:
            flat_in.append(arr)
            in_specs.append(_const_spec(arr))
    for arr in (fcw_p, fcb_p):
        flat_in.append(arr)
        in_specs.append(_const_spec(arr))

    out = pl.pallas_call(
        functools.partial(_fused_net_kernel, n_mid=n_mid),
        out_shape=jax.ShapeDtypeStruct((N, 1, nl_pad), jnp.float32),
        grid=(N,),
        in_specs=in_specs,
        out_specs=pl.BlockSpec((1, 1, nl_pad), lambda n: (n, 0, 0)),
        compiler_params=pltpu.CompilerParams(
            dimension_semantics=("parallel",),
            vmem_limit_bytes=48 * 1024 * 1024),
    )(*flat_in)

    # torch: x.view(-1, 1, 512) -> fc -> sigmoid -> mean over the size-1 dim.
    return out[:, 0, :num_labels]


# ---------------------------------------------------------------------------
# Pure-JAX reference (same folded parameters, no Pallas) for a sanity check
# ---------------------------------------------------------------------------
def reference_forward(x_ncl, conv_params, fc_w, fc_b):
    hp = lax.Precision.HIGHEST
    x = jnp.transpose(x_ncl, (0, 2, 1)).astype(jnp.float32)
    for cfg, p in zip(layer_configs(x_ncl.shape[1]), conv_params):
        if cfg["k"] == 2:
            w01, ss = p
            w0, w1 = w01[0], w01[1]
            scale, shift = ss[0], ss[1]
            xp = jnp.pad(x, ((0, 0), (cfg["p"], cfg["p"]), (0, 0)))
            Lc = (x.shape[1] + 2 * cfg["p"] - cfg["k"]) // cfg["s"] + 1
            idx = cfg["s"] * np.arange(Lc)
            y = (jnp.matmul(xp[:, idx, :], w0, precision=hp)
                 + jnp.matmul(xp[:, idx + 1, :], w1, precision=hp))
            y = jnp.maximum(y * scale + shift, 0.0)
            if cfg["pool"]:
                Lout = Lc // 2
                y = jnp.maximum(y[:, 0:2 * Lout:2, :], y[:, 1:2 * Lout:2, :])
            x = y
        else:
            w, b = p
            x = jnp.matmul(x, w, precision=hp) + b
    y = jnp.matmul(x, fc_w, precision=hp) + fc_b                   # (N, 1, num_labels)
    y = jax.nn.sigmoid(y)
    return jnp.mean(y, axis=1)


# ---------------------------------------------------------------------------
if __name__ == "__main__":
    segments, samples, num_labels = 4, 64, 10
    batch = 2

    key = jax.random.PRNGKey(0)
    kp, kx = jax.random.split(key)
    conv_params, fc_w, fc_b = make_params(kp, segments, num_labels)
    x = jax.random.normal(kx, (batch, segments, samples), jnp.float32)

    out = model_forward(x, conv_params, fc_w, fc_b)
    out = jax.block_until_ready(out)

    assert out.shape == (batch, num_labels), out.shape
    assert bool(jnp.all(jnp.isfinite(out)))

    ref = reference_forward(x, conv_params, fc_w, fc_b)
    np.testing.assert_allclose(np.asarray(out), np.asarray(ref),
                               rtol=1e-2, atol=1e-2)
    print("KERNEL_OK")
</pallas_src>

<mosaic_0001>
module attributes {stable_mosaic.version = 11 : i64} {
  func.func @_fused_net_kernel(%arg0: i32, %arg1: memref<1x33x4xf32, #tpu.memory_space<vmem>>, %arg2: memref<1x33x4xf32, #tpu.memory_space<vmem>>, %arg3: memref<2x4x128xf32, #tpu.memory_space<vmem>>, %arg4: memref<2x128xf32, #tpu.memory_space<vmem>>, %arg5: memref<2x128x128xf32, #tpu.memory_space<vmem>>, %arg6: memref<2x128xf32, #tpu.memory_space<vmem>>, %arg7: memref<2x128x128xf32, #tpu.memory_space<vmem>>, %arg8: memref<2x128xf32, #tpu.memory_space<vmem>>, %arg9: memref<2x128x128xf32, #tpu.memory_space<vmem>>, %arg10: memref<2x128xf32, #tpu.memory_space<vmem>>, %arg11: memref<2x128x128xf32, #tpu.memory_space<vmem>>, %arg12: memref<2x128xf32, #tpu.memory_space<vmem>>, %arg13: memref<2x128x128xf32, #tpu.memory_space<vmem>>, %arg14: memref<2x128xf32, #tpu.memory_space<vmem>>, %arg15: memref<2x128x128xf32, #tpu.memory_space<vmem>>, %arg16: memref<2x128xf32, #tpu.memory_space<vmem>>, %arg17: memref<2x128x256xf32, #tpu.memory_space<vmem>>, %arg18: memref<2x256xf32, #tpu.memory_space<vmem>>, %arg19: memref<2x256x256xf32, #tpu.memory_space<vmem>>, %arg20: memref<2x256xf32, #tpu.memory_space<vmem>>, %arg21: memref<2x256x256xf32, #tpu.memory_space<vmem>>, %arg22: memref<2x256xf32, #tpu.memory_space<vmem>>, %arg23: memref<2x256x256xf32, #tpu.memory_space<vmem>>, %arg24: memref<2x256xf32, #tpu.memory_space<vmem>>, %arg25: memref<2x256x256xf32, #tpu.memory_space<vmem>>, %arg26: memref<2x256xf32, #tpu.memory_space<vmem>>, %arg27: memref<2x256x256xf32, #tpu.memory_space<vmem>>, %arg28: memref<2x256xf32, #tpu.memory_space<vmem>>, %arg29: memref<2x256x256xf32, #tpu.memory_space<vmem>>, %arg30: memref<2x256xf32, #tpu.memory_space<vmem>>, %arg31: memref<2x256x256xf32, #tpu.memory_space<vmem>>, %arg32: memref<2x256xf32, #tpu.memory_space<vmem>>, %arg33: memref<2x256x256xf32, #tpu.memory_space<vmem>>, %arg34: memref<2x256xf32, #tpu.memory_space<vmem>>, %arg35: memref<2x256x512xf32, #tpu.memory_space<vmem>>, %arg36: memref<2x512xf32, #tpu.memory_space<vmem>>, %arg37: memref<512x512xf32, #tpu.memory_space<vmem>>, %arg38: memref<1x512xf32, #tpu.memory_space<vmem>>, %arg39: memref<512x128xf32, #tpu.memory_space<vmem>>, %arg40: memref<1x128xf32, #tpu.memory_space<vmem>>, %arg41: memref<1x1x128xf32, #tpu.memory_space<vmem>>) attributes {dimension_semantics = [#tpu.dimension_semantics<parallel>], iteration_bounds = array<i64: 2>, scalar_prefetch = 0 : i64, scratch_operands = 0 : i64, tpu.core_type = #tpu.core_type<tc>, window_params = [{transform_indices = @transform_0, window_bounds = array<i64: 1, 33, 4>}, {transform_indices = @transform_1, window_bounds = array<i64: 1, 33, 4>}, {pipeline_mode = #tpu.pipeline_mode<synchronous>, transform_indices = @transform_2, window_bounds = array<i64: 2, 4, 128>}, {pipeline_mode = #tpu.pipeline_mode<synchronous>, transform_indices = @transform_3, window_bounds = array<i64: 2, 128>}, {pipeline_mode = #tpu.pipeline_mode<synchronous>, transform_indices = @transform_4, window_bounds = array<i64: 2, 128, 128>}, {pipeline_mode = #tpu.pipeline_mode<synchronous>, transform_indices = @transform_5, window_bounds = array<i64: 2, 128>}, {pipeline_mode = #tpu.pipeline_mode<synchronous>, transform_indices = @transform_6, window_bounds = array<i64: 2, 128, 128>}, {pipeline_mode = #tpu.pipeline_mode<synchronous>, transform_indices = @transform_7, window_bounds = array<i64: 2, 128>}, {pipeline_mode = #tpu.pipeline_mode<synchronous>, transform_indices = @transform_8, window_bounds = array<i64: 2, 128, 128>}, {pipeline_mode = #tpu.pipeline_mode<synchronous>, transform_indices = @transform_9, window_bounds = array<i64: 2, 128>}, {pipeline_mode = #tpu.pipeline_mode<synchronous>, transform_indices = @transform_10, window_bounds = array<i64: 2, 128, 128>}, {pipeline_mode = #tpu.pipeline_mode<synchronous>, transform_indices = @transform_11, window_bounds = array<i64: 2, 128>}, {pipeline_mode = #tpu.pipeline_mode<synchronous>, transform_indices = @transform_12, window_bounds = array<i64: 2, 128, 128>}, {pipeline_mode = #tpu.pipeline_mode<synchronous>, transform_indices = @transform_13, window_bounds = array<i64: 2, 128>}, {pipeline_mode = #tpu.pipeline_mode<synchronous>, transform_indices = @transform_14, window_bounds = array<i64: 2, 128, 128>}, {pipeline_mode = #tpu.pipeline_mode<synchronous>, transform_indices = @transform_15, window_bounds = array<i64: 2, 128>}, {pipeline_mode = #tpu.pipeline_mode<synchronous>, transform_indices = @transform_16, window_bounds = array<i64: 2, 128, 256>}, {pipeline_mode = #tpu.pipeline_mode<synchronous>, transform_indices = @transform_17, window_bounds = array<i64: 2, 256>}, {pipeline_mode = #tpu.pipeline_mode<synchronous>, transform_indices = @transform_18, window_bounds = array<i64: 2, 256, 256>}, {pipeline_mode = #tpu.pipeline_mode<synchronous>, transform_indices = @transform_19, window_bounds = array<i64: 2, 256>}, {pipeline_mode = #tpu.pipeline_mode<synchronous>, transform_indices = @transform_20, window_bounds = array<i64: 2, 256, 256>}, {pipeline_mode = #tpu.pipeline_mode<synchronous>, transform_indices = @transform_21, window_bounds = array<i64: 2, 256>}, {pipeline_mode = #tpu.pipeline_mode<synchronous>, transform_indices = @transform_22, window_bounds = array<i64: 2, 256, 256>}, {pipeline_mode = #tpu.pipeline_mode<synchronous>, transform_indices = @transform_23, window_bounds = array<i64: 2, 256>}, {pipeline_mode = #tpu.pipeline_mode<synchronous>, transform_indices = @transform_24, window_bounds = array<i64: 2, 256, 256>}, {pipeline_mode = #tpu.pipeline_mode<synchronous>, transform_indices = @transform_25, window_bounds = array<i64: 2, 256>}, {pipeline_mode = #tpu.pipeline_mode<synchronous>, transform_indices = @transform_26, window_bounds = array<i64: 2, 256, 256>}, {pipeline_mode = #tpu.pipeline_mode<synchronous>, transform_indices = @transform_27, window_bounds = array<i64: 2, 256>}, {pipeline_mode = #tpu.pipeline_mode<synchronous>, transform_indices = @transform_28, window_bounds = array<i64: 2, 256, 256>}, {pipeline_mode = #tpu.pipeline_mode<synchronous>, transform_indices = @transform_29, window_bounds = array<i64: 2, 256>}, {pipeline_mode = #tpu.pipeline_mode<synchronous>, transform_indices = @transform_30, window_bounds = array<i64: 2, 256, 256>}, {pipeline_mode = #tpu.pipeline_mode<synchronous>, transform_indices = @transform_31, window_bounds = array<i64: 2, 256>}, {pipeline_mode = #tpu.pipeline_mode<synchronous>, transform_indices = @transform_32, window_bounds = array<i64: 2, 256, 256>}, {pipeline_mode = #tpu.pipeline_mode<synchronous>, transform_indices = @transform_33, window_bounds = array<i64: 2, 256>}, {pipeline_mode = #tpu.pipeline_mode<synchronous>, transform_indices = @transform_34, window_bounds = array<i64: 2, 256, 512>}, {pipeline_mode = #tpu.pipeline_mode<synchronous>, transform_indices = @transform_35, window_bounds = array<i64: 2, 512>}, {pipeline_mode = #tpu.pipeline_mode<synchronous>, transform_indices = @transform_36, window_bounds = array<i64: 512, 512>}, {pipeline_mode = #tpu.pipeline_mode<synchronous>, transform_indices = @transform_37, window_bounds = array<i64: 1, 512>}, {pipeline_mode = #tpu.pipeline_mode<synchronous>, transform_indices = @transform_38, window_bounds = array<i64: 512, 128>}, {pipeline_mode = #tpu.pipeline_mode<synchronous>, transform_indices = @transform_39, window_bounds = array<i64: 1, 128>}, {transform_indices = @transform_40, window_bounds = array<i64: 1, 1, 128>}]} {
    %c0 = arith.constant 0 : index
    %c0_0 = arith.constant 0 : index
    %c0_1 = arith.constant 0 : index
    %0 = vector.load %arg1[%c0, %c0_0, %c0_1] : memref<1x33x4xf32, #tpu.memory_space<vmem>>, vector<1x33x4xf32>
    %1 = vector.shape_cast %0 : vector<1x33x4xf32> to vector<33x4xf32>
    %c0_2 = arith.constant 0 : index
    %c0_3 = arith.constant 0 : index
    %c0_4 = arith.constant 0 : index
    %2 = vector.load %arg2[%c0_2, %c0_3, %c0_4] : memref<1x33x4xf32, #tpu.memory_space<vmem>>, vector<1x33x4xf32>
    %3 = vector.shape_cast %2 : vector<1x33x4xf32> to vector<33x4xf32>
    %c0_5 = arith.constant 0 : index
    %c0_6 = arith.constant 0 : index
    %c0_7 = arith.constant 0 : index
    %4 = vector.load %arg3[%c0_5, %c0_6, %c0_7] : memref<2x4x128xf32, #tpu.memory_space<vmem>>, vector<1x4x128xf32>
    %5 = vector.shape_cast %4 : vector<1x4x128xf32> to vector<4x128xf32>
    %c1 = arith.constant 1 : index
    %c0_8 = arith.constant 0 : index
    %c0_9 = arith.constant 0 : index
    %6 = vector.load %arg3[%c1, %c0_8, %c0_9] : memref<2x4x128xf32, #tpu.memory_space<vmem>>, vector<1x4x128xf32>
    %7 = vector.shape_cast %6 : vector<1x4x128xf32> to vector<4x128xf32>
    %c0_10 = arith.constant 0 : index
    %c0_11 = arith.constant 0 : index
    %8 = vector.load %arg4[%c0_10, %c0_11] : memref<2x128xf32, #tpu.memory_space<vmem>>, vector<1x128xf32>
    %c1_12 = arith.constant 1 : index
    %c0_13 = arith.constant 0 : index
    %9 = vector.load %arg4[%c1_12, %c0_13] : memref<2x128xf32, #tpu.memory_space<vmem>>, vector<1x128xf32>
    %cst = arith.constant dense<0.000000e+00> : vector<33x128xf32>
    %10 = tpu.matmul %1, %5, %cst {dimension_numbers = #tpu.dot_dimension_numbers<[1], [0], [0], [1], [0, 0, 1, 1], [], []>} : vector<33x4xf32>, vector<4x128xf32>, vector<33x128xf32> -> vector<33x128xf32>
    %cst_14 = arith.constant dense<0.000000e+00> : vector<33x128xf32>
    %11 = tpu.matmul %3, %7, %cst_14 {dimension_numbers = #tpu.dot_dimension_numbers<[1], [0], [0], [1], [0, 0, 1, 1], [], []>} : vector<33x4xf32>, vector<4x128xf32>, vector<33x128xf32> -> vector<33x128xf32>
    %12 = arith.addf %10, %11 : vector<33x128xf32>
    %13 = vector.broadcast %8 : vector<1x128xf32> to vector<33x128xf32>
    %14 = arith.mulf %12, %13 : vector<33x128xf32>
    %15 = vector.broadcast %9 : vector<1x128xf32> to vector<33x128xf32>
    %16 = arith.addf %14, %15 : vector<33x128xf32>
    %cst_15 = arith.constant 0.000000e+00 : f32
    %17 = vector.broadcast %cst_15 : f32 to vector<33x128xf32>
    %18 = arith.maximumf %16, %17 : vector<33x128xf32>
    %c0_16 = arith.constant 0 : index
    %c0_17 = arith.constant 0 : index
    %c0_18 = arith.constant 0 : index
    %19 = vector.load %arg5[%c0_16, %c0_17, %c0_18] : memref<2x128x128xf32, #tpu.memory_space<vmem>>, vector<1x128x128xf32>
    %20 = vector.shape_cast %19 : vector<1x128x128xf32> to vector<128x128xf32>
    %c1_19 = arith.constant 1 : index
    %c0_20 = arith.constant 0 : index
    %c0_21 = arith.constant 0 : index
    %21 = vector.load %arg5[%c1_19, %c0_20, %c0_21] : memref<2x128x128xf32, #tpu.memory_space<vmem>>, vector<1x128x128xf32>
    %22 = vector.shape_cast %21 : vector<1x128x128xf32> to vector<128x128xf32>
    %c0_22 = arith.constant 0 : index
    %c0_23 = arith.constant 0 : index
    %23 = vector.load %arg6[%c0_22, %c0_23] : memref<2x128xf32, #tpu.memory_space<vmem>>, vector<1x128xf32>
    %c1_24 = arith.constant 1 : index
    %c0_25 = arith.constant 0 : index
    %24 = vector.load %arg6[%c1_24, %c0_25] : memref<2x128xf32, #tpu.memory_space<vmem>>, vector<1x128xf32>
    %cst_26 = arith.constant 0.000000e+00 : f32
    %25 = vector.broadcast %cst_26 : f32 to vector<1x128xf32>
    %26 = tpu.concatenate %25, %18, %25 in 0 : vector<1x128xf32>, vector<33x128xf32>, vector<1x128xf32> -> vector<35x128xf32>
    %27 = vector.extract_strided_slice %26 {offsets = [0, 0], sizes = [34, 128], strides = [1, 1]} : vector<35x128xf32> to vector<34x128xf32>
    %cst_27 = arith.constant dense<0.000000e+00> : vector<34x128xf32>
    %28 = tpu.matmul %27, %20, %cst_27 {dimension_numbers = #tpu.dot_dimension_numbers<[1], [0], [0], [1], [0, 0, 1, 1], [], []>} : vector<34x128xf32>, vector<128x128xf32>, vector<34x128xf32> -> vector<34x128xf32>
    %29 = vector.extract_strided_slice %26 {offsets = [1, 0], sizes = [34, 128], strides = [1, 1]} : vector<35x128xf32> to vector<34x128xf32>
    %cst_28 = arith.constant dense<0.000000e+00> : vector<34x128xf32>
    %30 = tpu.matmul %29, %22, %cst_28 {dimension_numbers = #tpu.dot_dimension_numbers<[1], [0], [0], [1], [0, 0, 1, 1], [], []>} : vector<34x128xf32>, vector<128x128xf32>, vector<34x128xf32> -> vector<34x128xf32>
    %31 = arith.addf %28, %30 : vector<34x128xf32>
    %32 = vector.broadcast %23 : vector<1x128xf32> to vector<34x128xf32>
    %33 = arith.mulf %31, %32 : vector<34x128xf32>
    %34 = vector.broadcast %24 : vector<1x128xf32> to vector<34x128xf32>
    %35 = arith.addf %33, %34 : vector<34x128xf32>
    %cst_29 = arith.constant 0.000000e+00 : f32
    %36 = vector.broadcast %cst_29 : f32 to vector<34x128xf32>
    %37 = arith.maximumf %35, %36 : vector<34x128xf32>
    %38 = vector.extract_strided_slice %37 {offsets = [0, 0], sizes = [33, 128], strides = [1, 1]} : vector<34x128xf32> to vector<33x128xf32>
    %39 = vector.extract_strided_slice %37 {offsets = [1, 0], sizes = [33, 128], strides = [1, 1]} : vector<34x128xf32> to vector<33x128xf32>
    %40 = arith.maximumf %38, %39 : vector<33x128xf32>
    %41 = tpu.iota {dimensions = array<i32: 0>} : vector<17x33xi32>
    %42 = tpu.iota {dimensions = array<i32: 1>} : vector<17x33xi32>
    %c2_i32 = arith.constant 2 : i32
    %43 = vector.broadcast %c2_i32 : i32 to vector<17x33xi32>
    %44 = arith.muli %43, %41 : vector<17x33xi32>
    %45 = arith.cmpi eq, %42, %44 : vector<17x33xi32>
    %46 = arith.extui %45 : vector<17x33xi1> to vector<17x33xi32>
    %47 = arith.sitofp %46 : vector<17x33xi32> to vector<17x33xf32>
    %cst_30 = arith.constant dense<0.000000e+00> : vector<17x128xf32>
    %48 = tpu.matmul %47, %40, %cst_30 {dimension_numbers = #tpu.dot_dimension_numbers<[1], [0], [0], [1], [0, 0, 1, 1], [], []>} : vector<17x33xf32>, vector<33x128xf32>, vector<17x128xf32> -> vector<17x128xf32>
    %c0_31 = arith.constant 0 : index
    %c0_32 = arith.constant 0 : index
    %c0_33 = arith.constant 0 : index
    %49 = vector.load %arg7[%c0_31, %c0_32, %c0_33] : memref<2x128x128xf32, #tpu.memory_space<vmem>>, vector<1x128x128xf32>
    %50 = vector.shape_cast %49 : vector<1x128x128xf32> to vector<128x128xf32>
    %c1_34 = arith.constant 1 : index
    %c0_35 = arith.constant 0 : index
    %c0_36 = arith.constant 0 : index
    %51 = vector.load %arg7[%c1_34, %c0_35, %c0_36] : memref<2x128x128xf32, #tpu.memory_space<vmem>>, vector<1x128x128xf32>
    %52 = vector.shape_cast %51 : vector<1x128x128xf32> to vector<128x128xf32>
    %c0_37 = arith.constant 0 : index
    %c0_38 = arith.constant 0 : index
    %53 = vector.load %arg8[%c0_37, %c0_38] : memref<2x128xf32, #tpu.memory_space<vmem>>, vector<1x128xf32>
    %c1_39 = arith.constant 1 : index
    %c0_40 = arith.constant 0 : index
    %54 = vector.load %arg8[%c1_39, %c0_40] : memref<2x128xf32, #tpu.memory_space<vmem>>, vector<1x128xf32>
    %cst_41 = arith.constant 0.000000e+00 : f32
    %55 = vector.broadcast %cst_41 : f32 to vector<1x128xf32>
    %56 = tpu.concatenate %55, %48, %55 in 0 : vector<1x128xf32>, vector<17x128xf32>, vector<1x128xf32> -> vector<19x128xf32>
    %57 = vector.extract_strided_slice %56 {offsets = [0, 0], sizes = [18, 128], strides = [1, 1]} : vector<19x128xf32> to vector<18x128xf32>
    %cst_42 = arith.constant dense<0.000000e+00> : vector<18x128xf32>
    %58 = tpu.matmul %57, %50, %cst_42 {dimension_numbers = #tpu.dot_dimension_numbers<[1], [0], [0], [1], [0, 0, 1, 1], [], []>} : vector<18x128xf32>, vector<128x128xf32>, vector<18x128xf32> -> vector<18x128xf32>
    %59 = vector.extract_strided_slice %56 {offsets = [1, 0], sizes = [18, 128], strides = [1, 1]} : vector<19x128xf32> to vector<18x128xf32>
    %cst_43 = arith.constant dense<0.000000e+00> : vector<18x128xf32>
    %60 = tpu.matmul %59, %52, %cst_43 {dimension_numbers = #tpu.dot_dimension_numbers<[1], [0], [0], [1], [0, 0, 1, 1], [], []>} : vector<18x128xf32>, vector<128x128xf32>, vector<18x128xf32> -> vector<18x128xf32>
    %61 = arith.addf %58, %60 : vector<18x128xf32>
    %62 = vector.broadcast %53 : vector<1x128xf32> to vector<18x128xf32>
    %63 = arith.mulf %61, %62 : vector<18x128xf32>
    %64 = vector.broadcast %54 : vector<1x128xf32> to vector<18x128xf32>
    %65 = arith.addf %63, %64 : vector<18x128xf32>
    %cst_44 = arith.constant 0.000000e+00 : f32
    %66 = vector.broadcast %cst_44 : f32 to vector<18x128xf32>
    %67 = arith.maximumf %65, %66 : vector<18x128xf32>
    %68 = vector.extract_strided_slice %67 {offsets = [0, 0], sizes = [17, 128], strides = [1, 1]} : vector<18x128xf32> to vector<17x128xf32>
    %69 = vector.extract_strided_slice %67 {offsets = [1, 0], sizes = [17, 128], strides = [1, 1]} : vector<18x128xf32> to vector<17x128xf32>
    %70 = arith.maximumf %68, %69 : vector<17x128xf32>
    %71 = tpu.iota {dimensions = array<i32: 0>} : vector<9x17xi32>
    %72 = tpu.iota {dimensions = array<i32: 1>} : vector<9x17xi32>
    %c2_i32_45 = arith.constant 2 : i32
    %73 = vector.broadcast %c2_i32_45 : i32 to vector<9x17xi32>
    %74 = arith.muli %73, %71 : vector<9x17xi32>
    %75 = arith.cmpi eq, %72, %74 : vector<9x17xi32>
    %76 = arith.extui %75 : vector<9x17xi1> to vector<9x17xi32>
    %77 = arith.sitofp %76 : vector<9x17xi32> to vector<9x17xf32>
    %cst_46 = arith.constant dense<0.000000e+00> : vector<9x128xf32>
    %78 = tpu.matmul %77, %70, %cst_46 {dimension_numbers = #tpu.dot_dimension_numbers<[1], [0], [0], [1], [0, 0, 1, 1], [], []>} : vector<9x17xf32>, vector<17x128xf32>, vector<9x128xf32> -> vector<9x128xf32>
    %c0_47 = arith.constant 0 : index
    %c0_48 = arith.constant 0 : index
    %c0_49 = arith.constant 0 : index
    %79 = vector.load %arg9[%c0_47, %c0_48, %c0_49] : memref<2x128x128xf32, #tpu.memory_space<vmem>>, vector<1x128x128xf32>
    %80 = vector.shape_cast %79 : vector<1x128x128xf32> to vector<128x128xf32>
    %c1_50 = arith.constant 1 : index
    %c0_51 = arith.constant 0 : index
    %c0_52 = arith.constant 0 : index
    %81 = vector.load %arg9[%c1_50, %c0_51, %c0_52] : memref<2x128x128xf32, #tpu.memory_space<vmem>>, vector<1x128x128xf32>
    %82 = vector.shape_cast %81 : vector<1x128x128xf32> to vector<128x128xf32>
    %c0_53 = arith.constant 0 : index
    %c0_54 = arith.constant 0 : index
    %83 = vector.load %arg10[%c0_53, %c0_54] : memref<2x128xf32, #tpu.memory_space<vmem>>, vector<1x128xf32>
    %c1_55 = arith.constant 1 : index
    %c0_56 = arith.constant 0 : index
    %84 = vector.load %arg10[%c1_55, %c0_56] : memref<2x128xf32, #tpu.memory_space<vmem>>, vector<1x128xf32>
    %cst_57 = arith.constant 0.000000e+00 : f32
    %85 = vector.broadcast %cst_57 : f32 to vector<1x128xf32>
    %86 = tpu.concatenate %85, %78, %85 in 0 : vector<1x128xf32>, vector<9x128xf32>, vector<1x128xf32> -> vector<11x128xf32>
    %87 = vector.extract_strided_slice %86 {offsets = [0, 0], sizes = [10, 128], strides = [1, 1]} : vector<11x128xf32> to vector<10x128xf32>
    %cst_58 = arith.constant dense<0.000000e+00> : vector<10x128xf32>
    %88 = tpu.matmul %87, %80, %cst_58 {dimension_numbers = #tpu.dot_dimension_numbers<[1], [0], [0], [1], [0, 0, 1, 1], [], []>} : vector<10x128xf32>, vector<128x128xf32>, vector<10x128xf32> -> vector<10x128xf32>
    %89 = vector.extract_strided_slice %86 {offsets = [1, 0], sizes = [10, 128], strides = [1, 1]} : vector<11x128xf32> to vector<10x128xf32>
    %cst_59 = arith.constant dense<0.000000e+00> : vector<10x128xf32>
    %90 = tpu.matmul %89, %82, %cst_59 {dimension_numbers = #tpu.dot_dimension_numbers<[1], [0], [0], [1], [0, 0, 1, 1], [], []>} : vector<10x128xf32>, vector<128x128xf32>, vector<10x128xf32> -> vector<10x128xf32>
    %91 = arith.addf %88, %90 : vector<10x128xf32>
    %92 = vector.broadcast %83 : vector<1x128xf32> to vector<10x128xf32>
    %93 = arith.mulf %91, %92 : vector<10x128xf32>
    %94 = vector.broadcast %84 : vector<1x128xf32> to vector<10x128xf32>
    %95 = arith.addf %93, %94 : vector<10x128xf32>
    %cst_60 = arith.constant 0.000000e+00 : f32
    %96 = vector.broadcast %cst_60 : f32 to vector<10x128xf32>
    %97 = arith.maximumf %95, %96 : vector<10x128xf32>
    %98 = vector.extract_strided_slice %97 {offsets = [0, 0], sizes = [9, 128], strides = [1, 1]} : vector<10x128xf32> to vector<9x128xf32>
    %99 = vector.extract_strided_slice %97 {offsets = [1, 0], sizes = [9, 128], strides = [1, 1]} : vector<10x128xf32> to vector<9x128xf32>
    %100 = arith.maximumf %98, %99 : vector<9x128xf32>
    %101 = tpu.iota {dimensions = array<i32: 0>} : vector<5x9xi32>
    %102 = tpu.iota {dimensions = array<i32: 1>} : vector<5x9xi32>
    %c2_i32_61 = arith.constant 2 : i32
    %103 = vector.broadcast %c2_i32_61 : i32 to vector<5x9xi32>
    %104 = arith.muli %103, %101 : vector<5x9xi32>
    %105 = arith.cmpi eq, %102, %104 : vector<5x9xi32>
    %106 = arith.extui %105 : vector<5x9xi1> to vector<5x9xi32>
    %107 = arith.sitofp %106 : vector<5x9xi32> to vector<5x9xf32>
    %cst_62 = arith.constant dense<0.000000e+00> : vector<5x128xf32>
    %108 = tpu.matmul %107, %100, %cst_62 {dimension_numbers = #tpu.dot_dimension_numbers<[1], [0], [0], [1], [0, 0, 1, 1], [], []>} : vector<5x9xf32>, vector<9x128xf32>, vector<5x128xf32> -> vector<5x128xf32>
    %c0_63 = arith.constant 0 : index
    %c0_64 = arith.constant 0 : index
    %c0_65 = arith.constant 0 : index
    %109 = vector.load %arg11[%c0_63, %c0_64, %c0_65] : memref<2x128x128xf32, #tpu.memory_space<vmem>>, vector<1x128x128xf32>
    %110 = vector.shape_cast %109 : vector<1x128x128xf32> to vector<128x128xf32>
    %c1_66 = arith.constant 1 : index
    %c0_67 = arith.constant 0 : index
    %c0_68 = arith.constant 0 : index
    %111 = vector.load %arg11[%c1_66, %c0_67, %c0_68] : memref<2x128x128xf32, #tpu.memory_space<vmem>>, vector<1x128x128xf32>
    %112 = vector.shape_cast %111 : vector<1x128x128xf32> to vector<128x128xf32>
    %c0_69 = arith.constant 0 : index
    %c0_70 = arith.constant 0 : index
    %113 = vector.load %arg12[%c0_69, %c0_70] : memref<2x128xf32, #tpu.memory_space<vmem>>, vector<1x128xf32>
    %c1_71 = arith.constant 1 : index
    %c0_72 = arith.constant 0 : index
    %114 = vector.load %arg12[%c1_71, %c0_72] : memref<2x128xf32, #tpu.memory_space<vmem>>, vector<1x128xf32>
    %cst_73 = arith.constant 0.000000e+00 : f32
    %115 = vector.broadcast %cst_73 : f32 to vector<1x128xf32>
    %116 = tpu.concatenate %115, %108, %115 in 0 : vector<1x128xf32>, vector<5x128xf32>, vector<1x128xf32> -> vector<7x128xf32>
    %117 = vector.extract_strided_slice %116 {offsets = [0, 0], sizes = [6, 128], strides = [1, 1]} : vector<7x128xf32> to vector<6x128xf32>
    %cst_74 = arith.constant dense<0.000000e+00> : vector<6x128xf32>
    %118 = tpu.matmul %117, %110, %cst_74 {dimension_numbers = #tpu.dot_dimension_numbers<[1], [0], [0], [1], [0, 0, 1, 1], [], []>} : vector<6x128xf32>, vector<128x128xf32>, vector<6x128xf32> -> vector<6x128xf32>
    %119 = vector.extract_strided_slice %116 {offsets = [1, 0], sizes = [6, 128], strides = [1, 1]} : vector<7x128xf32> to vector<6x128xf32>
    %cst_75 = arith.constant dense<0.000000e+00> : vector<6x128xf32>
    %120 = tpu.matmul %119, %112, %cst_75 {dimension_numbers = #tpu.dot_dimension_numbers<[1], [0], [0], [1], [0, 0, 1, 1], [], []>} : vector<6x128xf32>, vector<128x128xf32>, vector<6x128xf32> -> vector<6x128xf32>
    %121 = arith.addf %118, %120 : vector<6x128xf32>
    %122 = vector.broadcast %113 : vector<1x128xf32> to vector<6x128xf32>
    %123 = arith.mulf %121, %122 : vector<6x128xf32>
    %124 = vector.broadcast %114 : vector<1x128xf32> to vector<6x128xf32>
    %125 = arith.addf %123, %124 : vector<6x128xf32>
    %cst_76 = arith.constant 0.000000e+00 : f32
    %126 = vector.broadcast %cst_76 : f32 to vector<6x128xf32>
    %127 = arith.maximumf %125, %126 : vector<6x128xf32>
    %128 = vector.extract_strided_slice %127 {offsets = [0, 0], sizes = [5, 128], strides = [1, 1]} : vector<6x128xf32> to vector<5x128xf32>
    %129 = vector.extract_strided_slice %127 {offsets = [1, 0], sizes = [5, 128], strides = [1, 1]} : vector<6x128xf32> to vector<5x128xf32>
    %130 = arith.maximumf %128, %129 : vector<5x128xf32>
    %131 = tpu.iota {dimensions = array<i32: 0>} : vector<3x5xi32>
    %132 = tpu.iota {dimensions = array<i32: 1>} : vector<3x5xi32>
    %c2_i32_77 = arith.constant 2 : i32
    %133 = vector.broadcast %c2_i32_77 : i32 to vector<3x5xi32>
    %134 = arith.muli %133, %131 : vector<3x5xi32>
    %135 = arith.cmpi eq, %132, %134 : vector<3x5xi32>
    %136 = arith.extui %135 : vector<3x5xi1> to vector<3x5xi32>
    %137 = arith.sitofp %136 : vector<3x5xi32> to vector<3x5xf32>
    %cst_78 = arith.constant dense<0.000000e+00> : vector<3x128xf32>
    %138 = tpu.matmul %137, %130, %cst_78 {dimension_numbers = #tpu.dot_dimension_numbers<[1], [0], [0], [1], [0, 0, 1, 1], [], []>} : vector<3x5xf32>, vector<5x128xf32>, vector<3x128xf32> -> vector<3x128xf32>
    %c0_79 = arith.constant 0 : index
    %c0_80 = arith.constant 0 : index
    %c0_81 = arith.constant 0 : index
    %139 = vector.load %arg13[%c0_79, %c0_80, %c0_81] : memref<2x128x128xf32, #tpu.memory_space<vmem>>, vector<1x128x128xf32>
    %140 = vector.shape_cast %139 : vector<1x128x128xf32> to vector<128x128xf32>
    %c1_82 = arith.constant 1 : index
    %c0_83 = arith.constant 0 : index
    %c0_84 = arith.constant 0 : index
    %141 = vector.load %arg13[%c1_82, %c0_83, %c0_84] : memref<2x128x128xf32, #tpu.memory_space<vmem>>, vector<1x128x128xf32>
    %142 = vector.shape_cast %141 : vector<1x128x128xf32> to vector<128x128xf32>
    %c0_85 = arith.constant 0 : index
    %c0_86 = arith.constant 0 : index
    %143 = vector.load %arg14[%c0_85, %c0_86] : memref<2x128xf32, #tpu.memory_space<vmem>>, vector<1x128xf32>
    %c1_87 = arith.constant 1 : index
    %c0_88 = arith.constant 0 : index
    %144 = vector.load %arg14[%c1_87, %c0_88] : memref<2x128xf32, #tpu.memory_space<vmem>>, vector<1x128xf32>
    %cst_89 = arith.constant 0.000000e+00 : f32
    %145 = vector.broadcast %cst_89 : f32 to vector<1x128xf32>
    %146 = tpu.concatenate %145, %138, %145 in 0 : vector<1x128xf32>, vector<3x128xf32>, vector<1x128xf32> -> vector<5x128xf32>
    %147 = vector.extract_strided_slice %146 {offsets = [0, 0], sizes = [4, 128], strides = [1, 1]} : vector<5x128xf32> to vector<4x128xf32>
    %cst_90 = arith.constant dense<0.000000e+00> : vector<4x128xf32>
    %148 = tpu.matmul %147, %140, %cst_90 {dimension_numbers = #tpu.dot_dimension_numbers<[1], [0], [0], [1], [0, 0, 1, 1], [], []>} : vector<4x128xf32>, vector<128x128xf32>, vector<4x128xf32> -> vector<4x128xf32>
    %149 = vector.extract_strided_slice %146 {offsets = [1, 0], sizes = [4, 128], strides = [1, 1]} : vector<5x128xf32> to vector<4x128xf32>
    %cst_91 = arith.constant dense<0.000000e+00> : vector<4x128xf32>
    %150 = tpu.matmul %149, %142, %cst_91 {dimension_numbers = #tpu.dot_dimension_numbers<[1], [0], [0], [1], [0, 0, 1, 1], [], []>} : vector<4x128xf32>, vector<128x128xf32>, vector<4x128xf32> -> vector<4x128xf32>
    %151 = arith.addf %148, %150 : vector<4x128xf32>
    %152 = vector.broadcast %143 : vector<1x128xf32> to vector<4x128xf32>
    %153 = arith.mulf %151, %152 : vector<4x128xf32>
    %154 = vector.broadcast %144 : vector<1x128xf32> to vector<4x128xf32>
    %155 = arith.addf %153, %154 : vector<4x128xf32>
    %cst_92 = arith.constant 0.000000e+00 : f32
    %156 = vector.broadcast %cst_92 : f32 to vector<4x128xf32>
    %157 = arith.maximumf %155, %156 : vector<4x128xf32>
    %158 = vector.extract_strided_slice %157 {offsets = [0, 0], sizes = [3, 128], strides = [1, 1]} : vector<4x128xf32> to vector<3x128xf32>
    %159 = vector.extract_strided_slice %157 {offsets = [1, 0], sizes = [3, 128], strides = [1, 1]} : vector<4x128xf32> to vector<3x128xf32>
    %160 = arith.maximumf %158, %159 : vector<3x128xf32>
    %161 = tpu.iota {dimensions = array<i32: 0>} : vector<2x3xi32>
    %162 = tpu.iota {dimensions = array<i32: 1>} : vector<2x3xi32>
    %c2_i32_93 = arith.constant 2 : i32
    %163 = vector.broadcast %c2_i32_93 : i32 to vector<2x3xi32>
    %164 = arith.muli %163, %161 : vector<2x3xi32>
    %165 = arith.cmpi eq, %162, %164 : vector<2x3xi32>
    %166 = arith.extui %165 : vector<2x3xi1> to vector<2x3xi32>
    %167 = arith.sitofp %166 : vector<2x3xi32> to vector<2x3xf32>
    %cst_94 = arith.constant dense<0.000000e+00> : vector<2x128xf32>
    %168 = tpu.matmul %167, %160, %cst_94 {dimension_numbers = #tpu.dot_dimension_numbers<[1], [0], [0], [1], [0, 0, 1, 1], [], []>} : vector<2x3xf32>, vector<3x128xf32>, vector<2x128xf32> -> vector<2x128xf32>
    %c0_95 = arith.constant 0 : index
    %c0_96 = arith.constant 0 : index
    %c0_97 = arith.constant 0 : index
    %169 = vector.load %arg15[%c0_95, %c0_96, %c0_97] : memref<2x128x128xf32, #tpu.memory_space<vmem>>, vector<1x128x128xf32>
    %170 = vector.shape_cast %169 : vector<1x128x128xf32> to vector<128x128xf32>
    %c1_98 = arith.constant 1 : index
    %c0_99 = arith.constant 0 : index
    %c0_100 = arith.constant 0 : index
    %171 = vector.load %arg15[%c1_98, %c0_99, %c0_100] : memref<2x128x128xf32, #tpu.memory_space<vmem>>, vector<1x128x128xf32>
    %172 = vector.shape_cast %171 : vector<1x128x128xf32> to vector<128x128xf32>
    %c0_101 = arith.constant 0 : index
    %c0_102 = arith.constant 0 : index
    %173 = vector.load %arg16[%c0_101, %c0_102] : memref<2x128xf32, #tpu.memory_space<vmem>>, vector<1x128xf32>
    %c1_103 = arith.constant 1 : index
    %c0_104 = arith.constant 0 : index
    %174 = vector.load %arg16[%c1_103, %c0_104] : memref<2x128xf32, #tpu.memory_space<vmem>>, vector<1x128xf32>
    %cst_105 = arith.constant 0.000000e+00 : f32
    %175 = vector.broadcast %cst_105 : f32 to vector<1x128xf32>
    %176 = tpu.concatenate %175, %168, %175 in 0 : vector<1x128xf32>, vector<2x128xf32>, vector<1x128xf32> -> vector<4x128xf32>
    %177 = vector.extract_strided_slice %176 {offsets = [0, 0], sizes = [3, 128], strides = [1, 1]} : vector<4x128xf32> to vector<3x128xf32>
    %cst_106 = arith.constant dense<0.000000e+00> : vector<3x128xf32>
    %178 = tpu.matmul %177, %170, %cst_106 {dimension_numbers = #tpu.dot_dimension_numbers<[1], [0], [0], [1], [0, 0, 1, 1], [], []>} : vector<3x128xf32>, vector<128x128xf32>, vector<3x128xf32> -> vector<3x128xf32>
    %179 = vector.extract_strided_slice %176 {offsets = [1, 0], sizes = [3, 128], strides = [1, 1]} : vector<4x128xf32> to vector<3x128xf32>
    %cst_107 = arith.constant dense<0.000000e+00> : vector<3x128xf32>
    %180 = tpu.matmul %179, %172, %cst_107 {dimension_numbers = #tpu.dot_dimension_numbers<[1], [0], [0], [1], [0, 0, 1, 1], [], []>} : vector<3x128xf32>, vector<128x128xf32>, vector<3x128xf32> -> vector<3x128xf32>
    %181 = arith.addf %178, %180 : vector<3x128xf32>
    %182 = vector.broadcast %173 : vector<1x128xf32> to vector<3x128xf32>
    %183 = arith.mulf %181, %182 : vector<3x128xf32>
    %184 = vector.broadcast %174 : vector<1x128xf32> to vector<3x128xf32>
    %185 = arith.addf %183, %184 : vector<3x128xf32>
    %cst_108 = arith.constant 0.000000e+00 : f32
    %186 = vector.broadcast %cst_108 : f32 to vector<3x128xf32>
    %187 = arith.maximumf %185, %186 : vector<3x128xf32>
    %188 = vector.extract_strided_slice %187 {offsets = [0, 0], sizes = [2, 128], strides = [1, 1]} : vector<3x128xf32> to vector<2x128xf32>
    %189 = vector.extract_strided_slice %187 {offsets = [1, 0], sizes = [2, 128], strides = [1, 1]} : vector<3x128xf32> to vector<2x128xf32>
    %190 = arith.maximumf %188, %189 : vector<2x128xf32>
    %191 = vector.extract_strided_slice %190 {offsets = [0, 0], sizes = [1, 128], strides = [1, 1]} : vector<2x128xf32> to vector<1x128xf32>
    %c0_109 = arith.constant 0 : index
    %c0_110 = arith.constant 0 : index
    %c0_111 = arith.constant 0 : index
    %192 = vector.load %arg17[%c0_109, %c0_110, %c0_111] : memref<2x128x256xf32, #tpu.memory_space<vmem>>, vector<1x128x256xf32>
    %193 = vector.shape_cast %192 : vector<1x128x256xf32> to vector<128x256xf32>
    %c1_112 = arith.constant 1 : index
    %c0_113 = arith.constant 0 : index
    %c0_114 = arith.constant 0 : index
    %194 = vector.load %arg17[%c1_112, %c0_113, %c0_114] : memref<2x128x256xf32, #tpu.memory_space<vmem>>, vector<1x128x256xf32>
    %195 = vector.shape_cast %194 : vector<1x128x256xf32> to vector<128x256xf32>
    %c0_115 = arith.constant 0 : index
    %c0_116 = arith.constant 0 : index
    %196 = vector.load %arg18[%c0_115, %c0_116] : memref<2x256xf32, #tpu.memory_space<vmem>>, vector<1x256xf32>
    %c1_117 = arith.constant 1 : index
    %c0_118 = arith.constant 0 : index
    %197 = vector.load %arg18[%c1_117, %c0_118] : memref<2x256xf32, #tpu.memory_space<vmem>>, vector<1x256xf32>
    %cst_119 = arith.constant 0.000000e+00 : f32
    %198 = vector.broadcast %cst_119 : f32 to vector<1x128xf32>
    %199 = tpu.concatenate %198, %191, %198 in 0 : vector<1x128xf32>, vector<1x128xf32>, vector<1x128xf32> -> vector<3x128xf32>
    %200 = vector.extract_strided_slice %199 {offsets = [0, 0], sizes = [2, 128], strides = [1, 1]} : vector<3x128xf32> to vector<2x128xf32>
    %cst_120 = arith.constant dense<0.000000e+00> : vector<2x256xf32>
    %201 = tpu.matmul %200, %193, %cst_120 {dimension_numbers = #tpu.dot_dimension_numbers<[1], [0], [0], [1], [0, 0, 1, 1], [], []>} : vector<2x128xf32>, vector<128x256xf32>, vector<2x256xf32> -> vector<2x256xf32>
    %202 = vector.extract_strided_slice %199 {offsets = [1, 0], sizes = [2, 128], strides = [1, 1]} : vector<3x128xf32> to vector<2x128xf32>
    %cst_121 = arith.constant dense<0.000000e+00> : vector<2x256xf32>
    %203 = tpu.matmul %202, %195, %cst_121 {dimension_numbers = #tpu.dot_dimension_numbers<[1], [0], [0], [1], [0, 0, 1, 1], [], []>} : vector<2x128xf32>, vector<128x256xf32>, vector<2x256xf32> -> vector<2x256xf32>
    %204 = arith.addf %201, %203 : vector<2x256xf32>
    %205 = vector.broadcast %196 : vector<1x256xf32> to vector<2x256xf32>
    %206 = arith.mulf %204, %205 : vector<2x256xf32>
    %207 = vector.broadcast %197 : vector<1x256xf32> to vector<2x256xf32>
    %208 = arith.addf %206, %207 : vector<2x256xf32>
    %cst_122 = arith.constant 0.000000e+00 : f32
    %209 = vector.broadcast %cst_122 : f32 to vector<2x256xf32>
    %210 = arith.maximumf %208, %209 : vector<2x256xf32>
    %211 = vector.extract_strided_slice %210 {offsets = [0, 0], sizes = [1, 256], strides = [1, 1]} : vector<2x256xf32> to vector<1x256xf32>
    %212 = vector.extract_strided_slice %210 {offsets = [1, 0], sizes = [1, 256], strides = [1, 1]} : vector<2x256xf32> to vector<1x256xf32>
    %213 = arith.maximumf %211, %212 : vector<1x256xf32>
    %c0_123 = arith.constant 0 : index
    %c0_124 = arith.constant 0 : index
    %c0_125 = arith.constant 0 : index
    %214 = vector.load %arg19[%c0_123, %c0_124, %c0_125] : memref<2x256x256xf32, #tpu.memory_space<vmem>>, vector<1x256x256xf32>
    %215 = vector.shape_cast %214 : vector<1x256x256xf32> to vector<256x256xf32>
    %c1_126 = arith.constant 1 : index
    %c0_127 = arith.constant 0 : index
    %c0_128 = arith.constant 0 : index
    %216 = vector.load %arg19[%c1_126, %c0_127, %c0_128] : memref<2x256x256xf32, #tpu.memory_space<vmem>>, vector<1x256x256xf32>
    %217 = vector.shape_cast %216 : vector<1x256x256xf32> to vector<256x256xf32>
    %c0_129 = arith.constant 0 : index
    %c0_130 = arith.constant 0 : index
    %218 = vector.load %arg20[%c0_129, %c0_130] : memref<2x256xf32, #tpu.memory_space<vmem>>, vector<1x256xf32>
    %c1_131 = arith.constant 1 : index
    %c0_132 = arith.constant 0 : index
    %219 = vector.load %arg20[%c1_131, %c0_132] : memref<2x256xf32, #tpu.memory_space<vmem>>, vector<1x256xf32>
    %cst_133 = arith.constant 0.000000e+00 : f32
    %220 = vector.broadcast %cst_133 : f32 to vector<1x256xf32>
    %221 = tpu.concatenate %220, %213, %220 in 0 : vector<1x256xf32>, vector<1x256xf32>, vector<1x256xf32> -> vector<3x256xf32>
    %222 = vector.extract_strided_slice %221 {offsets = [0, 0], sizes = [2, 256], strides = [1, 1]} : vector<3x256xf32> to vector<2x256xf32>
    %cst_134 = arith.constant dense<0.000000e+00> : vector<2x256xf32>
    %223 = tpu.matmul %222, %215, %cst_134 {dimension_numbers = #tpu.dot_dimension_numbers<[1], [0], [0], [1], [0, 0, 1, 1], [], []>} : vector<2x256xf32>, vector<256x256xf32>, vector<2x256xf32> -> vector<2x256xf32>
    %224 = vector.extract_strided_slice %221 {offsets = [1, 0], sizes = [2, 256], strides = [1, 1]} : vector<3x256xf32> to vector<2x256xf32>
    %cst_135 = arith.constant dense<0.000000e+00> : vector<2x256xf32>
    %225 = tpu.matmul %224, %217, %cst_135 {dimension_numbers = #tpu.dot_dimension_numbers<[1], [0], [0], [1], [0, 0, 1, 1], [], []>} : vector<2x256xf32>, vector<256x256xf32>, vector<2x256xf32> -> vector<2x256xf32>
    %226 = arith.addf %223, %225 : vector<2x256xf32>
    %227 = vector.broadcast %218 : vector<1x256xf32> to vector<2x256xf32>
    %228 = arith.mulf %226, %227 : vector<2x256xf32>
    %229 = vector.broadcast %219 : vector<1x256xf32> to vector<2x256xf32>
    %230 = arith.addf %228, %229 : vector<2x256xf32>
    %cst_136 = arith.constant 0.000000e+00 : f32
    %231 = vector.broadcast %cst_136 : f32 to vector<2x256xf32>
    %232 = arith.maximumf %230, %231 : vector<2x256xf32>
    %233 = vector.extract_strided_slice %232 {offsets = [0, 0], sizes = [1, 256], strides = [1, 1]} : vector<2x256xf32> to vector<1x256xf32>
    %234 = vector.extract_strided_slice %232 {offsets = [1, 0], sizes = [1, 256], strides = [1, 1]} : vector<2x256xf32> to vector<1x256xf32>
    %235 = arith.maximumf %233, %234 : vector<1x256xf32>
    %c0_137 = arith.constant 0 : index
    %c0_138 = arith.constant 0 : index
    %c0_139 = arith.constant 0 : index
    %236 = vector.load %arg21[%c0_137, %c0_138, %c0_139] : memref<2x256x256xf32, #tpu.memory_space<vmem>>, vector<1x256x256xf32>
    %237 = vector.shape_cast %236 : vector<1x256x256xf32> to vector<256x256xf32>
    %c1_140 = arith.constant 1 : index
    %c0_141 = arith.constant 0 : index
    %c0_142 = arith.constant 0 : index
    %238 = vector.load %arg21[%c1_140, %c0_141, %c0_142] : memref<2x256x256xf32, #tpu.memory_space<vmem>>, vector<1x256x256xf32>
    %239 = vector.shape_cast %238 : vector<1x256x256xf32> to vector<256x256xf32>
    %c0_143 = arith.constant 0 : index
    %c0_144 = arith.constant 0 : index
    %240 = vector.load %arg22[%c0_143, %c0_144] : memref<2x256xf32, #tpu.memory_space<vmem>>, vector<1x256xf32>
    %c1_145 = arith.constant 1 : index
    %c0_146 = arith.constant 0 : index
    %241 = vector.load %arg22[%c1_145, %c0_146] : memref<2x256xf32, #tpu.memory_space<vmem>>, vector<1x256xf32>
    %cst_147 = arith.constant 0.000000e+00 : f32
    %242 = vector.broadcast %cst_147 : f32 to vector<1x256xf32>
    %243 = tpu.concatenate %242, %235, %242 in 0 : vector<1x256xf32>, vector<1x256xf32>, vector<1x256xf32> -> vector<3x256xf32>
    %244 = vector.extract_strided_slice %243 {offsets = [0, 0], sizes = [2, 256], strides = [1, 1]} : vector<3x256xf32> to vector<2x256xf32>
    %cst_148 = arith.constant dense<0.000000e+00> : vector<2x256xf32>
    %245 = tpu.matmul %244, %237, %cst_148 {dimension_numbers = #tpu.dot_dimension_numbers<[1], [0], [0], [1], [0, 0, 1, 1], [], []>} : vector<2x256xf32>, vector<256x256xf32>, vector<2x256xf32> -> vector<2x256xf32>
    %246 = vector.extract_strided_slice %243 {offsets = [1, 0], sizes = [2, 256], strides = [1, 1]} : vector<3x256xf32> to vector<2x256xf32>
    %cst_149 = arith.constant dense<0.000000e+00> : vector<2x256xf32>
    %247 = tpu.matmul %246, %239, %cst_149 {dimension_numbers = #tpu.dot_dimension_numbers<[1], [0], [0], [1], [0, 0, 1, 1], [], []>} : vector<2x256xf32>, vector<256x256xf32>, vector<2x256xf32> -> vector<2x256xf32>
    %248 = arith.addf %245, %247 : vector<2x256xf32>
    %249 = vector.broadcast %240 : vector<1x256xf32> to vector<2x256xf32>
    %250 = arith.mulf %248, %249 : vector<2x256xf32>
    %251 = vector.broadcast %241 : vector<1x256xf32> to vector<2x256xf32>
    %252 = arith.addf %250, %251 : vector<2x256xf32>
    %cst_150 = arith.constant 0.000000e+00 : f32
    %253 = vector.broadcast %cst_150 : f32 to vector<2x256xf32>
    %254 = arith.maximumf %252, %253 : vector<2x256xf32>
    %255 = vector.extract_strided_slice %254 {offsets = [0, 0], sizes = [1, 256], strides = [1, 1]} : vector<2x256xf32> to vector<1x256xf32>
    %256 = vector.extract_strided_slice %254 {offsets = [1, 0], sizes = [1, 256], strides = [1, 1]} : vector<2x256xf32> to vector<1x256xf32>
    %257 = arith.maximumf %255, %256 : vector<1x256xf32>
    %c0_151 = arith.constant 0 : index
    %c0_152 = arith.constant 0 : index
    %c0_153 = arith.constant 0 : index
    %258 = vector.load %arg23[%c0_151, %c0_152, %c0_153] : memref<2x256x256xf32, #tpu.memory_space<vmem>>, vector<1x256x256xf32>
    %259 = vector.shape_cast %258 : vector<1x256x256xf32> to vector<256x256xf32>
    %c1_154 = arith.constant 1 : index
    %c0_155 = arith.constant 0 : index
    %c0_156 = arith.constant 0 : index
    %260 = vector.load %arg23[%c1_154, %c0_155, %c0_156] : memref<2x256x256xf32, #tpu.memory_space<vmem>>, vector<1x256x256xf32>
    %261 = vector.shape_cast %260 : vector<1x256x256xf32> to vector<256x256xf32>
    %c0_157 = arith.constant 0 : index
    %c0_158 = arith.constant 0 : index
    %262 = vector.load %arg24[%c0_157, %c0_158] : memref<2x256xf32, #tpu.memory_space<vmem>>, vector<1x256xf32>
    %c1_159 = arith.constant 1 : index
    %c0_160 = arith.constant 0 : index
    %263 = vector.load %arg24[%c1_159, %c0_160] : memref<2x256xf32, #tpu.memory_space<vmem>>, vector<1x256xf32>
    %cst_161 = arith.constant 0.000000e+00 : f32
    %264 = vector.broadcast %cst_161 : f32 to vector<1x256xf32>
    %265 = tpu.concatenate %264, %257, %264 in 0 : vector<1x256xf32>, vector<1x256xf32>, vector<1x256xf32> -> vector<3x256xf32>
    %266 = vector.extract_strided_slice %265 {offsets = [0, 0], sizes = [2, 256], strides = [1, 1]} : vector<3x256xf32> to vector<2x256xf32>
    %cst_162 = arith.constant dense<0.000000e+00> : vector<2x256xf32>
    %267 = tpu.matmul %266, %259, %cst_162 {dimension_numbers = #tpu.dot_dimension_numbers<[1], [0], [0], [1], [0, 0, 1, 1], [], []>} : vector<2x256xf32>, vector<256x256xf32>, vector<2x256xf32> -> vector<2x256xf32>
    %268 = vector.extract_strided_slice %265 {offsets = [1, 0], sizes = [2, 256], strides = [1, 1]} : vector<3x256xf32> to vector<2x256xf32>
    %cst_163 = arith.constant dense<0.000000e+00> : vector<2x256xf32>
    %269 = tpu.matmul %268, %261, %cst_163 {dimension_numbers = #tpu.dot_dimension_numbers<[1], [0], [0], [1], [0, 0, 1, 1], [], []>} : vector<2x256xf32>, vector<256x256xf32>, vector<2x256xf32> -> vector<2x256xf32>
    %270 = arith.addf %267, %269 : vector<2x256xf32>
    %271 = vector.broadcast %262 : vector<1x256xf32> to vector<2x256xf32>
    %272 = arith.mulf %270, %271 : vector<2x256xf32>
    %273 = vector.broadcast %263 : vector<1x256xf32> to vector<2x256xf32>
    %274 = arith.addf %272, %273 : vector<2x256xf32>
    %cst_164 = arith.constant 0.000000e+00 : f32
    %275 = vector.broadcast %cst_164 : f32 to vector<2x256xf32>
    %276 = arith.maximumf %274, %275 : vector<2x256xf32>
    %277 = vector.extract_strided_slice %276 {offsets = [0, 0], sizes = [1, 256], strides = [1, 1]} : vector<2x256xf32> to vector<1x256xf32>
    %278 = vector.extract_strided_slice %276 {offsets = [1, 0], sizes = [1, 256], strides = [1, 1]} : vector<2x256xf32> to vector<1x256xf32>
    %279 = arith.maximumf %277, %278 : vector<1x256xf32>
    %c0_165 = arith.constant 0 : index
    %c0_166 = arith.constant 0 : index
    %c0_167 = arith.constant 0 : index
    %280 = vector.load %arg25[%c0_165, %c0_166, %c0_167] : memref<2x256x256xf32, #tpu.memory_space<vmem>>, vector<1x256x256xf32>
    %281 = vector.shape_cast %280 : vector<1x256x256xf32> to vector<256x256xf32>
    %c1_168 = arith.constant 1 : index
    %c0_169 = arith.constant 0 : index
    %c0_170 = arith.constant 0 : index
    %282 = vector.load %arg25[%c1_168, %c0_169, %c0_170] : memref<2x256x256xf32, #tpu.memory_space<vmem>>, vector<1x256x256xf32>
    %283 = vector.shape_cast %282 : vector<1x256x256xf32> to vector<256x256xf32>
    %c0_171 = arith.constant 0 : index
    %c0_172 = arith.constant 0 : index
    %284 = vector.load %arg26[%c0_171, %c0_172] : memref<2x256xf32, #tpu.memory_space<vmem>>, vector<1x256xf32>
    %c1_173 = arith.constant 1 : index
    %c0_174 = arith.constant 0 : index
    %285 = vector.load %arg26[%c1_173, %c0_174] : memref<2x256xf32, #tpu.memory_space<vmem>>, vector<1x256xf32>
    %cst_175 = arith.constant 0.000000e+00 : f32
    %286 = vector.broadcast %cst_175 : f32 to vector<1x256xf32>
    %287 = tpu.concatenate %286, %279, %286 in 0 : vector<1x256xf32>, vector<1x256xf32>, vector<1x256xf32> -> vector<3x256xf32>
    %288 = vector.extract_strided_slice %287 {offsets = [0, 0], sizes = [2, 256], strides = [1, 1]} : vector<3x256xf32> to vector<2x256xf32>
    %cst_176 = arith.constant dense<0.000000e+00> : vector<2x256xf32>
    %289 = tpu.matmul %288, %281, %cst_176 {dimension_numbers = #tpu.dot_dimension_numbers<[1], [0], [0], [1], [0, 0, 1, 1], [], []>} : vector<2x256xf32>, vector<256x256xf32>, vector<2x256xf32> -> vector<2x256xf32>
    %290 = vector.extract_strided_slice %287 {offsets = [1, 0], sizes = [2, 256], strides = [1, 1]} : vector<3x256xf32> to vector<2x256xf32>
    %cst_177 = arith.constant dense<0.000000e+00> : vector<2x256xf32>
    %291 = tpu.matmul %290, %283, %cst_177 {dimension_numbers = #tpu.dot_dimension_numbers<[1], [0], [0], [1], [0, 0, 1, 1], [], []>} : vector<2x256xf32>, vector<256x256xf32>, vector<2x256xf32> -> vector<2x256xf32>
    %292 = arith.addf %289, %291 : vector<2x256xf32>
    %293 = vector.broadcast %284 : vector<1x256xf32> to vector<2x256xf32>
    %294 = arith.mulf %292, %293 : vector<2x256xf32>
    %295 = vector.broadcast %285 : vector<1x256xf32> to vector<2x256xf32>
    %296 = arith.addf %294, %295 : vector<2x256xf32>
    %cst_178 = arith.constant 0.000000e+00 : f32
    %297 = vector.broadcast %cst_178 : f32 to vector<2x256xf32>
    %298 = arith.maximumf %296, %297 : vector<2x256xf32>
    %299 = vector.extract_strided_slice %298 {offsets = [0, 0], sizes = [1, 256], strides = [1, 1]} : vector<2x256xf32> to vector<1x256xf32>
    %300 = vector.extract_strided_slice %298 {offsets = [1, 0], sizes = [1, 256], strides = [1, 1]} : vector<2x256xf32> to vector<1x256xf32>
    %301 = arith.maximumf %299, %300 : vector<1x256xf32>
    %c0_179 = arith.constant 0 : index
    %c0_180 = arith.constant 0 : index
    %c0_181 = arith.constant 0 : index
    %302 = vector.load %arg27[%c0_179, %c0_180, %c0_181] : memref<2x256x256xf32, #tpu.memory_space<vmem>>, vector<1x256x256xf32>
    %303 = vector.shape_cast %302 : vector<1x256x256xf32> to vector<256x256xf32>
    %c1_182 = arith.constant 1 : index
    %c0_183 = arith.constant 0 : index
    %c0_184 = arith.constant 0 : index
    %304 = vector.load %arg27[%c1_182, %c0_183, %c0_184] : memref<2x256x256xf32, #tpu.memory_space<vmem>>, vector<1x256x256xf32>
    %305 = vector.shape_cast %304 : vector<1x256x256xf32> to vector<256x256xf32>
    %c0_185 = arith.constant 0 : index
    %c0_186 = arith.constant 0 : index
    %306 = vector.load %arg28[%c0_185, %c0_186] : memref<2x256xf32, #tpu.memory_space<vmem>>, vector<1x256xf32>
    %c1_187 = arith.constant 1 : index
    %c0_188 = arith.constant 0 : index
    %307 = vector.load %arg28[%c1_187, %c0_188] : memref<2x256xf32, #tpu.memory_space<vmem>>, vector<1x256xf32>
    %cst_189 = arith.constant 0.000000e+00 : f32
    %308 = vector.broadcast %cst_189 : f32 to vector<1x256xf32>
    %309 = tpu.concatenate %308, %301, %308 in 0 : vector<1x256xf32>, vector<1x256xf32>, vector<1x256xf32> -> vector<3x256xf32>
    %310 = vector.extract_strided_slice %309 {offsets = [0, 0], sizes = [2, 256], strides = [1, 1]} : vector<3x256xf32> to vector<2x256xf32>
    %cst_190 = arith.constant dense<0.000000e+00> : vector<2x256xf32>
    %311 = tpu.matmul %310, %303, %cst_190 {dimension_numbers = #tpu.dot_dimension_numbers<[1], [0], [0], [1], [0, 0, 1, 1], [], []>} : vector<2x256xf32>, vector<256x256xf32>, vector<2x256xf32> -> vector<2x256xf32>
    %312 = vector.extract_strided_slice %309 {offsets = [1, 0], sizes = [2, 256], strides = [1, 1]} : vector<3x256xf32> to vector<2x256xf32>
    %cst_191 = arith.constant dense<0.000000e+00> : vector<2x256xf32>
    %313 = tpu.matmul %312, %305, %cst_191 {dimension_numbers = #tpu.dot_dimension_numbers<[1], [0], [0], [1], [0, 0, 1, 1], [], []>} : vector<2x256xf32>, vector<256x256xf32>, vector<2x256xf32> -> vector<2x256xf32>
    %314 = arith.addf %311, %313 : vector<2x256xf32>
    %315 = vector.broadcast %306 : vector<1x256xf32> to vector<2x256xf32>
    %316 = arith.mulf %314, %315 : vector<2x256xf32>
    %317 = vector.broadcast %307 : vector<1x256xf32> to vector<2x256xf32>
    %318 = arith.addf %316, %317 : vector<2x256xf32>
    %cst_192 = arith.constant 0.000000e+00 : f32
    %319 = vector.broadcast %cst_192 : f32 to vector<2x256xf32>
    %320 = arith.maximumf %318, %319 : vector<2x256xf32>
    %321 = vector.extract_strided_slice %320 {offsets = [0, 0], sizes = [1, 256], strides = [1, 1]} : vector<2x256xf32> to vector<1x256xf32>
    %322 = vector.extract_strided_slice %320 {offsets = [1, 0], sizes = [1, 256], strides = [1, 1]} : vector<2x256xf32> to vector<1x256xf32>
    %323 = arith.maximumf %321, %322 : vector<1x256xf32>
    %c0_193 = arith.constant 0 : index
    %c0_194 = arith.constant 0 : index
    %c0_195 = arith.constant 0 : index
    %324 = vector.load %arg29[%c0_193, %c0_194, %c0_195] : memref<2x256x256xf32, #tpu.memory_space<vmem>>, vector<1x256x256xf32>
    %325 = vector.shape_cast %324 : vector<1x256x256xf32> to vector<256x256xf32>
    %c1_196 = arith.constant 1 : index
    %c0_197 = arith.constant 0 : index
    %c0_198 = arith.constant 0 : index
    %326 = vector.load %arg29[%c1_196, %c0_197, %c0_198] : memref<2x256x256xf32, #tpu.memory_space<vmem>>, vector<1x256x256xf32>
    %327 = vector.shape_cast %326 : vector<1x256x256xf32> to vector<256x256xf32>
    %c0_199 = arith.constant 0 : index
    %c0_200 = arith.constant 0 : index
    %328 = vector.load %arg30[%c0_199, %c0_200] : memref<2x256xf32, #tpu.memory_space<vmem>>, vector<1x256xf32>
    %c1_201 = arith.constant 1 : index
    %c0_202 = arith.constant 0 : index
    %329 = vector.load %arg30[%c1_201, %c0_202] : memref<2x256xf32, #tpu.memory_space<vmem>>, vector<1x256xf32>
    %cst_203 = arith.constant 0.000000e+00 : f32
    %330 = vector.broadcast %cst_203 : f32 to vector<1x256xf32>
    %331 = tpu.concatenate %330, %323, %330 in 0 : vector<1x256xf32>, vector<1x256xf32>, vector<1x256xf32> -> vector<3x256xf32>
    %332 = vector.extract_strided_slice %331 {offsets = [0, 0], sizes = [2, 256], strides = [1, 1]} : vector<3x256xf32> to vector<2x256xf32>
    %cst_204 = arith.constant dense<0.000000e+00> : vector<2x256xf32>
    %333 = tpu.matmul %332, %325, %cst_204 {dimension_numbers = #tpu.dot_dimension_numbers<[1], [0], [0], [1], [0, 0, 1, 1], [], []>} : vector<2x256xf32>, vector<256x256xf32>, vector<2x256xf32> -> vector<2x256xf32>
    %334 = vector.extract_strided_slice %331 {offsets = [1, 0], sizes = [2, 256], strides = [1, 1]} : vector<3x256xf32> to vector<2x256xf32>
    %cst_205 = arith.constant dense<0.000000e+00> : vector<2x256xf32>
    %335 = tpu.matmul %334, %327, %cst_205 {dimension_numbers = #tpu.dot_dimension_numbers<[1], [0], [0], [1], [0, 0, 1, 1], [], []>} : vector<2x256xf32>, vector<256x256xf32>, vector<2x256xf32> -> vector<2x256xf32>
    %336 = arith.addf %333, %335 : vector<2x256xf32>
    %337 = vector.broadcast %328 : vector<1x256xf32> to vector<2x256xf32>
    %338 = arith.mulf %336, %337 : vector<2x256xf32>
    %339 = vector.broadcast %329 : vector<1x256xf32> to vector<2x256xf32>
    %340 = arith.addf %338, %339 : vector<2x256xf32>
    %cst_206 = arith.constant 0.000000e+00 : f32
    %341 = vector.broadcast %cst_206 : f32 to vector<2x256xf32>
    %342 = arith.maximumf %340, %341 : vector<2x256xf32>
    %343 = vector.extract_strided_slice %342 {offsets = [0, 0], sizes = [1, 256], strides = [1, 1]} : vector<2x256xf32> to vector<1x256xf32>
    %344 = vector.extract_strided_slice %342 {offsets = [1, 0], sizes = [1, 256], strides = [1, 1]} : vector<2x256xf32> to vector<1x256xf32>
    %345 = arith.maximumf %343, %344 : vector<1x256xf32>
    %c0_207 = arith.constant 0 : index
    %c0_208 = arith.constant 0 : index
    %c0_209 = arith.constant 0 : index
    %346 = vector.load %arg31[%c0_207, %c0_208, %c0_209] : memref<2x256x256xf32, #tpu.memory_space<vmem>>, vector<1x256x256xf32>
    %347 = vector.shape_cast %346 : vector<1x256x256xf32> to vector<256x256xf32>
    %c1_210 = arith.constant 1 : index
    %c0_211 = arith.constant 0 : index
    %c0_212 = arith.constant 0 : index
    %348 = vector.load %arg31[%c1_210, %c0_211, %c0_212] : memref<2x256x256xf32, #tpu.memory_space<vmem>>, vector<1x256x256xf32>
    %349 = vector.shape_cast %348 : vector<1x256x256xf32> to vector<256x256xf32>
    %c0_213 = arith.constant 0 : index
    %c0_214 = arith.constant 0 : index
    %350 = vector.load %arg32[%c0_213, %c0_214] : memref<2x256xf32, #tpu.memory_space<vmem>>, vector<1x256xf32>
    %c1_215 = arith.constant 1 : index
    %c0_216 = arith.constant 0 : index
    %351 = vector.load %arg32[%c1_215, %c0_216] : memref<2x256xf32, #tpu.memory_space<vmem>>, vector<1x256xf32>
    %cst_217 = arith.constant 0.000000e+00 : f32
    %352 = vector.broadcast %cst_217 : f32 to vector<1x256xf32>
    %353 = tpu.concatenate %352, %345, %352 in 0 : vector<1x256xf32>, vector<1x256xf32>, vector<1x256xf32> -> vector<3x256xf32>
    %354 = vector.extract_strided_slice %353 {offsets = [0, 0], sizes = [2, 256], strides = [1, 1]} : vector<3x256xf32> to vector<2x256xf32>
    %cst_218 = arith.constant dense<0.000000e+00> : vector<2x256xf32>
    %355 = tpu.matmul %354, %347, %cst_218 {dimension_numbers = #tpu.dot_dimension_numbers<[1], [0], [0], [1], [0, 0, 1, 1], [], []>} : vector<2x256xf32>, vector<256x256xf32>, vector<2x256xf32> -> vector<2x256xf32>
    %356 = vector.extract_strided_slice %353 {offsets = [1, 0], sizes = [2, 256], strides = [1, 1]} : vector<3x256xf32> to vector<2x256xf32>
    %cst_219 = arith.constant dense<0.000000e+00> : vector<2x256xf32>
    %357 = tpu.matmul %356, %349, %cst_219 {dimension_numbers = #tpu.dot_dimension_numbers<[1], [0], [0], [1], [0, 0, 1, 1], [], []>} : vector<2x256xf32>, vector<256x256xf32>, vector<2x256xf32> -> vector<2x256xf32>
    %358 = arith.addf %355, %357 : vector<2x256xf32>
    %359 = vector.broadcast %350 : vector<1x256xf32> to vector<2x256xf32>
    %360 = arith.mulf %358, %359 : vector<2x256xf32>
    %361 = vector.broadcast %351 : vector<1x256xf32> to vector<2x256xf32>
    %362 = arith.addf %360, %361 : vector<2x256xf32>
    %cst_220 = arith.constant 0.000000e+00 : f32
    %363 = vector.broadcast %cst_220 : f32 to vector<2x256xf32>
    %364 = arith.maximumf %362, %363 : vector<2x256xf32>
    %365 = vector.extract_strided_slice %364 {offsets = [0, 0], sizes = [1, 256], strides = [1, 1]} : vector<2x256xf32> to vector<1x256xf32>
    %366 = vector.extract_strided_slice %364 {offsets = [1, 0], sizes = [1, 256], strides = [1, 1]} : vector<2x256xf32> to vector<1x256xf32>
    %367 = arith.maximumf %365, %366 : vector<1x256xf32>
    %c0_221 = arith.constant 0 : index
    %c0_222 = arith.constant 0 : index
    %c0_223 = arith.constant 0 : index
    %368 = vector.load %arg33[%c0_221, %c0_222, %c0_223] : memref<2x256x256xf32, #tpu.memory_space<vmem>>, vector<1x256x256xf32>
    %369 = vector.shape_cast %368 : vector<1x256x256xf32> to vector<256x256xf32>
    %c1_224 = arith.constant 1 : index
    %c0_225 = arith.constant 0 : index
    %c0_226 = arith.constant 0 : index
    %370 = vector.load %arg33[%c1_224, %c0_225, %c0_226] : memref<2x256x256xf32, #tpu.memory_space<vmem>>, vector<1x256x256xf32>
    %371 = vector.shape_cast %370 : vector<1x256x256xf32> to vector<256x256xf32>
    %c0_227 = arith.constant 0 : index
    %c0_228 = arith.constant 0 : index
    %372 = vector.load %arg34[%c0_227, %c0_228] : memref<2x256xf32, #tpu.memory_space<vmem>>, vector<1x256xf32>
    %c1_229 = arith.constant 1 : index
    %c0_230 = arith.constant 0 : index
    %373 = vector.load %arg34[%c1_229, %c0_230] : memref<2x256xf32, #tpu.memory_space<vmem>>, vector<1x256xf32>
    %cst_231 = arith.constant 0.000000e+00 : f32
    %374 = vector.broadcast %cst_231 : f32 to vector<1x256xf32>
    %375 = tpu.concatenate %374, %367, %374 in 0 : vector<1x256xf32>, vector<1x256xf32>, vector<1x256xf32> -> vector<3x256xf32>
    %376 = vector.extract_strided_slice %375 {offsets = [0, 0], sizes = [2, 256], strides = [1, 1]} : vector<3x256xf32> to vector<2x256xf32>
    %cst_232 = arith.constant dense<0.000000e+00> : vector<2x256xf32>
    %377 = tpu.matmul %376, %369, %cst_232 {dimension_numbers = #tpu.dot_dimension_numbers<[1], [0], [0], [1], [0, 0, 1, 1], [], []>} : vector<2x256xf32>, vector<256x256xf32>, vector<2x256xf32> -> vector<2x256xf32>
    %378 = vector.extract_strided_slice %375 {offsets = [1, 0], sizes = [2, 256], strides = [1, 1]} : vector<3x256xf32> to vector<2x256xf32>
    %cst_233 = arith.constant dense<0.000000e+00> : vector<2x256xf32>
    %379 = tpu.matmul %378, %371, %cst_233 {dimension_numbers = #tpu.dot_dimension_numbers<[1], [0], [0], [1], [0, 0, 1, 1], [], []>} : vector<2x256xf32>, vector<256x256xf32>, vector<2x256xf32> -> vector<2x256xf32>
    %380 = arith.addf %377, %379 : vector<2x256xf32>
    %381 = vector.broadcast %372 : vector<1x256xf32> to vector<2x256xf32>
    %382 = arith.mulf %380, %381 : vector<2x256xf32>
    %383 = vector.broadcast %373 : vector<1x256xf32> to vector<2x256xf32>
    %384 = arith.addf %382, %383 : vector<2x256xf32>
    %cst_234 = arith.constant 0.000000e+00 : f32
    %385 = vector.broadcast %cst_234 : f32 to vector<2x256xf32>
    %386 = arith.maximumf %384, %385 : vector<2x256xf32>
    %387 = vector.extract_strided_slice %386 {offsets = [0, 0], sizes = [1, 256], strides = [1, 1]} : vector<2x256xf32> to vector<1x256xf32>
    %388 = vector.extract_strided_slice %386 {offsets = [1, 0], sizes = [1, 256], strides = [1, 1]} : vector<2x256xf32> to vector<1x256xf32>
    %389 = arith.maximumf %387, %388 : vector<1x256xf32>
    %c0_235 = arith.constant 0 : index
    %c0_236 = arith.constant 0 : index
    %c0_237 = arith.constant 0 : index
    %390 = vector.load %arg35[%c0_235, %c0_236, %c0_237] : memref<2x256x512xf32, #tpu.memory_space<vmem>>, vector<1x256x512xf32>
    %391 = vector.shape_cast %390 : vector<1x256x512xf32> to vector<256x512xf32>
    %c1_238 = arith.constant 1 : index
    %c0_239 = arith.constant 0 : index
    %c0_240 = arith.constant 0 : index
    %392 = vector.load %arg35[%c1_238, %c0_239, %c0_240] : memref<2x256x512xf32, #tpu.memory_space<vmem>>, vector<1x256x512xf32>
    %393 = vector.shape_cast %392 : vector<1x256x512xf32> to vector<256x512xf32>
    %c0_241 = arith.constant 0 : index
    %c0_242 = arith.constant 0 : index
    %394 = vector.load %arg36[%c0_241, %c0_242] : memref<2x512xf32, #tpu.memory_space<vmem>>, vector<1x512xf32>
    %c1_243 = arith.constant 1 : index
    %c0_244 = arith.constant 0 : index
    %395 = vector.load %arg36[%c1_243, %c0_244] : memref<2x512xf32, #tpu.memory_space<vmem>>, vector<1x512xf32>
    %cst_245 = arith.constant 0.000000e+00 : f32
    %396 = vector.broadcast %cst_245 : f32 to vector<1x256xf32>
    %397 = tpu.concatenate %396, %389, %396 in 0 : vector<1x256xf32>, vector<1x256xf32>, vector<1x256xf32> -> vector<3x256xf32>
    %398 = vector.extract_strided_slice %397 {offsets = [0, 0], sizes = [2, 256], strides = [1, 1]} : vector<3x256xf32> to vector<2x256xf32>
    %cst_246 = arith.constant dense<0.000000e+00> : vector<2x512xf32>
    %399 = tpu.matmul %398, %391, %cst_246 {dimension_numbers = #tpu.dot_dimension_numbers<[1], [0], [0], [1], [0, 0, 1, 1], [], []>} : vector<2x256xf32>, vector<256x512xf32>, vector<2x512xf32> -> vector<2x512xf32>
    %400 = vector.extract_strided_slice %397 {offsets = [1, 0], sizes = [2, 256], strides = [1, 1]} : vector<3x256xf32> to vector<2x256xf32>
    %cst_247 = arith.constant dense<0.000000e+00> : vector<2x512xf32>
    %401 = tpu.matmul %400, %393, %cst_247 {dimension_numbers = #tpu.dot_dimension_numbers<[1], [0], [0], [1], [0, 0, 1, 1], [], []>} : vector<2x256xf32>, vector<256x512xf32>, vector<2x512xf32> -> vector<2x512xf32>
    %402 = arith.addf %399, %401 : vector<2x512xf32>
    %403 = vector.broadcast %394 : vector<1x512xf32> to vector<2x512xf32>
    %404 = arith.mulf %402, %403 : vector<2x512xf32>
    %405 = vector.broadcast %395 : vector<1x512xf32> to vector<2x512xf32>
    %406 = arith.addf %404, %405 : vector<2x512xf32>
    %cst_248 = arith.constant 0.000000e+00 : f32
    %407 = vector.broadcast %cst_248 : f32 to vector<2x512xf32>
    %408 = arith.maximumf %406, %407 : vector<2x512xf32>
    %409 = vector.extract_strided_slice %408 {offsets = [0, 0], sizes = [1, 512], strides = [1, 1]} : vector<2x512xf32> to vector<1x512xf32>
    %410 = vector.extract_strided_slice %408 {offsets = [1, 0], sizes = [1, 512], strides = [1, 1]} : vector<2x512xf32> to vector<1x512xf32>
    %411 = arith.maximumf %409, %410 : vector<1x512xf32>
    %c0_249 = arith.constant 0 : index
    %c0_250 = arith.constant 0 : index
    %412 = vector.load %arg37[%c0_249, %c0_250] : memref<512x512xf32, #tpu.memory_space<vmem>>, vector<512x512xf32>
    %c0_251 = arith.constant 0 : index
    %c0_252 = arith.constant 0 : index
    %413 = vector.load %arg38[%c0_251, %c0_252] : memref<1x512xf32, #tpu.memory_space<vmem>>, vector<1x512xf32>
    %cst_253 = arith.constant dense<0.000000e+00> : vector<1x512xf32>
    %414 = tpu.matmul %411, %412, %cst_253 {dimension_numbers = #tpu.dot_dimension_numbers<[1], [0], [0], [1], [0, 0, 1, 1], [], []>} : vector<1x512xf32>, vector<512x512xf32>, vector<1x512xf32> -> vector<1x512xf32>
    %415 = arith.addf %414, %413 : vector<1x512xf32>
    %c0_254 = arith.constant 0 : index
    %c0_255 = arith.constant 0 : index
    %416 = vector.load %arg39[%c0_254, %c0_255] : memref<512x128xf32, #tpu.memory_space<vmem>>, vector<512x128xf32>
    %c0_256 = arith.constant 0 : index
    %c0_257 = arith.constant 0 : index
    %417 = vector.load %arg40[%c0_256, %c0_257] : memref<1x128xf32, #tpu.memory_space<vmem>>, vector<1x128xf32>
    %cst_258 = arith.constant dense<0.000000e+00> : vector<1x128xf32>
    %418 = tpu.matmul %415, %416, %cst_258 {dimension_numbers = #tpu.dot_dimension_numbers<[1], [0], [0], [1], [0, 0, 1, 1], [], []>} : vector<1x512xf32>, vector<512x128xf32>, vector<1x128xf32> -> vector<1x128xf32>
    %419 = arith.addf %418, %417 : vector<1x128xf32>
    %cst_259 = arith.constant 0.000000e+00 : f32
    %420 = vector.broadcast %cst_259 : f32 to vector<1x128xf32>
    %421 = arith.subf %420, %419 : vector<1x128xf32>
    %422 = math.exp %421 : vector<1x128xf32>
    %cst_260 = arith.constant 1.000000e+00 : f32
    %423 = vector.broadcast %cst_260 : f32 to vector<1x128xf32>
    %424 = arith.addf %423, %422 : vector<1x128xf32>
    %cst_261 = arith.constant 1.000000e+00 : f32
    %425 = vector.broadcast %cst_261 : f32 to vector<1x128xf32>
    %426 = arith.divf %425, %424 : vector<1x128xf32>
    %c0_262 = arith.constant 0 : index
    %c0_263 = arith.constant 0 : index
    %c0_264 = arith.constant 0 : index
    %427 = vector.load %arg41[%c0_262, %c0_263, %c0_264] : memref<1x1x128xf32, #tpu.memory_space<vmem>>, vector<1x1x128xf32>
    %428 = vector.shape_cast %427 : vector<1x1x128xf32> to vector<1x128xf32>
    %429 = vector.shape_cast %426 : vector<1x128xf32> to vector<1x1x128xf32>
    tpu.vector_store %arg41[%c0_262, %c0_263, %c0_264], %429 {strides = array<i32>} : memref<1x1x128xf32, #tpu.memory_space<vmem>>, vector<1x1x128xf32>,
    return
  }
  func.func @transform_0(%arg0: i32) -> (i32, i32, i32) {
    %c0_i32 = arith.constant 0 : i32
    %c0_i32_0 = arith.constant 0 : i32
    %c0_i32_1 = arith.constant 0 : i32
    return %arg0, %c0_i32, %c0_i32_0 : i32, i32, i32
  }
  func.func @transform_1(%arg0: i32) -> (i32, i32, i32) {
    %c0_i32 = arith.constant 0 : i32
    %c0_i32_0 = arith.constant 0 : i32
    %c0_i32_1 = arith.constant 0 : i32
    return %arg0, %c0_i32, %c0_i32_0 : i32, i32, i32
  }
  func.func @transform_2(%arg0: i32) -> (i32, i32, i32) {
    %c0_i32 = arith.constant 0 : i32
    %c0_i32_0 = arith.constant 0 : i32
    %c0_i32_1 = arith.constant 0 : i32
    %c0_i32_2 = arith.constant 0 : i32
    return %c0_i32, %c0_i32_0, %c0_i32_1 : i32, i32, i32
  }
  func.func @transform_3(%arg0: i32) -> (i32, i32) {
    %c0_i32 = arith.constant 0 : i32
    %c0_i32_0 = arith.constant 0 : i32
    %c0_i32_1 = arith.constant 0 : i32
    return %c0_i32, %c0_i32_0 : i32, i32
  }
  func.func @transform_4(%arg0: i32) -> (i32, i32, i32) {
    %c0_i32 = arith.constant 0 : i32
    %c0_i32_0 = arith.constant 0 : i32
    %c0_i32_1 = arith.constant 0 : i32
    %c0_i32_2 = arith.constant 0 : i32
    return %c0_i32, %c0_i32_0, %c0_i32_1 : i32, i32, i32
  }
  func.func @transform_5(%arg0: i32) -> (i32, i32) {
    %c0_i32 = arith.constant 0 : i32
    %c0_i32_0 = arith.constant 0 : i32
    %c0_i32_1 = arith.constant 0 : i32
    return %c0_i32, %c0_i32_0 : i32, i32
  }
  func.func @transform_6(%arg0: i32) -> (i32, i32, i32) {
    %c0_i32 = arith.constant 0 : i32
    %c0_i32_0 = arith.constant 0 : i32
    %c0_i32_1 = arith.constant 0 : i32
    %c0_i32_2 = arith.constant 0 : i32
    return %c0_i32, %c0_i32_0, %c0_i32_1 : i32, i32, i32
  }
  func.func @transform_7(%arg0: i32) -> (i32, i32) {
    %c0_i32 = arith.constant 0 : i32
    %c0_i32_0 = arith.constant 0 : i32
    %c0_i32_1 = arith.constant 0 : i32
    return %c0_i32, %c0_i32_0 : i32, i32
  }
  func.func @transform_8(%arg0: i32) -> (i32, i32, i32) {
    %c0_i32 = arith.constant 0 : i32
    %c0_i32_0 = arith.constant 0 : i32
    %c0_i32_1 = arith.constant 0 : i32
    %c0_i32_2 = arith.constant 0 : i32
    return %c0_i32, %c0_i32_0, %c0_i32_1 : i32, i32, i32
  }
  func.func @transform_9(%arg0: i32) -> (i32, i32) {
    %c0_i32 = arith.constant 0 : i32
    %c0_i32_0 = arith.constant 0 : i32
    %c0_i32_1 = arith.constant 0 : i32
    return %c0_i32, %c0_i32_0 : i32, i32
  }
  func.func @transform_10(%arg0: i32) -> (i32, i32, i32) {
    %c0_i32 = arith.constant 0 : i32
    %c0_i32_0 = arith.constant 0 : i32
    %c0_i32_1 = arith.constant 0 : i32
    %c0_i32_2 = arith.constant 0 : i32
    return %c0_i32, %c0_i32_0, %c0_i32_1 : i32, i32, i32
  }
  func.func @transform_11(%arg0: i32) -> (i32, i32) {
    %c0_i32 = arith.constant 0 : i32
    %c0_i32_0 = arith.constant 0 : i32
    %c0_i32_1 = arith.constant 0 : i32
    return %c0_i32, %c0_i32_0 : i32, i32
  }
  func.func @transform_12(%arg0: i32) -> (i32, i32, i32) {
    %c0_i32 = arith.constant 0 : i32
    %c0_i32_0 = arith.constant 0 : i32
    %c0_i32_1 = arith.constant 0 : i32
    %c0_i32_2 = arith.constant 0 : i32
    return %c0_i32, %c0_i32_0, %c0_i32_1 : i32, i32, i32
  }
  func.func @transform_13(%arg0: i32) -> (i32, i32) {
    %c0_i32 = arith.constant 0 : i32
    %c0_i32_0 = arith.constant 0 : i32
    %c0_i32_1 = arith.constant 0 : i32
    return %c0_i32, %c0_i32_0 : i32, i32
  }
  func.func @transform_14(%arg0: i32) -> (i32, i32, i32) {
    %c0_i32 = arith.constant 0 : i32
    %c0_i32_0 = arith.constant 0 : i32
    %c0_i32_1 = arith.constant 0 : i32
    %c0_i32_2 = arith.constant 0 : i32
    return %c0_i32, %c0_i32_0, %c0_i32_1 : i32, i32, i32
  }
  func.func @transform_15(%arg0: i32) -> (i32, i32) {
    %c0_i32 = arith.constant 0 : i32
    %c0_i32_0 = arith.constant 0 : i32
    %c0_i32_1 = arith.constant 0 : i32
    return %c0_i32, %c0_i32_0 : i32, i32
  }
  func.func @transform_16(%arg0: i32) -> (i32, i32, i32) {
    %c0_i32 = arith.constant 0 : i32
    %c0_i32_0 = arith.constant 0 : i32
    %c0_i32_1 = arith.constant 0 : i32
    %c0_i32_2 = arith.constant 0 : i32
    return %c0_i32, %c0_i32_0, %c0_i32_1 : i32, i32, i32
  }
  func.func @transform_17(%arg0: i32) -> (i32, i32) {
    %c0_i32 = arith.constant 0 : i32
    %c0_i32_0 = arith.constant 0 : i32
    %c0_i32_1 = arith.constant 0 : i32
    return %c0_i32, %c0_i32_0 : i32, i32
  }
  func.func @transform_18(%arg0: i32) -> (i32, i32, i32) {
    %c0_i32 = arith.constant 0 : i32
    %c0_i32_0 = arith.constant 0 : i32
    %c0_i32_1 = arith.constant 0 : i32
    %c0_i32_2 = arith.constant 0 : i32
    return %c0_i32, %c0_i32_0, %c0_i32_1 : i32, i32, i32
  }
  func.func @transform_19(%arg0: i32) -> (i32, i32) {
    %c0_i32 = arith.constant 0 : i32
    %c0_i32_0 = arith.constant 0 : i32
    %c0_i32_1 = arith.constant 0 : i32
    return %c0_i32, %c0_i32_0 : i32, i32
  }
  func.func @transform_20(%arg0: i32) -> (i32, i32, i32) {
    %c0_i32 = arith.constant 0 : i32
    %c0_i32_0 = arith.constant 0 : i32
    %c0_i32_1 = arith.constant 0 : i32
    %c0_i32_2 = arith.constant 0 : i32
    return %c0_i32, %c0_i32_0, %c0_i32_1 : i32, i32, i32
  }
  func.func @transform_21(%arg0: i32) -> (i32, i32) {
    %c0_i32 = arith.constant 0 : i32
    %c0_i32_0 = arith.constant 0 : i32
    %c0_i32_1 = arith.constant 0 : i32
    return %c0_i32, %c0_i32_0 : i32, i32
  }
  func.func @transform_22(%arg0: i32) -> (i32, i32, i32) {
    %c0_i32 = arith.constant 0 : i32
    %c0_i32_0 = arith.constant 0 : i32
    %c0_i32_1 = arith.constant 0 : i32
    %c0_i32_2 = arith.constant 0 : i32
    return %c0_i32, %c0_i32_0, %c0_i32_1 : i32, i32, i32
  }
  func.func @transform_23(%arg0: i32) -> (i32, i32) {
    %c0_i32 = arith.constant 0 : i32
    %c0_i32_0 = arith.constant 0 : i32
    %c0_i32_1 = arith.constant 0 : i32
    return %c0_i32, %c0_i32_0 : i32, i32
  }
  func.func @transform_24(%arg0: i32) -> (i32, i32, i32) {
    %c0_i32 = arith.constant 0 : i32
    %c0_i32_0 = arith.constant 0 : i32
    %c0_i32_1 = arith.constant 0 : i32
    %c0_i32_2 = arith.constant 0 : i32
    return %c0_i32, %c0_i32_0, %c0_i32_1 : i32, i32, i32
  }
  func.func @transform_25(%arg0: i32) -> (i32, i32) {
    %c0_i32 = arith.constant 0 : i32
    %c0_i32_0 = arith.constant 0 : i32
    %c0_i32_1 = arith.constant 0 : i32
    return %c0_i32, %c0_i32_0 : i32, i32
  }
  func.func @transform_26(%arg0: i32) -> (i32, i32, i32) {
    %c0_i32 = arith.constant 0 : i32
    %c0_i32_0 = arith.constant 0 : i32
    %c0_i32_1 = arith.constant 0 : i32
    %c0_i32_2 = arith.constant 0 : i32
    return %c0_i32, %c0_i32_0, %c0_i32_1 : i32, i32, i32
  }
  func.func @transform_27(%arg0: i32) -> (i32, i32) {
    %c0_i32 = arith.constant 0 : i32
    %c0_i32_0 = arith.constant 0 : i32
    %c0_i32_1 = arith.constant 0 : i32
    return %c0_i32, %c0_i32_0 : i32, i32
  }
  func.func @transform_28(%arg0: i32) -> (i32, i32, i32) {
    %c0_i32 = arith.constant 0 : i32
    %c0_i32_0 = arith.constant 0 : i32
    %c0_i32_1 = arith.constant 0 : i32
    %c0_i32_2 = arith.constant 0 : i32
    return %c0_i32, %c0_i32_0, %c0_i32_1 : i32, i32, i32
  }
  func.func @transform_29(%arg0: i32) -> (i32, i32) {
    %c0_i32 = arith.constant 0 : i32
    %c0_i32_0 = arith.constant 0 : i32
    %c0_i32_1 = arith.constant 0 : i32
    return %c0_i32, %c0_i32_0 : i32, i32
  }
  func.func @transform_30(%arg0: i32) -> (i32, i32, i32) {
    %c0_i32 = arith.constant 0 : i32
    %c0_i32_0 = arith.constant 0 : i32
    %c0_i32_1 = arith.constant 0 : i32
    %c0_i32_2 = arith.constant 0 : i32
    return %c0_i32, %c0_i32_0, %c0_i32_1 : i32, i32, i32
  }
  func.func @transform_31(%arg0: i32) -> (i32, i32) {
    %c0_i32 = arith.constant 0 : i32
    %c0_i32_0 = arith.constant 0 : i32
    %c0_i32_1 = arith.constant 0 : i32
    return %c0_i32, %c0_i32_0 : i32, i32
  }
  func.func @transform_32(%arg0: i32) -> (i32, i32, i32) {
    %c0_i32 = arith.constant 0 : i32
    %c0_i32_0 = arith.constant 0 : i32
    %c0_i32_1 = arith.constant 0 : i32
    %c0_i32_2 = arith.constant 0 : i32
    return %c0_i32, %c0_i32_0, %c0_i32_1 : i32, i32, i32
  }
  func.func @transform_33(%arg0: i32) -> (i32, i32) {
    %c0_i32 = arith.constant 0 : i32
    %c0_i32_0 = arith.constant 0 : i32
    %c0_i32_1 = arith.constant 0 : i32
    return %c0_i32, %c0_i32_0 : i32, i32
  }
  func.func @transform_34(%arg0: i32) -> (i32, i32, i32) {
    %c0_i32 = arith.constant 0 : i32
    %c0_i32_0 = arith.constant 0 : i32
    %c0_i32_1 = arith.constant 0 : i32
    %c0_i32_2 = arith.constant 0 : i32
    return %c0_i32, %c0_i32_0, %c0_i32_1 : i32, i32, i32
  }
  func.func @transform_35(%arg0: i32) -> (i32, i32) {
    %c0_i32 = arith.constant 0 : i32
    %c0_i32_0 = arith.constant 0 : i32
    %c0_i32_1 = arith.constant 0 : i32
    return %c0_i32, %c0_i32_0 : i32, i32
  }
  func.func @transform_36(%arg0: i32) -> (i32, i32) {
    %c0_i32 = arith.constant 0 : i32
    %c0_i32_0 = arith.constant 0 : i32
    %c0_i32_1 = arith.constant 0 : i32
    return %c0_i32, %c0_i32_0 : i32, i32
  }
  func.func @transform_37(%arg0: i32) -> (i32, i32) {
    %c0_i32 = arith.constant 0 : i32
    %c0_i32_0 = arith.constant 0 : i32
    %c0_i32_1 = arith.constant 0 : i32
    return %c0_i32, %c0_i32_0 : i32, i32
  }
  func.func @transform_38(%arg0: i32) -> (i32, i32) {
    %c0_i32 = arith.constant 0 : i32
    %c0_i32_0 = arith.constant 0 : i32
    %c0_i32_1 = arith.constant 0 : i32
    return %c0_i32, %c0_i32_0 : i32, i32
  }
  func.func @transform_39(%arg0: i32) -> (i32, i32) {
    %c0_i32 = arith.constant 0 : i32
    %c0_i32_0 = arith.constant 0 : i32
    %c0_i32_1 = arith.constant 0 : i32
    return %c0_i32, %c0_i32_0 : i32, i32
  }
  func.func @transform_40(%arg0: i32) -> (i32, i32, i32) {
    %c0_i32 = arith.constant 0 : i32
    %c0_i32_0 = arith.constant 0 : i32
    %c0_i32_1 = arith.constant 0 : i32
    return %arg0, %c0_i32, %c0_i32_0 : i32, i32, i32
  }
}

</mosaic_0001>

<llo_original>
// kernel: model_forward.1
$region0: #{model_forward.1}
  #allocation0 [shape = 'u32[]', space=smem, size = 0x4, offset = 0x4, fixed_abs, tag = 'smem constant byte address 0x4 - core index']
  #allocation1 [shape = 'u32[144,128]{1,0:T(1,128)}', space=vmem, size = 0x12000, scoped, tag = 'internal scratch']
  %s0 = inlined_call_operand.smem [shape: u32[41], index: -1, kind: input, shape index: {}]
  %s1 = sld [smem:[%s0]]
  %s2 = scalar_lea.smem %s0, 1
  %s3 = sld [smem:[%s2]]
  %s4 = scalar_lea.smem %s0, 2
  %s5 = sld [smem:[%s4]]
  %s6 = scalar_lea.smem %s0, 3
  %s7 = sld [smem:[%s6]]
  %s8 = scalar_lea.smem %s0, 4
  %s9 = sld [smem:[%s8]]
  %s10 = scalar_lea.smem %s0, 5
  %s11 = sld [smem:[%s10]]
  %s12 = scalar_lea.smem %s0, 6
  %s13 = sld [smem:[%s12]]
  %s14 = scalar_lea.smem %s0, 7
  %s15 = sld [smem:[%s14]]
  %s16 = scalar_lea.smem %s0, 8
  %s17 = sld [smem:[%s16]]
  %s18 = scalar_lea.smem %s0, 9
  %s19 = sld [smem:[%s18]]
  %s20 = scalar_lea.smem %s0, 10
  %s21 = sld [smem:[%s20]]
  %s22 = scalar_lea.smem %s0, 11
  %s23 = sld [smem:[%s22]]
  %s24 = scalar_lea.smem %s0, 12
  %s25 = sld [smem:[%s24]]
  %s26 = scalar_lea.smem %s0, 13
  %s27 = sld [smem:[%s26]]
  %s28 = scalar_lea.smem %s0, 14
  %s29 = sld [smem:[%s28]]
  %s30 = scalar_lea.smem %s0, 15
  %s31 = sld [smem:[%s30]]
  %s32 = scalar_lea.smem %s0, 16
  %s33 = sld [smem:[%s32]]
  %s34 = scalar_lea.smem %s0, 17
  %s35 = sld [smem:[%s34]]
  %s36 = scalar_lea.smem %s0, 18
  %s37 = sld [smem:[%s36]]
  %s38 = scalar_lea.smem %s0, 19
  %s39 = sld [smem:[%s38]]
  %s40 = scalar_lea.smem %s0, 20
  %s41 = sld [smem:[%s40]]
  %s42 = scalar_lea.smem %s0, 21
  %s43 = sld [smem:[%s42]]
  %s44 = scalar_lea.smem %s0, 22
  %s45 = sld [smem:[%s44]]
  %s46 = scalar_lea.smem %s0, 23
  %s47 = sld [smem:[%s46]]
  %s48 = scalar_lea.smem %s0, 24
  %s49 = sld [smem:[%s48]]
  %s50 = scalar_lea.smem %s0, 25
  %s51 = sld [smem:[%s50]]
  %s52 = scalar_lea.smem %s0, 26
  %s53 = sld [smem:[%s52]]
  %s54 = scalar_lea.smem %s0, 27
  %s55 = sld [smem:[%s54]]
  %s56 = scalar_lea.smem %s0, 28
  %s57 = sld [smem:[%s56]]
  %s58 = scalar_lea.smem %s0, 29
  %s59 = sld [smem:[%s58]]
  %s60 = scalar_lea.smem %s0, 30
  %s61 = sld [smem:[%s60]]
  %s62 = scalar_lea.smem %s0, 31
  %s63 = sld [smem:[%s62]]
  %s64 = scalar_lea.smem %s0, 32
  %s65 = sld [smem:[%s64]]
  %s66 = scalar_lea.smem %s0, 33
  %s67 = sld [smem:[%s66]]
  %s68 = scalar_lea.smem %s0, 34
  %s69 = sld [smem:[%s68]]
  %s70 = scalar_lea.smem %s0, 35
  %s71 = sld [smem:[%s70]]
  %s72 = scalar_lea.smem %s0, 36
  %s73 = sld [smem:[%s72]]
  %s74 = scalar_lea.smem %s0, 37
  %s75 = sld [smem:[%s74]]
  %s76 = scalar_lea.smem %s0, 38
  %s77 = sld [smem:[%s76]]
  %s78 = scalar_lea.smem %s0, 39
  %s79 = sld [smem:[%s78]]
  %s80 = scalar_lea.smem %s0, 40
  %s81 = sld [smem:[%s80]]
  %s82 = sld [smem:[#allocation0]]
  $region277: #{model_forward.1} parent=0
    _
  %s84 = ssub.s32 1, %s82
  %s85 = scalar_select 0, %s84, %s82
  $region1: #{model_forward.1} parent=0
    #allocation2 [shape = 'u8[1024]{0}', space=vmem, size = 0x400, scoped, tag = 'input window, operand 5, single buffered']
    #allocation3 [shape = 's32[2]{0}', space=sflag, size = 0x8, scoped, tag = 'scoped memory for model_forward.1']
    #allocation4 [shape = 's32[2]{0}', space=sflag, size = 0x8, scoped, tag = 'scoped memory for model_forward.1']
    #allocation5 [shape = 'u8[131072]{0}', space=vmem, size = 0x20000, scoped, tag = 'input window, operand 6, single buffered']
    #allocation6 [shape = 's32[1]{0}', space=sflag, size = 0x4, scoped, tag = 'scoped memory for model_forward.1']
    #allocation7 [shape = 'u8[1024]{0}', space=vmem, size = 0x400, scoped, tag = 'input window, operand 7, single buffered']
    #allocation8 [shape = 'u8[131072]{0}', space=vmem, size = 0x20000, scoped, tag = 'input window, operand 8, single buffered']
    #allocation9 [shape = 's32[1]{0}', space=sflag, size = 0x4, scoped, tag = 'scoped memory for model_forward.1']
    #allocation10 [shape = 'u8[1024]{0}', space=vmem, size = 0x400, scoped, tag = 'input window, operand 9, single buffered']
    #allocation11 [shape = 'u8[131072]{0}', space=vmem, size = 0x20000, scoped, tag = 'input window, operand 10, single buffered']
    #allocation12 [shape = 's32[1]{0}', space=sflag, size = 0x4, scoped, tag = 'scoped memory for model_forward.1']
    #allocation13 [shape = 'u8[1024]{0}', space=vmem, size = 0x400, scoped, tag = 'input window, operand 11, single buffered']
    #allocation14 [shape = 'u8[131072]{0}', space=vmem, size = 0x20000, scoped, tag = 'input window, operand 12, single buffered']
    #allocation15 [shape = 's32[1]{0}', space=sflag, size = 0x4, scoped, tag = 'scoped memory for model_forward.1']
    #allocation16 [shape = 'u8[1024]{0}', space=vmem, size = 0x400, scoped, tag = 'input window, operand 13, single buffered']
    #allocation17 [shape = 'u8[131072]{0}', space=vmem, size = 0x20000, scoped, tag = 'input window, operand 14, single buffered']
    #allocation18 [shape = 's32[1]{0}', space=sflag, size = 0x4, scoped, tag = 'scoped memory for model_forward.1']
    #allocation19 [shape = 'u8[1024]{0}', space=vmem, size = 0x400, scoped, tag = 'input window, operand 15, single buffered']
    #allocation20 [shape = 'u8[262144]{0}', space=vmem, size = 0x40000, scoped, tag = 'input window, operand 16, single buffered']
    #allocation21 [shape = 's32[1]{0}', space=sflag, size = 0x4, scoped, tag = 'scoped memory for model_forward.1']
    #allocation22 [shape = 'u8[524288]{0}', space=vmem, size = 0x80000, scoped, tag = 'input window, operand 18, single buffered']
    #allocation23 [shape = 'u8[524288]{0}', space=vmem, size = 0x80000, scoped, tag = 'input window, operand 20, single buffered']
    #allocation24 [shape = 's32[1]{0}', space=sflag, size = 0x4, scoped, tag = 'scoped memory for model_forward.1']
    #allocation25 [shape = 'u8[524288]{0}', space=vmem, size = 0x80000, scoped, tag = 'input window, operand 22, single buffered']
    #allocation26 [shape = 'u8[524288]{0}', space=vmem, size = 0x80000, scoped, tag = 'input window, operand 24, single buffered']
    #allocation27 [shape = 's32[1]{0}', space=sflag, size = 0x4, scoped, tag = 'scoped memory for model_forward.1']
    #allocation28 [shape = 'u8[524288]{0}', space=vmem, size = 0x80000, scoped, tag = 'input window, operand 26, single buffered']
    #allocation29 [shape = 'u8[524288]{0}', space=vmem, size = 0x80000, scoped, tag = 'input window, operand 28, single buffered']
    #allocation30 [shape = 's32[1]{0}', space=sflag, size = 0x4, scoped, tag = 'scoped memory for model_forward.1']
    #allocation31 [shape = 'u8[524288]{0}', space=vmem, size = 0x80000, scoped, tag = 'input window, operand 30, single buffered']
    #allocation32 [shape = 'u8[524288]{0}', space=vmem, size = 0x80000, scoped, tag = 'input window, operand 32, single buffered']
    #allocation33 [shape = 's32[1]{0}', space=sflag, size = 0x4, scoped, tag = 'scoped memory for model_forward.1']
    #allocation34 [shape = 'u8[1048576]{0}', space=vmem, size = 0x100000, scoped, tag = 'input window, operand 36, single buffered']
    #allocation35 [shape = 'u8[1024]{0}', space=vmem, size = 0x400, scoped, tag = 'output window, operand 0']
    %86 = vsyncpa [#allocation3], 0
    %87 = vsyncpa [#allocation6], 0
    %88 = vsyncpa [#allocation9], 0
    %89 = vsyncpa [#allocation12], 0
    %90 = vsyncpa [#allocation15], 0
    %91 = vsyncpa [#allocation18], 0
    %92 = vsyncpa [#allocation21], 0
    %93 = vsyncpa [#allocation24], 0
    %94 = vsyncpa [#allocation27], 0
    %95 = vsyncpa [#allocation30], 0
    %96 = vsyncpa [#allocation33], 0
    %97 = vsyncpa [#allocation4], 0
    %s98 = scalar_lea.sflag [#allocation4], 1
    %99 = vsyncpa %s98, 0
    loop: start=0, step=1, limit=4
    $region2: #{model_forward.1} parent=1 // loop_pre_header
      _
    $region3: #{model_forward.1} parent=1 // loop_header
      %s101 = sphi 0, %s105
      %p102 = scmp.ge.s32.totalorder %s101, 4
      %s111 = sphi 0, %s113
      %s114 = sphi 0, %s111
      %s115 = sphi 0, %s114
      %s131 = sphi 0, %s115
      %s137 = sphi 0, %s139
      %s140 = sphi 0, %s137
      %s141 = sphi 0, %s140
      %s157 = sphi 0, %s141
      %s161 = sphi 0, %s161
      %s163 = sphi 0, %s161
      %s164 = sphi 0, %s163
      %s178 = sphi 0, %s164
      %s182 = sphi 0, %s182
      %s184 = sphi 0, %s182
      %s185 = sphi 0, %s184
      %s199 = sphi 0, %s185
      %s203 = sphi 0, %s203
      %s205 = sphi 0, %s203
      %s206 = sphi 0, %s205
      %s220 = sphi 0, %s206
      %s224 = sphi 0, %s224
      %s226 = sphi 0, %s224
      %s227 = sphi 0, %s226
      %s241 = sphi 0, %s227
      %s245 = sphi 0, %s245
      %s247 = sphi 0, %s245
      %s248 = sphi 0, %s247
      %s262 = sphi 0, %s248
      %s266 = sphi 0, %s266
      %s268 = sphi 0, %s266
      %s269 = sphi 0, %s268
      %s283 = sphi 0, %s269
      %s287 = sphi 0, %s287
      %s289 = sphi 0, %s287
      %s290 = sphi 0, %s289
      %s304 = sphi 0, %s290
      %s308 = sphi 0, %s308
      %s310 = sphi 0, %s308
      %s311 = sphi 0, %s310
      %s325 = sphi 0, %s311
      %s329 = sphi 0, %s329
      %s331 = sphi 0, %s329
      %s332 = sphi 0, %s331
      %s346 = sphi 0, %s332
      %s350 = sphi 0, %s350
      %s352 = sphi 0, %s350
      %s353 = sphi 0, %s352
      %s367 = sphi 0, %s353
      %s371 = sphi 0, %s371
      %s373 = sphi 0, %s371
      %s374 = sphi 0, %s373
      %s388 = sphi 0, %s374
      %s392 = sphi 0, %s392
      %s394 = sphi 0, %s392
      %s395 = sphi 0, %s394
      %s409 = sphi 0, %s395
      %s413 = sphi 0, %s413
      %s415 = sphi 0, %s413
      %s416 = sphi 0, %s415
      %s430 = sphi 0, %s416
      %s434 = sphi 0, %s434
      %s436 = sphi 0, %s434
      %s437 = sphi 0, %s436
      %s451 = sphi 0, %s437
      %s455 = sphi 0, %s455
      %s457 = sphi 0, %s455
      %s458 = sphi 0, %s457
      %s472 = sphi 0, %s458
      %s476 = sphi 0, %s476
      %s478 = sphi 0, %s476
      %s479 = sphi 0, %s478
      %s493 = sphi 0, %s479
      %s497 = sphi 0, %s497
      %s499 = sphi 0, %s497
      %s500 = sphi 0, %s499
      %s514 = sphi 0, %s500
      %s518 = sphi 0, %s518
      %s520 = sphi 0, %s518
      %s521 = sphi 0, %s520
      %s535 = sphi 0, %s521
      %s539 = sphi 0, %s539
      %s541 = sphi 0, %s539
      %s542 = sphi 0, %s541
      %s556 = sphi 0, %s542
      %s560 = sphi 0, %s560
      %s562 = sphi 0, %s560
      %s563 = sphi 0, %s562
      %s577 = sphi 0, %s563
      %s581 = sphi 0, %s581
      %s583 = sphi 0, %s581
      %s584 = sphi 0, %s583
      %s598 = sphi 0, %s584
      %s602 = sphi 0, %s602
      %s604 = sphi 0, %s602
      %s605 = sphi 0, %s604
      %s619 = sphi 0, %s605
      %s623 = sphi 0, %s623
      %s625 = sphi 0, %s623
      %s626 = sphi 0, %s625
      %s640 = sphi 0, %s626
      %s644 = sphi 0, %s644
      %s646 = sphi 0, %s644
      %s647 = sphi 0, %s646
      %s661 = sphi 0, %s647
      %s665 = sphi 0, %s665
      %s667 = sphi 0, %s665
      %s668 = sphi 0, %s667
      %s682 = sphi 0, %s668
      %s686 = sphi 0, %s686
      %s688 = sphi 0, %s686
      %s689 = sphi 0, %s688
      %s703 = sphi 0, %s689
      %s707 = sphi 0, %s707
      %s709 = sphi 0, %s707
      %s710 = sphi 0, %s709
      %s724 = sphi 0, %s710
      %s728 = sphi 0, %s728
      %s730 = sphi 0, %s728
      %s731 = sphi 0, %s730
      %s745 = sphi 0, %s731
      %s749 = sphi 0, %s749
      %s751 = sphi 0, %s749
      %s752 = sphi 0, %s751
      %s766 = sphi 0, %s752
      %s770 = sphi 0, %s770
      %s772 = sphi 0, %s770
      %s773 = sphi 0, %s772
      %s787 = sphi 0, %s773
      %s791 = sphi 0, %s791
      %s793 = sphi 0, %s791
      %s794 = sphi 0, %s793
      %s808 = sphi 0, %s794
      %s812 = sphi 0, %s812
      %s814 = sphi 0, %s812
      %s815 = sphi 0, %s814
      %s829 = sphi 0, %s815
      %s833 = sphi 0, %s833
      %s835 = sphi 0, %s833
      %s836 = sphi 0, %s835
      %s850 = sphi 0, %s836
      %s854 = sphi 0, %s854
      %s856 = sphi 0, %s854
      %s857 = sphi 0, %s856
      %s871 = sphi 0, %s857
      %s875 = sphi 0, %s875
      %s877 = sphi 0, %s875
      %s878 = sphi 0, %s877
      %s892 = sphi 0, %s878
      %s896 = sphi 0, %s896
      %s898 = sphi 0, %s896
      %s899 = sphi 0, %s898
      %s913 = sphi 0, %s899
      %s917 = sphi 0, %s917
      %s919 = sphi 0, %s917
      %s920 = sphi 0, %s919
      %s934 = sphi 0, %s920
      %s938 = sphi 0, %s938
      %s940 = sphi 0, %s938
      %s941 = sphi 0, %s940
      %s955 = sphi 0, %s941
      %s961 = sphi 0, %s963
      %s964 = sphi 0, %s961
      %s965 = sphi 0, %s964
      %s981 = sphi 0, %s965
    $region4: #{model_forward.1} parent=1 // loop_header_branch
      %104 = sbr.rel (%p102) target = $region8
    $region5: #{model_forward.1} parent=1 // loop_body
      %s106 = ssub.s32 %s101, 1
      %s107 = ssub.s32 %s101, 2
      %s108 = sadd.s32 %s101, 1
      %s109 = ssub.s32 %s101, %s108
      %p110 = scmp.eq.s32.totalorder %s109, 0
      %s112 = sadd.s32 %s111, 1
      %s113 = scalar_select %p110, %s111, %s112
      %p116 = pneg %p110
      %p117 = scmp.eq.s32.totalorder %s101, 1
      %p118 = por %p116, %p117
      %p119 = scmp.ne.s32.totalorder %s111, %s114
      %p120 = scmp.eq.s32.totalorder %s101, 0
      %p121 = por %p119, %p120
      %p122 = scmp.ne.s32.totalorder %s111, %s114
      %p123 = scmp.eq.s32.totalorder %s106, 1
      %p124 = por %p122, %p123
      %p125 = scmp.ne.s32.totalorder %s114, %s115
      %p126 = scmp.eq.s32.totalorder %s106, 0
      %p127 = por %p125, %p126
      %p128 = scmp.ne.s32.totalorder %s114, %s115
      %p129 = scmp.eq.s32.totalorder %s107, 1
      %p130 = por %p128, %p129
      %p132 = scmp.ne.s32.totalorder %s115, %s131
      %p133 = scmp.eq.s32.totalorder %s107, 0
      %p134 = por %p132, %p133
      %s135 = ssub.s32 %s101, %s108
      %p136 = scmp.eq.s32.totalorder %s135, 0
      %s138 = sadd.s32 %s137, 1
      %s139 = scalar_select %p136, %s137, %s138
      %p142 = pneg %p136
      %p143 = scmp.eq.s32.totalorder %s101, 1
      %p144 = por %p142, %p143
      %p145 = scmp.ne.s32.totalorder %s137, %s140
      %p146 = scmp.eq.s32.totalorder %s101, 0
      %p147 = por %p145, %p146
      %p148 = scmp.ne.s32.totalorder %s137, %s140
      %p149 = scmp.eq.s32.totalorder %s106, 1
      %p150 = por %p148, %p149
      %p151 = scmp.ne.s32.totalorder %s140, %s141
      %p152 = scmp.eq.s32.totalorder %s106, 0
      %p153 = por %p151, %p152
      %p154 = scmp.ne.s32.totalorder %s140, %s141
      %p155 = scmp.eq.s32.totalorder %s107, 1
      %p156 = por %p154, %p155
      %p158 = scmp.ne.s32.totalorder %s141, %s157
      %p159 = scmp.eq.s32.totalorder %s107, 0
      %p160 = por %p158, %p159
      %s162 = sadd.s32 %s161, 1
      %p165 = scmp.eq.s32.totalorder %s101, 1
      %p166 = scmp.ne.s32.totalorder %s161, %s163
      %p167 = scmp.eq.s32.totalorder %s101, 0
      %p168 = por %p166, %p167
      %p169 = scmp.ne.s32.totalorder %s161, %s163
      %p170 = scmp.eq.s32.totalorder %s106, 1
      %p171 = por %p169, %p170
      %p172 = scmp.ne.s32.totalorder %s163, %s164
      %p173 = scmp.eq.s32.totalorder %s106, 0
      %p174 = por %p172, %p173
      %p175 = scmp.ne.s32.totalorder %s163, %s164
      %p176 = scmp.eq.s32.totalorder %s107, 1
      %p177 = por %p175, %p176
      %p179 = scmp.ne.s32.totalorder %s164, %s178
      %p180 = scmp.eq.s32.totalorder %s107, 0
      %p181 = por %p179, %p180
      %s183 = sadd.s32 %s182, 1
      %p186 = scmp.eq.s32.totalorder %s101, 1
      %p187 = scmp.ne.s32.totalorder %s182, %s184
      %p188 = scmp.eq.s32.totalorder %s101, 0
      %p189 = por %p187, %p188
      %p190 = scmp.ne.s32.totalorder %s182, %s184
      %p191 = scmp.eq.s32.totalorder %s106, 1
      %p192 = por %p190, %p191
      %p193 = scmp.ne.s32.totalorder %s184, %s185
      %p194 = scmp.eq.s32.totalorder %s106, 0
      %p195 = por %p193, %p194
      %p196 = scmp.ne.s32.totalorder %s184, %s185
      %p197 = scmp.eq.s32.totalorder %s107, 1
      %p198 = por %p196, %p197
      %p200 = scmp.ne.s32.totalorder %s185, %s199
      %p201 = scmp.eq.s32.totalorder %s107, 0
      %p202 = por %p200, %p201
      %s204 = sadd.s32 %s203, 1
      %p207 = scmp.eq.s32.totalorder %s101, 1
      %p208 = scmp.ne.s32.totalorder %s203, %s205
      %p209 = scmp.eq.s32.totalorder %s101, 0
      %p210 = por %p208, %p209
      %p211 = scmp.ne.s32.totalorder %s203, %s205
      %p212 = scmp.eq.s32.totalorder %s106, 1
      %p213 = por %p211, %p212
      %p214 = scmp.ne.s32.totalorder %s205, %s206
      %p215 = scmp.eq.s32.totalorder %s106, 0
      %p216 = por %p214, %p215
      %p217 = scmp.ne.s32.totalorder %s205, %s206
      %p218 = scmp.eq.s32.totalorder %s107, 1
      %p219 = por %p217, %p218
      %p221 = scmp.ne.s32.totalorder %s206, %s220
      %p222 = scmp.eq.s32.totalorder %s107, 0
      %p223 = por %p221, %p222
      %s225 = sadd.s32 %s224, 1
      %p228 = scmp.eq.s32.totalorder %s101, 1
      %p229 = scmp.ne.s32.totalorder %s224, %s226
      %p230 = scmp.eq.s32.totalorder %s101, 0
      %p231 = por %p229, %p230
      %p232 = scmp.ne.s32.totalorder %s224, %s226
      %p233 = scmp.eq.s32.totalorder %s106, 1
      %p234 = por %p232, %p233
      %p235 = scmp.ne.s32.totalorder %s226, %s227
      %p236 = scmp.eq.s32.totalorder %s106, 0
      %p237 = por %p235, %p236
      %p238 = scmp.ne.s32.totalorder %s226, %s227
      %p239 = scmp.eq.s32.totalorder %s107, 1
      %p240 = por %p238, %p239
      %p242 = scmp.ne.s32.totalorder %s227, %s241
      %p243 = scmp.eq.s32.totalorder %s107, 0
      %p244 = por %p242, %p243
      %s246 = sadd.s32 %s245, 1
      %p249 = scmp.eq.s32.totalorder %s101, 1
      %p250 = scmp.ne.s32.totalorder %s245, %s247
      %p251 = scmp.eq.s32.totalorder %s101, 0
      %p252 = por %p250, %p251
      %p253 = scmp.ne.s32.totalorder %s245, %s247
      %p254 = scmp.eq.s32.totalorder %s106, 1
      %p255 = por %p253, %p254
      %p256 = scmp.ne.s32.totalorder %s247, %s248
      %p257 = scmp.eq.s32.totalorder %s106, 0
      %p258 = por %p256, %p257
      %p259 = scmp.ne.s32.totalorder %s247, %s248
      %p260 = scmp.eq.s32.totalorder %s107, 1
      %p261 = por %p259, %p260
      %p263 = scmp.ne.s32.totalorder %s248, %s262
      %p264 = scmp.eq.s32.totalorder %s107, 0
      %p265 = por %p263, %p264
      %s267 = sadd.s32 %s266, 1
      %p270 = scmp.eq.s32.totalorder %s101, 1
      %p271 = scmp.ne.s32.totalorder %s266, %s268
      %p272 = scmp.eq.s32.totalorder %s101, 0
      %p273 = por %p271, %p272
      %p274 = scmp.ne.s32.totalorder %s266, %s268
      %p275 = scmp.eq.s32.totalorder %s106, 1
      %p276 = por %p274, %p275
      %p277 = scmp.ne.s32.totalorder %s268, %s269
      %p278 = scmp.eq.s32.totalorder %s106, 0
      %p279 = por %p277, %p278
      %p280 = scmp.ne.s32.totalorder %s268, %s269
      %p281 = scmp.eq.s32.totalorder %s107, 1
      %p282 = por %p280, %p281
      %p284 = scmp.ne.s32.totalorder %s269, %s283
      %p285 = scmp.eq.s32.totalorder %s107, 0
      %p286 = por %p284, %p285
      %s288 = sadd.s32 %s287, 1
      %p291 = scmp.eq.s32.totalorder %s101, 1
      %p292 = scmp.ne.s32.totalorder %s287, %s289
      %p293 = scmp.eq.s32.totalorder %s101, 0
      %p294 = por %p292, %p293
      %p295 = scmp.ne.s32.totalorder %s287, %s289
      %p296 = scmp.eq.s32.totalorder %s106, 1
      %p297 = por %p295, %p296
      %p298 = scmp.ne.s32.totalorder %s289, %s290
      %p299 = scmp.eq.s32.totalorder %s106, 0
      %p300 = por %p298, %p299
      %p301 = scmp.ne.s32.totalorder %s289, %s290
      %p302 = scmp.eq.s32.totalorder %s107, 1
      %p303 = por %p301, %p302
      %p305 = scmp.ne.s32.totalorder %s290, %s304
      %p306 = scmp.eq.s32.totalorder %s107, 0
      %p307 = por %p305, %p306
      %s309 = sadd.s32 %s308, 1
      %p312 = scmp.eq.s32.totalorder %s101, 1
      %p313 = scmp.ne.s32.totalorder %s308, %s310
      %p314 = scmp.eq.s32.totalorder %s101, 0
      %p315 = por %p313, %p314
      %p316 = scmp.ne.s32.totalorder %s308, %s310
      %p317 = scmp.eq.s32.totalorder %s106, 1
      %p318 = por %p316, %p317
      %p319 = scmp.ne.s32.totalorder %s310, %s311
      %p320 = scmp.eq.s32.totalorder %s106, 0
      %p321 = por %p319, %p320
      %p322 = scmp.ne.s32.totalorder %s310, %s311
      %p323 = scmp.eq.s32.totalorder %s107, 1
      %p324 = por %p322, %p323
      %p326 = scmp.ne.s32.totalorder %s311, %s325
      %p327 = scmp.eq.s32.totalorder %s107, 0
      %p328 = por %p326, %p327
      %s330 = sadd.s32 %s329, 1
      %p333 = scmp.eq.s32.totalorder %s101, 1
      %p334 = scmp.ne.s32.totalorder %s329, %s331
      %p335 = scmp.eq.s32.totalorder %s101, 0
      %p336 = por %p334, %p335
      %p337 = scmp.ne.s32.totalorder %s329, %s331
      %p338 = scmp.eq.s32.totalorder %s106, 1
      %p339 = por %p337, %p338
      %p340 = scmp.ne.s32.totalorder %s331, %s332
      %p341 = scmp.eq.s32.totalorder %s106, 0
      %p342 = por %p340, %p341
      %p343 = scmp.ne.s32.totalorder %s331, %s332
      %p344 = scmp.eq.s32.totalorder %s107, 1
      %p345 = por %p343, %p344
      %p347 = scmp.ne.s32.totalorder %s332, %s346
      %p348 = scmp.eq.s32.totalorder %s107, 0
      %p349 = por %p347, %p348
      %s351 = sadd.s32 %s350, 1
      %p354 = scmp.eq.s32.totalorder %s101, 1
      %p355 = scmp.ne.s32.totalorder %s350, %s352
      %p356 = scmp.eq.s32.totalorder %s101, 0
      %p357 = por %p355, %p356
      %p358 = scmp.ne.s32.totalorder %s350, %s352
      %p359 = scmp.eq.s32.totalorder %s106, 1
      %p360 = por %p358, %p359
      %p361 = scmp.ne.s32.totalorder %s352, %s353
      %p362 = scmp.eq.s32.totalorder %s106, 0
      %p363 = por %p361, %p362
      %p364 = scmp.ne.s32.totalorder %s352, %s353
      %p365 = scmp.eq.s32.totalorder %s107, 1
      %p366 = por %p364, %p365
      %p368 = scmp.ne.s32.totalorder %s353, %s367
      %p369 = scmp.eq.s32.totalorder %s107, 0
      %p370 = por %p368, %p369
      %s372 = sadd.s32 %s371, 1
      %p375 = scmp.eq.s32.totalorder %s101, 1
      %p376 = scmp.ne.s32.totalorder %s371, %s373
      %p377 = scmp.eq.s32.totalorder %s101, 0
      %p378 = por %p376, %p377
      %p379 = scmp.ne.s32.totalorder %s371, %s373
      %p380 = scmp.eq.s32.totalorder %s106, 1
      %p381 = por %p379, %p380
      %p382 = scmp.ne.s32.totalorder %s373, %s374
      %p383 = scmp.eq.s32.totalorder %s106, 0
      %p384 = por %p382, %p383
      %p385 = scmp.ne.s32.totalorder %s373, %s374
      %p386 = scmp.eq.s32.totalorder %s107, 1
      %p387 = por %p385, %p386
      %p389 = scmp.ne.s32.totalorder %s374, %s388
      %p390 = scmp.eq.s32.totalorder %s107, 0
      %p391 = por %p389, %p390
      %s393 = sadd.s32 %s392, 1
      %p396 = scmp.eq.s32.totalorder %s101, 1
      %p397 = scmp.ne.s32.totalorder %s392, %s394
      %p398 = scmp.eq.s32.totalorder %s101, 0
      %p399 = por %p397, %p398
      %p400 = scmp.ne.s32.totalorder %s392, %s394
      %p401 = scmp.eq.s32.totalorder %s106, 1
      %p402 = por %p400, %p401
      %p403 = scmp.ne.s32.totalorder %s394, %s395
      %p404 = scmp.eq.s32.totalorder %s106, 0
      %p405 = por %p403, %p404
      %p406 = scmp.ne.s32.totalorder %s394, %s395
      %p407 = scmp.eq.s32.totalorder %s107, 1
      %p408 = por %p406, %p407
      %p410 = scmp.ne.s32.totalorder %s395, %s409
      %p411 = scmp.eq.s32.totalorder %s107, 0
      %p412 = por %p410, %p411
      %s414 = sadd.s32 %s413, 1
      %p417 = scmp.eq.s32.totalorder %s101, 1
      %p418 = scmp.ne.s32.totalorder %s413, %s415
      %p419 = scmp.eq.s32.totalorder %s101, 0
      %p420 = por %p418, %p419
      %p421 = scmp.ne.s32.totalorder %s413, %s415
      %p422 = scmp.eq.s32.totalorder %s106, 1
      %p423 = por %p421, %p422
      %p424 = scmp.ne.s32.totalorder %s415, %s416
      %p425 = scmp.eq.s32.totalorder %s106, 0
      %p426 = por %p424, %p425
      %p427 = scmp.ne.s32.totalorder %s415, %s416
      %p428 = scmp.eq.s32.totalorder %s107, 1
      %p429 = por %p427, %p428
      %p431 = scmp.ne.s32.totalorder %s416, %s430
      %p432 = scmp.eq.s32.totalorder %s107, 0
      %p433 = por %p431, %p432
      %s435 = sadd.s32 %s434, 1
      %p438 = scmp.eq.s32.totalorder %s101, 1
      %p439 = scmp.ne.s32.totalorder %s434, %s436
      %p440 = scmp.eq.s32.totalorder %s101, 0
      %p441 = por %p439, %p440
      %p442 = scmp.ne.s32.totalorder %s434, %s436
      %p443 = scmp.eq.s32.totalorder %s106, 1
      %p444 = por %p442, %p443
      %p445 = scmp.ne.s32.totalorder %s436, %s437
      %p446 = scmp.eq.s32.totalorder %s106, 0
      %p447 = por %p445, %p446
      %p448 = scmp.ne.s32.totalorder %s436, %s437
      %p449 = scmp.eq.s32.totalorder %s107, 1
      %p450 = por %p448, %p449
      %p452 = scmp.ne.s32.totalorder %s437, %s451
      %p453 = scmp.eq.s32.totalorder %s107, 0
      %p454 = por %p452, %p453
      %s456 = sadd.s32 %s455, 1
      %p459 = scmp.eq.s32.totalorder %s101, 1
      %p460 = scmp.ne.s32.totalorder %s455, %s457
      %p461 = scmp.eq.s32.totalorder %s101, 0
      %p462 = por %p460, %p461
      %p463 = scmp.ne.s32.totalorder %s455, %s457
      %p464 = scmp.eq.s32.totalorder %s106, 1
      %p465 = por %p463, %p464
      %p466 = scmp.ne.s32.totalorder %s457, %s458
      %p467 = scmp.eq.s32.totalorder %s106, 0
      %p468 = por %p466, %p467
      %p469 = scmp.ne.s32.totalorder %s457, %s458
      %p470 = scmp.eq.s32.totalorder %s107, 1
      %p471 = por %p469, %p470
      %p473 = scmp.ne.s32.totalorder %s458, %s472
      %p474 = scmp.eq.s32.totalorder %s107, 0
      %p475 = por %p473, %p474
      %s477 = sadd.s32 %s476, 1
      %p480 = scmp.eq.s32.totalorder %s101, 1
      %p481 = scmp.ne.s32.totalorder %s476, %s478
      %p482 = scmp.eq.s32.totalorder %s101, 0
      %p483 = por %p481, %p482
      %p484 = scmp.ne.s32.totalorder %s476, %s478
      %p485 = scmp.eq.s32.totalorder %s106, 1
      %p486 = por %p484, %p485
      %p487 = scmp.ne.s32.totalorder %s478, %s479
      %p488 = scmp.eq.s32.totalorder %s106, 0
      %p489 = por %p487, %p488
      %p490 = scmp.ne.s32.totalorder %s478, %s479
      %p491 = scmp.eq.s32.totalorder %s107, 1
      %p492 = por %p490, %p491
      %p494 = scmp.ne.s32.totalorder %s479, %s493
      %p495 = scmp.eq.s32.totalorder %s107, 0
      %p496 = por %p494, %p495
      %s498 = sadd.s32 %s497, 1
      %p501 = scmp.eq.s32.totalorder %s101, 1
      %p502 = scmp.ne.s32.totalorder %s497, %s499
      %p503 = scmp.eq.s32.totalorder %s101, 0
      %p504 = por %p502, %p503
      %p505 = scmp.ne.s32.totalorder %s497, %s499
      %p506 = scmp.eq.s32.totalorder %s106, 1
      %p507 = por %p505, %p506
      %p508 = scmp.ne.s32.totalorder %s499, %s500
      %p509 = scmp.eq.s32.totalorder %s106, 0
      %p510 = por %p508, %p509
      %p511 = scmp.ne.s32.totalorder %s499, %s500
      %p512 = scmp.eq.s32.totalorder %s107, 1
      %p513 = por %p511, %p512
      %p515 = scmp.ne.s32.totalorder %s500, %s514
      %p516 = scmp.eq.s32.totalorder %s107, 0
      %p517 = por %p515, %p516
      %s519 = sadd.s32 %s518, 1
      %p522 = scmp.eq.s32.totalorder %s101, 1
      %p523 = scmp.ne.s32.totalorder %s518, %s520
      %p524 = scmp.eq.s32.totalorder %s101, 0
      %p525 = por %p523, %p524
      %p526 = scmp.ne.s32.totalorder %s518, %s520
      %p527 = scmp.eq.s32.totalorder %s106, 1
      %p528 = por %p526, %p527
      %p529 = scmp.ne.s32.totalorder %s520, %s521
      %p530 = scmp.eq.s32.totalorder %s106, 0
      %p531 = por %p529, %p530
      %p532 = scmp.ne.s32.totalorder %s520, %s521
      %p533 = scmp.eq.s32.totalorder %s107, 1
      %p534 = por %p532, %p533
      %p536 = scmp.ne.s32.totalorder %s521, %s535
      %p537 = scmp.eq.s32.totalorder %s107, 0
      %p538 = por %p536, %p537
      %s540 = sadd.s32 %s539, 1
      %p543 = scmp.eq.s32.totalorder %s101, 1
      %p544 = scmp.ne.s32.totalorder %s539, %s541
      %p545 = scmp.eq.s32.totalorder %s101, 0
      %p546 = por %p544, %p545
      %p547 = scmp.ne.s32.totalorder %s539, %s541
      %p548 = scmp.eq.s32.totalorder %s106, 1
      %p549 = por %p547, %p548
      %p550 = scmp.ne.s32.totalorder %s541, %s542
      %p551 = scmp.eq.s32.totalorder %s106, 0
      %p552 = por %p550, %p551
      %p553 = scmp.ne.s32.totalorder %s541, %s542
      %p554 = scmp.eq.s32.totalorder %s107, 1
      %p555 = por %p553, %p554
      %p557 = scmp.ne.s32.totalorder %s542, %s556
      %p558 = scmp.eq.s32.totalorder %s107, 0
      %p559 = por %p557, %p558
      %s561 = sadd.s32 %s560, 1
      %p564 = scmp.eq.s32.totalorder %s101, 1
      %p565 = scmp.ne.s32.totalorder %s560, %s562
      %p566 = scmp.eq.s32.totalorder %s101, 0
      %p567 = por %p565, %p566
      %p568 = scmp.ne.s32.totalorder %s560, %s562
      %p569 = scmp.eq.s32.totalorder %s106, 1
      %p570 = por %p568, %p569
      %p571 = scmp.ne.s32.totalorder %s562, %s563
      %p572 = scmp.eq.s32.totalorder %s106, 0
      %p573 = por %p571, %p572
      %p574 = scmp.ne.s32.totalorder %s562, %s563
      %p575 = scmp.eq.s32.totalorder %s107, 1
      %p576 = por %p574, %p575
      %p578 = scmp.ne.s32.totalorder %s563, %s577
      %p579 = scmp.eq.s32.totalorder %s107, 0
      %p580 = por %p578, %p579
      %s582 = sadd.s32 %s581, 1
      %p585 = scmp.eq.s32.totalorder %s101, 1
      %p586 = scmp.ne.s32.totalorder %s581, %s583
      %p587 = scmp.eq.s32.totalorder %s101, 0
      %p588 = por %p586, %p587
      %p589 = scmp.ne.s32.totalorder %s581, %s583
      %p590 = scmp.eq.s32.totalorder %s106, 1
      %p591 = por %p589, %p590
      %p592 = scmp.ne.s32.totalorder %s583, %s584
      %p593 = scmp.eq.s32.totalorder %s106, 0
      %p594 = por %p592, %p593
      %p595 = scmp.ne.s32.totalorder %s583, %s584
      %p596 = scmp.eq.s32.totalorder %s107, 1
      %p597 = por %p595, %p596
      %p599 = scmp.ne.s32.totalorder %s584, %s598
      %p600 = scmp.eq.s32.totalorder %s107, 0
      %p601 = por %p599, %p600
      %s603 = sadd.s32 %s602, 1
      %p606 = scmp.eq.s32.totalorder %s101, 1
      %p607 = scmp.ne.s32.totalorder %s602, %s604
      %p608 = scmp.eq.s32.totalorder %s101, 0
      %p609 = por %p607, %p608
      %p610 = scmp.ne.s32.totalorder %s602, %s604
      %p611 = scmp.eq.s32.totalorder %s106, 1
      %p612 = por %p610, %p611
      %p613 = scmp.ne.s32.totalorder %s604, %s605
      %p614 = scmp.eq.s32.totalorder %s106, 0
      %p615 = por %p613, %p614
      %p616 = scmp.ne.s32.totalorder %s604, %s605
      %p617 = scmp.eq.s32.totalorder %s107, 1
      %p618 = por %p616, %p617
      %p620 = scmp.ne.s32.totalorder %s605, %s619
      %p621 = scmp.eq.s32.totalorder %s107, 0
      %p622 = por %p620, %p621
      %s624 = sadd.s32 %s623, 1
      %p627 = scmp.eq.s32.totalorder %s101, 1
      %p628 = scmp.ne.s32.totalorder %s623, %s625
      %p629 = scmp.eq.s32.totalorder %s101, 0
      %p630 = por %p628, %p629
      %p631 = scmp.ne.s32.totalorder %s623, %s625
      %p632 = scmp.eq.s32.totalorder %s106, 1
      %p633 = por %p631, %p632
      %p634 = scmp.ne.s32.totalorder %s625, %s626
      %p635 = scmp.eq.s32.totalorder %s106, 0
      %p636 = por %p634, %p635
      %p637 = scmp.ne.s32.totalorder %s625, %s626
      %p638 = scmp.eq.s32.totalorder %s107, 1
      %p639 = por %p637, %p638
      %p641 = scmp.ne.s32.totalorder %s626, %s640
      %p642 = scmp.eq.s32.totalorder %s107, 0
      %p643 = por %p641, %p642
      %s645 = sadd.s32 %s644, 1
      %p648 = scmp.eq.s32.totalorder %s101, 1
      %p649 = scmp.ne.s32.totalorder %s644, %s646
      %p650 = scmp.eq.s32.totalorder %s101, 0
      %p651 = por %p649, %p650
      %p652 = scmp.ne.s32.totalorder %s644, %s646
      %p653 = scmp.eq.s32.totalorder %s106, 1
      %p654 = por %p652, %p653
      %p655 = scmp.ne.s32.totalorder %s646, %s647
      %p656 = scmp.eq.s32.totalorder %s106, 0
      %p657 = por %p655, %p656
      %p658 = scmp.ne.s32.totalorder %s646, %s647
      %p659 = scmp.eq.s32.totalorder %s107, 1
      %p660 = por %p658, %p659
      %p662 = scmp.ne.s32.totalorder %s647, %s661
      %p663 = scmp.eq.s32.totalorder %s107, 0
      %p664 = por %p662, %p663
      %s666 = sadd.s32 %s665, 1
      %p669 = scmp.eq.s32.totalorder %s101, 1
      %p670 = scmp.ne.s32.totalorder %s665, %s667
      %p671 = scmp.eq.s32.totalorder %s101, 0
      %p672 = por %p670, %p671
      %p673 = scmp.ne.s32.totalorder %s665, %s667
      %p674 = scmp.eq.s32.totalorder %s106, 1
      %p675 = por %p673, %p674
      %p676 = scmp.ne.s32.totalorder %s667, %s668
      %p677 = scmp.eq.s32.totalorder %s106, 0
      %p678 = por %p676, %p677
      %p679 = scmp.ne.s32.totalorder %s667, %s668
      %p680 = scmp.eq.s32.totalorder %s107, 1
      %p681 = por %p679, %p680
      %p683 = scmp.ne.s32.totalorder %s668, %s682
      %p684 = scmp.eq.s32.totalorder %s107, 0
      %p685 = por %p683, %p684
      %s687 = sadd.s32 %s686, 1
      %p690 = scmp.eq.s32.totalorder %s101, 1
      %p691 = scmp.ne.s32.totalorder %s686, %s688
      %p692 = scmp.eq.s32.totalorder %s101, 0
      %p693 = por %p691, %p692
      %p694 = scmp.ne.s32.totalorder %s686, %s688
      %p695 = scmp.eq.s32.totalorder %s106, 1
      %p696 = por %p694, %p695
      %p697 = scmp.ne.s32.totalorder %s688, %s689
      %p698 = scmp.eq.s32.totalorder %s106, 0
      %p699 = por %p697, %p698
      %p700 = scmp.ne.s32.totalorder %s688, %s689
      %p701 = scmp.eq.s32.totalorder %s107, 1
      %p702 = por %p700, %p701
      %p704 = scmp.ne.s32.totalorder %s689, %s703
      %p705 = scmp.eq.s32.totalorder %s107, 0
      %p706 = por %p704, %p705
      %s708 = sadd.s32 %s707, 1
      %p711 = scmp.eq.s32.totalorder %s101, 1
      %p712 = scmp.ne.s32.totalorder %s707, %s709
      %p713 = scmp.eq.s32.totalorder %s101, 0
      %p714 = por %p712, %p713
      %p715 = scmp.ne.s32.totalorder %s707, %s709
      %p716 = scmp.eq.s32.totalorder %s106, 1
      %p717 = por %p715, %p716
      %p718 = scmp.ne.s32.totalorder %s709, %s710
      %p719 = scmp.eq.s32.totalorder %s106, 0
      %p720 = por %p718, %p719
      %p721 = scmp.ne.s32.totalorder %s709, %s710
      %p722 = scmp.eq.s32.totalorder %s107, 1
      %p723 = por %p721, %p722
      %p725 = scmp.ne.s32.totalorder %s710, %s724
      %p726 = scmp.eq.s32.totalorder %s107, 0
      %p727 = por %p725, %p726
      %s729 = sadd.s32 %s728, 1
      %p732 = scmp.eq.s32.totalorder %s101, 1
      %p733 = scmp.ne.s32.totalorder %s728, %s730
      %p734 = scmp.eq.s32.totalorder %s101, 0
      %p735 = por %p733, %p734
      %p736 = scmp.ne.s32.totalorder %s728, %s730
      %p737 = scmp.eq.s32.totalorder %s106, 1
      %p738 = por %p736, %p737
      %p739 = scmp.ne.s32.totalorder %s730, %s731
      %p740 = scmp.eq.s32.totalorder %s106, 0
      %p741 = por %p739, %p740
      %p742 = scmp.ne.s32.totalorder %s730, %s731
      %p743 = scmp.eq.s32.totalorder %s107, 1
      %p744 = por %p742, %p743
      %p746 = scmp.ne.s32.totalorder %s731, %s745
      %p747 = scmp.eq.s32.totalorder %s107, 0
      %p748 = por %p746, %p747
      %s750 = sadd.s32 %s749, 1
      %p753 = scmp.eq.s32.totalorder %s101, 1
      %p754 = scmp.ne.s32.totalorder %s749, %s751
      %p755 = scmp.eq.s32.totalorder %s101, 0
      %p756 = por %p754, %p755
      %p757 = scmp.ne.s32.totalorder %s749, %s751
      %p758 = scmp.eq.s32.totalorder %s106, 1
      %p759 = por %p757, %p758
      %p760 = scmp.ne.s32.totalorder %s751, %s752
      %p761 = scmp.eq.s32.totalorder %s106, 0
      %p762 = por %p760, %p761
      %p763 = scmp.ne.s32.totalorder %s751, %s752
      %p764 = scmp.eq.s32.totalorder %s107, 1
      %p765 = por %p763, %p764
      %p767 = scmp.ne.s32.totalorder %s752, %s766
      %p768 = scmp.eq.s32.totalorder %s107, 0
      %p769 = por %p767, %p768
      %s771 = sadd.s32 %s770, 1
      %p774 = scmp.eq.s32.totalorder %s101, 1
      %p775 = scmp.ne.s32.totalorder %s770, %s772
      %p776 = scmp.eq.s32.totalorder %s101, 0
      %p777 = por %p775, %p776
      %p778 = scmp.ne.s32.totalorder %s770, %s772
      %p779 = scmp.eq.s32.totalorder %s106, 1
      %p780 = por %p778, %p779
      %p781 = scmp.ne.s32.totalorder %s772, %s773
      %p782 = scmp.eq.s32.totalorder %s106, 0
      %p783 = por %p781, %p782
      %p784 = scmp.ne.s32.totalorder %s772, %s773
      %p785 = scmp.eq.s32.totalorder %s107, 1
      %p786 = por %p784, %p785
      %p788 = scmp.ne.s32.totalorder %s773, %s787
      %p789 = scmp.eq.s32.totalorder %s107, 0
      %p790 = por %p788, %p789
      %s792 = sadd.s32 %s791, 1
      %p795 = scmp.eq.s32.totalorder %s101, 1
      %p796 = scmp.ne.s32.totalorder %s791, %s793
      %p797 = scmp.eq.s32.totalorder %s101, 0
      %p798 = por %p796, %p797
      %p799 = scmp.ne.s32.totalorder %s791, %s793
      %p800 = scmp.eq.s32.totalorder %s106, 1
      %p801 = por %p799, %p800
      %p802 = scmp.ne.s32.totalorder %s793, %s794
      %p803 = scmp.eq.s32.totalorder %s106, 0
      %p804 = por %p802, %p803
      %p805 = scmp.ne.s32.totalorder %s793, %s794
      %p806 = scmp.eq.s32.totalorder %s107, 1
      %p807 = por %p805, %p806
      %p809 = scmp.ne.s32.totalorder %s794, %s808
      %p810 = scmp.eq.s32.totalorder %s107, 0
      %p811 = por %p809, %p810
      %s813 = sadd.s32 %s812, 1
      %p816 = scmp.eq.s32.totalorder %s101, 1
      %p817 = scmp.ne.s32.totalorder %s812, %s814
      %p818 = scmp.eq.s32.totalorder %s101, 0
      %p819 = por %p817, %p818
      %p820 = scmp.ne.s32.totalorder %s812, %s814
      %p821 = scmp.eq.s32.totalorder %s106, 1
      %p822 = por %p820, %p821
      %p823 = scmp.ne.s32.totalorder %s814, %s815
      %p824 = scmp.eq.s32.totalorder %s106, 0
      %p825 = por %p823, %p824
      %p826 = scmp.ne.s32.totalorder %s814, %s815
      %p827 = scmp.eq.s32.totalorder %s107, 1
      %p828 = por %p826, %p827
      %p830 = scmp.ne.s32.totalorder %s815, %s829
      %p831 = scmp.eq.s32.totalorder %s107, 0
      %p832 = por %p830, %p831
      %s834 = sadd.s32 %s833, 1
      %p837 = scmp.eq.s32.totalorder %s101, 1
      %p838 = scmp.ne.s32.totalorder %s833, %s835
      %p839 = scmp.eq.s32.totalorder %s101, 0
      %p840 = por %p838, %p839
      %p841 = scmp.ne.s32.totalorder %s833, %s835
      %p842 = scmp.eq.s32.totalorder %s106, 1
      %p843 = por %p841, %p842
      %p844 = scmp.ne.s32.totalorder %s835, %s836
      %p845 = scmp.eq.s32.totalorder %s106, 0
      %p846 = por %p844, %p845
      %p847 = scmp.ne.s32.totalorder %s835, %s836
      %p848 = scmp.eq.s32.totalorder %s107, 1
      %p849 = por %p847, %p848
      %p851 = scmp.ne.s32.totalorder %s836, %s850
      %p852 = scmp.eq.s32.totalorder %s107, 0
      %p853 = por %p851, %p852
      %s855 = sadd.s32 %s854, 1
      %p858 = scmp.eq.s32.totalorder %s101, 1
      %p859 = scmp.ne.s32.totalorder %s854, %s856
      %p860 = scmp.eq.s32.totalorder %s101, 0
      %p861 = por %p859, %p860
      %p862 = scmp.ne.s32.totalorder %s854, %s856
      %p863 = scmp.eq.s32.totalorder %s106, 1
      %p864 = por %p862, %p863
      %p865 = scmp.ne.s32.totalorder %s856, %s857
      %p866 = scmp.eq.s32.totalorder %s106, 0
      %p867 = por %p865, %p866
      %p868 = scmp.ne.s32.totalorder %s856, %s857
      %p869 = scmp.eq.s32.totalorder %s107, 1
      %p870 = por %p868, %p869
      %p872 = scmp.ne.s32.totalorder %s857, %s871
      %p873 = scmp.eq.s32.totalorder %s107, 0
      %p874 = por %p872, %p873
      %s876 = sadd.s32 %s875, 1
      %p879 = scmp.eq.s32.totalorder %s101, 1
      %p880 = scmp.ne.s32.totalorder %s875, %s877
      %p881 = scmp.eq.s32.totalorder %s101, 0
      %p882 = por %p880, %p881
      %p883 = scmp.ne.s32.totalorder %s875, %s877
      %p884 = scmp.eq.s32.totalorder %s106, 1
      %p885 = por %p883, %p884
      %p886 = scmp.ne.s32.totalorder %s877, %s878
      %p887 = scmp.eq.s32.totalorder %s106, 0
      %p888 = por %p886, %p887
      %p889 = scmp.ne.s32.totalorder %s877, %s878
      %p890 = scmp.eq.s32.totalorder %s107, 1
      %p891 = por %p889, %p890
      %p893 = scmp.ne.s32.totalorder %s878, %s892
      %p894 = scmp.eq.s32.totalorder %s107, 0
      %p895 = por %p893, %p894
      %s897 = sadd.s32 %s896, 1
      %p900 = scmp.eq.s32.totalorder %s101, 1
      %p901 = scmp.ne.s32.totalorder %s896, %s898
      %p902 = scmp.eq.s32.totalorder %s101, 0
      %p903 = por %p901, %p902
      %p904 = scmp.ne.s32.totalorder %s896, %s898
      %p905 = scmp.eq.s32.totalorder %s106, 1
      %p906 = por %p904, %p905
      %p907 = scmp.ne.s32.totalorder %s898, %s899
      %p908 = scmp.eq.s32.totalorder %s106, 0
      %p909 = por %p907, %p908
      %p910 = scmp.ne.s32.totalorder %s898, %s899
      %p911 = scmp.eq.s32.totalorder %s107, 1
      %p912 = por %p910, %p911
      %p914 = scmp.ne.s32.totalorder %s899, %s913
      %p915 = scmp.eq.s32.totalorder %s107, 0
      %p916 = por %p914, %p915
      %s918 = sadd.s32 %s917, 1
      %p921 = scmp.eq.s32.totalorder %s101, 1
      %p922 = scmp.ne.s32.totalorder %s917, %s919
      %p923 = scmp.eq.s32.totalorder %s101, 0
      %p924 = por %p922, %p923
      %p925 = scmp.ne.s32.totalorder %s917, %s919
      %p926 = scmp.eq.s32.totalorder %s106, 1
      %p927 = por %p925, %p926
      %p928 = scmp.ne.s32.totalorder %s919, %s920
      %p929 = scmp.eq.s32.totalorder %s106, 0
      %p930 = por %p928, %p929
      %p931 = scmp.ne.s32.totalorder %s919, %s920
      %p932 = scmp.eq.s32.totalorder %s107, 1
      %p933 = por %p931, %p932
      %p935 = scmp.ne.s32.totalorder %s920, %s934
      %p936 = scmp.eq.s32.totalorder %s107, 0
      %p937 = por %p935, %p936
      %s939 = sadd.s32 %s938, 1
      %p942 = scmp.eq.s32.totalorder %s101, 1
      %p943 = scmp.ne.s32.totalorder %s938, %s940
      %p944 = scmp.eq.s32.totalorder %s101, 0
      %p945 = por %p943, %p944
      %p946 = scmp.ne.s32.totalorder %s938, %s940
      %p947 = scmp.eq.s32.totalorder %s106, 1
      %p948 = por %p946, %p947
      %p949 = scmp.ne.s32.totalorder %s940, %s941
      %p950 = scmp.eq.s32.totalorder %s106, 0
      %p951 = por %p949, %p950
      %p952 = scmp.ne.s32.totalorder %s940, %s941
      %p953 = scmp.eq.s32.totalorder %s107, 1
      %p954 = por %p952, %p953
      %p956 = scmp.ne.s32.totalorder %s941, %s955
      %p957 = scmp.eq.s32.totalorder %s107, 0
      %p958 = por %p956, %p957
      %s959 = ssub.s32 %s101, %s108
      %p960 = scmp.eq.s32.totalorder %s959, 0
      %s962 = sadd.s32 %s961, 1
      %s963 = scalar_select %p960, %s961, %s962
      %p966 = pneg %p960
      %p967 = scmp.eq.s32.totalorder %s101, 1
      %p968 = por %p966, %p967
      %p969 = scmp.ne.s32.totalorder %s961, %s964
      %p970 = scmp.eq.s32.totalorder %s101, 0
      %p971 = por %p969, %p970
      %p972 = scmp.ne.s32.totalorder %s961, %s964
      %p973 = scmp.eq.s32.totalorder %s106, 1
      %p974 = por %p972, %p973
      %p975 = scmp.ne.s32.totalorder %s964, %s965
      %p976 = scmp.eq.s32.totalorder %s106, 0
      %p977 = por %p975, %p976
      %p978 = scmp.ne.s32.totalorder %s964, %s965
      %p979 = scmp.eq.s32.totalorder %s107, 1
      %p980 = por %p978, %p979
      %p982 = scmp.ne.s32.totalorder %s965, %s981
      %p983 = scmp.eq.s32.totalorder %s107, 0
      %p984 = por %p982, %p983
      %p985 = scmp.le.s32.totalorder 1, %s101
      %p986 = scmp.lt.s32.totalorder %s101, 3
      %p987 = pnand %p985, %p986
      %p988 = pneg %p987
      // Predicated region
      $region9: #{model_forward.1} parent=5 // pred_check
        _
      $region10: #{model_forward.1} parent=5 // pred_check_branch
        %990 = sbr.rel (%p987) target = $region12
      $region11: #{model_forward.1} parent=5 // pred_region
        %s991 = ssub.s32 %s101, 1
        // Predicated region
        $region13: #{model_forward.1} parent=11 // pred_check
          %p992 = pneg %p174
        $region14: #{model_forward.1} parent=11 // pred_check_branch
          %994 = sbr.rel (%p992) target = $region16
        $region15: #{model_forward.1} parent=11 // pred_region
          _
        $region16: #{model_forward.1} parent=11 // pred_fallthru
          _
        // Predicated region
        $region17: #{model_forward.1} parent=11 // pred_check
          %p995 = pneg %p195
        $region18: #{model_forward.1} parent=11 // pred_check_branch
          %997 = sbr.rel (%p995) target = $region20
        $region19: #{model_forward.1} parent=11 // pred_region
          _
        $region20: #{model_forward.1} parent=11 // pred_fallthru
          _
        // Predicated region
        $region21: #{model_forward.1} parent=11 // pred_check
          %p998 = pneg %p216
        $region22: #{model_forward.1} parent=11 // pred_check_branch
          %1000 = sbr.rel (%p998) target = $region24
        $region23: #{model_forward.1} parent=11 // pred_region
          _
        $region24: #{model_forward.1} parent=11 // pred_fallthru
          _
        // Predicated region
        $region25: #{model_forward.1} parent=11 // pred_check
          %p1001 = pneg %p237
        $region26: #{model_forward.1} parent=11 // pred_check_branch
          %1003 = sbr.rel (%p1001) target = $region28
        $region27: #{model_forward.1} parent=11 // pred_region
          %s1005 = ssub.s32 32, 32
          %1006 = vsyncadd [#allocation3], %s1005
          %s1008 = sshll.u32 [#allocation2], 4
          %s1009 = int_to_ptr.vmem [resolvable:$true] %s1008
          %1011 = dma.hbm_to_vmem [thread:$0]  %s11, 32, %s1009, [#allocation3]
        $region28: #{model_forward.1} parent=11 // pred_fallthru
          _
        // Predicated region
        $region29: #{model_forward.1} parent=11 // pred_check
          %p1012 = pneg %p258
        $region30: #{model_forward.1} parent=11 // pred_check_branch
          %1014 = sbr.rel (%p1012) target = $region32
        $region31: #{model_forward.1} parent=11 // pred_region
          %s1016 = ssub.s32 4096, 4096
          %1017 = vsyncadd [#allocation6], %s1016
          %s1018 = sshll.u32 [#allocation5], 4
          %s1019 = int_to_ptr.vmem [resolvable:$true] %s1018
          %1024 = dma.hbm_to_vmem [thread:$0]  %s13, 4096, %s1019, [#allocation6], 128, 128, 8
        $region32: #{model_forward.1} parent=11 // pred_fallthru
          _
        // Predicated region
        $region33: #{model_forward.1} parent=11 // pred_check
          %p1025 = pneg %p279
        $region34: #{model_forward.1} parent=11 // pred_check_branch
          %1027 = sbr.rel (%p1025) target = $region36
        $region35: #{model_forward.1} parent=11 // pred_region
          %s1029 = ssub.s32 32, 32
          %1030 = vsyncadd [#allocation6], %s1029
          %s1032 = sshll.u32 [#allocation7], 4
          %s1033 = int_to_ptr.vmem [resolvable:$true] %s1032
          %1035 = dma.hbm_to_vmem [thread:$0]  %s15, 32, %s1033, [#allocation6]
        $region36: #{model_forward.1} parent=11 // pred_fallthru
          _
        // Predicated region
        $region37: #{model_forward.1} parent=11 // pred_check
          %p1036 = pneg %p300
        $region38: #{model_forward.1} parent=11 // pred_check_branch
          %1038 = sbr.rel (%p1036) target = $region40
        $region39: #{model_forward.1} parent=11 // pred_region
          %s1040 = ssub.s32 4096, 4096
          %1041 = vsyncadd [#allocation9], %s1040
          %s1042 = sshll.u32 [#allocation8], 4
          %s1043 = int_to_ptr.vmem [resolvable:$true] %s1042
          %1048 = dma.hbm_to_vmem [thread:$0]  %s17, 4096, %s1043, [#allocation9], 128, 128, 8
        $region40: #{model_forward.1} parent=11 // pred_fallthru
          _
        // Predicated region
        $region41: #{model_forward.1} parent=11 // pred_check
          %p1049 = pneg %p321
        $region42: #{model_forward.1} parent=11 // pred_check_branch
          %1051 = sbr.rel (%p1049) target = $region44
        $region43: #{model_forward.1} parent=11 // pred_region
          %s1053 = ssub.s32 32, 32
          %1054 = vsyncadd [#allocation9], %s1053
          %s1056 = sshll.u32 [#allocation10], 4
          %s1057 = int_to_ptr.vmem [resolvable:$true] %s1056
          %1059 = dma.hbm_to_vmem [thread:$0]  %s19, 32, %s1057, [#allocation9]
        $region44: #{model_forward.1} parent=11 // pred_fallthru
          _
        // Predicated region
        $region45: #{model_forward.1} parent=11 // pred_check
          %p1060 = pneg %p342
        $region46: #{model_forward.1} parent=11 // pred_check_branch
          %1062 = sbr.rel (%p1060) target = $region48
        $region47: #{model_forward.1} parent=11 // pred_region
          %s1064 = ssub.s32 4096, 4096
          %1065 = vsyncadd [#allocation12], %s1064
          %s1066 = sshll.u32 [#allocation11], 4
          %s1067 = int_to_ptr.vmem [resolvable:$true] %s1066
          %1072 = dma.hbm_to_vmem [thread:$0]  %s21, 4096, %s1067, [#allocation12], 128, 128, 8
        $region48: #{model_forward.1} parent=11 // pred_fallthru
          _
        // Predicated region
        $region49: #{model_forward.1} parent=11 // pred_check
          %p1073 = pneg %p363
        $region50: #{model_forward.1} parent=11 // pred_check_branch
          %1075 = sbr.rel (%p1073) target = $region52
        $region51: #{model_forward.1} parent=11 // pred_region
          %s1077 = ssub.s32 32, 32
          %1078 = vsyncadd [#allocation12], %s1077
          %s1080 = sshll.u32 [#allocation13], 4
          %s1081 = int_to_ptr.vmem [resolvable:$true] %s1080
          %1083 = dma.hbm_to_vmem [thread:$0]  %s23, 32, %s1081, [#allocation12]
        $region52: #{model_forward.1} parent=11 // pred_fallthru
          _
        // Predicated region
        $region53: #{model_forward.1} parent=11 // pred_check
          %p1084 = pneg %p384
        $region54: #{model_forward.1} parent=11 // pred_check_branch
          %1086 = sbr.rel (%p1084) target = $region56
        $region55: #{model_forward.1} parent=11 // pred_region
          %s1088 = ssub.s32 4096, 4096
          %1089 = vsyncadd [#allocation15], %s1088
          %s1090 = sshll.u32 [#allocation14], 4
          %s1091 = int_to_ptr.vmem [resolvable:$true] %s1090
          %1096 = dma.hbm_to_vmem [thread:$0]  %s25, 4096, %s1091, [#allocation15], 128, 128, 8
        $region56: #{model_forward.1} parent=11 // pred_fallthru
          _
        // Predicated region
        $region57: #{model_forward.1} parent=11 // pred_check
          %p1097 = pneg %p405
        $region58: #{model_forward.1} parent=11 // pred_check_branch
          %1099 = sbr.rel (%p1097) target = $region60
        $region59: #{model_forward.1} parent=11 // pred_region
          %s1101 = ssub.s32 32, 32
          %1102 = vsyncadd [#allocation15], %s1101
          %s1104 = sshll.u32 [#allocation16], 4
          %s1105 = int_to_ptr.vmem [resolvable:$true] %s1104
          %1107 = dma.hbm_to_vmem [thread:$0]  %s27, 32, %s1105, [#allocation15]
        $region60: #{model_forward.1} parent=11 // pred_fallthru
          _
        // Predicated region
        $region61: #{model_forward.1} parent=11 // pred_check
          %p1108 = pneg %p426
        $region62: #{model_forward.1} parent=11 // pred_check_branch
          %1110 = sbr.rel (%p1108) target = $region64
        $region63: #{model_forward.1} parent=11 // pred_region
          %s1112 = ssub.s32 4096, 4096
          %1113 = vsyncadd [#allocation18], %s1112
          %s1114 = sshll.u32 [#allocation17], 4
          %s1115 = int_to_ptr.vmem [resolvable:$true] %s1114
          %1120 = dma.hbm_to_vmem [thread:$0]  %s29, 4096, %s1115, [#allocation18], 128, 128, 8
        $region64: #{model_forward.1} parent=11 // pred_fallthru
          _
        // Predicated region
        $region65: #{model_forward.1} parent=11 // pred_check
          %p1121 = pneg %p447
        $region66: #{model_forward.1} parent=11 // pred_check_branch
          %1123 = sbr.rel (%p1121) target = $region68
        $region67: #{model_forward.1} parent=11 // pred_region
          %s1125 = ssub.s32 32, 32
          %1126 = vsyncadd [#allocation18], %s1125
          %s1128 = sshll.u32 [#allocation19], 4
          %s1129 = int_to_ptr.vmem [resolvable:$true] %s1128
          %1131 = dma.hbm_to_vmem [thread:$0]  %s31, 32, %s1129, [#allocation18]
        $region68: #{model_forward.1} parent=11 // pred_fallthru
          _
        // Predicated region
        $region69: #{model_forward.1} parent=11 // pred_check
          %p1132 = pneg %p468
        $region70: #{model_forward.1} parent=11 // pred_check_branch
          %1134 = sbr.rel (%p1132) target = $region72
        $region71: #{model_forward.1} parent=11 // pred_region
          %s1136 = ssub.s32 8192, 8192
          %1137 = vsyncadd [#allocation21], %s1136
          %s1138 = sshll.u32 [#allocation20], 4
          %s1139 = int_to_ptr.vmem [resolvable:$true] %s1138
          %1144 = dma.hbm_to_vmem [thread:$0]  %s33, 8192, %s1139, [#allocation21], 256, 256, 16
        $region72: #{model_forward.1} parent=11 // pred_fallthru
          _
        // Predicated region
        $region73: #{model_forward.1} parent=11 // pred_check
          %p1145 = pneg %p489
        $region74: #{model_forward.1} parent=11 // pred_check_branch
          %1147 = sbr.rel (%p1145) target = $region76
        $region75: #{model_forward.1} parent=11 // pred_region
          _
        $region76: #{model_forward.1} parent=11 // pred_fallthru
          _
        // Predicated region
        $region77: #{model_forward.1} parent=11 // pred_check
          %p1148 = pneg %p510
        $region78: #{model_forward.1} parent=11 // pred_check_branch
          %1150 = sbr.rel (%p1148) target = $region80
        $region79: #{model_forward.1} parent=11 // pred_region
          %s1152 = ssub.s32 16384, 16384
          %1153 = vsyncadd [#allocation21], %s1152
          %s1154 = sshll.u32 [#allocation22], 4
          %s1155 = int_to_ptr.vmem [resolvable:$true] %s1154
          %1160 = dma.hbm_to_vmem [thread:$0]  %s37, 16384, %s1155, [#allocation21], 256, 256, 16
        $region80: #{model_forward.1} parent=11 // pred_fallthru
          _
        // Predicated region
        $region81: #{model_forward.1} parent=11 // pred_check
          %p1161 = pneg %p531
        $region82: #{model_forward.1} parent=11 // pred_check_branch
          %1163 = sbr.rel (%p1161) target = $region84
        $region83: #{model_forward.1} parent=11 // pred_region
          _
        $region84: #{model_forward.1} parent=11 // pred_fallthru
          _
        // Predicated region
        $region85: #{model_forward.1} parent=11 // pred_check
          %p1164 = pneg %p552
        $region86: #{model_forward.1} parent=11 // pred_check_branch
          %1166 = sbr.rel (%p1164) target = $region88
        $region87: #{model_forward.1} parent=11 // pred_region
          %s1168 = ssub.s32 16384, 16384
          %1169 = vsyncadd [#allocation24], %s1168
          %s1170 = sshll.u32 [#allocation23], 4
          %s1171 = int_to_ptr.vmem [resolvable:$true] %s1170
          %1176 = dma.hbm_to_vmem [thread:$0]  %s41, 16384, %s1171, [#allocation24], 256, 256, 16
        $region88: #{model_forward.1} parent=11 // pred_fallthru
          _
        // Predicated region
        $region89: #{model_forward.1} parent=11 // pred_check
          %p1177 = pneg %p573
        $region90: #{model_forward.1} parent=11 // pred_check_branch
          %1179 = sbr.rel (%p1177) target = $region92
        $region91: #{model_forward.1} parent=11 // pred_region
          _
        $region92: #{model_forward.1} parent=11 // pred_fallthru
          _
        // Predicated region
        $region93: #{model_forward.1} parent=11 // pred_check
          %p1180 = pneg %p594
        $region94: #{model_forward.1} parent=11 // pred_check_branch
          %1182 = sbr.rel (%p1180) target = $region96
        $region95: #{model_forward.1} parent=11 // pred_region
          %s1184 = ssub.s32 16384, 16384
          %1185 = vsyncadd [#allocation24], %s1184
          %s1186 = sshll.u32 [#allocation25], 4
          %s1187 = int_to_ptr.vmem [resolvable:$true] %s1186
          %1192 = dma.hbm_to_vmem [thread:$0]  %s45, 16384, %s1187, [#allocation24], 256, 256, 16
        $region96: #{model_forward.1} parent=11 // pred_fallthru
          _
        // Predicated region
        $region97: #{model_forward.1} parent=11 // pred_check
          %p1193 = pneg %p615
        $region98: #{model_forward.1} parent=11 // pred_check_branch
          %1195 = sbr.rel (%p1193) target = $region100
        $region99: #{model_forward.1} parent=11 // pred_region
          _
        $region100: #{model_forward.1} parent=11 // pred_fallthru
          _
        // Predicated region
        $region101: #{model_forward.1} parent=11 // pred_check
          %p1196 = pneg %p636
        $region102: #{model_forward.1} parent=11 // pred_check_branch
          %1198 = sbr.rel (%p1196) target = $region104
        $region103: #{model_forward.1} parent=11 // pred_region
          %s1200 = ssub.s32 16384, 16384
          %1201 = vsyncadd [#allocation27], %s1200
          %s1202 = sshll.u32 [#allocation26], 4
          %s1203 = int_to_ptr.vmem [resolvable:$true] %s1202
          %1208 = dma.hbm_to_vmem [thread:$0]  %s49, 16384, %s1203, [#allocation27], 256, 256, 16
        $region104: #{model_forward.1} parent=11 // pred_fallthru
          _
        // Predicated region
        $region105: #{model_forward.1} parent=11 // pred_check
          %p1209 = pneg %p657
        $region106: #{model_forward.1} parent=11 // pred_check_branch
          %1211 = sbr.rel (%p1209) target = $region108
        $region107: #{model_forward.1} parent=11 // pred_region
          _
        $region108: #{model_forward.1} parent=11 // pred_fallthru
          _
        // Predicated region
        $region109: #{model_forward.1} parent=11 // pred_check
          %p1212 = pneg %p678
        $region110: #{model_forward.1} parent=11 // pred_check_branch
          %1214 = sbr.rel (%p1212) target = $region112
        $region111: #{model_forward.1} parent=11 // pred_region
          %s1216 = ssub.s32 16384, 16384
          %1217 = vsyncadd [#allocation27], %s1216
          %s1218 = sshll.u32 [#allocation28], 4
          %s1219 = int_to_ptr.vmem [resolvable:$true] %s1218
          %1224 = dma.hbm_to_vmem [thread:$0]  %s53, 16384, %s1219, [#allocation27], 256, 256, 16
        $region112: #{model_forward.1} parent=11 // pred_fallthru
          _
        // Predicated region
        $region113: #{model_forward.1} parent=11 // pred_check
          %p1225 = pneg %p699
        $region114: #{model_forward.1} parent=11 // pred_check_branch
          %1227 = sbr.rel (%p1225) target = $region116
        $region115: #{model_forward.1} parent=11 // pred_region
          _
        $region116: #{model_forward.1} parent=11 // pred_fallthru
          _
        // Predicated region
        $region117: #{model_forward.1} parent=11 // pred_check
          %p1228 = pneg %p720
        $region118: #{model_forward.1} parent=11 // pred_check_branch
          %1230 = sbr.rel (%p1228) target = $region120
        $region119: #{model_forward.1} parent=11 // pred_region
          %s1232 = ssub.s32 16384, 16384
          %1233 = vsyncadd [#allocation30], %s1232
          %s1234 = sshll.u32 [#allocation29], 4
          %s1235 = int_to_ptr.vmem [resolvable:$true] %s1234
          %1240 = dma.hbm_to_vmem [thread:$0]  %s57, 16384, %s1235, [#allocation30], 256, 256, 16
        $region120: #{model_forward.1} parent=11 // pred_fallthru
          _
        // Predicated region
        $region121: #{model_forward.1} parent=11 // pred_check
          %p1241 = pneg %p741
        $region122: #{model_forward.1} parent=11 // pred_check_branch
          %1243 = sbr.rel (%p1241) target = $region124
        $region123: #{model_forward.1} parent=11 // pred_region
          _
        $region124: #{model_forward.1} parent=11 // pred_fallthru
          _
        // Predicated region
        $region125: #{model_forward.1} parent=11 // pred_check
          %p1244 = pneg %p762
        $region126: #{model_forward.1} parent=11 // pred_check_branch
          %1246 = sbr.rel (%p1244) target = $region128
        $region127: #{model_forward.1} parent=11 // pred_region
          %s1248 = ssub.s32 16384, 16384
          %1249 = vsyncadd [#allocation30], %s1248
          %s1250 = sshll.u32 [#allocation31], 4
          %s1251 = int_to_ptr.vmem [resolvable:$true] %s1250
          %1256 = dma.hbm_to_vmem [thread:$0]  %s61, 16384, %s1251, [#allocation30], 256, 256, 16
        $region128: #{model_forward.1} parent=11 // pred_fallthru
          _
        // Predicated region
        $region129: #{model_forward.1} parent=11 // pred_check
          %p1257 = pneg %p783
        $region130: #{model_forward.1} parent=11 // pred_check_branch
          %1259 = sbr.rel (%p1257) target = $region132
        $region131: #{model_forward.1} parent=11 // pred_region
          _
        $region132: #{model_forward.1} parent=11 // pred_fallthru
          _
        // Predicated region
        $region133: #{model_forward.1} parent=11 // pred_check
          %p1260 = pneg %p804
        $region134: #{model_forward.1} parent=11 // pred_check_branch
          %1262 = sbr.rel (%p1260) target = $region136
        $region135: #{model_forward.1} parent=11 // pred_region
          %s1264 = ssub.s32 16384, 16384
          %1265 = vsyncadd [#allocation33], %s1264
          %s1266 = sshll.u32 [#allocation32], 4
          %s1267 = int_to_ptr.vmem [resolvable:$true] %s1266
          %1272 = dma.hbm_to_vmem [thread:$0]  %s65, 16384, %s1267, [#allocation33], 256, 256, 16
        $region136: #{model_forward.1} parent=11 // pred_fallthru
          _
        // Predicated region
        $region137: #{model_forward.1} parent=11 // pred_check
          %p1273 = pneg %p825
        $region138: #{model_forward.1} parent=11 // pred_check_branch
          %1275 = sbr.rel (%p1273) target = $region140
        $region139: #{model_forward.1} parent=11 // pred_region
          _
        $region140: #{model_forward.1} parent=11 // pred_fallthru
          _
        // Predicated region
        $region141: #{model_forward.1} parent=11 // pred_check
          %p1276 = pneg %p846
        $region142: #{model_forward.1} parent=11 // pred_check_branch
          %1278 = sbr.rel (%p1276) target = $region144
        $region143: #{model_forward.1} parent=11 // pred_region
          _
        $region144: #{model_forward.1} parent=11 // pred_fallthru
          _
        // Predicated region
        $region145: #{model_forward.1} parent=11 // pred_check
          %p1279 = pneg %p867
        $region146: #{model_forward.1} parent=11 // pred_check_branch
          %1281 = sbr.rel (%p1279) target = $region148
        $region147: #{model_forward.1} parent=11 // pred_region
          _
        $region148: #{model_forward.1} parent=11 // pred_fallthru
          _
        // Predicated region
        $region149: #{model_forward.1} parent=11 // pred_check
          %p1282 = pneg %p888
        $region150: #{model_forward.1} parent=11 // pred_check_branch
          %1284 = sbr.rel (%p1282) target = $region152
        $region151: #{model_forward.1} parent=11 // pred_region
          %s1286 = ssub.s32 32768, 32768
          %1287 = vsyncadd [#allocation33], %s1286
          %s1288 = sshll.u32 [#allocation34], 4
          %s1289 = int_to_ptr.vmem [resolvable:$true] %s1288
          %1294 = dma.hbm_to_vmem [thread:$0]  %s73, 32768, %s1289, [#allocation33], 512, 512, 32
        $region152: #{model_forward.1} parent=11 // pred_fallthru
          _
        // Predicated region
        $region153: #{model_forward.1} parent=11 // pred_check
          %p1295 = pneg %p909
        $region154: #{model_forward.1} parent=11 // pred_check_branch
          %1297 = sbr.rel (%p1295) target = $region156
        $region155: #{model_forward.1} parent=11 // pred_region
          _
        $region156: #{model_forward.1} parent=11 // pred_fallthru
          _
        // Predicated region
        $region157: #{model_forward.1} parent=11 // pred_check
          %p1298 = pneg %p930
        $region158: #{model_forward.1} parent=11 // pred_check_branch
          %1300 = sbr.rel (%p1298) target = $region160
        $region159: #{model_forward.1} parent=11 // pred_region
          _
        $region160: #{model_forward.1} parent=11 // pred_fallthru
          _
        // Predicated region
        $region161: #{model_forward.1} parent=11 // pred_check
          %p1301 = pneg %p951
        $region162: #{model_forward.1} parent=11 // pred_check_branch
          %1303 = sbr.rel (%p1301) target = $region164
        $region163: #{model_forward.1} parent=11 // pred_region
          _
        $region164: #{model_forward.1} parent=11 // pred_fallthru
          _
      $region12: #{model_forward.1} parent=5 // pred_fallthru
        _
      %p1304 = scmp.lt.s32.totalorder %s101, 2
      // Predicated region
      $region165: #{model_forward.1} parent=5 // pred_check
        %p1305 = pneg %p1304
      $region166: #{model_forward.1} parent=5 // pred_check_branch
        %1307 = sbr.rel (%p1305) target = $region168
      $region167: #{model_forward.1} parent=5 // pred_region
        // Predicated region
        $region169: #{model_forward.1} parent=167 // pred_check
          %p1308 = pneg %p121
        $region170: #{model_forward.1} parent=167 // pred_check_branch
          %1310 = sbr.rel (%p1308) target = $region172
        $region171: #{model_forward.1} parent=167 // pred_region
          %p1311 = scmp.lt.s32.totalorder %s101, 1
          %s1312 = scalar_select %p1311, %s101, 1
          %s1313 = smul.addr %s1312, 5
          %s1314 = smul.addr %s1313, 8
          %s1315 = scalar_lea.vmem %s1, %s1314
        $region172: #{model_forward.1} parent=167 // pred_fallthru
          _
        // Predicated region
        $region173: #{model_forward.1} parent=167 // pred_check
          %p1316 = pneg %p147
        $region174: #{model_forward.1} parent=167 // pred_check_branch
          %1318 = sbr.rel (%p1316) target = $region176
        $region175: #{model_forward.1} parent=167 // pred_region
          %p1319 = scmp.lt.s32.totalorder %s101, 1
          %s1320 = scalar_select %p1319, %s101, 1
          %s1321 = smul.addr %s1320, 5
          %s1322 = smul.addr %s1321, 8
          %s1323 = scalar_lea.vmem %s3, %s1322
        $region176: #{model_forward.1} parent=167 // pred_fallthru
          _
      $region168: #{model_forward.1} parent=5 // pred_fallthru
        _
      %p1324 = scmp.le.s32.totalorder 1, %s101
      %p1325 = scmp.lt.s32.totalorder %s101, 3
      %p1326 = pnand %p1324, %p1325
      %p1327 = pneg %p1326
      // Predicated region
      $region177: #{model_forward.1} parent=5 // pred_check
        _
      $region178: #{model_forward.1} parent=5 // pred_check_branch
        %1329 = sbr.rel (%p1326) target = $region180
      $region179: #{model_forward.1} parent=5 // pred_region
        %s1330 = ssub.s32 %s101, 1
        // Predicated region
        $region181: #{model_forward.1} parent=179 // pred_check
          %p1331 = pneg %p237
        $region182: #{model_forward.1} parent=179 // pred_check_branch
          %1333 = sbr.rel (%p1331) target = $region184
        $region183: #{model_forward.1} parent=179 // pred_region
          %1334 = dma.done [#allocation3], 32
        $region184: #{model_forward.1} parent=179 // pred_fallthru
          _
        // Predicated region
        $region185: #{model_forward.1} parent=179 // pred_check
          %p1335 = pneg %p258
        $region186: #{model_forward.1} parent=179 // pred_check_branch
          %1337 = sbr.rel (%p1335) target = $region188
        $region187: #{model_forward.1} parent=179 // pred_region
          %1338 = dma.done [#allocation6], 4096
        $region188: #{model_forward.1} parent=179 // pred_fallthru
          _
        // Predicated region
        $region189: #{model_forward.1} parent=179 // pred_check
          %p1339 = pneg %p279
        $region190: #{model_forward.1} parent=179 // pred_check_branch
          %1341 = sbr.rel (%p1339) target = $region192
        $region191: #{model_forward.1} parent=179 // pred_region
          %1342 = dma.done [#allocation6], 32
        $region192: #{model_forward.1} parent=179 // pred_fallthru
          _
        // Predicated region
        $region193: #{model_forward.1} parent=179 // pred_check
          %p1343 = pneg %p300
        $region194: #{model_forward.1} parent=179 // pred_check_branch
          %1345 = sbr.rel (%p1343) target = $region196
        $region195: #{model_forward.1} parent=179 // pred_region
          %1346 = dma.done [#allocation9], 4096
        $region196: #{model_forward.1} parent=179 // pred_fallthru
          _
        // Predicated region
        $region197: #{model_forward.1} parent=179 // pred_check
          %p1347 = pneg %p321
        $region198: #{model_forward.1} parent=179 // pred_check_branch
          %1349 = sbr.rel (%p1347) target = $region200
        $region199: #{model_forward.1} parent=179 // pred_region
          %1350 = dma.done [#allocation9], 32
        $region200: #{model_forward.1} parent=179 // pred_fallthru
          _
        // Predicated region
        $region201: #{model_forward.1} parent=179 // pred_check
          %p1351 = pneg %p342
        $region202: #{model_forward.1} parent=179 // pred_check_branch
          %1353 = sbr.rel (%p1351) target = $region204
        $region203: #{model_forward.1} parent=179 // pred_region
          %1354 = dma.done [#allocation12], 4096
        $region204: #{model_forward.1} parent=179 // pred_fallthru
          _
        // Predicated region
        $region205: #{model_forward.1} parent=179 // pred_check
          %p1355 = pneg %p363
        $region206: #{model_forward.1} parent=179 // pred_check_branch
          %1357 = sbr.rel (%p1355) target = $region208
        $region207: #{model_forward.1} parent=179 // pred_region
          %1358 = dma.done [#allocation12], 32
        $region208: #{model_forward.1} parent=179 // pred_fallthru
          _
        // Predicated region
        $region209: #{model_forward.1} parent=179 // pred_check
          %p1359 = pneg %p384
        $region210: #{model_forward.1} parent=179 // pred_check_branch
          %1361 = sbr.rel (%p1359) target = $region212
        $region211: #{model_forward.1} parent=179 // pred_region
          %1362 = dma.done [#allocation15], 4096
        $region212: #{model_forward.1} parent=179 // pred_fallthru
          _
        // Predicated region
        $region213: #{model_forward.1} parent=179 // pred_check
          %p1363 = pneg %p405
        $region214: #{model_forward.1} parent=179 // pred_check_branch
          %1365 = sbr.rel (%p1363) target = $region216
        $region215: #{model_forward.1} parent=179 // pred_region
          %1366 = dma.done [#allocation15], 32
        $region216: #{model_forward.1} parent=179 // pred_fallthru
          _
        // Predicated region
        $region217: #{model_forward.1} parent=179 // pred_check
          %p1367 = pneg %p426
        $region218: #{model_forward.1} parent=179 // pred_check_branch
          %1369 = sbr.rel (%p1367) target = $region220
        $region219: #{model_forward.1} parent=179 // pred_region
          %1370 = dma.done [#allocation18], 4096
        $region220: #{model_forward.1} parent=179 // pred_fallthru
          _
        // Predicated region
        $region221: #{model_forward.1} parent=179 // pred_check
          %p1371 = pneg %p447
        $region222: #{model_forward.1} parent=179 // pred_check_branch
          %1373 = sbr.rel (%p1371) target = $region224
        $region223: #{model_forward.1} parent=179 // pred_region
          %1374 = dma.done [#allocation18], 32
        $region224: #{model_forward.1} parent=179 // pred_fallthru
          _
        // Predicated region
        $region225: #{model_forward.1} parent=179 // pred_check
          %p1375 = pneg %p468
        $region226: #{model_forward.1} parent=179 // pred_check_branch
          %1377 = sbr.rel (%p1375) target = $region228
        $region227: #{model_forward.1} parent=179 // pred_region
          %1378 = dma.done [#allocation21], 8192
        $region228: #{model_forward.1} parent=179 // pred_fallthru
          _
        // Predicated region
        $region229: #{model_forward.1} parent=179 // pred_check
          %p1379 = pneg %p510
        $region230: #{model_forward.1} parent=179 // pred_check_branch
          %1381 = sbr.rel (%p1379) target = $region232
        $region231: #{model_forward.1} parent=179 // pred_region
          %1382 = dma.done [#allocation21], 16384
        $region232: #{model_forward.1} parent=179 // pred_fallthru
          _
        // Predicated region
        $region233: #{model_forward.1} parent=179 // pred_check
          %p1383 = pneg %p552
        $region234: #{model_forward.1} parent=179 // pred_check_branch
          %1385 = sbr.rel (%p1383) target = $region236
        $region235: #{model_forward.1} parent=179 // pred_region
          %1386 = dma.done [#allocation24], 16384
        $region236: #{model_forward.1} parent=179 // pred_fallthru
          _
        // Predicated region
        $region237: #{model_forward.1} parent=179 // pred_check
          %p1387 = pneg %p594
        $region238: #{model_forward.1} parent=179 // pred_check_branch
          %1389 = sbr.rel (%p1387) target = $region240
        $region239: #{model_forward.1} parent=179 // pred_region
          %1390 = dma.done [#allocation24], 16384
        $region240: #{model_forward.1} parent=179 // pred_fallthru
          _
        // Predicated region
        $region241: #{model_forward.1} parent=179 // pred_check
          %p1391 = pneg %p636
        $region242: #{model_forward.1} parent=179 // pred_check_branch
          %1393 = sbr.rel (%p1391) target = $region244
        $region243: #{model_forward.1} parent=179 // pred_region
          %1394 = dma.done [#allocation27], 16384
        $region244: #{model_forward.1} parent=179 // pred_fallthru
          _
        // Predicated region
        $region245: #{model_forward.1} parent=179 // pred_check
          %p1395 = pneg %p678
        $region246: #{model_forward.1} parent=179 // pred_check_branch
          %1397 = sbr.rel (%p1395) target = $region248
        $region247: #{model_forward.1} parent=179 // pred_region
          %1398 = dma.done [#allocation27], 16384
        $region248: #{model_forward.1} parent=179 // pred_fallthru
          _
        // Predicated region
        $region249: #{model_forward.1} parent=179 // pred_check
          %p1399 = pneg %p720
        $region250: #{model_forward.1} parent=179 // pred_check_branch
          %1401 = sbr.rel (%p1399) target = $region252
        $region251: #{model_forward.1} parent=179 // pred_region
          %1402 = dma.done [#allocation30], 16384
        $region252: #{model_forward.1} parent=179 // pred_fallthru
          _
        // Predicated region
        $region253: #{model_forward.1} parent=179 // pred_check
          %p1403 = pneg %p762
        $region254: #{model_forward.1} parent=179 // pred_check_branch
          %1405 = sbr.rel (%p1403) target = $region256
        $region255: #{model_forward.1} parent=179 // pred_region
          %1406 = dma.done [#allocation30], 16384
        $region256: #{model_forward.1} parent=179 // pred_fallthru
          _
        // Predicated region
        $region257: #{model_forward.1} parent=179 // pred_check
          %p1407 = pneg %p804
        $region258: #{model_forward.1} parent=179 // pred_check_branch
          %1409 = sbr.rel (%p1407) target = $region260
        $region259: #{model_forward.1} parent=179 // pred_region
          %1410 = dma.done [#allocation33], 16384
        $region260: #{model_forward.1} parent=179 // pred_fallthru
          _
        // Predicated region
        $region261: #{model_forward.1} parent=179 // pred_check
          %p1411 = pneg %p888
        $region262: #{model_forward.1} parent=179 // pred_check_branch
          %1413 = sbr.rel (%p1411) target = $region264
        $region263: #{model_forward.1} parent=179 // pred_region
          %1414 = dma.done [#allocation33], 32768
        $region264: #{model_forward.1} parent=179 // pred_fallthru
          _
        %p1415 = scmp.lt.s32.totalorder %s106, 1
        %s1416 = scalar_select %p1415, %s106, 1
        %s1417 = smul.addr %s1416, 5
        %s1418 = smul.addr %s1417, 8
        %s1419 = scalar_lea.vmem %s1, %s1418
        %p1420 = pneg %p127
        %p1421 = pneg %p124
        %p1422 = scmp.lt.s32.totalorder %s106, 1
        %s1423 = scalar_select %p1422, %s106, 1
        %s1424 = smul.addr %s1423, 5
        %s1425 = smul.addr %s1424, 8
        %s1426 = scalar_lea.vmem %s3, %s1425
        %p1427 = pneg %p153
        %p1428 = pneg %p150
        %p1429 = pneg %p174
        %p1430 = pneg %p171
        %p1431 = pneg %p195
        %p1432 = pneg %p192
        %p1433 = pneg %p216
        %p1434 = pneg %p213
        %p1435 = pneg %p237
        %p1436 = pneg %p234
        %p1437 = pneg %p258
        %p1438 = pneg %p255
        %p1439 = pneg %p279
        %p1440 = pneg %p276
        %p1441 = pneg %p300
        %p1442 = pneg %p297
        %p1443 = pneg %p321
        %p1444 = pneg %p318
        %p1445 = pneg %p342
        %p1446 = pneg %p339
        %p1447 = pneg %p363
        %p1448 = pneg %p360
        %p1449 = pneg %p384
        %p1450 = pneg %p381
        %p1451 = pneg %p405
        %p1452 = pneg %p402
        %p1453 = pneg %p426
        %p1454 = pneg %p423
        %p1455 = pneg %p447
        %p1456 = pneg %p444
        %p1457 = pneg %p468
        %p1458 = pneg %p465
        %p1459 = pneg %p489
        %p1460 = pneg %p486
        %p1461 = pneg %p510
        %p1462 = pneg %p507
        %p1463 = pneg %p531
        %p1464 = pneg %p528
        %p1465 = pneg %p552
        %p1466 = pneg %p549
        %p1467 = pneg %p573
        %p1468 = pneg %p570
        %p1469 = pneg %p594
        %p1470 = pneg %p591
        %p1471 = pneg %p615
        %p1472 = pneg %p612
        %p1473 = pneg %p636
        %p1474 = pneg %p633
        %p1475 = pneg %p657
        %p1476 = pneg %p654
        %p1477 = pneg %p678
        %p1478 = pneg %p675
        %p1479 = pneg %p699
        %p1480 = pneg %p696
        %p1481 = pneg %p720
        %p1482 = pneg %p717
        %p1483 = pneg %p741
        %p1484 = pneg %p738
        %p1485 = pneg %p762
        %p1486 = pneg %p759
        %p1487 = pneg %p783
        %p1488 = pneg %p780
        %p1489 = pneg %p804
        %p1490 = pneg %p801
        %p1491 = pneg %p825
        %p1492 = pneg %p822
        %p1493 = pneg %p846
        %p1494 = pneg %p843
        %p1495 = pneg %p867
        %p1496 = pneg %p864
        %p1497 = pneg %p888
        %p1498 = pneg %p885
        %p1499 = pneg %p909
        %p1500 = pneg %p906
        %p1501 = pneg %p930
        %p1502 = pneg %p927
        %p1503 = pneg %p951
        %p1504 = pneg %p948
        %p1505 = pneg %p977
        %p1506 = pneg %p974
        %s1507 = sand.u32 %s964, 1
        %s1508 = scalar_lea.sflag [#allocation4], %s1507
        %s1509 = sand.u32 %s964, 1
        %s1510 = scalar_lea.vmem [#allocation35], %s1509
        %p1511 = scmp.lt.s32.totalorder %s106, 1
        %s1512 = scalar_select %p1511, %s106, 1
        %s1513 = smul.addr %s1512, 5
        %s1514 = smul.addr %s1513, 8
        %s1515 = scalar_lea.vmem %s1, %s1514
        %p1516 = scmp.lt.s32.totalorder %s106, 1
        %s1517 = scalar_select %p1516, %s106, 1
        %s1518 = smul.addr %s1517, 5
        %s1519 = smul.addr %s1518, 8
        %s1520 = scalar_lea.vmem %s3, %s1519
        %v1521 = vld [vmem:[%s1515] sm:$0xff]
        %v1522 = vld [vmem:[%s1515 + $0x8] sm:$0xff]
        %v1523 = vld [vmem:[%s1515 + $0x10] sm:$0xff]
        %v1524 = vld [vmem:[%s1515 + $0x18] sm:$0xff]
        %v1525 = vld [vmem:[%s1515 + $0x20] sm:$0x1]
        %v1526 = vld [vmem:[%s1520] sm:$0xff]
        %v1527 = vld [vmem:[%s1520 + $0x8] sm:$0xff]
        %v1528 = vld [vmem:[%s1520 + $0x10] sm:$0xff]
        %v1529 = vld [vmem:[%s1520 + $0x18] sm:$0xff]
        %v1530 = vld [vmem:[%s1520 + $0x20] sm:$0x1]
        %v1531 = vld [vmem:[%s5] sm:$0xf]
        %s1532 = scalar_lea.vmem %s5, 4
        %v1533 = vld [vmem:[%s1532] sm:$0xf]
        %v1534 = vld [vmem:[%s7] sm:$0x1]
        %v1535 = vld [vmem:[%s7 + $0x1] sm:$0x1]
        %vm1536 = vcmask 31744
        %v1538 = vsel %vm1536, %v1526, 0
        %v1541 = vsel %vm1536, %v1527, 0
        %v1544 = vsel %vm1536, %v1528, 0
        %v1547 = vsel %vm1536, %v1529, 0
        %v1550 = vsel %vm1536, %v1530, 0
        %vm1552 = vcmask 1043456
        %v1554 = vsel %vm1552, %v1533, 0
        %1556 = vmatprep.subr.mxu0 0.0
        %1557 = vmatpush1.msra.mxu0 %v1554
        %1558 = vmatprep.subr.mxu0 0.0
        %1559 = vmatpush1.msra.mxu0 0.0
        %1560 = vmatprep.subr.mxu0 0.0
        %1561 = vmatpush1.msra.mxu0 0.0
        %1562 = vmatprep.subr.mxu0 0.0
        %1563 = vmatpush1.msra.mxu0 0.0
        %1564 = vmatprep.subr.mxu0 0.0
        %1565 = vmatpush1.msra.mxu0 0.0
        %1566 = vmatprep.subr.mxu0 0.0
        %1567 = vmatpush1.msra.mxu0 0.0
        %1568 = vmatprep.subr.mxu0 0.0
        %1569 = vmatpush1.msra.mxu0 0.0
        %1570 = vmatprep.subr.mxu0 0.0
        %1571 = vmatpush1.msra.mxu0 0.0
        %1572 = vmatprep.subr.mxu0 0.0
        %1573 = vmatpush1.msra.mxu0 0.0
        %1574 = vmatprep.subr.mxu0 0.0
        %1575 = vmatpush1.msra.mxu0 0.0
        %1576 = vmatprep.subr.mxu0 0.0
        %1577 = vmatpush1.msra.mxu0 0.0
        %1578 = vmatprep.subr.mxu0 0.0
        %1579 = vmatpush1.msra.mxu0 0.0
        %1580 = vmatprep.subr.mxu0 0.0
        %1581 = vmatpush1.msra.mxu0 0.0
        %1582 = vmatprep.subr.mxu0 0.0
        %1583 = vmatpush1.msra.mxu0 0.0
        %1584 = vmatprep.subr.mxu0 0.0
        %1585 = vmatpush1.msra.mxu0 0.0
        %1586 = vmatprep.subr.mxu0 0.0
        %1587 = vmatpush1.msra.mxu0 0.0
        %1588 = vmatprep.subr.mxu0 0.0
        %1589 = vmatpush1.msra.mxu0 0.0
        %1590 = vmatprep.subr.mxu0 0.0
        %1591 = vmatpush1.msra.mxu0 0.0
        %1592 = vmatprep.subr.mxu0 0.0
        %1593 = vmatpush1.msra.mxu0 0.0
        %1594 = vmatprep.subr.mxu0 0.0
        %1595 = vmatpush1.msra.mxu0 0.0
        %1596 = vmatprep.subr.mxu0 0.0
        %1597 = vmatpush1.msra.mxu0 0.0
        %1598 = vmatprep.subr.mxu0 0.0
        %1599 = vmatpush1.msra.mxu0 0.0
        %1600 = vmatprep.subr.mxu0 0.0
        %1601 = vmatpush1.msra.mxu0 0.0
        %1602 = vmatprep.subr.mxu0 0.0
        %1603 = vmatpush1.msra.mxu0 0.0
        %1604 = vmatprep.subr.mxu0 0.0
        %1605 = vmatpush1.msra.mxu0 0.0
        %1606 = vmatprep.subr.mxu0 0.0
        %1607 = vmatpush1.msra.mxu0 0.0
        %1608 = vmatprep.subr.mxu0 0.0
        %1609 = vmatpush1.msra.mxu0 0.0
        %1610 = vmatprep.subr.mxu0 0.0
        %1611 = vmatpush1.msra.mxu0 0.0
        %1612 = vmatprep.subr.mxu0 0.0
        %1613 = vmatpush1.msra.mxu0 0.0
        %1614 = vmatprep.subr.mxu0 0.0
        %1615 = vmatpush1.msra.mxu0 0.0
        %1616 = vmatprep.subr.mxu0 0.0
        %1617 = vmatpush1.msra.mxu0 0.0
        %1618 = vmatprep.subr.mxu0 0.0
        %1619 = vmatpush1.msra.mxu0 0.0
        %1620 = vmatprep.mubr.f32.mxu0 0.0
        %1621 = vmatmul.mubr.f32.gmra.mrb[0].mxu0 %v1538
        %v1622 = vpop.f32.mrb[0].mxu0
        %v1623 = vadd.f32 0.0, %v1622
        %v1624 = vpop.f32.mrb[0].mxu0
        %1625 = vmatprep.mubr.f32.mxu0 0.0
        %1626 = vmatmul.mubr.f32.gmra.mrb[0].mxu0 %v1541
        %v1627 = vpop.f32.mrb[0].mxu0
        %v1628 = vadd.f32 0.0, %v1627
        %v1629 = vpop.f32.mrb[0].mxu0
        %1630 = vmatprep.mubr.f32.mxu0 0.0
        %1631 = vmatmul.mubr.f32.gmra.mrb[0].mxu0 %v1544
        %v1632 = vpop.f32.mrb[0].mxu0
        %v1633 = vadd.f32 0.0, %v1632
        %v1634 = vpop.f32.mrb[0].mxu0
        %1635 = vmatprep.mubr.f32.mxu0 0.0
        %1636 = vmatmul.mubr.f32.gmra.mrb[0].mxu0 %v1547
        %v1637 = vpop.f32.mrb[0].mxu0
        %v1638 = vadd.f32 0.0, %v1637
        %v1639 = vpop.f32.mrb[0].mxu0
        %1640 = vmatprep.mubr.f32.mxu0 0.0
        %1641 = vmatmul.mubr.f32.gmra.mrb[0].mxu0 %v1550
        %v1642 = vpop.f32.mrb[0].mxu0
        %v1643 = vadd.f32 0.0, %v1642
        %v1644 = vpop.f32.mrb[0].mxu0
        %1645 = vdwg.mxu0
        %v1647 = vsel %vm1536, %v1521, 0
        %v1650 = vsel %vm1536, %v1522, 0
        %v1653 = vsel %vm1536, %v1523, 0
        %v1656 = vsel %vm1536, %v1524, 0
        %v1659 = vsel %vm1536, %v1525, 0
        %v1662 = vsel %vm1552, %v1531, 0
        %1664 = vmatprep.subr.mxu0 0.0
        %1665 = vmatpush1.msra.mxu0 %v1662
        %1666 = vmatprep.subr.mxu0 0.0
        %1667 = vmatpush1.msra.mxu0 0.0
        %1668 = vmatprep.subr.mxu0 0.0
        %1669 = vmatpush1.msra.mxu0 0.0
        %1670 = vmatprep.subr.mxu0 0.0
        %1671 = vmatpush1.msra.mxu0 0.0
        %1672 = vmatprep.subr.mxu0 0.0
        %1673 = vmatpush1.msra.mxu0 0.0
        %1674 = vmatprep.subr.mxu0 0.0
        %1675 = vmatpush1.msra.mxu0 0.0
        %1676 = vmatprep.subr.mxu0 0.0
        %1677 = vmatpush1.msra.mxu0 0.0
        %1678 = vmatprep.subr.mxu0 0.0
        %1679 = vmatpush1.msra.mxu0 0.0
        %1680 = vmatprep.subr.mxu0 0.0
        %1681 = vmatpush1.msra.mxu0 0.0
        %1682 = vmatprep.subr.mxu0 0.0
        %1683 = vmatpush1.msra.mxu0 0.0
        %1684 = vmatprep.subr.mxu0 0.0
        %1685 = vmatpush1.msra.mxu0 0.0
        %1686 = vmatprep.subr.mxu0 0.0
        %1687 = vmatpush1.msra.mxu0 0.0
        %1688 = vmatprep.subr.mxu0 0.0
        %1689 = vmatpush1.msra.mxu0 0.0
        %1690 = vmatprep.subr.mxu0 0.0
        %1691 = vmatpush1.msra.mxu0 0.0
        %1692 = vmatprep.subr.mxu0 0.0
        %1693 = vmatpush1.msra.mxu0 0.0
        %1694 = vmatprep.subr.mxu0 0.0
        %1695 = vmatpush1.msra.mxu0 0.0
        %1696 = vmatprep.subr.mxu0 0.0
        %1697 = vmatpush1.msra.mxu0 0.0
        %1698 = vmatprep.subr.mxu0 0.0
        %1699 = vmatpush1.msra.mxu0 0.0
        %1700 = vmatprep.subr.mxu0 0.0
        %1701 = vmatpush1.msra.mxu0 0.0
        %1702 = vmatprep.subr.mxu0 0.0
        %1703 = vmatpush1.msra.mxu0 0.0
        %1704 = vmatprep.subr.mxu0 0.0
        %1705 = vmatpush1.msra.mxu0 0.0
        %1706 = vmatprep.subr.mxu0 0.0
        %1707 = vmatpush1.msra.mxu0 0.0
        %1708 = vmatprep.subr.mxu0 0.0
        %1709 = vmatpush1.msra.mxu0 0.0
        %1710 = vmatprep.subr.mxu0 0.0
        %1711 = vmatpush1.msra.mxu0 0.0
        %1712 = vmatprep.subr.mxu0 0.0
        %1713 = vmatpush1.msra.mxu0 0.0
        %1714 = vmatprep.subr.mxu0 0.0
        %1715 = vmatpush1.msra.mxu0 0.0
        %1716 = vmatprep.subr.mxu0 0.0
        %1717 = vmatpush1.msra.mxu0 0.0
        %1718 = vmatprep.subr.mxu0 0.0
        %1719 = vmatpush1.msra.mxu0 0.0
        %1720 = vmatprep.subr.mxu0 0.0
        %1721 = vmatpush1.msra.mxu0 0.0
        %1722 = vmatprep.subr.mxu0 0.0
        %1723 = vmatpush1.msra.mxu0 0.0
        %1724 = vmatprep.subr.mxu0 0.0
        %1725 = vmatpush1.msra.mxu0 0.0
        %1726 = vmatprep.subr.mxu0 0.0
        %1727 = vmatpush1.msra.mxu0 0.0
        %1728 = vmatprep.mubr.f32.mxu0 0.0
        %1729 = vmatmul.mubr.f32.gmra.mrb[0].mxu0 %v1647
        %v1730 = vpop.f32.mrb[0].mxu0
        %v1731 = vadd.f32 %v1623, %v1730
        %v1732 = vpop.f32.mrb[0].mxu0
        %1733 = vmatprep.mubr.f32.mxu0 0.0
        %1734 = vmatmul.mubr.f32.gmra.mrb[0].mxu0 %v1650
        %v1735 = vpop.f32.mrb[0].mxu0
        %v1736 = vadd.f32 %v1628, %v1735
        %v1737 = vpop.f32.mrb[0].mxu0
        %1738 = vmatprep.mubr.f32.mxu0 0.0
        %1739 = vmatmul.mubr.f32.gmra.mrb[0].mxu0 %v1653
        %v1740 = vpop.f32.mrb[0].mxu0
        %v1741 = vadd.f32 %v1633, %v1740
        %v1742 = vpop.f32.mrb[0].mxu0
        %1743 = vmatprep.mubr.f32.mxu0 0.0
        %1744 = vmatmul.mubr.f32.gmra.mrb[0].mxu0 %v1656
        %v1745 = vpop.f32.mrb[0].mxu0
        %v1746 = vadd.f32 %v1638, %v1745
        %v1747 = vpop.f32.mrb[0].mxu0
        %1748 = vmatprep.mubr.f32.mxu0 0.0
        %1749 = vmatmul.mubr.f32.gmra.mrb[0].mxu0 %v1659
        %v1750 = vpop.f32.mrb[0].mxu0
        %v1751 = vadd.f32 %v1643, %v1750
        %v1752 = vpop.f32.mrb[0].mxu0
        %1753 = vdwg.mxu0
        %v1754 = vlaneseq
        %v1755 = vshrl.u32 %v1754, 7
        %v1756 = vsub.s32 0, %v1755
        %v1757 = vrot.slane %v1534, %v1756
        %v1758 = vmul.f32 %v1731, %v1757
        %v1759 = vmul.f32 %v1736, %v1757
        %v1760 = vmul.f32 %v1741, %v1757
        %v1761 = vmul.f32 %v1746, %v1757
        %v1762 = vmul.f32 %v1751, %v1757
        %v1763 = vlaneseq
        %v1764 = vshrl.u32 %v1763, 7
        %v1765 = vsub.s32 0, %v1764
        %v1766 = vrot.slane %v1535, %v1765
        %v1767 = vadd.f32 %v1758, %v1766
        %v1768 = vadd.f32 %v1759, %v1766
        %v1769 = vadd.f32 %v1760, %v1766
        %v1770 = vadd.f32 %v1761, %v1766
        %v1771 = vadd.f32 %v1762, %v1766
        %v1772 = vmax.f32 %v1767, 0.0
        %v1773 = vmax.f32 %v1768, 0.0
        %v1774 = vmax.f32 %v1769, 0.0
        %v1775 = vmax.f32 %v1770, 0.0
        %v1776 = vmax.f32 %v1771, 0.0
        %v1777 = vld [vmem:[%s9] sm:$0xff]
        %v1778 = vld [vmem:[%s9 + $0x8] sm:$0xff]
        %v1779 = vld [vmem:[%s9 + $0x10] sm:$0xff]
        %v1780 = vld [vmem:[%s9 + $0x18] sm:$0xff]
        %v1781 = vld [vmem:[%s9 + $0x20] sm:$0xff]
        %v1782 = vld [vmem:[%s9 + $0x28] sm:$0xff]
        %v1783 = vld [vmem:[%s9 + $0x30] sm:$0xff]
        %v1784 = vld [vmem:[%s9 + $0x38] sm:$0xff]
        %v1785 = vld [vmem:[%s9 + $0x40] sm:$0xff]
        %v1786 = vld [vmem:[%s9 + $0x48] sm:$0xff]
        %v1787 = vld [vmem:[%s9 + $0x50] sm:$0xff]
        %v1788 = vld [vmem:[%s9 + $0x58] sm:$0xff]
        %v1789 = vld [vmem:[%s9 + $0x60] sm:$0xff]
        %v1790 = vld [vmem:[%s9 + $0x68] sm:$0xff]
        %v1791 = vld [vmem:[%s9 + $0x70] sm:$0xff]
        %v1792 = vld [vmem:[%s9 + $0x78] sm:$0xff]
        %s1793 = scalar_lea.vmem %s9, 128
        %v1794 = vld [vmem:[%s1793] sm:$0xff]
        %v1795 = vld [vmem:[%s1793 + $0x8] sm:$0xff]
        %v1796 = vld [vmem:[%s1793 + $0x10] sm:$0xff]
        %v1797 = vld [vmem:[%s1793 + $0x18] sm:$0xff]
        %v1798 = vld [vmem:[%s1793 + $0x20] sm:$0xff]
        %v1799 = vld [vmem:[%s1793 + $0x28] sm:$0xff]
        %v1800 = vld [vmem:[%s1793 + $0x30] sm:$0xff]
        %v1801 = vld [vmem:[%s1793 + $0x38] sm:$0xff]
        %v1802 = vld [vmem:[%s1793 + $0x40] sm:$0xff]
        %v1803 = vld [vmem:[%s1793 + $0x48] sm:$0xff]
        %v1804 = vld [vmem:[%s1793 + $0x50] sm:$0xff]
        %v1805 = vld [vmem:[%s1793 + $0x58] sm:$0xff]
        %v1806 = vld [vmem:[%s1793 + $0x60] sm:$0xff]
        %v1807 = vld [vmem:[%s1793 + $0x68] sm:$0xff]
        %v1808 = vld [vmem:[%s1793 + $0x70] sm:$0xff]
        %v1809 = vld [vmem:[%s1793 + $0x78] sm:$0xff]
        %v1810 = vld [vmem:[#allocation2] sm:$0x1]
        %v1811 = vld [vmem:[#allocation2 + $0x1] sm:$0x1]
        %vm1817 = vcmask 1040384
        %v1818 = vrot.slane %v1772, 7
        %v1819 = vrot.slane %v1773, 7
        %v1820 = vsel %vm1817, %v1818, %v1819
        %v1821 = vrot.slane %v1774, 7
        %v1822 = vsel %vm1817, %v1819, %v1821
        %v1823 = vrot.slane %v1775, 7
        %v1824 = vsel %vm1817, %v1821, %v1823
        %v1825 = vrot.slane %v1776, 7
        %v1826 = vsel %vm1817, %v1823, %v1825
        %v1832 = vsel %vm1817, 0.0, %v1818
        %vm1833 = vcmask 1041408
        %v1834 = vsel %vm1833, %v1826, 0.0
        %vm1837 = vcmask 1046528
        %v1838 = vrot.slane %v1832, 1
        %v1839 = vrot.slane %v1820, 1
        %v1840 = vsel %vm1837, %v1838, %v1839
        %v1841 = vrot.slane %v1822, 1
        %v1842 = vsel %vm1837, %v1839, %v1841
        %v1843 = vrot.slane %v1824, 1
        %v1844 = vsel %vm1837, %v1841, %v1843
        %v1845 = vrot.slane %v1834, 1
        %v1846 = vsel %vm1837, %v1843, %v1845
        %1852 = vmatprep.subr.mxu0 0.0
        %1853 = vmatpush1.msra.mxu0 %v1794
        %1854 = vmatprep.subr.mxu0 0.0
        %1855 = vmatpush1.msra.mxu0 %v1795
        %1856 = vmatprep.subr.mxu0 0.0
        %1857 = vmatpush1.msra.mxu0 %v1796
        %1858 = vmatprep.subr.mxu0 0.0
        %1859 = vmatpush1.msra.mxu0 %v1797
        %1860 = vmatprep.subr.mxu0 0.0
        %1861 = vmatpush1.msra.mxu0 %v1798
        %1862 = vmatprep.subr.mxu0 0.0
        %1863 = vmatpush1.msra.mxu0 %v1799
        %1864 = vmatprep.subr.mxu0 0.0
        %1865 = vmatpush1.msra.mxu0 %v1800
        %1866 = vmatprep.subr.mxu0 0.0
        %1867 = vmatpush1.msra.mxu0 %v1801
        %1868 = vmatprep.subr.mxu0 0.0
        %1869 = vmatpush1.msra.mxu0 %v1802
        %1870 = vmatprep.subr.mxu0 0.0
        %1871 = vmatpush1.msra.mxu0 %v1803
        %1872 = vmatprep.subr.mxu0 0.0
        %1873 = vmatpush1.msra.mxu0 %v1804
        %1874 = vmatprep.subr.mxu0 0.0
        %1875 = vmatpush1.msra.mxu0 %v1805
        %1876 = vmatprep.subr.mxu0 0.0
        %1877 = vmatpush1.msra.mxu0 %v1806
        %1878 = vmatprep.subr.mxu0 0.0
        %1879 = vmatpush1.msra.mxu0 %v1807
        %1880 = vmatprep.subr.mxu0 0.0
        %1881 = vmatpush1.msra.mxu0 %v1808
        %1882 = vmatprep.subr.mxu0 0.0
        %1883 = vmatpush1.msra.mxu0 %v1809
        %1884 = vmatprep.subr.mxu0 0.0
        %1885 = vmatpush1.msra.mxu0 0.0
        %1886 = vmatprep.subr.mxu0 0.0
        %1887 = vmatpush1.msra.mxu0 0.0
        %1888 = vmatprep.subr.mxu0 0.0
        %1889 = vmatpush1.msra.mxu0 0.0
        %1890 = vmatprep.subr.mxu0 0.0
        %1891 = vmatpush1.msra.mxu0 0.0
        %1892 = vmatprep.subr.mxu0 0.0
        %1893 = vmatpush1.msra.mxu0 0.0
        %1894 = vmatprep.subr.mxu0 0.0
        %1895 = vmatpush1.msra.mxu0 0.0
        %1896 = vmatprep.subr.mxu0 0.0
        %1897 = vmatpush1.msra.mxu0 0.0
        %1898 = vmatprep.subr.mxu0 0.0
        %1899 = vmatpush1.msra.mxu0 0.0
        %1900 = vmatprep.subr.mxu0 0.0
        %1901 = vmatpush1.msra.mxu0 0.0
        %1902 = vmatprep.subr.mxu0 0.0
        %1903 = vmatpush1.msra.mxu0 0.0
        %1904 = vmatprep.subr.mxu0 0.0
        %1905 = vmatpush1.msra.mxu0 0.0
        %1906 = vmatprep.subr.mxu0 0.0
        %1907 = vmatpush1.msra.mxu0 0.0
        %1908 = vmatprep.subr.mxu0 0.0
        %1909 = vmatpush1.msra.mxu0 0.0
        %1910 = vmatprep.subr.mxu0 0.0
        %1911 = vmatpush1.msra.mxu0 0.0
        %1912 = vmatprep.subr.mxu0 0.0
        %1913 = vmatpush1.msra.mxu0 0.0
        %1914 = vmatprep.subr.mxu0 0.0
        %1915 = vmatpush1.msra.mxu0 0.0
        %1916 = vmatprep.mubr.f32.mxu0 0.0
        %1917 = vmatmul.mubr.f32.gmra.mrb[0].mxu0 %v1840
        %v1918 = vpop.f32.mrb[0].mxu0
        %v1919 = vadd.f32 0.0, %v1918
        %v1920 = vpop.f32.mrb[0].mxu0
        %1921 = vmatprep.mubr.f32.mxu0 0.0
        %1922 = vmatmul.mubr.f32.gmra.mrb[0].mxu0 %v1842
        %v1923 = vpop.f32.mrb[0].mxu0
        %v1924 = vadd.f32 0.0, %v1923
        %v1925 = vpop.f32.mrb[0].mxu0
        %1926 = vmatprep.mubr.f32.mxu0 0.0
        %1927 = vmatmul.mubr.f32.gmra.mrb[0].mxu0 %v1844
        %v1928 = vpop.f32.mrb[0].mxu0
        %v1929 = vadd.f32 0.0, %v1928
        %v1930 = vpop.f32.mrb[0].mxu0
        %1931 = vmatprep.mubr.f32.mxu0 0.0
        %1932 = vmatmul.mubr.f32.gmra.mrb[0].mxu0 %v1846
        %v1933 = vpop.f32.mrb[0].mxu0
        %v1934 = vadd.f32 0.0, %v1933
        %v1935 = vpop.f32.mrb[0].mxu0
        %1936 = vmatprep.mubr.f32.mxu0 0.0
        %1937 = vmatmul.mubr.f32.gmra.mrb[0].mxu0 %v1845
        %v1938 = vpop.f32.mrb[0].mxu0
        %v1939 = vadd.f32 0.0, %v1938
        %v1940 = vpop.f32.mrb[0].mxu0
        %1941 = vdwg.mxu0
        %1942 = vmatprep.subr.mxu0 0.0
        %1943 = vmatpush1.msra.mxu0 %v1777
        %1944 = vmatprep.subr.mxu0 0.0
        %1945 = vmatpush1.msra.mxu0 %v1778
        %1946 = vmatprep.subr.mxu0 0.0
        %1947 = vmatpush1.msra.mxu0 %v1779
        %1948 = vmatprep.subr.mxu0 0.0
        %1949 = vmatpush1.msra.mxu0 %v1780
        %1950 = vmatprep.subr.mxu0 0.0
        %1951 = vmatpush1.msra.mxu0 %v1781
        %1952 = vmatprep.subr.mxu0 0.0
        %1953 = vmatpush1.msra.mxu0 %v1782
        %1954 = vmatprep.subr.mxu0 0.0
        %1955 = vmatpush1.msra.mxu0 %v1783
        %1956 = vmatprep.subr.mxu0 0.0
        %1957 = vmatpush1.msra.mxu0 %v1784
        %1958 = vmatprep.subr.mxu0 0.0
        %1959 = vmatpush1.msra.mxu0 %v1785
        %1960 = vmatprep.subr.mxu0 0.0
        %1961 = vmatpush1.msra.mxu0 %v1786
        %1962 = vmatprep.subr.mxu0 0.0
        %1963 = vmatpush1.msra.mxu0 %v1787
        %1964 = vmatprep.subr.mxu0 0.0
        %1965 = vmatpush1.msra.mxu0 %v1788
        %1966 = vmatprep.subr.mxu0 0.0
        %1967 = vmatpush1.msra.mxu0 %v1789
        %1968 = vmatprep.subr.mxu0 0.0
        %1969 = vmatpush1.msra.mxu0 %v1790
        %1970 = vmatprep.subr.mxu0 0.0
        %1971 = vmatpush1.msra.mxu0 %v1791
        %1972 = vmatprep.subr.mxu0 0.0
        %1973 = vmatpush1.msra.mxu0 %v1792
        %1974 = vmatprep.subr.mxu0 0.0
        %1975 = vmatpush1.msra.mxu0 0.0
        %1976 = vmatprep.subr.mxu0 0.0
        %1977 = vmatpush1.msra.mxu0 0.0
        %1978 = vmatprep.subr.mxu0 0.0
        %1979 = vmatpush1.msra.mxu0 0.0
        %1980 = vmatprep.subr.mxu0 0.0
        %1981 = vmatpush1.msra.mxu0 0.0
        %1982 = vmatprep.subr.mxu0 0.0
        %1983 = vmatpush1.msra.mxu0 0.0
        %1984 = vmatprep.subr.mxu0 0.0
        %1985 = vmatpush1.msra.mxu0 0.0
        %1986 = vmatprep.subr.mxu0 0.0
        %1987 = vmatpush1.msra.mxu0 0.0
        %1988 = vmatprep.subr.mxu0 0.0
        %1989 = vmatpush1.msra.mxu0 0.0
        %1990 = vmatprep.subr.mxu0 0.0
        %1991 = vmatpush1.msra.mxu0 0.0
        %1992 = vmatprep.subr.mxu0 0.0
        %1993 = vmatpush1.msra.mxu0 0.0
        %1994 = vmatprep.subr.mxu0 0.0
        %1995 = vmatpush1.msra.mxu0 0.0
        %1996 = vmatprep.subr.mxu0 0.0
        %1997 = vmatpush1.msra.mxu0 0.0
        %1998 = vmatprep.subr.mxu0 0.0
        %1999 = vmatpush1.msra.mxu0 0.0
        %2000 = vmatprep.subr.mxu0 0.0
        %2001 = vmatpush1.msra.mxu0 0.0
        %2002 = vmatprep.subr.mxu0 0.0
        %2003 = vmatpush1.msra.mxu0 0.0
        %2004 = vmatprep.subr.mxu0 0.0
        %2005 = vmatpush1.msra.mxu0 0.0
        %2006 = vmatprep.mubr.f32.mxu0 0.0
        %2007 = vmatmul.mubr.f32.gmra.mrb[0].mxu0 %v1832
        %v2008 = vpop.f32.mrb[0].mxu0
        %v2009 = vadd.f32 %v1919, %v2008
        %v2010 = vpop.f32.mrb[0].mxu0
        %2011 = vmatprep.mubr.f32.mxu0 0.0
        %2012 = vmatmul.mubr.f32.gmra.mrb[0].mxu0 %v1820
        %v2013 = vpop.f32.mrb[0].mxu0
        %v2014 = vadd.f32 %v1924, %v2013
        %v2015 = vpop.f32.mrb[0].mxu0
        %2016 = vmatprep.mubr.f32.mxu0 0.0
        %2017 = vmatmul.mubr.f32.gmra.mrb[0].mxu0 %v1822
        %v2018 = vpop.f32.mrb[0].mxu0
        %v2019 = vadd.f32 %v1929, %v2018
        %v2020 = vpop.f32.mrb[0].mxu0
        %2021 = vmatprep.mubr.f32.mxu0 0.0
        %2022 = vmatmul.mubr.f32.gmra.mrb[0].mxu0 %v1824
        %v2023 = vpop.f32.mrb[0].mxu0
        %v2024 = vadd.f32 %v1934, %v2023
        %v2025 = vpop.f32.mrb[0].mxu0
        %2026 = vmatprep.mubr.f32.mxu0 0.0
        %2027 = vmatmul.mubr.f32.gmra.mrb[0].mxu0 %v1834
        %v2028 = vpop.f32.mrb[0].mxu0
        %v2029 = vadd.f32 %v1939, %v2028
        %v2030 = vpop.f32.mrb[0].mxu0
        %2031 = vdwg.mxu0
        %v2032 = vlaneseq
        %v2033 = vshrl.u32 %v2032, 7
        %v2034 = vsub.s32 0, %v2033
        %v2035 = vrot.slane %v1810, %v2034
        %v2036 = vmul.f32 %v2009, %v2035
        %v2037 = vmul.f32 %v2014, %v2035
        %v2038 = vmul.f32 %v2019, %v2035
        %v2039 = vmul.f32 %v2024, %v2035
        %v2040 = vmul.f32 %v2029, %v2035
        %v2041 = vlaneseq
        %v2042 = vshrl.u32 %v2041, 7
        %v2043 = vsub.s32 0, %v2042
        %v2044 = vrot.slane %v1811, %v2043
        %v2045 = vadd.f32 %v2036, %v2044
        %v2046 = vadd.f32 %v2037, %v2044
        %v2047 = vadd.f32 %v2038, %v2044
        %v2048 = vadd.f32 %v2039, %v2044
        %v2049 = vadd.f32 %v2040, %v2044
        %v2050 = vmax.f32 %v2045, 0.0
        %v2051 = vmax.f32 %v2046, 0.0
        %v2052 = vmax.f32 %v2047, 0.0
        %v2053 = vmax.f32 %v2048, 0.0
        %v2054 = vmax.f32 %v2049, 0.0
        %v2060 = vrot.slane %v2050, 1
        %v2061 = vrot.slane %v2051, 1
        %v2062 = vsel %vm1837, %v2060, %v2061
        %v2063 = vrot.slane %v2052, 1
        %v2064 = vsel %vm1837, %v2061, %v2063
        %v2065 = vrot.slane %v2053, 1
        %v2066 = vsel %vm1837, %v2063, %v2065
        %v2067 = vrot.slane %v2054, 1
        %v2068 = vsel %vm1837, %v2065, %v2067
        %v2074 = vmax.f32 %v2050, %v2062
        %v2075 = vmax.f32 %v2051, %v2064
        %v2076 = vmax.f32 %v2052, %v2066
        %v2077 = vmax.f32 %v2053, %v2068
        %v2078 = vmax.f32 %v2054, %v2067
        %v2079 = vlaneseq
        %v2080 = vshrl.u32 %v2079, 7
        %v2081 = vadd.s32 %v2080, 8
        %v2082 = vadd.s32 %v2080, 16
        %v2083 = vlaneseq
        %v2084 = vand.u32 %v2083, 127
        %v2085 = vmul.u32 %v2080, 2
        %v2086 = vmul.u32 %v2081, 2
        %v2087 = vmul.u32 %v2082, 2
        %vm2088 = vcmp.eq.s32.totalorder %v2084, %v2085
        %vm2089 = vcmp.eq.s32.totalorder %v2084, %v2086
        %vm2090 = vcmp.eq.s32.totalorder %v2084, %v2087
        %v2091 = vsel %vm2088, 1, 0
        %v2092 = vsel %vm2089, 1, 0
        %v2093 = vsel %vm2090, 1, 0
        %v2094 = vcvt.s32.f32 %v2091
        %v2095 = vcvt.s32.f32 %v2092
        %v2096 = vcvt.s32.f32 %v2093
        %vm2097 = vcmask 269312
        %v2099 = vsel %vm2097, %v2094, 0
        %v2102 = vsel %vm2097, %v2095, 0
        %v2105 = vsel %vm2097, %v2096, 0
        %v2108 = vsel %vm1817, %v2078, 0
        %2110 = vmatprep.subr.mxu0 0.0
        %2111 = vmatpush1.msra.mxu0 %v2074
        %2112 = vmatprep.subr.mxu0 0.0
        %2113 = vmatpush1.msra.mxu0 %v2075
        %2114 = vmatprep.subr.mxu0 0.0
        %2115 = vmatpush1.msra.mxu0 %v2076
        %2116 = vmatprep.subr.mxu0 0.0
        %2117 = vmatpush1.msra.mxu0 %v2077
        %2118 = vmatprep.subr.mxu0 0.0
        %2119 = vmatpush1.msra.mxu0 %v2108
        %2120 = vmatprep.subr.mxu0 0.0
        %2121 = vmatpush1.msra.mxu0 0.0
        %2122 = vmatprep.subr.mxu0 0.0
        %2123 = vmatpush1.msra.mxu0 0.0
        %2124 = vmatprep.subr.mxu0 0.0
        %2125 = vmatpush1.msra.mxu0 0.0
        %2126 = vmatprep.subr.mxu0 0.0
        %2127 = vmatpush1.msra.mxu0 0.0
        %2128 = vmatprep.subr.mxu0 0.0
        %2129 = vmatpush1.msra.mxu0 0.0
        %2130 = vmatprep.subr.mxu0 0.0
        %2131 = vmatpush1.msra.mxu0 0.0
        %2132 = vmatprep.subr.mxu0 0.0
        %2133 = vmatpush1.msra.mxu0 0.0
        %2134 = vmatprep.subr.mxu0 0.0
        %2135 = vmatpush1.msra.mxu0 0.0
        %2136 = vmatprep.subr.mxu0 0.0
        %2137 = vmatpush1.msra.mxu0 0.0
        %2138 = vmatprep.subr.mxu0 0.0
        %2139 = vmatpush1.msra.mxu0 0.0
        %2140 = vmatprep.subr.mxu0 0.0
        %2141 = vmatpush1.msra.mxu0 0.0
        %2142 = vmatprep.subr.mxu0 0.0
        %2143 = vmatpush1.msra.mxu0 0.0
        %2144 = vmatprep.subr.mxu0 0.0
        %2145 = vmatpush1.msra.mxu0 0.0
        %2146 = vmatprep.subr.mxu0 0.0
        %2147 = vmatpush1.msra.mxu0 0.0
        %2148 = vmatprep.subr.mxu0 0.0
        %2149 = vmatpush1.msra.mxu0 0.0
        %2150 = vmatprep.subr.mxu0 0.0
        %2151 = vmatpush1.msra.mxu0 0.0
        %2152 = vmatprep.subr.mxu0 0.0
        %2153 = vmatpush1.msra.mxu0 0.0
        %2154 = vmatprep.subr.mxu0 0.0
        %2155 = vmatpush1.msra.mxu0 0.0
        %2156 = vmatprep.subr.mxu0 0.0
        %2157 = vmatpush1.msra.mxu0 0.0
        %2158 = vmatprep.subr.mxu0 0.0
        %2159 = vmatpush1.msra.mxu0 0.0
        %2160 = vmatprep.subr.mxu0 0.0
        %2161 = vmatpush1.msra.mxu0 0.0
        %2162 = vmatprep.subr.mxu0 0.0
        %2163 = vmatpush1.msra.mxu0 0.0
        %2164 = vmatprep.subr.mxu0 0.0
        %2165 = vmatpush1.msra.mxu0 0.0
        %2166 = vmatprep.subr.mxu0 0.0
        %2167 = vmatpush1.msra.mxu0 0.0
        %2168 = vmatprep.subr.mxu0 0.0
        %2169 = vmatpush1.msra.mxu0 0.0
        %2170 = vmatprep.subr.mxu0 0.0
        %2171 = vmatpush1.msra.mxu0 0.0
        %2172 = vmatprep.subr.mxu0 0.0
        %2173 = vmatpush1.msra.mxu0 0.0
        %2174 = vmatprep.mubr.f32.mxu0 0.0
        %2175 = vmatmul.mubr.f32.gmra.mrb[0].mxu0 %v2099
        %v2176 = vpop.f32.mrb[0].mxu0
        %v2177 = vadd.f32 0.0, %v2176
        %v2178 = vpop.f32.mrb[0].mxu0
        %2179 = vmatprep.mubr.f32.mxu0 0.0
        %2180 = vmatmul.mubr.f32.gmra.mrb[0].mxu0 %v2102
        %v2181 = vpop.f32.mrb[0].mxu0
        %v2182 = vadd.f32 0.0, %v2181
        %v2183 = vpop.f32.mrb[0].mxu0
        %2184 = vmatprep.mubr.f32.mxu0 0.0
        %2185 = vmatmul.mubr.f32.gmra.mrb[0].mxu0 %v2105
        %v2186 = vpop.f32.mrb[0].mxu0
        %v2187 = vadd.f32 0.0, %v2186
        %v2188 = vpop.f32.mrb[0].mxu0
        %2189 = vdwg.mxu0
        %v2190 = vld [vmem:[#allocation5] sm:$0xff]
        %v2191 = vld [vmem:[#allocation5 + $0x8] sm:$0xff]
        %v2192 = vld [vmem:[#allocation5 + $0x10] sm:$0xff]
        %v2193 = vld [vmem:[#allocation5 + $0x18] sm:$0xff]
        %v2194 = vld [vmem:[#allocation5 + $0x20] sm:$0xff]
        %v2195 = vld [vmem:[#allocation5 + $0x28] sm:$0xff]
        %v2196 = vld [vmem:[#allocation5 + $0x30] sm:$0xff]
        %v2197 = vld [vmem:[#allocation5 + $0x38] sm:$0xff]
        %v2198 = vld [vmem:[#allocation5 + $0x40] sm:$0xff]
        %v2199 = vld [vmem:[#allocation5 + $0x48] sm:$0xff]
        %v2200 = vld [vmem:[#allocation5 + $0x50] sm:$0xff]
        %v2201 = vld [vmem:[#allocation5 + $0x58] sm:$0xff]
        %v2202 = vld [vmem:[#allocation5 + $0x60] sm:$0xff]
        %v2203 = vld [vmem:[#allocation5 + $0x68] sm:$0xff]
        %v2204 = vld [vmem:[#allocation5 + $0x70] sm:$0xff]
        %v2205 = vld [vmem:[#allocation5 + $0x78] sm:$0xff]
        %s2206 = scalar_lea.vmem [#allocation5], 128
        %v2207 = vld [vmem:[%s2206] sm:$0xff]
        %v2208 = vld [vmem:[%s2206 + $0x8] sm:$0xff]
        %v2209 = vld [vmem:[%s2206 + $0x10] sm:$0xff]
        %v2210 = vld [vmem:[%s2206 + $0x18] sm:$0xff]
        %v2211 = vld [vmem:[%s2206 + $0x20] sm:$0xff]
        %v2212 = vld [vmem:[%s2206 + $0x28] sm:$0xff]
        %v2213 = vld [vmem:[%s2206 + $0x30] sm:$0xff]
        %v2214 = vld [vmem:[%s2206 + $0x38] sm:$0xff]
        %v2215 = vld [vmem:[%s2206 + $0x40] sm:$0xff]
        %v2216 = vld [vmem:[%s2206 + $0x48] sm:$0xff]
        %v2217 = vld [vmem:[%s2206 + $0x50] sm:$0xff]
        %v2218 = vld [vmem:[%s2206 + $0x58] sm:$0xff]
        %v2219 = vld [vmem:[%s2206 + $0x60] sm:$0xff]
        %v2220 = vld [vmem:[%s2206 + $0x68] sm:$0xff]
        %v2221 = vld [vmem:[%s2206 + $0x70] sm:$0xff]
        %v2222 = vld [vmem:[%s2206 + $0x78] sm:$0xff]
        %v2223 = vld [vmem:[#allocation7] sm:$0x1]
        %v2224 = vld [vmem:[#allocation7 + $0x1] sm:$0x1]
        %v2228 = vrot.slane %v2177, 7
        %v2229 = vrot.slane %v2182, 7
        %v2230 = vsel %vm1817, %v2228, %v2229
        %v2231 = vrot.slane %v2187, 7
        %v2232 = vsel %vm1817, %v2229, %v2231
        %v2236 = vsel %vm1817, 0.0, %v2228
        %v2237 = vsel %vm1833, %v2232, 0.0
        %v2240 = vrot.slane %v2236, 1
        %v2241 = vrot.slane %v2230, 1
        %v2242 = vsel %vm1837, %v2240, %v2241
        %v2243 = vrot.slane %v2237, 1
        %v2244 = vsel %vm1837, %v2241, %v2243
        %2248 = vmatprep.subr.mxu0 0.0
        %2249 = vmatpush1.msra.mxu0 %v2207
        %2250 = vmatprep.subr.mxu0 0.0
        %2251 = vmatpush1.msra.mxu0 %v2208
        %2252 = vmatprep.subr.mxu0 0.0
        %2253 = vmatpush1.msra.mxu0 %v2209
        %2254 = vmatprep.subr.mxu0 0.0
        %2255 = vmatpush1.msra.mxu0 %v2210
        %2256 = vmatprep.subr.mxu0 0.0
        %2257 = vmatpush1.msra.mxu0 %v2211
        %2258 = vmatprep.subr.mxu0 0.0
        %2259 = vmatpush1.msra.mxu0 %v2212
        %2260 = vmatprep.subr.mxu0 0.0
        %2261 = vmatpush1.msra.mxu0 %v2213
        %2262 = vmatprep.subr.mxu0 0.0
        %2263 = vmatpush1.msra.mxu0 %v2214
        %2264 = vmatprep.subr.mxu0 0.0
        %2265 = vmatpush1.msra.mxu0 %v2215
        %2266 = vmatprep.subr.mxu0 0.0
        %2267 = vmatpush1.msra.mxu0 %v2216
        %2268 = vmatprep.subr.mxu0 0.0
        %2269 = vmatpush1.msra.mxu0 %v2217
        %2270 = vmatprep.subr.mxu0 0.0
        %2271 = vmatpush1.msra.mxu0 %v2218
        %2272 = vmatprep.subr.mxu0 0.0
        %2273 = vmatpush1.msra.mxu0 %v2219
        %2274 = vmatprep.subr.mxu0 0.0
        %2275 = vmatpush1.msra.mxu0 %v2220
        %2276 = vmatprep.subr.mxu0 0.0
        %2277 = vmatpush1.msra.mxu0 %v2221
        %2278 = vmatprep.subr.mxu0 0.0
        %2279 = vmatpush1.msra.mxu0 %v2222
        %2280 = vmatprep.subr.mxu0 0.0
        %2281 = vmatpush1.msra.mxu0 0.0
        %2282 = vmatprep.subr.mxu0 0.0
        %2283 = vmatpush1.msra.mxu0 0.0
        %2284 = vmatprep.subr.mxu0 0.0
        %2285 = vmatpush1.msra.mxu0 0.0
        %2286 = vmatprep.subr.mxu0 0.0
        %2287 = vmatpush1.msra.mxu0 0.0
        %2288 = vmatprep.subr.mxu0 0.0
        %2289 = vmatpush1.msra.mxu0 0.0
        %2290 = vmatprep.subr.mxu0 0.0
        %2291 = vmatpush1.msra.mxu0 0.0
        %2292 = vmatprep.subr.mxu0 0.0
        %2293 = vmatpush1.msra.mxu0 0.0
        %2294 = vmatprep.subr.mxu0 0.0
        %2295 = vmatpush1.msra.mxu0 0.0
        %2296 = vmatprep.subr.mxu0 0.0
        %2297 = vmatpush1.msra.mxu0 0.0
        %2298 = vmatprep.subr.mxu0 0.0
        %2299 = vmatpush1.msra.mxu0 0.0
        %2300 = vmatprep.subr.mxu0 0.0
        %2301 = vmatpush1.msra.mxu0 0.0
        %2302 = vmatprep.subr.mxu0 0.0
        %2303 = vmatpush1.msra.mxu0 0.0
        %2304 = vmatprep.subr.mxu0 0.0
        %2305 = vmatpush1.msra.mxu0 0.0
        %2306 = vmatprep.subr.mxu0 0.0
        %2307 = vmatpush1.msra.mxu0 0.0
        %2308 = vmatprep.subr.mxu0 0.0
        %2309 = vmatpush1.msra.mxu0 0.0
        %2310 = vmatprep.subr.mxu0 0.0
        %2311 = vmatpush1.msra.mxu0 0.0
        %2312 = vmatprep.mubr.f32.mxu0 0.0
        %2313 = vmatmul.mubr.f32.gmra.mrb[0].mxu0 %v2242
        %v2314 = vpop.f32.mrb[0].mxu0
        %v2315 = vadd.f32 0.0, %v2314
        %v2316 = vpop.f32.mrb[0].mxu0
        %2317 = vmatprep.mubr.f32.mxu0 0.0
        %2318 = vmatmul.mubr.f32.gmra.mrb[0].mxu0 %v2244
        %v2319 = vpop.f32.mrb[0].mxu0
        %v2320 = vadd.f32 0.0, %v2319
        %v2321 = vpop.f32.mrb[0].mxu0
        %2322 = vmatprep.mubr.f32.mxu0 0.0
        %2323 = vmatmul.mubr.f32.gmra.mrb[0].mxu0 %v2243
        %v2324 = vpop.f32.mrb[0].mxu0
        %v2325 = vadd.f32 0.0, %v2324
        %v2326 = vpop.f32.mrb[0].mxu0
        %2327 = vdwg.mxu0
        %2328 = vmatprep.subr.mxu0 0.0
        %2329 = vmatpush1.msra.mxu0 %v2190
        %2330 = vmatprep.subr.mxu0 0.0
        %2331 = vmatpush1.msra.mxu0 %v2191
        %2332 = vmatprep.subr.mxu0 0.0
        %2333 = vmatpush1.msra.mxu0 %v2192
        %2334 = vmatprep.subr.mxu0 0.0
        %2335 = vmatpush1.msra.mxu0 %v2193
        %2336 = vmatprep.subr.mxu0 0.0
        %2337 = vmatpush1.msra.mxu0 %v2194
        %2338 = vmatprep.subr.mxu0 0.0
        %2339 = vmatpush1.msra.mxu0 %v2195
        %2340 = vmatprep.subr.mxu0 0.0
        %2341 = vmatpush1.msra.mxu0 %v2196
        %2342 = vmatprep.subr.mxu0 0.0
        %2343 = vmatpush1.msra.mxu0 %v2197
        %2344 = vmatprep.subr.mxu0 0.0
        %2345 = vmatpush1.msra.mxu0 %v2198
        %2346 = vmatprep.subr.mxu0 0.0
        %2347 = vmatpush1.msra.mxu0 %v2199
        %2348 = vmatprep.subr.mxu0 0.0
        %2349 = vmatpush1.msra.mxu0 %v2200
        %2350 = vmatprep.subr.mxu0 0.0
        %2351 = vmatpush1.msra.mxu0 %v2201
        %2352 = vmatprep.subr.mxu0 0.0
        %2353 = vmatpush1.msra.mxu0 %v2202
        %2354 = vmatprep.subr.mxu0 0.0
        %2355 = vmatpush1.msra.mxu0 %v2203
        %2356 = vmatprep.subr.mxu0 0.0
        %2357 = vmatpush1.msra.mxu0 %v2204
        %2358 = vmatprep.subr.mxu0 0.0
        %2359 = vmatpush1.msra.mxu0 %v2205
        %2360 = vmatprep.subr.mxu0 0.0
        %2361 = vmatpush1.msra.mxu0 0.0
        %2362 = vmatprep.subr.mxu0 0.0
        %2363 = vmatpush1.msra.mxu0 0.0
        %2364 = vmatprep.subr.mxu0 0.0
        %2365 = vmatpush1.msra.mxu0 0.0
        %2366 = vmatprep.subr.mxu0 0.0
        %2367 = vmatpush1.msra.mxu0 0.0
        %2368 = vmatprep.subr.mxu0 0.0
        %2369 = vmatpush1.msra.mxu0 0.0
        %2370 = vmatprep.subr.mxu0 0.0
        %2371 = vmatpush1.msra.mxu0 0.0
        %2372 = vmatprep.subr.mxu0 0.0
        %2373 = vmatpush1.msra.mxu0 0.0
        %2374 = vmatprep.subr.mxu0 0.0
        %2375 = vmatpush1.msra.mxu0 0.0
        %2376 = vmatprep.subr.mxu0 0.0
        %2377 = vmatpush1.msra.mxu0 0.0
        %2378 = vmatprep.subr.mxu0 0.0
        %2379 = vmatpush1.msra.mxu0 0.0
        %2380 = vmatprep.subr.mxu0 0.0
        %2381 = vmatpush1.msra.mxu0 0.0
        %2382 = vmatprep.subr.mxu0 0.0
        %2383 = vmatpush1.msra.mxu0 0.0
        %2384 = vmatprep.subr.mxu0 0.0
        %2385 = vmatpush1.msra.mxu0 0.0
        %2386 = vmatprep.subr.mxu0 0.0
        %2387 = vmatpush1.msra.mxu0 0.0
        %2388 = vmatprep.subr.mxu0 0.0
        %2389 = vmatpush1.msra.mxu0 0.0
        %2390 = vmatprep.subr.mxu0 0.0
        %2391 = vmatpush1.msra.mxu0 0.0
        %2392 = vmatprep.mubr.f32.mxu0 0.0
        %2393 = vmatmul.mubr.f32.gmra.mrb[0].mxu0 %v2236
        %v2394 = vpop.f32.mrb[0].mxu0
        %v2395 = vadd.f32 %v2315, %v2394
        %v2396 = vpop.f32.mrb[0].mxu0
        %2397 = vmatprep.mubr.f32.mxu0 0.0
        %2398 = vmatmul.mubr.f32.gmra.mrb[0].mxu0 %v2230
        %v2399 = vpop.f32.mrb[0].mxu0
        %v2400 = vadd.f32 %v2320, %v2399
        %v2401 = vpop.f32.mrb[0].mxu0
        %2402 = vmatprep.mubr.f32.mxu0 0.0
        %2403 = vmatmul.mubr.f32.gmra.mrb[0].mxu0 %v2237
        %v2404 = vpop.f32.mrb[0].mxu0
        %v2405 = vadd.f32 %v2325, %v2404
        %v2406 = vpop.f32.mrb[0].mxu0
        %2407 = vdwg.mxu0
        %v2408 = vlaneseq
        %v2409 = vshrl.u32 %v2408, 7
        %v2410 = vsub.s32 0, %v2409
        %v2411 = vrot.slane %v2223, %v2410
        %v2412 = vmul.f32 %v2395, %v2411
        %v2413 = vmul.f32 %v2400, %v2411
        %v2414 = vmul.f32 %v2405, %v2411
        %v2415 = vlaneseq
        %v2416 = vshrl.u32 %v2415, 7
        %v2417 = vsub.s32 0, %v2416
        %v2418 = vrot.slane %v2224, %v2417
        %v2419 = vadd.f32 %v2412, %v2418
        %v2420 = vadd.f32 %v2413, %v2418
        %v2421 = vadd.f32 %v2414, %v2418
        %v2422 = vmax.f32 %v2419, 0.0
        %v2423 = vmax.f32 %v2420, 0.0
        %v2424 = vmax.f32 %v2421, 0.0
        %v2428 = vrot.slane %v2422, 1
        %v2429 = vrot.slane %v2423, 1
        %v2430 = vsel %vm1837, %v2428, %v2429
        %v2431 = vrot.slane %v2424, 1
        %v2432 = vsel %vm1837, %v2429, %v2431
        %v2436 = vmax.f32 %v2422, %v2430
        %v2437 = vmax.f32 %v2423, %v2432
        %v2438 = vmax.f32 %v2424, %v2431
        %vm2439 = vcmask 138240
        %v2440 = vsel %vm2439, %v2094, 0
        %v2442 = vsel %vm2439, %v2095, 0
        %v2445 = vsel %vm1817, %v2438, 0
        %2447 = vmatprep.subr.mxu0 0.0
        %2448 = vmatpush1.msra.mxu0 %v2436
        %2449 = vmatprep.subr.mxu0 0.0
        %2450 = vmatpush1.msra.mxu0 %v2437
        %2451 = vmatprep.subr.mxu0 0.0
        %2452 = vmatpush1.msra.mxu0 %v2445
        %2453 = vmatprep.subr.mxu0 0.0
        %2454 = vmatpush1.msra.mxu0 0.0
        %2455 = vmatprep.subr.mxu0 0.0
        %2456 = vmatpush1.msra.mxu0 0.0
        %2457 = vmatprep.subr.mxu0 0.0
        %2458 = vmatpush1.msra.mxu0 0.0
        %2459 = vmatprep.subr.mxu0 0.0
        %2460 = vmatpush1.msra.mxu0 0.0
        %2461 = vmatprep.subr.mxu0 0.0
        %2462 = vmatpush1.msra.mxu0 0.0
        %2463 = vmatprep.subr.mxu0 0.0
        %2464 = vmatpush1.msra.mxu0 0.0
        %2465 = vmatprep.subr.mxu0 0.0
        %2466 = vmatpush1.msra.mxu0 0.0
        %2467 = vmatprep.subr.mxu0 0.0
        %2468 = vmatpush1.msra.mxu0 0.0
        %2469 = vmatprep.subr.mxu0 0.0
        %2470 = vmatpush1.msra.mxu0 0.0
        %2471 = vmatprep.subr.mxu0 0.0
        %2472 = vmatpush1.msra.mxu0 0.0
        %2473 = vmatprep.subr.mxu0 0.0
        %2474 = vmatpush1.msra.mxu0 0.0
        %2475 = vmatprep.subr.mxu0 0.0
        %2476 = vmatpush1.msra.mxu0 0.0
        %2477 = vmatprep.subr.mxu0 0.0
        %2478 = vmatpush1.msra.mxu0 0.0
        %2479 = vmatprep.subr.mxu0 0.0
        %2480 = vmatpush1.msra.mxu0 0.0
        %2481 = vmatprep.subr.mxu0 0.0
        %2482 = vmatpush1.msra.mxu0 0.0
        %2483 = vmatprep.subr.mxu0 0.0
        %2484 = vmatpush1.msra.mxu0 0.0
        %2485 = vmatprep.subr.mxu0 0.0
        %2486 = vmatpush1.msra.mxu0 0.0
        %2487 = vmatprep.subr.mxu0 0.0
        %2488 = vmatpush1.msra.mxu0 0.0
        %2489 = vmatprep.subr.mxu0 0.0
        %2490 = vmatpush1.msra.mxu0 0.0
        %2491 = vmatprep.subr.mxu0 0.0
        %2492 = vmatpush1.msra.mxu0 0.0
        %2493 = vmatprep.subr.mxu0 0.0
        %2494 = vmatpush1.msra.mxu0 0.0
        %2495 = vmatprep.subr.mxu0 0.0
        %2496 = vmatpush1.msra.mxu0 0.0
        %2497 = vmatprep.subr.mxu0 0.0
        %2498 = vmatpush1.msra.mxu0 0.0
        %2499 = vmatprep.subr.mxu0 0.0
        %2500 = vmatpush1.msra.mxu0 0.0
        %2501 = vmatprep.subr.mxu0 0.0
        %2502 = vmatpush1.msra.mxu0 0.0
        %2503 = vmatprep.subr.mxu0 0.0
        %2504 = vmatpush1.msra.mxu0 0.0
        %2505 = vmatprep.subr.mxu0 0.0
        %2506 = vmatpush1.msra.mxu0 0.0
        %2507 = vmatprep.subr.mxu0 0.0
        %2508 = vmatpush1.msra.mxu0 0.0
        %2509 = vmatprep.subr.mxu0 0.0
        %2510 = vmatpush1.msra.mxu0 0.0
        %2511 = vmatprep.mubr.f32.mxu0 0.0
        %2512 = vmatmul.mubr.f32.gmra.mrb[0].mxu0 %v2440
        %v2513 = vpop.f32.mrb[0].mxu0
        %v2514 = vadd.f32 0.0, %v2513
        %v2515 = vpop.f32.mrb[0].mxu0
        %2516 = vmatprep.mubr.f32.mxu0 0.0
        %2517 = vmatmul.mubr.f32.gmra.mrb[0].mxu0 %v2442
        %v2518 = vpop.f32.mrb[0].mxu0
        %v2519 = vadd.f32 0.0, %v2518
        %v2520 = vpop.f32.mrb[0].mxu0
        %2521 = vdwg.mxu0
        %v2522 = vld [vmem:[#allocation8] sm:$0xff]
        %v2523 = vld [vmem:[#allocation8 + $0x8] sm:$0xff]
        %v2524 = vld [vmem:[#allocation8 + $0x10] sm:$0xff]
        %v2525 = vld [vmem:[#allocation8 + $0x18] sm:$0xff]
        %v2526 = vld [vmem:[#allocation8 + $0x20] sm:$0xff]
        %v2527 = vld [vmem:[#allocation8 + $0x28] sm:$0xff]
        %v2528 = vld [vmem:[#allocation8 + $0x30] sm:$0xff]
        %v2529 = vld [vmem:[#allocation8 + $0x38] sm:$0xff]
        %v2530 = vld [vmem:[#allocation8 + $0x40] sm:$0xff]
        %v2531 = vld [vmem:[#allocation8 + $0x48] sm:$0xff]
        %v2532 = vld [vmem:[#allocation8 + $0x50] sm:$0xff]
        %v2533 = vld [vmem:[#allocation8 + $0x58] sm:$0xff]
        %v2534 = vld [vmem:[#allocation8 + $0x60] sm:$0xff]
        %v2535 = vld [vmem:[#allocation8 + $0x68] sm:$0xff]
        %v2536 = vld [vmem:[#allocation8 + $0x70] sm:$0xff]
        %v2537 = vld [vmem:[#allocation8 + $0x78] sm:$0xff]
        %s2538 = scalar_lea.vmem [#allocation8], 128
        %v2539 = vld [vmem:[%s2538] sm:$0xff]
        %v2540 = vld [vmem:[%s2538 + $0x8] sm:$0xff]
        %v2541 = vld [vmem:[%s2538 + $0x10] sm:$0xff]
        %v2542 = vld [vmem:[%s2538 + $0x18] sm:$0xff]
        %v2543 = vld [vmem:[%s2538 + $0x20] sm:$0xff]
        %v2544 = vld [vmem:[%s2538 + $0x28] sm:$0xff]
        %v2545 = vld [vmem:[%s2538 + $0x30] sm:$0xff]
        %v2546 = vld [vmem:[%s2538 + $0x38] sm:$0xff]
        %v2547 = vld [vmem:[%s2538 + $0x40] sm:$0xff]
        %v2548 = vld [vmem:[%s2538 + $0x48] sm:$0xff]
        %v2549 = vld [vmem:[%s2538 + $0x50] sm:$0xff]
        %v2550 = vld [vmem:[%s2538 + $0x58] sm:$0xff]
        %v2551 = vld [vmem:[%s2538 + $0x60] sm:$0xff]
        %v2552 = vld [vmem:[%s2538 + $0x68] sm:$0xff]
        %v2553 = vld [vmem:[%s2538 + $0x70] sm:$0xff]
        %v2554 = vld [vmem:[%s2538 + $0x78] sm:$0xff]
        %v2555 = vld [vmem:[#allocation10] sm:$0x1]
        %v2556 = vld [vmem:[#allocation10 + $0x1] sm:$0x1]
        %v2559 = vrot.slane %v2514, 7
        %v2560 = vrot.slane %v2519, 7
        %v2561 = vsel %vm1817, %v2559, %v2560
        %v2564 = vsel %vm1817, 0.0, %v2559
        %v2565 = vsel %vm1833, %v2561, 0.0
        %v2568 = vrot.slane %v2564, 1
        %v2569 = vrot.slane %v2565, 1
        %v2570 = vsel %vm1837, %v2568, %v2569
        %2573 = vmatprep.subr.mxu0 0.0
        %2574 = vmatpush1.msra.mxu0 %v2539
        %2575 = vmatprep.subr.mxu0 0.0
        %2576 = vmatpush1.msra.mxu0 %v2540
        %2577 = vmatprep.subr.mxu0 0.0
        %2578 = vmatpush1.msra.mxu0 %v2541
        %2579 = vmatprep.subr.mxu0 0.0
        %2580 = vmatpush1.msra.mxu0 %v2542
        %2581 = vmatprep.subr.mxu0 0.0
        %2582 = vmatpush1.msra.mxu0 %v2543
        %2583 = vmatprep.subr.mxu0 0.0
        %2584 = vmatpush1.msra.mxu0 %v2544
        %2585 = vmatprep.subr.mxu0 0.0
        %2586 = vmatpush1.msra.mxu0 %v2545
        %2587 = vmatprep.subr.mxu0 0.0
        %2588 = vmatpush1.msra.mxu0 %v2546
        %2589 = vmatprep.subr.mxu0 0.0
        %2590 = vmatpush1.msra.mxu0 %v2547
        %2591 = vmatprep.subr.mxu0 0.0
        %2592 = vmatpush1.msra.mxu0 %v2548
        %2593 = vmatprep.subr.mxu0 0.0
        %2594 = vmatpush1.msra.mxu0 %v2549
        %2595 = vmatprep.subr.mxu0 0.0
        %2596 = vmatpush1.msra.mxu0 %v2550
        %2597 = vmatprep.subr.mxu0 0.0
        %2598 = vmatpush1.msra.mxu0 %v2551
        %2599 = vmatprep.subr.mxu0 0.0
        %2600 = vmatpush1.msra.mxu0 %v2552
        %2601 = vmatprep.subr.mxu0 0.0
        %2602 = vmatpush1.msra.mxu0 %v2553
        %2603 = vmatprep.subr.mxu0 0.0
        %2604 = vmatpush1.msra.mxu0 %v2554
        %2605 = vmatprep.subr.mxu0 0.0
        %2606 = vmatpush1.msra.mxu0 0.0
        %2607 = vmatprep.subr.mxu0 0.0
        %2608 = vmatpush1.msra.mxu0 0.0
        %2609 = vmatprep.subr.mxu0 0.0
        %2610 = vmatpush1.msra.mxu0 0.0
        %2611 = vmatprep.subr.mxu0 0.0
        %2612 = vmatpush1.msra.mxu0 0.0
        %2613 = vmatprep.subr.mxu0 0.0
        %2614 = vmatpush1.msra.mxu0 0.0
        %2615 = vmatprep.subr.mxu0 0.0
        %2616 = vmatpush1.msra.mxu0 0.0
        %2617 = vmatprep.subr.mxu0 0.0
        %2618 = vmatpush1.msra.mxu0 0.0
        %2619 = vmatprep.subr.mxu0 0.0
        %2620 = vmatpush1.msra.mxu0 0.0
        %2621 = vmatprep.subr.mxu0 0.0
        %2622 = vmatpush1.msra.mxu0 0.0
        %2623 = vmatprep.subr.mxu0 0.0
        %2624 = vmatpush1.msra.mxu0 0.0
        %2625 = vmatprep.subr.mxu0 0.0
        %2626 = vmatpush1.msra.mxu0 0.0
        %2627 = vmatprep.subr.mxu0 0.0
        %2628 = vmatpush1.msra.mxu0 0.0
        %2629 = vmatprep.subr.mxu0 0.0
        %2630 = vmatpush1.msra.mxu0 0.0
        %2631 = vmatprep.subr.mxu0 0.0
        %2632 = vmatpush1.msra.mxu0 0.0
        %2633 = vmatprep.subr.mxu0 0.0
        %2634 = vmatpush1.msra.mxu0 0.0
        %2635 = vmatprep.subr.mxu0 0.0
        %2636 = vmatpush1.msra.mxu0 0.0
        %2637 = vmatprep.mubr.f32.mxu0 0.0
        %2638 = vmatmul.mubr.f32.gmra.mrb[0].mxu0 %v2570
        %v2639 = vpop.f32.mrb[0].mxu0
        %v2640 = vadd.f32 0.0, %v2639
        %v2641 = vpop.f32.mrb[0].mxu0
        %2642 = vmatprep.mubr.f32.mxu0 0.0
        %2643 = vmatmul.mubr.f32.gmra.mrb[0].mxu0 %v2569
        %v2644 = vpop.f32.mrb[0].mxu0
        %v2645 = vadd.f32 0.0, %v2644
        %v2646 = vpop.f32.mrb[0].mxu0
        %2647 = vdwg.mxu0
        %2648 = vmatprep.subr.mxu0 0.0
        %2649 = vmatpush1.msra.mxu0 %v2522
        %2650 = vmatprep.subr.mxu0 0.0
        %2651 = vmatpush1.msra.mxu0 %v2523
        %2652 = vmatprep.subr.mxu0 0.0
        %2653 = vmatpush1.msra.mxu0 %v2524
        %2654 = vmatprep.subr.mxu0 0.0
        %2655 = vmatpush1.msra.mxu0 %v2525
        %2656 = vmatprep.subr.mxu0 0.0
        %2657 = vmatpush1.msra.mxu0 %v2526
        %2658 = vmatprep.subr.mxu0 0.0
        %2659 = vmatpush1.msra.mxu0 %v2527
        %2660 = vmatprep.subr.mxu0 0.0
        %2661 = vmatpush1.msra.mxu0 %v2528
        %2662 = vmatprep.subr.mxu0 0.0
        %2663 = vmatpush1.msra.mxu0 %v2529
        %2664 = vmatprep.subr.mxu0 0.0
        %2665 = vmatpush1.msra.mxu0 %v2530
        %2666 = vmatprep.subr.mxu0 0.0
        %2667 = vmatpush1.msra.mxu0 %v2531
        %2668 = vmatprep.subr.mxu0 0.0
        %2669 = vmatpush1.msra.mxu0 %v2532
        %2670 = vmatprep.subr.mxu0 0.0
        %2671 = vmatpush1.msra.mxu0 %v2533
        %2672 = vmatprep.subr.mxu0 0.0
        %2673 = vmatpush1.msra.mxu0 %v2534
        %2674 = vmatprep.subr.mxu0 0.0
        %2675 = vmatpush1.msra.mxu0 %v2535
        %2676 = vmatprep.subr.mxu0 0.0
        %2677 = vmatpush1.msra.mxu0 %v2536
        %2678 = vmatprep.subr.mxu0 0.0
        %2679 = vmatpush1.msra.mxu0 %v2537
        %2680 = vmatprep.subr.mxu0 0.0
        %2681 = vmatpush1.msra.mxu0 0.0
        %2682 = vmatprep.subr.mxu0 0.0
        %2683 = vmatpush1.msra.mxu0 0.0
        %2684 = vmatprep.subr.mxu0 0.0
        %2685 = vmatpush1.msra.mxu0 0.0
        %2686 = vmatprep.subr.mxu0 0.0
        %2687 = vmatpush1.msra.mxu0 0.0
        %2688 = vmatprep.subr.mxu0 0.0
        %2689 = vmatpush1.msra.mxu0 0.0
        %2690 = vmatprep.subr.mxu0 0.0
        %2691 = vmatpush1.msra.mxu0 0.0
        %2692 = vmatprep.subr.mxu0 0.0
        %2693 = vmatpush1.msra.mxu0 0.0
        %2694 = vmatprep.subr.mxu0 0.0
        %2695 = vmatpush1.msra.mxu0 0.0
        %2696 = vmatprep.subr.mxu0 0.0
        %2697 = vmatpush1.msra.mxu0 0.0
        %2698 = vmatprep.subr.mxu0 0.0
        %2699 = vmatpush1.msra.mxu0 0.0
        %2700 = vmatprep.subr.mxu0 0.0
        %2701 = vmatpush1.msra.mxu0 0.0
        %2702 = vmatprep.subr.mxu0 0.0
        %2703 = vmatpush1.msra.mxu0 0.0
        %2704 = vmatprep.subr.mxu0 0.0
        %2705 = vmatpush1.msra.mxu0 0.0
        %2706 = vmatprep.subr.mxu0 0.0
        %2707 = vmatpush1.msra.mxu0 0.0
        %2708 = vmatprep.subr.mxu0 0.0
        %2709 = vmatpush1.msra.mxu0 0.0
        %2710 = vmatprep.subr.mxu0 0.0
        %2711 = vmatpush1.msra.mxu0 0.0
        %2712 = vmatprep.mubr.f32.mxu0 0.0
        %2713 = vmatmul.mubr.f32.gmra.mrb[0].mxu0 %v2564
        %v2714 = vpop.f32.mrb[0].mxu0
        %v2715 = vadd.f32 %v2640, %v2714
        %v2716 = vpop.f32.mrb[0].mxu0
        %2717 = vmatprep.mubr.f32.mxu0 0.0
        %2718 = vmatmul.mubr.f32.gmra.mrb[0].mxu0 %v2565
        %v2719 = vpop.f32.mrb[0].mxu0
        %v2720 = vadd.f32 %v2645, %v2719
        %v2721 = vpop.f32.mrb[0].mxu0
        %2722 = vdwg.mxu0
        %v2723 = vlaneseq
        %v2724 = vshrl.u32 %v2723, 7
        %v2725 = vsub.s32 0, %v2724
        %v2726 = vrot.slane %v2555, %v2725
        %v2727 = vmul.f32 %v2715, %v2726
        %v2728 = vmul.f32 %v2720, %v2726
        %v2729 = vlaneseq
        %v2730 = vshrl.u32 %v2729, 7
        %v2731 = vsub.s32 0, %v2730
        %v2732 = vrot.slane %v2556, %v2731
        %v2733 = vadd.f32 %v2727, %v2732
        %v2734 = vadd.f32 %v2728, %v2732
        %v2735 = vmax.f32 %v2733, 0.0
        %v2736 = vmax.f32 %v2734, 0.0
        %v2739 = vrot.slane %v2735, 1
        %v2740 = vrot.slane %v2736, 1
        %v2741 = vsel %vm1837, %v2739, %v2740
        %v2744 = vmax.f32 %v2735, %v2741
        %v2745 = vmax.f32 %v2736, %v2740
        %vm2746 = vcmask 72704
        %v2747 = vsel %vm2746, %v2094, 0
        %v2750 = vsel %vm1817, %v2745, 0
        %2752 = vmatprep.subr.mxu0 0.0
        %2753 = vmatpush1.msra.mxu0 %v2744
        %2754 = vmatprep.subr.mxu0 0.0
        %2755 = vmatpush1.msra.mxu0 %v2750
        %2756 = vmatprep.subr.mxu0 0.0
        %2757 = vmatpush1.msra.mxu0 0.0
        %2758 = vmatprep.subr.mxu0 0.0
        %2759 = vmatpush1.msra.mxu0 0.0
        %2760 = vmatprep.subr.mxu0 0.0
        %2761 = vmatpush1.msra.mxu0 0.0
        %2762 = vmatprep.subr.mxu0 0.0
        %2763 = vmatpush1.msra.mxu0 0.0
        %2764 = vmatprep.subr.mxu0 0.0
        %2765 = vmatpush1.msra.mxu0 0.0
        %2766 = vmatprep.subr.mxu0 0.0
        %2767 = vmatpush1.msra.mxu0 0.0
        %2768 = vmatprep.subr.mxu0 0.0
        %2769 = vmatpush1.msra.mxu0 0.0
        %2770 = vmatprep.subr.mxu0 0.0
        %2771 = vmatpush1.msra.mxu0 0.0
        %2772 = vmatprep.subr.mxu0 0.0
        %2773 = vmatpush1.msra.mxu0 0.0
        %2774 = vmatprep.subr.mxu0 0.0
        %2775 = vmatpush1.msra.mxu0 0.0
        %2776 = vmatprep.subr.mxu0 0.0
        %2777 = vmatpush1.msra.mxu0 0.0
        %2778 = vmatprep.subr.mxu0 0.0
        %2779 = vmatpush1.msra.mxu0 0.0
        %2780 = vmatprep.subr.mxu0 0.0
        %2781 = vmatpush1.msra.mxu0 0.0
        %2782 = vmatprep.subr.mxu0 0.0
        %2783 = vmatpush1.msra.mxu0 0.0
        %2784 = vmatprep.subr.mxu0 0.0
        %2785 = vmatpush1.msra.mxu0 0.0
        %2786 = vmatprep.subr.mxu0 0.0
        %2787 = vmatpush1.msra.mxu0 0.0
        %2788 = vmatprep.subr.mxu0 0.0
        %2789 = vmatpush1.msra.mxu0 0.0
        %2790 = vmatprep.subr.mxu0 0.0
        %2791 = vmatpush1.msra.mxu0 0.0
        %2792 = vmatprep.subr.mxu0 0.0
        %2793 = vmatpush1.msra.mxu0 0.0
        %2794 = vmatprep.subr.mxu0 0.0
        %2795 = vmatpush1.msra.mxu0 0.0
        %2796 = vmatprep.subr.mxu0 0.0
        %2797 = vmatpush1.msra.mxu0 0.0
        %2798 = vmatprep.subr.mxu0 0.0
        %2799 = vmatpush1.msra.mxu0 0.0
        %2800 = vmatprep.subr.mxu0 0.0
        %2801 = vmatpush1.msra.mxu0 0.0
        %2802 = vmatprep.subr.mxu0 0.0
        %2803 = vmatpush1.msra.mxu0 0.0
        %2804 = vmatprep.subr.mxu0 0.0
        %2805 = vmatpush1.msra.mxu0 0.0
        %2806 = vmatprep.subr.mxu0 0.0
        %2807 = vmatpush1.msra.mxu0 0.0
        %2808 = vmatprep.subr.mxu0 0.0
        %2809 = vmatpush1.msra.mxu0 0.0
        %2810 = vmatprep.subr.mxu0 0.0
        %2811 = vmatpush1.msra.mxu0 0.0
        %2812 = vmatprep.subr.mxu0 0.0
        %2813 = vmatpush1.msra.mxu0 0.0
        %2814 = vmatprep.subr.mxu0 0.0
        %2815 = vmatpush1.msra.mxu0 0.0
        %2816 = vmatprep.mubr.f32.mxu0 0.0
        %2817 = vmatmul.mubr.f32.gmra.mrb[0].mxu0 %v2747
        %v2818 = vpop.f32.mrb[0].mxu0
        %v2819 = vadd.f32 0.0, %v2818
        %v2820 = vpop.f32.mrb[0].mxu0
        %2821 = vdwg.mxu0
        %v2822 = vld [vmem:[#allocation11] sm:$0xff]
        %v2823 = vld [vmem:[#allocation11 + $0x8] sm:$0xff]
        %v2824 = vld [vmem:[#allocation11 + $0x10] sm:$0xff]
        %v2825 = vld [vmem:[#allocation11 + $0x18] sm:$0xff]
        %v2826 = vld [vmem:[#allocation11 + $0x20] sm:$0xff]
        %v2827 = vld [vmem:[#allocation11 + $0x28] sm:$0xff]
        %v2828 = vld [vmem:[#allocation11 + $0x30] sm:$0xff]
        %v2829 = vld [vmem:[#allocation11 + $0x38] sm:$0xff]
        %v2830 = vld [vmem:[#allocation11 + $0x40] sm:$0xff]
        %v2831 = vld [vmem:[#allocation11 + $0x48] sm:$0xff]
        %v2832 = vld [vmem:[#allocation11 + $0x50] sm:$0xff]
        %v2833 = vld [vmem:[#allocation11 + $0x58] sm:$0xff]
        %v2834 = vld [vmem:[#allocation11 + $0x60] sm:$0xff]
        %v2835 = vld [vmem:[#allocation11 + $0x68] sm:$0xff]
        %v2836 = vld [vmem:[#allocation11 + $0x70] sm:$0xff]
        %v2837 = vld [vmem:[#allocation11 + $0x78] sm:$0xff]
        %s2838 = scalar_lea.vmem [#allocation11], 128
        %v2839 = vld [vmem:[%s2838] sm:$0xff]
        %v2840 = vld [vmem:[%s2838 + $0x8] sm:$0xff]
        %v2841 = vld [vmem:[%s2838 + $0x10] sm:$0xff]
        %v2842 = vld [vmem:[%s2838 + $0x18] sm:$0xff]
        %v2843 = vld [vmem:[%s2838 + $0x20] sm:$0xff]
        %v2844 = vld [vmem:[%s2838 + $0x28] sm:$0xff]
        %v2845 = vld [vmem:[%s2838 + $0x30] sm:$0xff]
        %v2846 = vld [vmem:[%s2838 + $0x38] sm:$0xff]
        %v2847 = vld [vmem:[%s2838 + $0x40] sm:$0xff]
        %v2848 = vld [vmem:[%s2838 + $0x48] sm:$0xff]
        %v2849 = vld [vmem:[%s2838 + $0x50] sm:$0xff]
        %v2850 = vld [vmem:[%s2838 + $0x58] sm:$0xff]
        %v2851 = vld [vmem:[%s2838 + $0x60] sm:$0xff]
        %v2852 = vld [vmem:[%s2838 + $0x68] sm:$0xff]
        %v2853 = vld [vmem:[%s2838 + $0x70] sm:$0xff]
        %v2854 = vld [vmem:[%s2838 + $0x78] sm:$0xff]
        %v2855 = vld [vmem:[#allocation13] sm:$0x1]
        %v2856 = vld [vmem:[#allocation13 + $0x1] sm:$0x1]
        %v2858 = vrot.slane %v2819, 7
        %v2860 = vsel %vm1817, 0.0, %v2858
        %vm2861 = vcmask 1045504
        %v2862 = vsel %vm2861, %v2860, 0.0
        %v2864 = vrot.slane %v2862, 1
        %2866 = vmatprep.subr.mxu0 0.0
        %2867 = vmatpush1.msra.mxu0 %v2839
        %2868 = vmatprep.subr.mxu0 0.0
        %2869 = vmatpush1.msra.mxu0 %v2840
        %2870 = vmatprep.subr.mxu0 0.0
        %2871 = vmatpush1.msra.mxu0 %v2841
        %2872 = vmatprep.subr.mxu0 0.0
        %2873 = vmatpush1.msra.mxu0 %v2842
        %2874 = vmatprep.subr.mxu0 0.0
        %2875 = vmatpush1.msra.mxu0 %v2843
        %2876 = vmatprep.subr.mxu0 0.0
        %2877 = vmatpush1.msra.mxu0 %v2844
        %2878 = vmatprep.subr.mxu0 0.0
        %2879 = vmatpush1.msra.mxu0 %v2845
        %2880 = vmatprep.subr.mxu0 0.0
        %2881 = vmatpush1.msra.mxu0 %v2846
        %2882 = vmatprep.subr.mxu0 0.0
        %2883 = vmatpush1.msra.mxu0 %v2847
        %2884 = vmatprep.subr.mxu0 0.0
        %2885 = vmatpush1.msra.mxu0 %v2848
        %2886 = vmatprep.subr.mxu0 0.0
        %2887 = vmatpush1.msra.mxu0 %v2849
        %2888 = vmatprep.subr.mxu0 0.0
        %2889 = vmatpush1.msra.mxu0 %v2850
        %2890 = vmatprep.subr.mxu0 0.0
        %2891 = vmatpush1.msra.mxu0 %v2851
        %2892 = vmatprep.subr.mxu0 0.0
        %2893 = vmatpush1.msra.mxu0 %v2852
        %2894 = vmatprep.subr.mxu0 0.0
        %2895 = vmatpush1.msra.mxu0 %v2853
        %2896 = vmatprep.subr.mxu0 0.0
        %2897 = vmatpush1.msra.mxu0 %v2854
        %2898 = vmatprep.subr.mxu0 0.0
        %2899 = vmatpush1.msra.mxu0 0.0
        %2900 = vmatprep.subr.mxu0 0.0
        %2901 = vmatpush1.msra.mxu0 0.0
        %2902 = vmatprep.subr.mxu0 0.0
        %2903 = vmatpush1.msra.mxu0 0.0
        %2904 = vmatprep.subr.mxu0 0.0
        %2905 = vmatpush1.msra.mxu0 0.0
        %2906 = vmatprep.subr.mxu0 0.0
        %2907 = vmatpush1.msra.mxu0 0.0
        %2908 = vmatprep.subr.mxu0 0.0
        %2909 = vmatpush1.msra.mxu0 0.0
        %2910 = vmatprep.subr.mxu0 0.0
        %2911 = vmatpush1.msra.mxu0 0.0
        %2912 = vmatprep.subr.mxu0 0.0
        %2913 = vmatpush1.msra.mxu0 0.0
        %2914 = vmatprep.subr.mxu0 0.0
        %2915 = vmatpush1.msra.mxu0 0.0
        %2916 = vmatprep.subr.mxu0 0.0
        %2917 = vmatpush1.msra.mxu0 0.0
        %2918 = vmatprep.subr.mxu0 0.0
        %2919 = vmatpush1.msra.mxu0 0.0
        %2920 = vmatprep.subr.mxu0 0.0
        %2921 = vmatpush1.msra.mxu0 0.0
        %2922 = vmatprep.subr.mxu0 0.0
        %2923 = vmatpush1.msra.mxu0 0.0
        %2924 = vmatprep.subr.mxu0 0.0
        %2925 = vmatpush1.msra.mxu0 0.0
        %2926 = vmatprep.subr.mxu0 0.0
        %2927 = vmatpush1.msra.mxu0 0.0
        %2928 = vmatprep.subr.mxu0 0.0
        %2929 = vmatpush1.msra.mxu0 0.0
        %2930 = vmatprep.mubr.f32.mxu0 0.0
        %2931 = vmatmul.mubr.f32.gmra.mrb[0].mxu0 %v2864
        %v2932 = vpop.f32.mrb[0].mxu0
        %v2933 = vadd.f32 0.0, %v2932
        %v2934 = vpop.f32.mrb[0].mxu0
        %2935 = vdwg.mxu0
        %2936 = vmatprep.subr.mxu0 0.0
        %2937 = vmatpush1.msra.mxu0 %v2822
        %2938 = vmatprep.subr.mxu0 0.0
        %2939 = vmatpush1.msra.mxu0 %v2823
        %2940 = vmatprep.subr.mxu0 0.0
        %2941 = vmatpush1.msra.mxu0 %v2824
        %2942 = vmatprep.subr.mxu0 0.0
        %2943 = vmatpush1.msra.mxu0 %v2825
        %2944 = vmatprep.subr.mxu0 0.0
        %2945 = vmatpush1.msra.mxu0 %v2826
        %2946 = vmatprep.subr.mxu0 0.0
        %2947 = vmatpush1.msra.mxu0 %v2827
        %2948 = vmatprep.subr.mxu0 0.0
        %2949 = vmatpush1.msra.mxu0 %v2828
        %2950 = vmatprep.subr.mxu0 0.0
        %2951 = vmatpush1.msra.mxu0 %v2829
        %2952 = vmatprep.subr.mxu0 0.0
        %2953 = vmatpush1.msra.mxu0 %v2830
        %2954 = vmatprep.subr.mxu0 0.0
        %2955 = vmatpush1.msra.mxu0 %v2831
        %2956 = vmatprep.subr.mxu0 0.0
        %2957 = vmatpush1.msra.mxu0 %v2832
        %2958 = vmatprep.subr.mxu0 0.0
        %2959 = vmatpush1.msra.mxu0 %v2833
        %2960 = vmatprep.subr.mxu0 0.0
        %2961 = vmatpush1.msra.mxu0 %v2834
        %2962 = vmatprep.subr.mxu0 0.0
        %2963 = vmatpush1.msra.mxu0 %v2835
        %2964 = vmatprep.subr.mxu0 0.0
        %2965 = vmatpush1.msra.mxu0 %v2836
        %2966 = vmatprep.subr.mxu0 0.0
        %2967 = vmatpush1.msra.mxu0 %v2837
        %2968 = vmatprep.subr.mxu0 0.0
        %2969 = vmatpush1.msra.mxu0 0.0
        %2970 = vmatprep.subr.mxu0 0.0
        %2971 = vmatpush1.msra.mxu0 0.0
        %2972 = vmatprep.subr.mxu0 0.0
        %2973 = vmatpush1.msra.mxu0 0.0
        %2974 = vmatprep.subr.mxu0 0.0
        %2975 = vmatpush1.msra.mxu0 0.0
        %2976 = vmatprep.subr.mxu0 0.0
        %2977 = vmatpush1.msra.mxu0 0.0
        %2978 = vmatprep.subr.mxu0 0.0
        %2979 = vmatpush1.msra.mxu0 0.0
        %2980 = vmatprep.subr.mxu0 0.0
        %2981 = vmatpush1.msra.mxu0 0.0
        %2982 = vmatprep.subr.mxu0 0.0
        %2983 = vmatpush1.msra.mxu0 0.0
        %2984 = vmatprep.subr.mxu0 0.0
        %2985 = vmatpush1.msra.mxu0 0.0
        %2986 = vmatprep.subr.mxu0 0.0
        %2987 = vmatpush1.msra.mxu0 0.0
        %2988 = vmatprep.subr.mxu0 0.0
        %2989 = vmatpush1.msra.mxu0 0.0
        %2990 = vmatprep.subr.mxu0 0.0
        %2991 = vmatpush1.msra.mxu0 0.0
        %2992 = vmatprep.subr.mxu0 0.0
        %2993 = vmatpush1.msra.mxu0 0.0
        %2994 = vmatprep.subr.mxu0 0.0
        %2995 = vmatpush1.msra.mxu0 0.0
        %2996 = vmatprep.subr.mxu0 0.0
        %2997 = vmatpush1.msra.mxu0 0.0
        %2998 = vmatprep.subr.mxu0 0.0
        %2999 = vmatpush1.msra.mxu0 0.0
        %3000 = vmatprep.mubr.f32.mxu0 0.0
        %3001 = vmatmul.mubr.f32.gmra.mrb[0].mxu0 %v2862
        %v3002 = vpop.f32.mrb[0].mxu0
        %v3003 = vadd.f32 %v2933, %v3002
        %v3004 = vpop.f32.mrb[0].mxu0
        %3005 = vdwg.mxu0
        %v3006 = vlaneseq
        %v3007 = vshrl.u32 %v3006, 7
        %v3008 = vsub.s32 0, %v3007
        %v3009 = vrot.slane %v2855, %v3008
        %v3010 = vmul.f32 %v3003, %v3009
        %v3011 = vlaneseq
        %v3012 = vshrl.u32 %v3011, 7
        %v3013 = vsub.s32 0, %v3012
        %v3014 = vrot.slane %v2856, %v3013
        %v3015 = vadd.f32 %v3010, %v3014
        %v3016 = vmax.f32 %v3015, 0.0
        %v3018 = vrot.slane %v3016, 1
        %v3020 = vmax.f32 %v3016, %v3018
        %vm3021 = vcmask 39936
        %v3022 = vsel %vm3021, %v2094, 0
        %vm3024 = vcmask 1044480
        %v3026 = vsel %vm3024, %v3020, 0
        %3028 = vmatprep.subr.mxu0 0.0
        %3029 = vmatpush1.msra.mxu0 %v3026
        %3030 = vmatprep.subr.mxu0 0.0
        %3031 = vmatpush1.msra.mxu0 0.0
        %3032 = vmatprep.subr.mxu0 0.0
        %3033 = vmatpush1.msra.mxu0 0.0
        %3034 = vmatprep.subr.mxu0 0.0
        %3035 = vmatpush1.msra.mxu0 0.0
        %3036 = vmatprep.subr.mxu0 0.0
        %3037 = vmatpush1.msra.mxu0 0.0
        %3038 = vmatprep.subr.mxu0 0.0
        %3039 = vmatpush1.msra.mxu0 0.0
        %3040 = vmatprep.subr.mxu0 0.0
        %3041 = vmatpush1.msra.mxu0 0.0
        %3042 = vmatprep.subr.mxu0 0.0
        %3043 = vmatpush1.msra.mxu0 0.0
        %3044 = vmatprep.subr.mxu0 0.0
        %3045 = vmatpush1.msra.mxu0 0.0
        %3046 = vmatprep.subr.mxu0 0.0
        %3047 = vmatpush1.msra.mxu0 0.0
        %3048 = vmatprep.subr.mxu0 0.0
        %3049 = vmatpush1.msra.mxu0 0.0
        %3050 = vmatprep.subr.mxu0 0.0
        %3051 = vmatpush1.msra.mxu0 0.0
        %3052 = vmatprep.subr.mxu0 0.0
        %3053 = vmatpush1.msra.mxu0 0.0
        %3054 = vmatprep.subr.mxu0 0.0
        %3055 = vmatpush1.msra.mxu0 0.0
        %3056 = vmatprep.subr.mxu0 0.0
        %3057 = vmatpush1.msra.mxu0 0.0
        %3058 = vmatprep.subr.mxu0 0.0
        %3059 = vmatpush1.msra.mxu0 0.0
        %3060 = vmatprep.subr.mxu0 0.0
        %3061 = vmatpush1.msra.mxu0 0.0
        %3062 = vmatprep.subr.mxu0 0.0
        %3063 = vmatpush1.msra.mxu0 0.0
        %3064 = vmatprep.subr.mxu0 0.0
        %3065 = vmatpush1.msra.mxu0 0.0
        %3066 = vmatprep.subr.mxu0 0.0
        %3067 = vmatpush1.msra.mxu0 0.0
        %3068 = vmatprep.subr.mxu0 0.0
        %3069 = vmatpush1.msra.mxu0 0.0
        %3070 = vmatprep.subr.mxu0 0.0
        %3071 = vmatpush1.msra.mxu0 0.0
        %3072 = vmatprep.subr.mxu0 0.0
        %3073 = vmatpush1.msra.mxu0 0.0
        %3074 = vmatprep.subr.mxu0 0.0
        %3075 = vmatpush1.msra.mxu0 0.0
        %3076 = vmatprep.subr.mxu0 0.0
        %3077 = vmatpush1.msra.mxu0 0.0
        %3078 = vmatprep.subr.mxu0 0.0
        %3079 = vmatpush1.msra.mxu0 0.0
        %3080 = vmatprep.subr.mxu0 0.0
        %3081 = vmatpush1.msra.mxu0 0.0
        %3082 = vmatprep.subr.mxu0 0.0
        %3083 = vmatpush1.msra.mxu0 0.0
        %3084 = vmatprep.subr.mxu0 0.0
        %3085 = vmatpush1.msra.mxu0 0.0
        %3086 = vmatprep.subr.mxu0 0.0
        %3087 = vmatpush1.msra.mxu0 0.0
        %3088 = vmatprep.subr.mxu0 0.0
        %3089 = vmatpush1.msra.mxu0 0.0
        %3090 = vmatprep.subr.mxu0 0.0
        %3091 = vmatpush1.msra.mxu0 0.0
        %3092 = vmatprep.mubr.f32.mxu0 0.0
        %3093 = vmatmul.mubr.f32.gmra.mrb[0].mxu0 %v3022
        %v3094 = vpop.f32.mrb[0].mxu0
        %v3095 = vadd.f32 0.0, %v3094
        %v3096 = vpop.f32.mrb[0].mxu0
        %3097 = vdwg.mxu0
        %v3098 = vld [vmem:[#allocation14] sm:$0xff]
        %v3099 = vld [vmem:[#allocation14 + $0x8] sm:$0xff]
        %v3100 = vld [vmem:[#allocation14 + $0x10] sm:$0xff]
        %v3101 = vld [vmem:[#allocation14 + $0x18] sm:$0xff]
        %v3102 = vld [vmem:[#allocation14 + $0x20] sm:$0xff]
        %v3103 = vld [vmem:[#allocation14 + $0x28] sm:$0xff]
        %v3104 = vld [vmem:[#allocation14 + $0x30] sm:$0xff]
        %v3105 = vld [vmem:[#allocation14 + $0x38] sm:$0xff]
        %v3106 = vld [vmem:[#allocation14 + $0x40] sm:$0xff]
        %v3107 = vld [vmem:[#allocation14 + $0x48] sm:$0xff]
        %v3108 = vld [vmem:[#allocation14 + $0x50] sm:$0xff]
        %v3109 = vld [vmem:[#allocation14 + $0x58] sm:$0xff]
        %v3110 = vld [vmem:[#allocation14 + $0x60] sm:$0xff]
        %v3111 = vld [vmem:[#allocation14 + $0x68] sm:$0xff]
        %v3112 = vld [vmem:[#allocation14 + $0x70] sm:$0xff]
        %v3113 = vld [vmem:[#allocation14 + $0x78] sm:$0xff]
        %s3114 = scalar_lea.vmem [#allocation14], 128
        %v3115 = vld [vmem:[%s3114] sm:$0xff]
        %v3116 = vld [vmem:[%s3114 + $0x8] sm:$0xff]
        %v3117 = vld [vmem:[%s3114 + $0x10] sm:$0xff]
        %v3118 = vld [vmem:[%s3114 + $0x18] sm:$0xff]
        %v3119 = vld [vmem:[%s3114 + $0x20] sm:$0xff]
        %v3120 = vld [vmem:[%s3114 + $0x28] sm:$0xff]
        %v3121 = vld [vmem:[%s3114 + $0x30] sm:$0xff]
        %v3122 = vld [vmem:[%s3114 + $0x38] sm:$0xff]
        %v3123 = vld [vmem:[%s3114 + $0x40] sm:$0xff]
        %v3124 = vld [vmem:[%s3114 + $0x48] sm:$0xff]
        %v3125 = vld [vmem:[%s3114 + $0x50] sm:$0xff]
        %v3126 = vld [vmem:[%s3114 + $0x58] sm:$0xff]
        %v3127 = vld [vmem:[%s3114 + $0x60] sm:$0xff]
        %v3128 = vld [vmem:[%s3114 + $0x68] sm:$0xff]
        %v3129 = vld [vmem:[%s3114 + $0x70] sm:$0xff]
        %v3130 = vld [vmem:[%s3114 + $0x78] sm:$0xff]
        %v3131 = vld [vmem:[#allocation16] sm:$0x1]
        %v3132 = vld [vmem:[#allocation16 + $0x1] sm:$0x1]
        %v3134 = vrot.slane %v3095, 7
        %v3136 = vsel %vm1817, 0.0, %v3134
        %v3137 = vsel %vm1552, %v3136, 0.0
        %v3139 = vrot.slane %v3137, 1
        %3141 = vmatprep.subr.mxu0 0.0
        %3142 = vmatpush1.msra.mxu0 %v3115
        %3143 = vmatprep.subr.mxu0 0.0
        %3144 = vmatpush1.msra.mxu0 %v3116
        %3145 = vmatprep.subr.mxu0 0.0
        %3146 = vmatpush1.msra.mxu0 %v3117
        %3147 = vmatprep.subr.mxu0 0.0
        %3148 = vmatpush1.msra.mxu0 %v3118
        %3149 = vmatprep.subr.mxu0 0.0
        %3150 = vmatpush1.msra.mxu0 %v3119
        %3151 = vmatprep.subr.mxu0 0.0
        %3152 = vmatpush1.msra.mxu0 %v3120
        %3153 = vmatprep.subr.mxu0 0.0
        %3154 = vmatpush1.msra.mxu0 %v3121
        %3155 = vmatprep.subr.mxu0 0.0
        %3156 = vmatpush1.msra.mxu0 %v3122
        %3157 = vmatprep.subr.mxu0 0.0
        %3158 = vmatpush1.msra.mxu0 %v3123
        %3159 = vmatprep.subr.mxu0 0.0
        %3160 = vmatpush1.msra.mxu0 %v3124
        %3161 = vmatprep.subr.mxu0 0.0
        %3162 = vmatpush1.msra.mxu0 %v3125
        %3163 = vmatprep.subr.mxu0 0.0
        %3164 = vmatpush1.msra.mxu0 %v3126
        %3165 = vmatprep.subr.mxu0 0.0
        %3166 = vmatpush1.msra.mxu0 %v3127
        %3167 = vmatprep.subr.mxu0 0.0
        %3168 = vmatpush1.msra.mxu0 %v3128
        %3169 = vmatprep.subr.mxu0 0.0
        %3170 = vmatpush1.msra.mxu0 %v3129
        %3171 = vmatprep.subr.mxu0 0.0
        %3172 = vmatpush1.msra.mxu0 %v3130
        %3173 = vmatprep.subr.mxu0 0.0
        %3174 = vmatpush1.msra.mxu0 0.0
        %3175 = vmatprep.subr.mxu0 0.0
        %3176 = vmatpush1.msra.mxu0 0.0
        %3177 = vmatprep.subr.mxu0 0.0
        %3178 = vmatpush1.msra.mxu0 0.0
        %3179 = vmatprep.subr.mxu0 0.0
        %3180 = vmatpush1.msra.mxu0 0.0
        %3181 = vmatprep.subr.mxu0 0.0
        %3182 = vmatpush1.msra.mxu0 0.0
        %3183 = vmatprep.subr.mxu0 0.0
        %3184 = vmatpush1.msra.mxu0 0.0
        %3185 = vmatprep.subr.mxu0 0.0
        %3186 = vmatpush1.msra.mxu0 0.0
        %3187 = vmatprep.subr.mxu0 0.0
        %3188 = vmatpush1.msra.mxu0 0.0
        %3189 = vmatprep.subr.mxu0 0.0
        %3190 = vmatpush1.msra.mxu0 0.0
        %3191 = vmatprep.subr.mxu0 0.0
        %3192 = vmatpush1.msra.mxu0 0.0
        %3193 = vmatprep.subr.mxu0 0.0
        %3194 = vmatpush1.msra.mxu0 0.0
        %3195 = vmatprep.subr.mxu0 0.0
        %3196 = vmatpush1.msra.mxu0 0.0
        %3197 = vmatprep.subr.mxu0 0.0
        %3198 = vmatpush1.msra.mxu0 0.0
        %3199 = vmatprep.subr.mxu0 0.0
        %3200 = vmatpush1.msra.mxu0 0.0
        %3201 = vmatprep.subr.mxu0 0.0
        %3202 = vmatpush1.msra.mxu0 0.0
        %3203 = vmatprep.subr.mxu0 0.0
        %3204 = vmatpush1.msra.mxu0 0.0
        %3205 = vmatprep.mubr.f32.mxu0 0.0
        %3206 = vmatmul.mubr.f32.gmra.mrb[0].mxu0 %v3139
        %v3207 = vpop.f32.mrb[0].mxu0
        %v3208 = vadd.f32 0.0, %v3207
        %v3209 = vpop.f32.mrb[0].mxu0
        %3210 = vdwg.mxu0
        %3211 = vmatprep.subr.mxu0 0.0
        %3212 = vmatpush1.msra.mxu0 %v3098
        %3213 = vmatprep.subr.mxu0 0.0
        %3214 = vmatpush1.msra.mxu0 %v3099
        %3215 = vmatprep.subr.mxu0 0.0
        %3216 = vmatpush1.msra.mxu0 %v3100
        %3217 = vmatprep.subr.mxu0 0.0
        %3218 = vmatpush1.msra.mxu0 %v3101
        %3219 = vmatprep.subr.mxu0 0.0
        %3220 = vmatpush1.msra.mxu0 %v3102
        %3221 = vmatprep.subr.mxu0 0.0
        %3222 = vmatpush1.msra.mxu0 %v3103
        %3223 = vmatprep.subr.mxu0 0.0
        %3224 = vmatpush1.msra.mxu0 %v3104
        %3225 = vmatprep.subr.mxu0 0.0
        %3226 = vmatpush1.msra.mxu0 %v3105
        %3227 = vmatprep.subr.mxu0 0.0
        %3228 = vmatpush1.msra.mxu0 %v3106
        %3229 = vmatprep.subr.mxu0 0.0
        %3230 = vmatpush1.msra.mxu0 %v3107
        %3231 = vmatprep.subr.mxu0 0.0
        %3232 = vmatpush1.msra.mxu0 %v3108
        %3233 = vmatprep.subr.mxu0 0.0
        %3234 = vmatpush1.msra.mxu0 %v3109
        %3235 = vmatprep.subr.mxu0 0.0
        %3236 = vmatpush1.msra.mxu0 %v3110
        %3237 = vmatprep.subr.mxu0 0.0
        %3238 = vmatpush1.msra.mxu0 %v3111
        %3239 = vmatprep.subr.mxu0 0.0
        %3240 = vmatpush1.msra.mxu0 %v3112
        %3241 = vmatprep.subr.mxu0 0.0
        %3242 = vmatpush1.msra.mxu0 %v3113
        %3243 = vmatprep.subr.mxu0 0.0
        %3244 = vmatpush1.msra.mxu0 0.0
        %3245 = vmatprep.subr.mxu0 0.0
        %3246 = vmatpush1.msra.mxu0 0.0
        %3247 = vmatprep.subr.mxu0 0.0
        %3248 = vmatpush1.msra.mxu0 0.0
        %3249 = vmatprep.subr.mxu0 0.0
        %3250 = vmatpush1.msra.mxu0 0.0
        %3251 = vmatprep.subr.mxu0 0.0
        %3252 = vmatpush1.msra.mxu0 0.0
        %3253 = vmatprep.subr.mxu0 0.0
        %3254 = vmatpush1.msra.mxu0 0.0
        %3255 = vmatprep.subr.mxu0 0.0
        %3256 = vmatpush1.msra.mxu0 0.0
        %3257 = vmatprep.subr.mxu0 0.0
        %3258 = vmatpush1.msra.mxu0 0.0
        %3259 = vmatprep.subr.mxu0 0.0
        %3260 = vmatpush1.msra.mxu0 0.0
        %3261 = vmatprep.subr.mxu0 0.0
        %3262 = vmatpush1.msra.mxu0 0.0
        %3263 = vmatprep.subr.mxu0 0.0
        %3264 = vmatpush1.msra.mxu0 0.0
        %3265 = vmatprep.subr.mxu0 0.0
        %3266 = vmatpush1.msra.mxu0 0.0
        %3267 = vmatprep.subr.mxu0 0.0
        %3268 = vmatpush1.msra.mxu0 0.0
        %3269 = vmatprep.subr.mxu0 0.0
        %3270 = vmatpush1.msra.mxu0 0.0
        %3271 = vmatprep.subr.mxu0 0.0
        %3272 = vmatpush1.msra.mxu0 0.0
        %3273 = vmatprep.subr.mxu0 0.0
        %3274 = vmatpush1.msra.mxu0 0.0
        %3275 = vmatprep.mubr.f32.mxu0 0.0
        %3276 = vmatmul.mubr.f32.gmra.mrb[0].mxu0 %v3137
        %v3277 = vpop.f32.mrb[0].mxu0
        %v3278 = vadd.f32 %v3208, %v3277
        %v3279 = vpop.f32.mrb[0].mxu0
        %3280 = vdwg.mxu0
        %v3281 = vlaneseq
        %v3282 = vshrl.u32 %v3281, 7
        %v3283 = vsub.s32 0, %v3282
        %v3284 = vrot.slane %v3131, %v3283
        %v3285 = vmul.f32 %v3278, %v3284
        %v3286 = vlaneseq
        %v3287 = vshrl.u32 %v3286, 7
        %v3288 = vsub.s32 0, %v3287
        %v3289 = vrot.slane %v3132, %v3288
        %v3290 = vadd.f32 %v3285, %v3289
        %v3291 = vmax.f32 %v3290, 0.0
        %v3293 = vrot.slane %v3291, 1
        %v3295 = vmax.f32 %v3291, %v3293
        %vm3296 = vcmask 23552
        %v3297 = vsel %vm3296, %v2094, 0
        %vm3299 = vcmask 1042432
        %v3301 = vsel %vm3299, %v3295, 0
        %3303 = vmatprep.subr.mxu0 0.0
        %3304 = vmatpush1.msra.mxu0 %v3301
        %3305 = vmatprep.subr.mxu0 0.0
        %3306 = vmatpush1.msra.mxu0 0.0
        %3307 = vmatprep.subr.mxu0 0.0
        %3308 = vmatpush1.msra.mxu0 0.0
        %3309 = vmatprep.subr.mxu0 0.0
        %3310 = vmatpush1.msra.mxu0 0.0
        %3311 = vmatprep.subr.mxu0 0.0
        %3312 = vmatpush1.msra.mxu0 0.0
        %3313 = vmatprep.subr.mxu0 0.0
        %3314 = vmatpush1.msra.mxu0 0.0
        %3315 = vmatprep.subr.mxu0 0.0
        %3316 = vmatpush1.msra.mxu0 0.0
        %3317 = vmatprep.subr.mxu0 0.0
        %3318 = vmatpush1.msra.mxu0 0.0
        %3319 = vmatprep.subr.mxu0 0.0
        %3320 = vmatpush1.msra.mxu0 0.0
        %3321 = vmatprep.subr.mxu0 0.0
        %3322 = vmatpush1.msra.mxu0 0.0
        %3323 = vmatprep.subr.mxu0 0.0
        %3324 = vmatpush1.msra.mxu0 0.0
        %3325 = vmatprep.subr.mxu0 0.0
        %3326 = vmatpush1.msra.mxu0 0.0
        %3327 = vmatprep.subr.mxu0 0.0
        %3328 = vmatpush1.msra.mxu0 0.0
        %3329 = vmatprep.subr.mxu0 0.0
        %3330 = vmatpush1.msra.mxu0 0.0
        %3331 = vmatprep.subr.mxu0 0.0
        %3332 = vmatpush1.msra.mxu0 0.0
        %3333 = vmatprep.subr.mxu0 0.0
        %3334 = vmatpush1.msra.mxu0 0.0
        %3335 = vmatprep.subr.mxu0 0.0
        %3336 = vmatpush1.msra.mxu0 0.0
        %3337 = vmatprep.subr.mxu0 0.0
        %3338 = vmatpush1.msra.mxu0 0.0
        %3339 = vmatprep.subr.mxu0 0.0
        %3340 = vmatpush1.msra.mxu0 0.0
        %3341 = vmatprep.subr.mxu0 0.0
        %3342 = vmatpush1.msra.mxu0 0.0
        %3343 = vmatprep.subr.mxu0 0.0
        %3344 = vmatpush1.msra.mxu0 0.0
        %3345 = vmatprep.subr.mxu0 0.0
        %3346 = vmatpush1.msra.mxu0 0.0
        %3347 = vmatprep.subr.mxu0 0.0
        %3348 = vmatpush1.msra.mxu0 0.0
        %3349 = vmatprep.subr.mxu0 0.0
        %3350 = vmatpush1.msra.mxu0 0.0
        %3351 = vmatprep.subr.mxu0 0.0
        %3352 = vmatpush1.msra.mxu0 0.0
        %3353 = vmatprep.subr.mxu0 0.0
        %3354 = vmatpush1.msra.mxu0 0.0
        %3355 = vmatprep.subr.mxu0 0.0
        %3356 = vmatpush1.msra.mxu0 0.0
        %3357 = vmatprep.subr.mxu0 0.0
        %3358 = vmatpush1.msra.mxu0 0.0
        %3359 = vmatprep.subr.mxu0 0.0
        %3360 = vmatpush1.msra.mxu0 0.0
        %3361 = vmatprep.subr.mxu0 0.0
        %3362 = vmatpush1.msra.mxu0 0.0
        %3363 = vmatprep.subr.mxu0 0.0
        %3364 = vmatpush1.msra.mxu0 0.0
        %3365 = vmatprep.subr.mxu0 0.0
        %3366 = vmatpush1.msra.mxu0 0.0
        %3367 = vmatprep.mubr.f32.mxu0 0.0
        %3368 = vmatmul.mubr.f32.gmra.mrb[0].mxu0 %v3297
        %v3369 = vpop.f32.mrb[0].mxu0
        %v3370 = vadd.f32 0.0, %v3369
        %v3371 = vpop.f32.mrb[0].mxu0
        %3372 = vdwg.mxu0
        %v3373 = vld [vmem:[#allocation17] sm:$0xff]
        %v3374 = vld [vmem:[#allocation17 + $0x8] sm:$0xff]
        %v3375 = vld [vmem:[#allocation17 + $0x10] sm:$0xff]
        %v3376 = vld [vmem:[#allocation17 + $0x18] sm:$0xff]
        %v3377 = vld [vmem:[#allocation17 + $0x20] sm:$0xff]
        %v3378 = vld [vmem:[#allocation17 + $0x28] sm:$0xff]
        %v3379 = vld [vmem:[#allocation17 + $0x30] sm:$0xff]
        %v3380 = vld [vmem:[#allocation17 + $0x38] sm:$0xff]
        %v3381 = vld [vmem:[#allocation17 + $0x40] sm:$0xff]
        %v3382 = vld [vmem:[#allocation17 + $0x48] sm:$0xff]
        %v3383 = vld [vmem:[#allocation17 + $0x50] sm:$0xff]
        %v3384 = vld [vmem:[#allocation17 + $0x58] sm:$0xff]
        %v3385 = vld [vmem:[#allocation17 + $0x60] sm:$0xff]
        %v3386 = vld [vmem:[#allocation17 + $0x68] sm:$0xff]
        %v3387 = vld [vmem:[#allocation17 + $0x70] sm:$0xff]
        %v3388 = vld [vmem:[#allocation17 + $0x78] sm:$0xff]
        %s3389 = scalar_lea.vmem [#allocation17], 128
        %v3390 = vld [vmem:[%s3389] sm:$0xff]
        %v3391 = vld [vmem:[%s3389 + $0x8] sm:$0xff]
        %v3392 = vld [vmem:[%s3389 + $0x10] sm:$0xff]
        %v3393 = vld [vmem:[%s3389 + $0x18] sm:$0xff]
        %v3394 = vld [vmem:[%s3389 + $0x20] sm:$0xff]
        %v3395 = vld [vmem:[%s3389 + $0x28] sm:$0xff]
        %v3396 = vld [vmem:[%s3389 + $0x30] sm:$0xff]
        %v3397 = vld [vmem:[%s3389 + $0x38] sm:$0xff]
        %v3398 = vld [vmem:[%s3389 + $0x40] sm:$0xff]
        %v3399 = vld [vmem:[%s3389 + $0x48] sm:$0xff]
        %v3400 = vld [vmem:[%s3389 + $0x50] sm:$0xff]
        %v3401 = vld [vmem:[%s3389 + $0x58] sm:$0xff]
        %v3402 = vld [vmem:[%s3389 + $0x60] sm:$0xff]
        %v3403 = vld [vmem:[%s3389 + $0x68] sm:$0xff]
        %v3404 = vld [vmem:[%s3389 + $0x70] sm:$0xff]
        %v3405 = vld [vmem:[%s3389 + $0x78] sm:$0xff]
        %v3406 = vld [vmem:[#allocation19] sm:$0x1]
        %v3407 = vld [vmem:[#allocation19 + $0x1] sm:$0x1]
        %v3409 = vrot.slane %v3370, 7
        %v3411 = vsel %vm1817, 0.0, %v3409
        %v3412 = vsel %vm3299, %v3411, 0.0
        %v3414 = vrot.slane %v3412, 1
        %3416 = vmatprep.subr.mxu0 0.0
        %3417 = vmatpush1.msra.mxu0 %v3390
        %3418 = vmatprep.subr.mxu0 0.0
        %3419 = vmatpush1.msra.mxu0 %v3391
        %3420 = vmatprep.subr.mxu0 0.0
        %3421 = vmatpush1.msra.mxu0 %v3392
        %3422 = vmatprep.subr.mxu0 0.0
        %3423 = vmatpush1.msra.mxu0 %v3393
        %3424 = vmatprep.subr.mxu0 0.0
        %3425 = vmatpush1.msra.mxu0 %v3394
        %3426 = vmatprep.subr.mxu0 0.0
        %3427 = vmatpush1.msra.mxu0 %v3395
        %3428 = vmatprep.subr.mxu0 0.0
        %3429 = vmatpush1.msra.mxu0 %v3396
        %3430 = vmatprep.subr.mxu0 0.0
        %3431 = vmatpush1.msra.mxu0 %v3397
        %3432 = vmatprep.subr.mxu0 0.0
        %3433 = vmatpush1.msra.mxu0 %v3398
        %3434 = vmatprep.subr.mxu0 0.0
        %3435 = vmatpush1.msra.mxu0 %v3399
        %3436 = vmatprep.subr.mxu0 0.0
        %3437 = vmatpush1.msra.mxu0 %v3400
        %3438 = vmatprep.subr.mxu0 0.0
        %3439 = vmatpush1.msra.mxu0 %v3401
        %3440 = vmatprep.subr.mxu0 0.0
        %3441 = vmatpush1.msra.mxu0 %v3402
        %3442 = vmatprep.subr.mxu0 0.0
        %3443 = vmatpush1.msra.mxu0 %v3403
        %3444 = vmatprep.subr.mxu0 0.0
        %3445 = vmatpush1.msra.mxu0 %v3404
        %3446 = vmatprep.subr.mxu0 0.0
        %3447 = vmatpush1.msra.mxu0 %v3405
        %3448 = vmatprep.subr.mxu0 0.0
        %3449 = vmatpush1.msra.mxu0 0.0
        %3450 = vmatprep.subr.mxu0 0.0
        %3451 = vmatpush1.msra.mxu0 0.0
        %3452 = vmatprep.subr.mxu0 0.0
        %3453 = vmatpush1.msra.mxu0 0.0
        %3454 = vmatprep.subr.mxu0 0.0
        %3455 = vmatpush1.msra.mxu0 0.0
        %3456 = vmatprep.subr.mxu0 0.0
        %3457 = vmatpush1.msra.mxu0 0.0
        %3458 = vmatprep.subr.mxu0 0.0
        %3459 = vmatpush1.msra.mxu0 0.0
        %3460 = vmatprep.subr.mxu0 0.0
        %3461 = vmatpush1.msra.mxu0 0.0
        %3462 = vmatprep.subr.mxu0 0.0
        %3463 = vmatpush1.msra.mxu0 0.0
        %3464 = vmatprep.subr.mxu0 0.0
        %3465 = vmatpush1.msra.mxu0 0.0
        %3466 = vmatprep.subr.mxu0 0.0
        %3467 = vmatpush1.msra.mxu0 0.0
        %3468 = vmatprep.subr.mxu0 0.0
        %3469 = vmatpush1.msra.mxu0 0.0
        %3470 = vmatprep.subr.mxu0 0.0
        %3471 = vmatpush1.msra.mxu0 0.0
        %3472 = vmatprep.subr.mxu0 0.0
        %3473 = vmatpush1.msra.mxu0 0.0
        %3474 = vmatprep.subr.mxu0 0.0
        %3475 = vmatpush1.msra.mxu0 0.0
        %3476 = vmatprep.subr.mxu0 0.0
        %3477 = vmatpush1.msra.mxu0 0.0
        %3478 = vmatprep.subr.mxu0 0.0
        %3479 = vmatpush1.msra.mxu0 0.0
        %3480 = vmatprep.mubr.f32.mxu0 0.0
        %3481 = vmatmul.mubr.f32.gmra.mrb[0].mxu0 %v3414
        %v3482 = vpop.f32.mrb[0].mxu0
        %v3483 = vadd.f32 0.0, %v3482
        %v3484 = vpop.f32.mrb[0].mxu0
        %3485 = vdwg.mxu0
        %3486 = vmatprep.subr.mxu0 0.0
        %3487 = vmatpush1.msra.mxu0 %v3373
        %3488 = vmatprep.subr.mxu0 0.0
        %3489 = vmatpush1.msra.mxu0 %v3374
        %3490 = vmatprep.subr.mxu0 0.0
        %3491 = vmatpush1.msra.mxu0 %v3375
        %3492 = vmatprep.subr.mxu0 0.0
        %3493 = vmatpush1.msra.mxu0 %v3376
        %3494 = vmatprep.subr.mxu0 0.0
        %3495 = vmatpush1.msra.mxu0 %v3377
        %3496 = vmatprep.subr.mxu0 0.0
        %3497 = vmatpush1.msra.mxu0 %v3378
        %3498 = vmatprep.subr.mxu0 0.0
        %3499 = vmatpush1.msra.mxu0 %v3379
        %3500 = vmatprep.subr.mxu0 0.0
        %3501 = vmatpush1.msra.mxu0 %v3380
        %3502 = vmatprep.subr.mxu0 0.0
        %3503 = vmatpush1.msra.mxu0 %v3381
        %3504 = vmatprep.subr.mxu0 0.0
        %3505 = vmatpush1.msra.mxu0 %v3382
        %3506 = vmatprep.subr.mxu0 0.0
        %3507 = vmatpush1.msra.mxu0 %v3383
        %3508 = vmatprep.subr.mxu0 0.0
        %3509 = vmatpush1.msra.mxu0 %v3384
        %3510 = vmatprep.subr.mxu0 0.0
        %3511 = vmatpush1.msra.mxu0 %v3385
        %3512 = vmatprep.subr.mxu0 0.0
        %3513 = vmatpush1.msra.mxu0 %v3386
        %3514 = vmatprep.subr.mxu0 0.0
        %3515 = vmatpush1.msra.mxu0 %v3387
        %3516 = vmatprep.subr.mxu0 0.0
        %3517 = vmatpush1.msra.mxu0 %v3388
        %3518 = vmatprep.subr.mxu0 0.0
        %3519 = vmatpush1.msra.mxu0 0.0
        %3520 = vmatprep.subr.mxu0 0.0
        %3521 = vmatpush1.msra.mxu0 0.0
        %3522 = vmatprep.subr.mxu0 0.0
        %3523 = vmatpush1.msra.mxu0 0.0
        %3524 = vmatprep.subr.mxu0 0.0
        %3525 = vmatpush1.msra.mxu0 0.0
        %3526 = vmatprep.subr.mxu0 0.0
        %3527 = vmatpush1.msra.mxu0 0.0
        %3528 = vmatprep.subr.mxu0 0.0
        %3529 = vmatpush1.msra.mxu0 0.0
        %3530 = vmatprep.subr.mxu0 0.0
        %3531 = vmatpush1.msra.mxu0 0.0
        %3532 = vmatprep.subr.mxu0 0.0
        %3533 = vmatpush1.msra.mxu0 0.0
        %3534 = vmatprep.subr.mxu0 0.0
        %3535 = vmatpush1.msra.mxu0 0.0
        %3536 = vmatprep.subr.mxu0 0.0
        %3537 = vmatpush1.msra.mxu0 0.0
        %3538 = vmatprep.subr.mxu0 0.0
        %3539 = vmatpush1.msra.mxu0 0.0
        %3540 = vmatprep.subr.mxu0 0.0
        %3541 = vmatpush1.msra.mxu0 0.0
        %3542 = vmatprep.subr.mxu0 0.0
        %3543 = vmatpush1.msra.mxu0 0.0
        %3544 = vmatprep.subr.mxu0 0.0
        %3545 = vmatpush1.msra.mxu0 0.0
        %3546 = vmatprep.subr.mxu0 0.0
        %3547 = vmatpush1.msra.mxu0 0.0
        %3548 = vmatprep.subr.mxu0 0.0
        %3549 = vmatpush1.msra.mxu0 0.0
        %3550 = vmatprep.mubr.f32.mxu0 0.0
        %3551 = vmatmul.mubr.f32.gmra.mrb[0].mxu0 %v3412
        %v3552 = vpop.f32.mrb[0].mxu0
        %v3553 = vadd.f32 %v3483, %v3552
        %v3554 = vpop.f32.mrb[0].mxu0
        %3555 = vdwg.mxu0
        %v3556 = vlaneseq
        %v3557 = vshrl.u32 %v3556, 7
        %v3558 = vsub.s32 0, %v3557
        %v3559 = vrot.slane %v3406, %v3558
        %v3560 = vmul.f32 %v3553, %v3559
        %v3561 = vlaneseq
        %v3562 = vshrl.u32 %v3561, 7
        %v3563 = vsub.s32 0, %v3562
        %v3564 = vrot.slane %v3407, %v3563
        %v3565 = vadd.f32 %v3560, %v3564
        %v3566 = vmax.f32 %v3565, 0.0
        %v3568 = vrot.slane %v3566, 1
        %v3570 = vmax.f32 %v3566, %v3568
        %v3571 = vld [vmem:[#allocation20] sm:$0xff]
        %v3572 = vld [vmem:[#allocation20 + $0x8] sm:$0xff]
        %v3573 = vld [vmem:[#allocation20 + $0x10] sm:$0xff]
        %v3574 = vld [vmem:[#allocation20 + $0x18] sm:$0xff]
        %v3575 = vld [vmem:[#allocation20 + $0x20] sm:$0xff]
        %v3576 = vld [vmem:[#allocation20 + $0x28] sm:$0xff]
        %v3577 = vld [vmem:[#allocation20 + $0x30] sm:$0xff]
        %v3578 = vld [vmem:[#allocation20 + $0x38] sm:$0xff]
        %v3579 = vld [vmem:[#allocation20 + $0x40] sm:$0xff]
        %v3580 = vld [vmem:[#allocation20 + $0x48] sm:$0xff]
        %v3581 = vld [vmem:[#allocation20 + $0x50] sm:$0xff]
        %v3582 = vld [vmem:[#allocation20 + $0x58] sm:$0xff]
        %v3583 = vld [vmem:[#allocation20 + $0x60] sm:$0xff]
        %v3584 = vld [vmem:[#allocation20 + $0x68] sm:$0xff]
        %v3585 = vld [vmem:[#allocation20 + $0x70] sm:$0xff]
        %v3586 = vld [vmem:[#allocation20 + $0x78] sm:$0xff]
        %v3587 = vld [vmem:[#allocation20 + $0x80] sm:$0xff]
        %v3588 = vld [vmem:[#allocation20 + $0x88] sm:$0xff]
        %v3589 = vld [vmem:[#allocation20 + $0x90] sm:$0xff]
        %v3590 = vld [vmem:[#allocation20 + $0x98] sm:$0xff]
        %v3591 = vld [vmem:[#allocation20 + $0xa0] sm:$0xff]
        %v3592 = vld [vmem:[#allocation20 + $0xa8] sm:$0xff]
        %v3593 = vld [vmem:[#allocation20 + $0xb0] sm:$0xff]
        %v3594 = vld [vmem:[#allocation20 + $0xb8] sm:$0xff]
        %v3595 = vld [vmem:[#allocation20 + $0xc0] sm:$0xff]
        %v3596 = vld [vmem:[#allocation20 + $0xc8] sm:$0xff]
        %v3597 = vld [vmem:[#allocation20 + $0xd0] sm:$0xff]
        %v3598 = vld [vmem:[#allocation20 + $0xd8] sm:$0xff]
        %v3599 = vld [vmem:[#allocation20 + $0xe0] sm:$0xff]
        %v3600 = vld [vmem:[#allocation20 + $0xe8] sm:$0xff]
        %v3601 = vld [vmem:[#allocation20 + $0xf0] sm:$0xff]
        %v3602 = vld [vmem:[#allocation20 + $0xf8] sm:$0xff]
        %s3603 = scalar_lea.vmem [#allocation20], 256
        %v3604 = vld [vmem:[%s3603] sm:$0xff]
        %v3605 = vld [vmem:[%s3603 + $0x8] sm:$0xff]
        %v3606 = vld [vmem:[%s3603 + $0x10] sm:$0xff]
        %v3607 = vld [vmem:[%s3603 + $0x18] sm:$0xff]
        %v3608 = vld [vmem:[%s3603 + $0x20] sm:$0xff]
        %v3609 = vld [vmem:[%s3603 + $0x28] sm:$0xff]
        %v3610 = vld [vmem:[%s3603 + $0x30] sm:$0xff]
        %v3611 = vld [vmem:[%s3603 + $0x38] sm:$0xff]
        %v3612 = vld [vmem:[%s3603 + $0x40] sm:$0xff]
        %v3613 = vld [vmem:[%s3603 + $0x48] sm:$0xff]
        %v3614 = vld [vmem:[%s3603 + $0x50] sm:$0xff]
        %v3615 = vld [vmem:[%s3603 + $0x58] sm:$0xff]
        %v3616 = vld [vmem:[%s3603 + $0x60] sm:$0xff]
        %v3617 = vld [vmem:[%s3603 + $0x68] sm:$0xff]
        %v3618 = vld [vmem:[%s3603 + $0x70] sm:$0xff]
        %v3619 = vld [vmem:[%s3603 + $0x78] sm:$0xff]
        %v3620 = vld [vmem:[%s3603 + $0x80] sm:$0xff]
        %v3621 = vld [vmem:[%s3603 + $0x88] sm:$0xff]
        %v3622 = vld [vmem:[%s3603 + $0x90] sm:$0xff]
        %v3623 = vld [vmem:[%s3603 + $0x98] sm:$0xff]
        %v3624 = vld [vmem:[%s3603 + $0xa0] sm:$0xff]
        %v3625 = vld [vmem:[%s3603 + $0xa8] sm:$0xff]
        %v3626 = vld [vmem:[%s3603 + $0xb0] sm:$0xff]
        %v3627 = vld [vmem:[%s3603 + $0xb8] sm:$0xff]
        %v3628 = vld [vmem:[%s3603 + $0xc0] sm:$0xff]
        %v3629 = vld [vmem:[%s3603 + $0xc8] sm:$0xff]
        %v3630 = vld [vmem:[%s3603 + $0xd0] sm:$0xff]
        %v3631 = vld [vmem:[%s3603 + $0xd8] sm:$0xff]
        %v3632 = vld [vmem:[%s3603 + $0xe0] sm:$0xff]
        %v3633 = vld [vmem:[%s3603 + $0xe8] sm:$0xff]
        %v3634 = vld [vmem:[%s3603 + $0xf0] sm:$0xff]
        %v3635 = vld [vmem:[%s3603 + $0xf8] sm:$0xff]
        %v3636 = vld [vmem:[%s35] ss:$2 sm:$0x3]
        %s3637 = scalar_lea.vmem %s35, 1
        %v3638 = vld [vmem:[%s3637] ss:$2 sm:$0x3]
        %v3640 = vrot.slane %v3570, 7
        %v3642 = vsel %vm1817, 0.0, %v3640
        %v3643 = vsel %vm1833, %v3642, 0.0
        %v3645 = vrot.slane %v3643, 1
        %3647 = vmatprep.subr.mxu0 %v3605
        %3648 = vmatpush1.msra.mxu0 %v3604
        %3649 = vmatprep.subr.mxu0 %v3607
        %3650 = vmatpush1.msra.mxu0 %v3606
        %3651 = vmatprep.subr.mxu0 %v3609
        %3652 = vmatpush1.msra.mxu0 %v3608
        %3653 = vmatprep.subr.mxu0 %v3611
        %3654 = vmatpush1.msra.mxu0 %v3610
        %3655 = vmatprep.subr.mxu0 %v3613
        %3656 = vmatpush1.msra.mxu0 %v3612
        %3657 = vmatprep.subr.mxu0 %v3615
        %3658 = vmatpush1.msra.mxu0 %v3614
        %3659 = vmatprep.subr.mxu0 %v3617
        %3660 = vmatpush1.msra.mxu0 %v3616
        %3661 = vmatprep.subr.mxu0 %v3619
        %3662 = vmatpush1.msra.mxu0 %v3618
        %3663 = vmatprep.subr.mxu0 %v3621
        %3664 = vmatpush1.msra.mxu0 %v3620
        %3665 = vmatprep.subr.mxu0 %v3623
        %3666 = vmatpush1.msra.mxu0 %v3622
        %3667 = vmatprep.subr.mxu0 %v3625
        %3668 = vmatpush1.msra.mxu0 %v3624
        %3669 = vmatprep.subr.mxu0 %v3627
        %3670 = vmatpush1.msra.mxu0 %v3626
        %3671 = vmatprep.subr.mxu0 %v3629
        %3672 = vmatpush1.msra.mxu0 %v3628
        %3673 = vmatprep.subr.mxu0 %v3631
        %3674 = vmatpush1.msra.mxu0 %v3630
        %3675 = vmatprep.subr.mxu0 %v3633
        %3676 = vmatpush1.msra.mxu0 %v3632
        %3677 = vmatprep.subr.mxu0 %v3635
        %3678 = vmatpush1.msra.mxu0 %v3634
        %3679 = vmatprep.subr.mxu0 0.0
        %3680 = vmatpush1.msra.mxu0 0.0
        %3681 = vmatprep.subr.mxu0 0.0
        %3682 = vmatpush1.msra.mxu0 0.0
        %3683 = vmatprep.subr.mxu0 0.0
        %3684 = vmatpush1.msra.mxu0 0.0
        %3685 = vmatprep.subr.mxu0 0.0
        %3686 = vmatpush1.msra.mxu0 0.0
        %3687 = vmatprep.subr.mxu0 0.0
        %3688 = vmatpush1.msra.mxu0 0.0
        %3689 = vmatprep.subr.mxu0 0.0
        %3690 = vmatpush1.msra.mxu0 0.0
        %3691 = vmatprep.subr.mxu0 0.0
        %3692 = vmatpush1.msra.mxu0 0.0
        %3693 = vmatprep.subr.mxu0 0.0
        %3694 = vmatpush1.msra.mxu0 0.0
        %3695 = vmatprep.subr.mxu0 0.0
        %3696 = vmatpush1.msra.mxu0 0.0
        %3697 = vmatprep.subr.mxu0 0.0
        %3698 = vmatpush1.msra.mxu0 0.0
        %3699 = vmatprep.subr.mxu0 0.0
        %3700 = vmatpush1.msra.mxu0 0.0
        %3701 = vmatprep.subr.mxu0 0.0
        %3702 = vmatpush1.msra.mxu0 0.0
        %3703 = vmatprep.subr.mxu0 0.0
        %3704 = vmatpush1.msra.mxu0 0.0
        %3705 = vmatprep.subr.mxu0 0.0
        %3706 = vmatpush1.msra.mxu0 0.0
        %3707 = vmatprep.subr.mxu0 0.0
        %3708 = vmatpush1.msra.mxu0 0.0
        %3709 = vmatprep.subr.mxu0 0.0
        %3710 = vmatpush1.msra.mxu0 0.0
        %3711 = vmatprep.mubr.f32.mxu0 0.0
        %3712 = vmatmul.mubr.f32.gmra.mrb[0].mxu0 %v3645
        %v3713 = vpop.f32.mrb[0].mxu0
        %v3714 = vadd.f32 0.0, %v3713
        %v3715 = vpop.f32.mrb[0].mxu0
        %v3716 = vadd.f32 0.0, %v3715
        %3717 = vdwg.mxu0
        %3718 = vmatprep.subr.mxu0 %v3572
        %3719 = vmatpush1.msra.mxu0 %v3571
        %3720 = vmatprep.subr.mxu0 %v3574
        %3721 = vmatpush1.msra.mxu0 %v3573
        %3722 = vmatprep.subr.mxu0 %v3576
        %3723 = vmatpush1.msra.mxu0 %v3575
        %3724 = vmatprep.subr.mxu0 %v3578
        %3725 = vmatpush1.msra.mxu0 %v3577
        %3726 = vmatprep.subr.mxu0 %v3580
        %3727 = vmatpush1.msra.mxu0 %v3579
        %3728 = vmatprep.subr.mxu0 %v3582
        %3729 = vmatpush1.msra.mxu0 %v3581
        %3730 = vmatprep.subr.mxu0 %v3584
        %3731 = vmatpush1.msra.mxu0 %v3583
        %3732 = vmatprep.subr.mxu0 %v3586
        %3733 = vmatpush1.msra.mxu0 %v3585
        %3734 = vmatprep.subr.mxu0 %v3588
        %3735 = vmatpush1.msra.mxu0 %v3587
        %3736 = vmatprep.subr.mxu0 %v3590
        %3737 = vmatpush1.msra.mxu0 %v3589
        %3738 = vmatprep.subr.mxu0 %v3592
        %3739 = vmatpush1.msra.mxu0 %v3591
        %3740 = vmatprep.subr.mxu0 %v3594
        %3741 = vmatpush1.msra.mxu0 %v3593
        %3742 = vmatprep.subr.mxu0 %v3596
        %3743 = vmatpush1.msra.mxu0 %v3595
        %3744 = vmatprep.subr.mxu0 %v3598
        %3745 = vmatpush1.msra.mxu0 %v3597
        %3746 = vmatprep.subr.mxu0 %v3600
        %3747 = vmatpush1.msra.mxu0 %v3599
        %3748 = vmatprep.subr.mxu0 %v3602
        %3749 = vmatpush1.msra.mxu0 %v3601
        %3750 = vmatprep.subr.mxu0 0.0
        %3751 = vmatpush1.msra.mxu0 0.0
        %3752 = vmatprep.subr.mxu0 0.0
        %3753 = vmatpush1.msra.mxu0 0.0
        %3754 = vmatprep.subr.mxu0 0.0
        %3755 = vmatpush1.msra.mxu0 0.0
        %3756 = vmatprep.subr.mxu0 0.0
        %3757 = vmatpush1.msra.mxu0 0.0
        %3758 = vmatprep.subr.mxu0 0.0
        %3759 = vmatpush1.msra.mxu0 0.0
        %3760 = vmatprep.subr.mxu0 0.0
        %3761 = vmatpush1.msra.mxu0 0.0
        %3762 = vmatprep.subr.mxu0 0.0
        %3763 = vmatpush1.msra.mxu0 0.0
        %3764 = vmatprep.subr.mxu0 0.0
        %3765 = vmatpush1.msra.mxu0 0.0
        %3766 = vmatprep.subr.mxu0 0.0
        %3767 = vmatpush1.msra.mxu0 0.0
        %3768 = vmatprep.subr.mxu0 0.0
        %3769 = vmatpush1.msra.mxu0 0.0
        %3770 = vmatprep.subr.mxu0 0.0
        %3771 = vmatpush1.msra.mxu0 0.0
        %3772 = vmatprep.subr.mxu0 0.0
        %3773 = vmatpush1.msra.mxu0 0.0
        %3774 = vmatprep.subr.mxu0 0.0
        %3775 = vmatpush1.msra.mxu0 0.0
        %3776 = vmatprep.subr.mxu0 0.0
        %3777 = vmatpush1.msra.mxu0 0.0
        %3778 = vmatprep.subr.mxu0 0.0
        %3779 = vmatpush1.msra.mxu0 0.0
        %3780 = vmatprep.subr.mxu0 0.0
        %3781 = vmatpush1.msra.mxu0 0.0
        %3782 = vmatprep.mubr.f32.mxu0 0.0
        %3783 = vmatmul.mubr.f32.gmra.mrb[0].mxu0 %v3643
        %v3784 = vpop.f32.mrb[0].mxu0
        %v3785 = vadd.f32 %v3714, %v3784
        %v3786 = vpop.f32.mrb[0].mxu0
        %v3787 = vadd.f32 %v3716, %v3786
        %3788 = vdwg.mxu0
        %v3790 = vlaneseq
        %v3791 = vshrl.u32 %v3790, 7
        %v3792 = vsub.s32 0, %v3791
        %v3793 = vrot.slane %v3636, %v3792
        %v3794 = vlaneseq
        %v3795 = vshrl.u32 %v3794, 7
        %v3796 = vsub.s32 1, %v3795
        %v3797 = vrot.slane %v3636, %v3796
        %v3800 = vmul.f32 %v3785, %v3793
        %v3801 = vmul.f32 %v3787, %v3797
        %v3803 = vlaneseq
        %v3804 = vshrl.u32 %v3803, 7
        %v3805 = vsub.s32 0, %v3804
        %v3806 = vrot.slane %v3638, %v3805
        %v3807 = vlaneseq
        %v3808 = vshrl.u32 %v3807, 7
        %v3809 = vsub.s32 1, %v3808
        %v3810 = vrot.slane %v3638, %v3809
        %v3813 = vadd.f32 %v3800, %v3806
        %v3814 = vadd.f32 %v3801, %v3810
        %v3815 = vmax.f32 %v3813, 0.0
        %v3816 = vmax.f32 %v3814, 0.0
        %v3819 = vrot.slane %v3815, 1
        %v3820 = vrot.slane %v3816, 1
        %v3823 = vmax.f32 %v3815, %v3819
        %v3824 = vmax.f32 %v3816, %v3820
        %v3825 = vld [vmem:[#allocation22] sm:$0xff]
        %v3826 = vld [vmem:[#allocation22 + $0x8] sm:$0xff]
        %v3827 = vld [vmem:[#allocation22 + $0x10] sm:$0xff]
        %v3828 = vld [vmem:[#allocation22 + $0x18] sm:$0xff]
        %v3829 = vld [vmem:[#allocation22 + $0x20] sm:$0xff]
        %v3830 = vld [vmem:[#allocation22 + $0x28] sm:$0xff]
        %v3831 = vld [vmem:[#allocation22 + $0x30] sm:$0xff]
        %v3832 = vld [vmem:[#allocation22 + $0x38] sm:$0xff]
        %v3833 = vld [vmem:[#allocation22 + $0x40] sm:$0xff]
        %v3834 = vld [vmem:[#allocation22 + $0x48] sm:$0xff]
        %v3835 = vld [vmem:[#allocation22 + $0x50] sm:$0xff]
        %v3836 = vld [vmem:[#allocation22 + $0x58] sm:$0xff]
        %v3837 = vld [vmem:[#allocation22 + $0x60] sm:$0xff]
        %v3838 = vld [vmem:[#allocation22 + $0x68] sm:$0xff]
        %v3839 = vld [vmem:[#allocation22 + $0x70] sm:$0xff]
        %v3840 = vld [vmem:[#allocation22 + $0x78] sm:$0xff]
        %v3841 = vld [vmem:[#allocation22 + $0x80] sm:$0xff]
        %v3842 = vld [vmem:[#allocation22 + $0x88] sm:$0xff]
        %v3843 = vld [vmem:[#allocation22 + $0x90] sm:$0xff]
        %v3844 = vld [vmem:[#allocation22 + $0x98] sm:$0xff]
        %v3845 = vld [vmem:[#allocation22 + $0xa0] sm:$0xff]
        %v3846 = vld [vmem:[#allocation22 + $0xa8] sm:$0xff]
        %v3847 = vld [vmem:[#allocation22 + $0xb0] sm:$0xff]
        %v3848 = vld [vmem:[#allocation22 + $0xb8] sm:$0xff]
        %v3849 = vld [vmem:[#allocation22 + $0xc0] sm:$0xff]
        %v3850 = vld [vmem:[#allocation22 + $0xc8] sm:$0xff]
        %v3851 = vld [vmem:[#allocation22 + $0xd0] sm:$0xff]
        %v3852 = vld [vmem:[#allocation22 + $0xd8] sm:$0xff]
        %v3853 = vld [vmem:[#allocation22 + $0xe0] sm:$0xff]
        %v3854 = vld [vmem:[#allocation22 + $0xe8] sm:$0xff]
        %v3855 = vld [vmem:[#allocation22 + $0xf0] sm:$0xff]
        %v3856 = vld [vmem:[#allocation22 + $0xf8] sm:$0xff]
        %v3857 = vld [vmem:[#allocation22 + $0x100] sm:$0xff]
        %v3858 = vld [vmem:[#allocation22 + $0x108] sm:$0xff]
        %v3859 = vld [vmem:[#allocation22 + $0x110] sm:$0xff]
        %v3860 = vld [vmem:[#allocation22 + $0x118] sm:$0xff]
        %v3861 = vld [vmem:[#allocation22 + $0x120] sm:$0xff]
        %v3862 = vld [vmem:[#allocation22 + $0x128] sm:$0xff]
        %v3863 = vld [vmem:[#allocation22 + $0x130] sm:$0xff]
        %v3864 = vld [vmem:[#allocation22 + $0x138] sm:$0xff]
        %v3865 = vld [vmem:[#allocation22 + $0x140] sm:$0xff]
        %v3866 = vld [vmem:[#allocation22 + $0x148] sm:$0xff]
        %v3867 = vld [vmem:[#allocation22 + $0x150] sm:$0xff]
        %v3868 = vld [vmem:[#allocation22 + $0x158] sm:$0xff]
        %v3869 = vld [vmem:[#allocation22 + $0x160] sm:$0xff]
        %v3870 = vld [vmem:[#allocation22 + $0x168] sm:$0xff]
        %v3871 = vld [vmem:[#allocation22 + $0x170] sm:$0xff]
        %v3872 = vld [vmem:[#allocation22 + $0x178] sm:$0xff]
        %v3873 = vld [vmem:[#allocation22 + $0x180] sm:$0xff]
        %v3874 = vld [vmem:[#allocation22 + $0x188] sm:$0xff]
        %v3875 = vld [vmem:[#allocation22 + $0x190] sm:$0xff]
        %v3876 = vld [vmem:[#allocation22 + $0x198] sm:$0xff]
        %v3877 = vld [vmem:[#allocation22 + $0x1a0] sm:$0xff]
        %v3878 = vld [vmem:[#allocation22 + $0x1a8] sm:$0xff]
        %v3879 = vld [vmem:[#allocation22 + $0x1b0] sm:$0xff]
        %v3880 = vld [vmem:[#allocation22 + $0x1b8] sm:$0xff]
        %v3881 = vld [vmem:[#allocation22 + $0x1c0] sm:$0xff]
        %v3882 = vld [vmem:[#allocation22 + $0x1c8] sm:$0xff]
        %v3883 = vld [vmem:[#allocation22 + $0x1d0] sm:$0xff]
        %v3884 = vld [vmem:[#allocation22 + $0x1d8] sm:$0xff]
        %v3885 = vld [vmem:[#allocation22 + $0x1e0] sm:$0xff]
        %v3886 = vld [vmem:[#allocation22 + $0x1e8] sm:$0xff]
        %v3887 = vld [vmem:[#allocation22 + $0x1f0] sm:$0xff]
        %v3888 = vld [vmem:[#allocation22 + $0x1f8] sm:$0xff]
        %s3889 = scalar_lea.vmem [#allocation22], 512
        %v3890 = vld [vmem:[%s3889] sm:$0xff]
        %v3891 = vld [vmem:[%s3889 + $0x8] sm:$0xff]
        %v3892 = vld [vmem:[%s3889 + $0x10] sm:$0xff]
        %v3893 = vld [vmem:[%s3889 + $0x18] sm:$0xff]
        %v3894 = vld [vmem:[%s3889 + $0x20] sm:$0xff]
        %v3895 = vld [vmem:[%s3889 + $0x28] sm:$0xff]
        %v3896 = vld [vmem:[%s3889 + $0x30] sm:$0xff]
        %v3897 = vld [vmem:[%s3889 + $0x38] sm:$0xff]
        %v3898 = vld [vmem:[%s3889 + $0x40] sm:$0xff]
        %v3899 = vld [vmem:[%s3889 + $0x48] sm:$0xff]
        %v3900 = vld [vmem:[%s3889 + $0x50] sm:$0xff]
        %v3901 = vld [vmem:[%s3889 + $0x58] sm:$0xff]
        %v3902 = vld [vmem:[%s3889 + $0x60] sm:$0xff]
        %v3903 = vld [vmem:[%s3889 + $0x68] sm:$0xff]
        %v3904 = vld [vmem:[%s3889 + $0x70] sm:$0xff]
        %v3905 = vld [vmem:[%s3889 + $0x78] sm:$0xff]
        %v3906 = vld [vmem:[%s3889 + $0x80] sm:$0xff]
        %v3907 = vld [vmem:[%s3889 + $0x88] sm:$0xff]
        %v3908 = vld [vmem:[%s3889 + $0x90] sm:$0xff]
        %v3909 = vld [vmem:[%s3889 + $0x98] sm:$0xff]
        %v3910 = vld [vmem:[%s3889 + $0xa0] sm:$0xff]
        %v3911 = vld [vmem:[%s3889 + $0xa8] sm:$0xff]
        %v3912 = vld [vmem:[%s3889 + $0xb0] sm:$0xff]
        %v3913 = vld [vmem:[%s3889 + $0xb8] sm:$0xff]
        %v3914 = vld [vmem:[%s3889 + $0xc0] sm:$0xff]
        %v3915 = vld [vmem:[%s3889 + $0xc8] sm:$0xff]
        %v3916 = vld [vmem:[%s3889 + $0xd0] sm:$0xff]
        %v3917 = vld [vmem:[%s3889 + $0xd8] sm:$0xff]
        %v3918 = vld [vmem:[%s3889 + $0xe0] sm:$0xff]
        %v3919 = vld [vmem:[%s3889 + $0xe8] sm:$0xff]
        %v3920 = vld [vmem:[%s3889 + $0xf0] sm:$0xff]
        %v3921 = vld [vmem:[%s3889 + $0xf8] sm:$0xff]
        %v3922 = vld [vmem:[%s3889 + $0x100] sm:$0xff]
        %v3923 = vld [vmem:[%s3889 + $0x108] sm:$0xff]
        %v3924 = vld [vmem:[%s3889 + $0x110] sm:$0xff]
        %v3925 = vld [vmem:[%s3889 + $0x118] sm:$0xff]
        %v3926 = vld [vmem:[%s3889 + $0x120] sm:$0xff]
        %v3927 = vld [vmem:[%s3889 + $0x128] sm:$0xff]
        %v3928 = vld [vmem:[%s3889 + $0x130] sm:$0xff]
        %v3929 = vld [vmem:[%s3889 + $0x138] sm:$0xff]
        %v3930 = vld [vmem:[%s3889 + $0x140] sm:$0xff]
        %v3931 = vld [vmem:[%s3889 + $0x148] sm:$0xff]
        %v3932 = vld [vmem:[%s3889 + $0x150] sm:$0xff]
        %v3933 = vld [vmem:[%s3889 + $0x158] sm:$0xff]
        %v3934 = vld [vmem:[%s3889 + $0x160] sm:$0xff]
        %v3935 = vld [vmem:[%s3889 + $0x168] sm:$0xff]
        %v3936 = vld [vmem:[%s3889 + $0x170] sm:$0xff]
        %v3937 = vld [vmem:[%s3889 + $0x178] sm:$0xff]
        %v3938 = vld [vmem:[%s3889 + $0x180] sm:$0xff]
        %v3939 = vld [vmem:[%s3889 + $0x188] sm:$0xff]
        %v3940 = vld [vmem:[%s3889 + $0x190] sm:$0xff]
        %v3941 = vld [vmem:[%s3889 + $0x198] sm:$0xff]
        %v3942 = vld [vmem:[%s3889 + $0x1a0] sm:$0xff]
        %v3943 = vld [vmem:[%s3889 + $0x1a8] sm:$0xff]
        %v3944 = vld [vmem:[%s3889 + $0x1b0] sm:$0xff]
        %v3945 = vld [vmem:[%s3889 + $0x1b8] sm:$0xff]
        %v3946 = vld [vmem:[%s3889 + $0x1c0] sm:$0xff]
        %v3947 = vld [vmem:[%s3889 + $0x1c8] sm:$0xff]
        %v3948 = vld [vmem:[%s3889 + $0x1d0] sm:$0xff]
        %v3949 = vld [vmem:[%s3889 + $0x1d8] sm:$0xff]
        %v3950 = vld [vmem:[%s3889 + $0x1e0] sm:$0xff]
        %v3951 = vld [vmem:[%s3889 + $0x1e8] sm:$0xff]
        %v3952 = vld [vmem:[%s3889 + $0x1f0] sm:$0xff]
        %v3953 = vld [vmem:[%s3889 + $0x1f8] sm:$0xff]
        %v3954 = vld [vmem:[%s39] ss:$2 sm:$0x3]
        %s3955 = scalar_lea.vmem %s39, 1
        %v3956 = vld [vmem:[%s3955] ss:$2 sm:$0x3]
        %v3959 = vrot.slane %v3823, 7
        %v3960 = vrot.slane %v3824, 7
        %v3963 = vsel %vm1817, 0.0, %v3959
        %v3964 = vsel %vm1817, 0.0, %v3960
        %v3965 = vsel %vm1833, %v3963, 0.0
        %v3966 = vsel %vm1833, %v3964, 0.0
        %v3969 = vrot.slane %v3965, 1
        %v3970 = vrot.slane %v3966, 1
        %3973 = vmatprep.subr.mxu0 %v3891
        %3974 = vmatpush1.msra.mxu0 %v3890
        %3975 = vmatprep.subr.mxu0 %v3893
        %3976 = vmatpush1.msra.mxu0 %v3892
        %3977 = vmatprep.subr.mxu0 %v3895
        %3978 = vmatpush1.msra.mxu0 %v3894
        %3979 = vmatprep.subr.mxu0 %v3897
        %3980 = vmatpush1.msra.mxu0 %v3896
        %3981 = vmatprep.subr.mxu0 %v3899
        %3982 = vmatpush1.msra.mxu0 %v3898
        %3983 = vmatprep.subr.mxu0 %v3901
        %3984 = vmatpush1.msra.mxu0 %v3900
        %3985 = vmatprep.subr.mxu0 %v3903
        %3986 = vmatpush1.msra.mxu0 %v3902
        %3987 = vmatprep.subr.mxu0 %v3905
        %3988 = vmatpush1.msra.mxu0 %v3904
        %3989 = vmatprep.subr.mxu0 %v3907
        %3990 = vmatpush1.msra.mxu0 %v3906
        %3991 = vmatprep.subr.mxu0 %v3909
        %3992 = vmatpush1.msra.mxu0 %v3908
        %3993 = vmatprep.subr.mxu0 %v3911
        %3994 = vmatpush1.msra.mxu0 %v3910
        %3995 = vmatprep.subr.mxu0 %v3913
        %3996 = vmatpush1.msra.mxu0 %v3912
        %3997 = vmatprep.subr.mxu0 %v3915
        %3998 = vmatpush1.msra.mxu0 %v3914
        %3999 = vmatprep.subr.mxu0 %v3917
        %4000 = vmatpush1.msra.mxu0 %v3916
        %4001 = vmatprep.subr.mxu0 %v3919
        %4002 = vmatpush1.msra.mxu0 %v3918
        %4003 = vmatprep.subr.mxu0 %v3921
        %4004 = vmatpush1.msra.mxu0 %v3920
        %4005 = vmatprep.subr.mxu0 %v3923
        %4006 = vmatpush1.msra.mxu0 %v3922
        %4007 = vmatprep.subr.mxu0 %v3925
        %4008 = vmatpush1.msra.mxu0 %v3924
        %4009 = vmatprep.subr.mxu0 %v3927
        %4010 = vmatpush1.msra.mxu0 %v3926
        %4011 = vmatprep.subr.mxu0 %v3929
        %4012 = vmatpush1.msra.mxu0 %v3928
        %4013 = vmatprep.subr.mxu0 %v3931
        %4014 = vmatpush1.msra.mxu0 %v3930
        %4015 = vmatprep.subr.mxu0 %v3933
        %4016 = vmatpush1.msra.mxu0 %v3932
        %4017 = vmatprep.subr.mxu0 %v3935
        %4018 = vmatpush1.msra.mxu0 %v3934
        %4019 = vmatprep.subr.mxu0 %v3937
        %4020 = vmatpush1.msra.mxu0 %v3936
        %4021 = vmatprep.subr.mxu0 %v3939
        %4022 = vmatpush1.msra.mxu0 %v3938
        %4023 = vmatprep.subr.mxu0 %v3941
        %4024 = vmatpush1.msra.mxu0 %v3940
        %4025 = vmatprep.subr.mxu0 %v3943
        %4026 = vmatpush1.msra.mxu0 %v3942
        %4027 = vmatprep.subr.mxu0 %v3945
        %4028 = vmatpush1.msra.mxu0 %v3944
        %4029 = vmatprep.subr.mxu0 %v3947
        %4030 = vmatpush1.msra.mxu0 %v3946
        %4031 = vmatprep.subr.mxu0 %v3949
        %4032 = vmatpush1.msra.mxu0 %v3948
        %4033 = vmatprep.subr.mxu0 %v3951
        %4034 = vmatpush1.msra.mxu0 %v3950
        %4035 = vmatprep.subr.mxu0 %v3953
        %4036 = vmatpush1.msra.mxu0 %v3952
        %4037 = vmatprep.mubr.f32.mxu0 %v3970
        %4038 = vmatmul.mubr.f32.gmra.mrb[0].mxu0 %v3969
        %v4039 = vpop.f32.mrb[0].mxu0
        %v4040 = vadd.f32 0.0, %v4039
        %v4041 = vpop.f32.mrb[0].mxu0
        %v4042 = vadd.f32 0.0, %v4041
        %4043 = vdwg.mxu0
        %4044 = vmatprep.subr.mxu0 %v3826
        %4045 = vmatpush1.msra.mxu0 %v3825
        %4046 = vmatprep.subr.mxu0 %v3828
        %4047 = vmatpush1.msra.mxu0 %v3827
        %4048 = vmatprep.subr.mxu0 %v3830
        %4049 = vmatpush1.msra.mxu0 %v3829
        %4050 = vmatprep.subr.mxu0 %v3832
        %4051 = vmatpush1.msra.mxu0 %v3831
        %4052 = vmatprep.subr.mxu0 %v3834
        %4053 = vmatpush1.msra.mxu0 %v3833
        %4054 = vmatprep.subr.mxu0 %v3836
        %4055 = vmatpush1.msra.mxu0 %v3835
        %4056 = vmatprep.subr.mxu0 %v3838
        %4057 = vmatpush1.msra.mxu0 %v3837
        %4058 = vmatprep.subr.mxu0 %v3840
        %4059 = vmatpush1.msra.mxu0 %v3839
        %4060 = vmatprep.subr.mxu0 %v3842
        %4061 = vmatpush1.msra.mxu0 %v3841
        %4062 = vmatprep.subr.mxu0 %v3844
        %4063 = vmatpush1.msra.mxu0 %v3843
        %4064 = vmatprep.subr.mxu0 %v3846
        %4065 = vmatpush1.msra.mxu0 %v3845
        %4066 = vmatprep.subr.mxu0 %v3848
        %4067 = vmatpush1.msra.mxu0 %v3847
        %4068 = vmatprep.subr.mxu0 %v3850
        %4069 = vmatpush1.msra.mxu0 %v3849
        %4070 = vmatprep.subr.mxu0 %v3852
        %4071 = vmatpush1.msra.mxu0 %v3851
        %4072 = vmatprep.subr.mxu0 %v3854
        %4073 = vmatpush1.msra.mxu0 %v3853
        %4074 = vmatprep.subr.mxu0 %v3856
        %4075 = vmatpush1.msra.mxu0 %v3855
        %4076 = vmatprep.subr.mxu0 %v3858
        %4077 = vmatpush1.msra.mxu0 %v3857
        %4078 = vmatprep.subr.mxu0 %v3860
        %4079 = vmatpush1.msra.mxu0 %v3859
        %4080 = vmatprep.subr.mxu0 %v3862
        %4081 = vmatpush1.msra.mxu0 %v3861
        %4082 = vmatprep.subr.mxu0 %v3864
        %4083 = vmatpush1.msra.mxu0 %v3863
        %4084 = vmatprep.subr.mxu0 %v3866
        %4085 = vmatpush1.msra.mxu0 %v3865
        %4086 = vmatprep.subr.mxu0 %v3868
        %4087 = vmatpush1.msra.mxu0 %v3867
        %4088 = vmatprep.subr.mxu0 %v3870
        %4089 = vmatpush1.msra.mxu0 %v3869
        %4090 = vmatprep.subr.mxu0 %v3872
        %4091 = vmatpush1.msra.mxu0 %v3871
        %4092 = vmatprep.subr.mxu0 %v3874
        %4093 = vmatpush1.msra.mxu0 %v3873
        %4094 = vmatprep.subr.mxu0 %v3876
        %4095 = vmatpush1.msra.mxu0 %v3875
        %4096 = vmatprep.subr.mxu0 %v3878
        %4097 = vmatpush1.msra.mxu0 %v3877
        %4098 = vmatprep.subr.mxu0 %v3880
        %4099 = vmatpush1.msra.mxu0 %v3879
        %4100 = vmatprep.subr.mxu0 %v3882
        %4101 = vmatpush1.msra.mxu0 %v3881
        %4102 = vmatprep.subr.mxu0 %v3884
        %4103 = vmatpush1.msra.mxu0 %v3883
        %4104 = vmatprep.subr.mxu0 %v3886
        %4105 = vmatpush1.msra.mxu0 %v3885
        %4106 = vmatprep.subr.mxu0 %v3888
        %4107 = vmatpush1.msra.mxu0 %v3887
        %4108 = vmatprep.mubr.f32.mxu0 %v3966
        %4109 = vmatmul.mubr.f32.gmra.mrb[0].mxu0 %v3965
        %v4110 = vpop.f32.mrb[0].mxu0
        %v4111 = vadd.f32 %v4040, %v4110
        %v4112 = vpop.f32.mrb[0].mxu0
        %v4113 = vadd.f32 %v4042, %v4112
        %4114 = vdwg.mxu0
        %v4116 = vlaneseq
        %v4117 = vshrl.u32 %v4116, 7
        %v4118 = vsub.s32 0, %v4117
        %v4119 = vrot.slane %v3954, %v4118
        %v4120 = vlaneseq
        %v4121 = vshrl.u32 %v4120, 7
        %v4122 = vsub.s32 1, %v4121
        %v4123 = vrot.slane %v3954, %v4122
        %v4126 = vmul.f32 %v4111, %v4119
        %v4127 = vmul.f32 %v4113, %v4123
        %v4129 = vlaneseq
        %v4130 = vshrl.u32 %v4129, 7
        %v4131 = vsub.s32 0, %v4130
        %v4132 = vrot.slane %v3956, %v4131
        %v4133 = vlaneseq
        %v4134 = vshrl.u32 %v4133, 7
        %v4135 = vsub.s32 1, %v4134
        %v4136 = vrot.slane %v3956, %v4135
        %v4139 = vadd.f32 %v4126, %v4132
        %v4140 = vadd.f32 %v4127, %v4136
        %v4141 = vmax.f32 %v4139, 0.0
        %v4142 = vmax.f32 %v4140, 0.0
        %v4145 = vrot.slane %v4141, 1
        %v4146 = vrot.slane %v4142, 1
        %v4149 = vmax.f32 %v4141, %v4145
        %v4150 = vmax.f32 %v4142, %v4146
        %v4151 = vld [vmem:[#allocation23] sm:$0xff]
        %v4152 = vld [vmem:[#allocation23 + $0x8] sm:$0xff]
        %v4153 = vld [vmem:[#allocation23 + $0x10] sm:$0xff]
        %v4154 = vld [vmem:[#allocation23 + $0x18] sm:$0xff]
        %v4155 = vld [vmem:[#allocation23 + $0x20] sm:$0xff]
        %v4156 = vld [vmem:[#allocation23 + $0x28] sm:$0xff]
        %v4157 = vld [vmem:[#allocation23 + $0x30] sm:$0xff]
        %v4158 = vld [vmem:[#allocation23 + $0x38] sm:$0xff]
        %v4159 = vld [vmem:[#allocation23 + $0x40] sm:$0xff]
        %v4160 = vld [vmem:[#allocation23 + $0x48] sm:$0xff]
        %v4161 = vld [vmem:[#allocation23 + $0x50] sm:$0xff]
        %v4162 = vld [vmem:[#allocation23 + $0x58] sm:$0xff]
        %v4163 = vld [vmem:[#allocation23 + $0x60] sm:$0xff]
        %v4164 = vld [vmem:[#allocation23 + $0x68] sm:$0xff]
        %v4165 = vld [vmem:[#allocation23 + $0x70] sm:$0xff]
        %v4166 = vld [vmem:[#allocation23 + $0x78] sm:$0xff]
        %v4167 = vld [vmem:[#allocation23 + $0x80] sm:$0xff]
        %v4168 = vld [vmem:[#allocation23 + $0x88] sm:$0xff]
        %v4169 = vld [vmem:[#allocation23 + $0x90] sm:$0xff]
        %v4170 = vld [vmem:[#allocation23 + $0x98] sm:$0xff]
        %v4171 = vld [vmem:[#allocation23 + $0xa0] sm:$0xff]
        %v4172 = vld [vmem:[#allocation23 + $0xa8] sm:$0xff]
        %v4173 = vld [vmem:[#allocation23 + $0xb0] sm:$0xff]
        %v4174 = vld [vmem:[#allocation23 + $0xb8] sm:$0xff]
        %v4175 = vld [vmem:[#allocation23 + $0xc0] sm:$0xff]
        %v4176 = vld [vmem:[#allocation23 + $0xc8] sm:$0xff]
        %v4177 = vld [vmem:[#allocation23 + $0xd0] sm:$0xff]
        %v4178 = vld [vmem:[#allocation23 + $0xd8] sm:$0xff]
        %v4179 = vld [vmem:[#allocation23 + $0xe0] sm:$0xff]
        %v4180 = vld [vmem:[#allocation23 + $0xe8] sm:$0xff]
        %v4181 = vld [vmem:[#allocation23 + $0xf0] sm:$0xff]
        %v4182 = vld [vmem:[#allocation23 + $0xf8] sm:$0xff]
        %v4183 = vld [vmem:[#allocation23 + $0x100] sm:$0xff]
        %v4184 = vld [vmem:[#allocation23 + $0x108] sm:$0xff]
        %v4185 = vld [vmem:[#allocation23 + $0x110] sm:$0xff]
        %v4186 = vld [vmem:[#allocation23 + $0x118] sm:$0xff]
        %v4187 = vld [vmem:[#allocation23 + $0x120] sm:$0xff]
        %v4188 = vld [vmem:[#allocation23 + $0x128] sm:$0xff]
        %v4189 = vld [vmem:[#allocation23 + $0x130] sm:$0xff]
        %v4190 = vld [vmem:[#allocation23 + $0x138] sm:$0xff]
        %v4191 = vld [vmem:[#allocation23 + $0x140] sm:$0xff]
        %v4192 = vld [vmem:[#allocation23 + $0x148] sm:$0xff]
        %v4193 = vld [vmem:[#allocation23 + $0x150] sm:$0xff]
        %v4194 = vld [vmem:[#allocation23 + $0x158] sm:$0xff]
        %v4195 = vld [vmem:[#allocation23 + $0x160] sm:$0xff]
        %v4196 = vld [vmem:[#allocation23 + $0x168] sm:$0xff]
        %v4197 = vld [vmem:[#allocation23 + $0x170] sm:$0xff]
        %v4198 = vld [vmem:[#allocation23 + $0x178] sm:$0xff]
        %v4199 = vld [vmem:[#allocation23 + $0x180] sm:$0xff]
        %v4200 = vld [vmem:[#allocation23 + $0x188] sm:$0xff]
        %v4201 = vld [vmem:[#allocation23 + $0x190] sm:$0xff]
        %v4202 = vld [vmem:[#allocation23 + $0x198] sm:$0xff]
        %v4203 = vld [vmem:[#allocation23 + $0x1a0] sm:$0xff]
        %v4204 = vld [vmem:[#allocation23 + $0x1a8] sm:$0xff]
        %v4205 = vld [vmem:[#allocation23 + $0x1b0] sm:$0xff]
        %v4206 = vld [vmem:[#allocation23 + $0x1b8] sm:$0xff]
        %v4207 = vld [vmem:[#allocation23 + $0x1c0] sm:$0xff]
        %v4208 = vld [vmem:[#allocation23 + $0x1c8] sm:$0xff]
        %v4209 = vld [vmem:[#allocation23 + $0x1d0] sm:$0xff]
        %v4210 = vld [vmem:[#allocation23 + $0x1d8] sm:$0xff]
        %v4211 = vld [vmem:[#allocation23 + $0x1e0] sm:$0xff]
        %v4212 = vld [vmem:[#allocation23 + $0x1e8] sm:$0xff]
        %v4213 = vld [vmem:[#allocation23 + $0x1f0] sm:$0xff]
        %v4214 = vld [vmem:[#allocation23 + $0x1f8] sm:$0xff]
        %s4215 = scalar_lea.vmem [#allocation23], 512
        %v4216 = vld [vmem:[%s4215] sm:$0xff]
        %v4217 = vld [vmem:[%s4215 + $0x8] sm:$0xff]
        %v4218 = vld [vmem:[%s4215 + $0x10] sm:$0xff]
        %v4219 = vld [vmem:[%s4215 + $0x18] sm:$0xff]
        %v4220 = vld [vmem:[%s4215 + $0x20] sm:$0xff]
        %v4221 = vld [vmem:[%s4215 + $0x28] sm:$0xff]
        %v4222 = vld [vmem:[%s4215 + $0x30] sm:$0xff]
        %v4223 = vld [vmem:[%s4215 + $0x38] sm:$0xff]
        %v4224 = vld [vmem:[%s4215 + $0x40] sm:$0xff]
        %v4225 = vld [vmem:[%s4215 + $0x48] sm:$0xff]
        %v4226 = vld [vmem:[%s4215 + $0x50] sm:$0xff]
        %v4227 = vld [vmem:[%s4215 + $0x58] sm:$0xff]
        %v4228 = vld [vmem:[%s4215 + $0x60] sm:$0xff]
        %v4229 = vld [vmem:[%s4215 + $0x68] sm:$0xff]
        %v4230 = vld [vmem:[%s4215 + $0x70] sm:$0xff]
        %v4231 = vld [vmem:[%s4215 + $0x78] sm:$0xff]
        %v4232 = vld [vmem:[%s4215 + $0x80] sm:$0xff]
        %v4233 = vld [vmem:[%s4215 + $0x88] sm:$0xff]
        %v4234 = vld [vmem:[%s4215 + $0x90] sm:$0xff]
        %v4235 = vld [vmem:[%s4215 + $0x98] sm:$0xff]
        %v4236 = vld [vmem:[%s4215 + $0xa0] sm:$0xff]
        %v4237 = vld [vmem:[%s4215 + $0xa8] sm:$0xff]
        %v4238 = vld [vmem:[%s4215 + $0xb0] sm:$0xff]
        %v4239 = vld [vmem:[%s4215 + $0xb8] sm:$0xff]
        %v4240 = vld [vmem:[%s4215 + $0xc0] sm:$0xff]
        %v4241 = vld [vmem:[%s4215 + $0xc8] sm:$0xff]
        %v4242 = vld [vmem:[%s4215 + $0xd0] sm:$0xff]
        %v4243 = vld [vmem:[%s4215 + $0xd8] sm:$0xff]
        %v4244 = vld [vmem:[%s4215 + $0xe0] sm:$0xff]
        %v4245 = vld [vmem:[%s4215 + $0xe8] sm:$0xff]
        %v4246 = vld [vmem:[%s4215 + $0xf0] sm:$0xff]
        %v4247 = vld [vmem:[%s4215 + $0xf8] sm:$0xff]
        %v4248 = vld [vmem:[%s4215 + $0x100] sm:$0xff]
        %v4249 = vld [vmem:[%s4215 + $0x108] sm:$0xff]
        %v4250 = vld [vmem:[%s4215 + $0x110] sm:$0xff]
        %v4251 = vld [vmem:[%s4215 + $0x118] sm:$0xff]
        %v4252 = vld [vmem:[%s4215 + $0x120] sm:$0xff]
        %v4253 = vld [vmem:[%s4215 + $0x128] sm:$0xff]
        %v4254 = vld [vmem:[%s4215 + $0x130] sm:$0xff]
        %v4255 = vld [vmem:[%s4215 + $0x138] sm:$0xff]
        %v4256 = vld [vmem:[%s4215 + $0x140] sm:$0xff]
        %v4257 = vld [vmem:[%s4215 + $0x148] sm:$0xff]
        %v4258 = vld [vmem:[%s4215 + $0x150] sm:$0xff]
        %v4259 = vld [vmem:[%s4215 + $0x158] sm:$0xff]
        %v4260 = vld [vmem:[%s4215 + $0x160] sm:$0xff]
        %v4261 = vld [vmem:[%s4215 + $0x168] sm:$0xff]
        %v4262 = vld [vmem:[%s4215 + $0x170] sm:$0xff]
        %v4263 = vld [vmem:[%s4215 + $0x178] sm:$0xff]
        %v4264 = vld [vmem:[%s4215 + $0x180] sm:$0xff]
        %v4265 = vld [vmem:[%s4215 + $0x188] sm:$0xff]
        %v4266 = vld [vmem:[%s4215 + $0x190] sm:$0xff]
        %v4267 = vld [vmem:[%s4215 + $0x198] sm:$0xff]
        %v4268 = vld [vmem:[%s4215 + $0x1a0] sm:$0xff]
        %v4269 = vld [vmem:[%s4215 + $0x1a8] sm:$0xff]
        %v4270 = vld [vmem:[%s4215 + $0x1b0] sm:$0xff]
        %v4271 = vld [vmem:[%s4215 + $0x1b8] sm:$0xff]
        %v4272 = vld [vmem:[%s4215 + $0x1c0] sm:$0xff]
        %v4273 = vld [vmem:[%s4215 + $0x1c8] sm:$0xff]
        %v4274 = vld [vmem:[%s4215 + $0x1d0] sm:$0xff]
        %v4275 = vld [vmem:[%s4215 + $0x1d8] sm:$0xff]
        %v4276 = vld [vmem:[%s4215 + $0x1e0] sm:$0xff]
        %v4277 = vld [vmem:[%s4215 + $0x1e8] sm:$0xff]
        %v4278 = vld [vmem:[%s4215 + $0x1f0] sm:$0xff]
        %v4279 = vld [vmem:[%s4215 + $0x1f8] sm:$0xff]
        %v4280 = vld [vmem:[%s43] ss:$2 sm:$0x3]
        %s4281 = scalar_lea.vmem %s43, 1
        %v4282 = vld [vmem:[%s4281] ss:$2 sm:$0x3]
        %v4285 = vrot.slane %v4149, 7
        %v4286 = vrot.slane %v4150, 7
        %v4289 = vsel %vm1817, 0.0, %v4285
        %v4290 = vsel %vm1817, 0.0, %v4286
        %v4291 = vsel %vm1833, %v4289, 0.0
        %v4292 = vsel %vm1833, %v4290, 0.0
        %v4295 = vrot.slane %v4291, 1
        %v4296 = vrot.slane %v4292, 1
        %4299 = vmatprep.subr.mxu0 %v4217
        %4300 = vmatpush1.msra.mxu0 %v4216
        %4301 = vmatprep.subr.mxu0 %v4219
        %4302 = vmatpush1.msra.mxu0 %v4218
        %4303 = vmatprep.subr.mxu0 %v4221
        %4304 = vmatpush1.msra.mxu0 %v4220
        %4305 = vmatprep.subr.mxu0 %v4223
        %4306 = vmatpush1.msra.mxu0 %v4222
        %4307 = vmatprep.subr.mxu0 %v4225
        %4308 = vmatpush1.msra.mxu0 %v4224
        %4309 = vmatprep.subr.mxu0 %v4227
        %4310 = vmatpush1.msra.mxu0 %v4226
        %4311 = vmatprep.subr.mxu0 %v4229
        %4312 = vmatpush1.msra.mxu0 %v4228
        %4313 = vmatprep.subr.mxu0 %v4231
        %4314 = vmatpush1.msra.mxu0 %v4230
        %4315 = vmatprep.subr.mxu0 %v4233
        %4316 = vmatpush1.msra.mxu0 %v4232
        %4317 = vmatprep.subr.mxu0 %v4235
        %4318 = vmatpush1.msra.mxu0 %v4234
        %4319 = vmatprep.subr.mxu0 %v4237
        %4320 = vmatpush1.msra.mxu0 %v4236
        %4321 = vmatprep.subr.mxu0 %v4239
        %4322 = vmatpush1.msra.mxu0 %v4238
        %4323 = vmatprep.subr.mxu0 %v4241
        %4324 = vmatpush1.msra.mxu0 %v4240
        %4325 = vmatprep.subr.mxu0 %v4243
        %4326 = vmatpush1.msra.mxu0 %v4242
        %4327 = vmatprep.subr.mxu0 %v4245
        %4328 = vmatpush1.msra.mxu0 %v4244
        %4329 = vmatprep.subr.mxu0 %v4247
        %4330 = vmatpush1.msra.mxu0 %v4246
        %4331 = vmatprep.subr.mxu0 %v4249
        %4332 = vmatpush1.msra.mxu0 %v4248
        %4333 = vmatprep.subr.mxu0 %v4251
        %4334 = vmatpush1.msra.mxu0 %v4250
        %4335 = vmatprep.subr.mxu0 %v4253
        %4336 = vmatpush1.msra.mxu0 %v4252
        %4337 = vmatprep.subr.mxu0 %v4255
        %4338 = vmatpush1.msra.mxu0 %v4254
        %4339 = vmatprep.subr.mxu0 %v4257
        %4340 = vmatpush1.msra.mxu0 %v4256
        %4341 = vmatprep.subr.mxu0 %v4259
        %4342 = vmatpush1.msra.mxu0 %v4258
        %4343 = vmatprep.subr.mxu0 %v4261
        %4344 = vmatpush1.msra.mxu0 %v4260
        %4345 = vmatprep.subr.mxu0 %v4263
        %4346 = vmatpush1.msra.mxu0 %v4262
        %4347 = vmatprep.subr.mxu0 %v4265
        %4348 = vmatpush1.msra.mxu0 %v4264
        %4349 = vmatprep.subr.mxu0 %v4267
        %4350 = vmatpush1.msra.mxu0 %v4266
        %4351 = vmatprep.subr.mxu0 %v4269
        %4352 = vmatpush1.msra.mxu0 %v4268
        %4353 = vmatprep.subr.mxu0 %v4271
        %4354 = vmatpush1.msra.mxu0 %v4270
        %4355 = vmatprep.subr.mxu0 %v4273
        %4356 = vmatpush1.msra.mxu0 %v4272
        %4357 = vmatprep.subr.mxu0 %v4275
        %4358 = vmatpush1.msra.mxu0 %v4274
        %4359 = vmatprep.subr.mxu0 %v4277
        %4360 = vmatpush1.msra.mxu0 %v4276
        %4361 = vmatprep.subr.mxu0 %v4279
        %4362 = vmatpush1.msra.mxu0 %v4278
        %4363 = vmatprep.mubr.f32.mxu0 %v4296
        %4364 = vmatmul.mubr.f32.gmra.mrb[0].mxu0 %v4295
        %v4365 = vpop.f32.mrb[0].mxu0
        %v4366 = vadd.f32 0.0, %v4365
        %v4367 = vpop.f32.mrb[0].mxu0
        %v4368 = vadd.f32 0.0, %v4367
        %4369 = vdwg.mxu0
        %4370 = vmatprep.subr.mxu0 %v4152
        %4371 = vmatpush1.msra.mxu0 %v4151
        %4372 = vmatprep.subr.mxu0 %v4154
        %4373 = vmatpush1.msra.mxu0 %v4153
        %4374 = vmatprep.subr.mxu0 %v4156
        %4375 = vmatpush1.msra.mxu0 %v4155
        %4376 = vmatprep.subr.mxu0 %v4158
        %4377 = vmatpush1.msra.mxu0 %v4157
        %4378 = vmatprep.subr.mxu0 %v4160
        %4379 = vmatpush1.msra.mxu0 %v4159
        %4380 = vmatprep.subr.mxu0 %v4162
        %4381 = vmatpush1.msra.mxu0 %v4161
        %4382 = vmatprep.subr.mxu0 %v4164
        %4383 = vmatpush1.msra.mxu0 %v4163
        %4384 = vmatprep.subr.mxu0 %v4166
        %4385 = vmatpush1.msra.mxu0 %v4165
        %4386 = vmatprep.subr.mxu0 %v4168
        %4387 = vmatpush1.msra.mxu0 %v4167
        %4388 = vmatprep.subr.mxu0 %v4170
        %4389 = vmatpush1.msra.mxu0 %v4169
        %4390 = vmatprep.subr.mxu0 %v4172
        %4391 = vmatpush1.msra.mxu0 %v4171
        %4392 = vmatprep.subr.mxu0 %v4174
        %4393 = vmatpush1.msra.mxu0 %v4173
        %4394 = vmatprep.subr.mxu0 %v4176
        %4395 = vmatpush1.msra.mxu0 %v4175
        %4396 = vmatprep.subr.mxu0 %v4178
        %4397 = vmatpush1.msra.mxu0 %v4177
        %4398 = vmatprep.subr.mxu0 %v4180
        %4399 = vmatpush1.msra.mxu0 %v4179
        %4400 = vmatprep.subr.mxu0 %v4182
        %4401 = vmatpush1.msra.mxu0 %v4181
        %4402 = vmatprep.subr.mxu0 %v4184
        %4403 = vmatpush1.msra.mxu0 %v4183
        %4404 = vmatprep.subr.mxu0 %v4186
        %4405 = vmatpush1.msra.mxu0 %v4185
        %4406 = vmatprep.subr.mxu0 %v4188
        %4407 = vmatpush1.msra.mxu0 %v4187
        %4408 = vmatprep.subr.mxu0 %v4190
        %4409 = vmatpush1.msra.mxu0 %v4189
        %4410 = vmatprep.subr.mxu0 %v4192
        %4411 = vmatpush1.msra.mxu0 %v4191
        %4412 = vmatprep.subr.mxu0 %v4194
        %4413 = vmatpush1.msra.mxu0 %v4193
        %4414 = vmatprep.subr.mxu0 %v4196
        %4415 = vmatpush1.msra.mxu0 %v4195
        %4416 = vmatprep.subr.mxu0 %v4198
        %4417 = vmatpush1.msra.mxu0 %v4197
        %4418 = vmatprep.subr.mxu0 %v4200
        %4419 = vmatpush1.msra.mxu0 %v4199
        %4420 = vmatprep.subr.mxu0 %v4202
        %4421 = vmatpush1.msra.mxu0 %v4201
        %4422 = vmatprep.subr.mxu0 %v4204
        %4423 = vmatpush1.msra.mxu0 %v4203
        %4424 = vmatprep.subr.mxu0 %v4206
        %4425 = vmatpush1.msra.mxu0 %v4205
        %4426 = vmatprep.subr.mxu0 %v4208
        %4427 = vmatpush1.msra.mxu0 %v4207
        %4428 = vmatprep.subr.mxu0 %v4210
        %4429 = vmatpush1.msra.mxu0 %v4209
        %4430 = vmatprep.subr.mxu0 %v4212
        %4431 = vmatpush1.msra.mxu0 %v4211
        %4432 = vmatprep.subr.mxu0 %v4214
        %4433 = vmatpush1.msra.mxu0 %v4213
        %4434 = vmatprep.mubr.f32.mxu0 %v4292
        %4435 = vmatmul.mubr.f32.gmra.mrb[0].mxu0 %v4291
        %v4436 = vpop.f32.mrb[0].mxu0
        %v4437 = vadd.f32 %v4366, %v4436
        %v4438 = vpop.f32.mrb[0].mxu0
        %v4439 = vadd.f32 %v4368, %v4438
        %4440 = vdwg.mxu0
        %v4442 = vlaneseq
        %v4443 = vshrl.u32 %v4442, 7
        %v4444 = vsub.s32 0, %v4443
        %v4445 = vrot.slane %v4280, %v4444
        %v4446 = vlaneseq
        %v4447 = vshrl.u32 %v4446, 7
        %v4448 = vsub.s32 1, %v4447
        %v4449 = vrot.slane %v4280, %v4448
        %v4452 = vmul.f32 %v4437, %v4445
        %v4453 = vmul.f32 %v4439, %v4449
        %v4455 = vlaneseq
        %v4456 = vshrl.u32 %v4455, 7
        %v4457 = vsub.s32 0, %v4456
        %v4458 = vrot.slane %v4282, %v4457
        %v4459 = vlaneseq
        %v4460 = vshrl.u32 %v4459, 7
        %v4461 = vsub.s32 1, %v4460
        %v4462 = vrot.slane %v4282, %v4461
        %v4465 = vadd.f32 %v4452, %v4458
        %v4466 = vadd.f32 %v4453, %v4462
        %v4467 = vmax.f32 %v4465, 0.0
        %v4468 = vmax.f32 %v4466, 0.0
        %v4471 = vrot.slane %v4467, 1
        %v4472 = vrot.slane %v4468, 1
        %v4475 = vmax.f32 %v4467, %v4471
        %v4476 = vmax.f32 %v4468, %v4472
        %v4477 = vld [vmem:[#allocation25] sm:$0xff]
        %v4478 = vld [vmem:[#allocation25 + $0x8] sm:$0xff]
        %v4479 = vld [vmem:[#allocation25 + $0x10] sm:$0xff]
        %v4480 = vld [vmem:[#allocation25 + $0x18] sm:$0xff]
        %v4481 = vld [vmem:[#allocation25 + $0x20] sm:$0xff]
        %v4482 = vld [vmem:[#allocation25 + $0x28] sm:$0xff]
        %v4483 = vld [vmem:[#allocation25 + $0x30] sm:$0xff]
        %v4484 = vld [vmem:[#allocation25 + $0x38] sm:$0xff]
        %v4485 = vld [vmem:[#allocation25 + $0x40] sm:$0xff]
        %v4486 = vld [vmem:[#allocation25 + $0x48] sm:$0xff]
        %v4487 = vld [vmem:[#allocation25 + $0x50] sm:$0xff]
        %v4488 = vld [vmem:[#allocation25 + $0x58] sm:$0xff]
        %v4489 = vld [vmem:[#allocation25 + $0x60] sm:$0xff]
        %v4490 = vld [vmem:[#allocation25 + $0x68] sm:$0xff]
        %v4491 = vld [vmem:[#allocation25 + $0x70] sm:$0xff]
        %v4492 = vld [vmem:[#allocation25 + $0x78] sm:$0xff]
        %v4493 = vld [vmem:[#allocation25 + $0x80] sm:$0xff]
        %v4494 = vld [vmem:[#allocation25 + $0x88] sm:$0xff]
        %v4495 = vld [vmem:[#allocation25 + $0x90] sm:$0xff]
        %v4496 = vld [vmem:[#allocation25 + $0x98] sm:$0xff]
        %v4497 = vld [vmem:[#allocation25 + $0xa0] sm:$0xff]
        %v4498 = vld [vmem:[#allocation25 + $0xa8] sm:$0xff]
        %v4499 = vld [vmem:[#allocation25 + $0xb0] sm:$0xff]
        %v4500 = vld [vmem:[#allocation25 + $0xb8] sm:$0xff]
        %v4501 = vld [vmem:[#allocation25 + $0xc0] sm:$0xff]
        %v4502 = vld [vmem:[#allocation25 + $0xc8] sm:$0xff]
        %v4503 = vld [vmem:[#allocation25 + $0xd0] sm:$0xff]
        %v4504 = vld [vmem:[#allocation25 + $0xd8] sm:$0xff]
        %v4505 = vld [vmem:[#allocation25 + $0xe0] sm:$0xff]
        %v4506 = vld [vmem:[#allocation25 + $0xe8] sm:$0xff]
        %v4507 = vld [vmem:[#allocation25 + $0xf0] sm:$0xff]
        %v4508 = vld [vmem:[#allocation25 + $0xf8] sm:$0xff]
        %v4509 = vld [vmem:[#allocation25 + $0x100] sm:$0xff]
        %v4510 = vld [vmem:[#allocation25 + $0x108] sm:$0xff]
        %v4511 = vld [vmem:[#allocation25 + $0x110] sm:$0xff]
        %v4512 = vld [vmem:[#allocation25 + $0x118] sm:$0xff]
        %v4513 = vld [vmem:[#allocation25 + $0x120] sm:$0xff]
        %v4514 = vld [vmem:[#allocation25 + $0x128] sm:$0xff]
        %v4515 = vld [vmem:[#allocation25 + $0x130] sm:$0xff]
        %v4516 = vld [vmem:[#allocation25 + $0x138] sm:$0xff]
        %v4517 = vld [vmem:[#allocation25 + $0x140] sm:$0xff]
        %v4518 = vld [vmem:[#allocation25 + $0x148] sm:$0xff]
        %v4519 = vld [vmem:[#allocation25 + $0x150] sm:$0xff]
        %v4520 = vld [vmem:[#allocation25 + $0x158] sm:$0xff]
        %v4521 = vld [vmem:[#allocation25 + $0x160] sm:$0xff]
        %v4522 = vld [vmem:[#allocation25 + $0x168] sm:$0xff]
        %v4523 = vld [vmem:[#allocation25 + $0x170] sm:$0xff]
        %v4524 = vld [vmem:[#allocation25 + $0x178] sm:$0xff]
        %v4525 = vld [vmem:[#allocation25 + $0x180] sm:$0xff]
        %v4526 = vld [vmem:[#allocation25 + $0x188] sm:$0xff]
        %v4527 = vld [vmem:[#allocation25 + $0x190] sm:$0xff]
        %v4528 = vld [vmem:[#allocation25 + $0x198] sm:$0xff]
        %v4529 = vld [vmem:[#allocation25 + $0x1a0] sm:$0xff]
        %v4530 = vld [vmem:[#allocation25 + $0x1a8] sm:$0xff]
        %v4531 = vld [vmem:[#allocation25 + $0x1b0] sm:$0xff]
        %v4532 = vld [vmem:[#allocation25 + $0x1b8] sm:$0xff]
        %v4533 = vld [vmem:[#allocation25 + $0x1c0] sm:$0xff]
        %v4534 = vld [vmem:[#allocation25 + $0x1c8] sm:$0xff]
        %v4535 = vld [vmem:[#allocation25 + $0x1d0] sm:$0xff]
        %v4536 = vld [vmem:[#allocation25 + $0x1d8] sm:$0xff]
        %v4537 = vld [vmem:[#allocation25 + $0x1e0] sm:$0xff]
        %v4538 = vld [vmem:[#allocation25 + $0x1e8] sm:$0xff]
        %v4539 = vld [vmem:[#allocation25 + $0x1f0] sm:$0xff]
        %v4540 = vld [vmem:[#allocation25 + $0x1f8] sm:$0xff]
        %s4541 = scalar_lea.vmem [#allocation25], 512
        %v4542 = vld [vmem:[%s4541] sm:$0xff]
        %v4543 = vld [vmem:[%s4541 + $0x8] sm:$0xff]
        %v4544 = vld [vmem:[%s4541 + $0x10] sm:$0xff]
        %v4545 = vld [vmem:[%s4541 + $0x18] sm:$0xff]
        %v4546 = vld [vmem:[%s4541 + $0x20] sm:$0xff]
        %v4547 = vld [vmem:[%s4541 + $0x28] sm:$0xff]
        %v4548 = vld [vmem:[%s4541 + $0x30] sm:$0xff]
        %v4549 = vld [vmem:[%s4541 + $0x38] sm:$0xff]
        %v4550 = vld [vmem:[%s4541 + $0x40] sm:$0xff]
        %v4551 = vld [vmem:[%s4541 + $0x48] sm:$0xff]
        %v4552 = vld [vmem:[%s4541 + $0x50] sm:$0xff]
        %v4553 = vld [vmem:[%s4541 + $0x58] sm:$0xff]
        %v4554 = vld [vmem:[%s4541 + $0x60] sm:$0xff]
        %v4555 = vld [vmem:[%s4541 + $0x68] sm:$0xff]
        %v4556 = vld [vmem:[%s4541 + $0x70] sm:$0xff]
        %v4557 = vld [vmem:[%s4541 + $0x78] sm:$0xff]
        %v4558 = vld [vmem:[%s4541 + $0x80] sm:$0xff]
        %v4559 = vld [vmem:[%s4541 + $0x88] sm:$0xff]
        %v4560 = vld [vmem:[%s4541 + $0x90] sm:$0xff]
        %v4561 = vld [vmem:[%s4541 + $0x98] sm:$0xff]
        %v4562 = vld [vmem:[%s4541 + $0xa0] sm:$0xff]
        %v4563 = vld [vmem:[%s4541 + $0xa8] sm:$0xff]
        %v4564 = vld [vmem:[%s4541 + $0xb0] sm:$0xff]
        %v4565 = vld [vmem:[%s4541 + $0xb8] sm:$0xff]
        %v4566 = vld [vmem:[%s4541 + $0xc0] sm:$0xff]
        %v4567 = vld [vmem:[%s4541 + $0xc8] sm:$0xff]
        %v4568 = vld [vmem:[%s4541 + $0xd0] sm:$0xff]
        %v4569 = vld [vmem:[%s4541 + $0xd8] sm:$0xff]
        %v4570 = vld [vmem:[%s4541 + $0xe0] sm:$0xff]
        %v4571 = vld [vmem:[%s4541 + $0xe8] sm:$0xff]
        %v4572 = vld [vmem:[%s4541 + $0xf0] sm:$0xff]
        %v4573 = vld [vmem:[%s4541 + $0xf8] sm:$0xff]
        %v4574 = vld [vmem:[%s4541 + $0x100] sm:$0xff]
        %v4575 = vld [vmem:[%s4541 + $0x108] sm:$0xff]
        %v4576 = vld [vmem:[%s4541 + $0x110] sm:$0xff]
        %v4577 = vld [vmem:[%s4541 + $0x118] sm:$0xff]
        %v4578 = vld [vmem:[%s4541 + $0x120] sm:$0xff]
        %v4579 = vld [vmem:[%s4541 + $0x128] sm:$0xff]
        %v4580 = vld [vmem:[%s4541 + $0x130] sm:$0xff]
        %v4581 = vld [vmem:[%s4541 + $0x138] sm:$0xff]
        %v4582 = vld [vmem:[%s4541 + $0x140] sm:$0xff]
        %v4583 = vld [vmem:[%s4541 + $0x148] sm:$0xff]
        %v4584 = vld [vmem:[%s4541 + $0x150] sm:$0xff]
        %v4585 = vld [vmem:[%s4541 + $0x158] sm:$0xff]
        %v4586 = vld [vmem:[%s4541 + $0x160] sm:$0xff]
        %v4587 = vld [vmem:[%s4541 + $0x168] sm:$0xff]
        %v4588 = vld [vmem:[%s4541 + $0x170] sm:$0xff]
        %v4589 = vld [vmem:[%s4541 + $0x178] sm:$0xff]
        %v4590 = vld [vmem:[%s4541 + $0x180] sm:$0xff]
        %v4591 = vld [vmem:[%s4541 + $0x188] sm:$0xff]
        %v4592 = vld [vmem:[%s4541 + $0x190] sm:$0xff]
        %v4593 = vld [vmem:[%s4541 + $0x198] sm:$0xff]
        %v4594 = vld [vmem:[%s4541 + $0x1a0] sm:$0xff]
        %v4595 = vld [vmem:[%s4541 + $0x1a8] sm:$0xff]
        %v4596 = vld [vmem:[%s4541 + $0x1b0] sm:$0xff]
        %v4597 = vld [vmem:[%s4541 + $0x1b8] sm:$0xff]
        %v4598 = vld [vmem:[%s4541 + $0x1c0] sm:$0xff]
        %v4599 = vld [vmem:[%s4541 + $0x1c8] sm:$0xff]
        %v4600 = vld [vmem:[%s4541 + $0x1d0] sm:$0xff]
        %v4601 = vld [vmem:[%s4541 + $0x1d8] sm:$0xff]
        %v4602 = vld [vmem:[%s4541 + $0x1e0] sm:$0xff]
        %v4603 = vld [vmem:[%s4541 + $0x1e8] sm:$0xff]
        %v4604 = vld [vmem:[%s4541 + $0x1f0] sm:$0xff]
        %v4605 = vld [vmem:[%s4541 + $0x1f8] sm:$0xff]
        %v4606 = vld [vmem:[%s47] ss:$2 sm:$0x3]
        %s4607 = scalar_lea.vmem %s47, 1
        %v4608 = vld [vmem:[%s4607] ss:$2 sm:$0x3]
        %v4611 = vrot.slane %v4475, 7
        %v4612 = vrot.slane %v4476, 7
        %v4615 = vsel %vm1817, 0.0, %v4611
        %v4616 = vsel %vm1817, 0.0, %v4612
        %v4617 = vsel %vm1833, %v4615, 0.0
        %v4618 = vsel %vm1833, %v4616, 0.0
        %v4621 = vrot.slane %v4617, 1
        %v4622 = vrot.slane %v4618, 1
        %4625 = vmatprep.subr.mxu0 %v4543
        %4626 = vmatpush1.msra.mxu0 %v4542
        %4627 = vmatprep.subr.mxu0 %v4545
        %4628 = vmatpush1.msra.mxu0 %v4544
        %4629 = vmatprep.subr.mxu0 %v4547
        %4630 = vmatpush1.msra.mxu0 %v4546
        %4631 = vmatprep.subr.mxu0 %v4549
        %4632 = vmatpush1.msra.mxu0 %v4548
        %4633 = vmatprep.subr.mxu0 %v4551
        %4634 = vmatpush1.msra.mxu0 %v4550
        %4635 = vmatprep.subr.mxu0 %v4553
        %4636 = vmatpush1.msra.mxu0 %v4552
        %4637 = vmatprep.subr.mxu0 %v4555
        %4638 = vmatpush1.msra.mxu0 %v4554
        %4639 = vmatprep.subr.mxu0 %v4557
        %4640 = vmatpush1.msra.mxu0 %v4556
        %4641 = vmatprep.subr.mxu0 %v4559
        %4642 = vmatpush1.msra.mxu0 %v4558
        %4643 = vmatprep.subr.mxu0 %v4561
        %4644 = vmatpush1.msra.mxu0 %v4560
        %4645 = vmatprep.subr.mxu0 %v4563
        %4646 = vmatpush1.msra.mxu0 %v4562
        %4647 = vmatprep.subr.mxu0 %v4565
        %4648 = vmatpush1.msra.mxu0 %v4564
        %4649 = vmatprep.subr.mxu0 %v4567
        %4650 = vmatpush1.msra.mxu0 %v4566
        %4651 = vmatprep.subr.mxu0 %v4569
        %4652 = vmatpush1.msra.mxu0 %v4568
        %4653 = vmatprep.subr.mxu0 %v4571
        %4654 = vmatpush1.msra.mxu0 %v4570
        %4655 = vmatprep.subr.mxu0 %v4573
        %4656 = vmatpush1.msra.mxu0 %v4572
        %4657 = vmatprep.subr.mxu0 %v4575
        %4658 = vmatpush1.msra.mxu0 %v4574
        %4659 = vmatprep.subr.mxu0 %v4577
        %4660 = vmatpush1.msra.mxu0 %v4576
        %4661 = vmatprep.subr.mxu0 %v4579
        %4662 = vmatpush1.msra.mxu0 %v4578
        %4663 = vmatprep.subr.mxu0 %v4581
        %4664 = vmatpush1.msra.mxu0 %v4580
        %4665 = vmatprep.subr.mxu0 %v4583
        %4666 = vmatpush1.msra.mxu0 %v4582
        %4667 = vmatprep.subr.mxu0 %v4585
        %4668 = vmatpush1.msra.mxu0 %v4584
        %4669 = vmatprep.subr.mxu0 %v4587
        %4670 = vmatpush1.msra.mxu0 %v4586
        %4671 = vmatprep.subr.mxu0 %v4589
        %4672 = vmatpush1.msra.mxu0 %v4588
        %4673 = vmatprep.subr.mxu0 %v4591
        %4674 = vmatpush1.msra.mxu0 %v4590
        %4675 = vmatprep.subr.mxu0 %v4593
        %4676 = vmatpush1.msra.mxu0 %v4592
        %4677 = vmatprep.subr.mxu0 %v4595
        %4678 = vmatpush1.msra.mxu0 %v4594
        %4679 = vmatprep.subr.mxu0 %v4597
        %4680 = vmatpush1.msra.mxu0 %v4596
        %4681 = vmatprep.subr.mxu0 %v4599
        %4682 = vmatpush1.msra.mxu0 %v4598
        %4683 = vmatprep.subr.mxu0 %v4601
        %4684 = vmatpush1.msra.mxu0 %v4600
        %4685 = vmatprep.subr.mxu0 %v4603
        %4686 = vmatpush1.msra.mxu0 %v4602
        %4687 = vmatprep.subr.mxu0 %v4605
        %4688 = vmatpush1.msra.mxu0 %v4604
        %4689 = vmatprep.mubr.f32.mxu0 %v4622
        %4690 = vmatmul.mubr.f32.gmra.mrb[0].mxu0 %v4621
        %v4691 = vpop.f32.mrb[0].mxu0
        %v4692 = vadd.f32 0.0, %v4691
        %v4693 = vpop.f32.mrb[0].mxu0
        %v4694 = vadd.f32 0.0, %v4693
        %4695 = vdwg.mxu0
        %4696 = vmatprep.subr.mxu0 %v4478
        %4697 = vmatpush1.msra.mxu0 %v4477
        %4698 = vmatprep.subr.mxu0 %v4480
        %4699 = vmatpush1.msra.mxu0 %v4479
        %4700 = vmatprep.subr.mxu0 %v4482
        %4701 = vmatpush1.msra.mxu0 %v4481
        %4702 = vmatprep.subr.mxu0 %v4484
        %4703 = vmatpush1.msra.mxu0 %v4483
        %4704 = vmatprep.subr.mxu0 %v4486
        %4705 = vmatpush1.msra.mxu0 %v4485
        %4706 = vmatprep.subr.mxu0 %v4488
        %4707 = vmatpush1.msra.mxu0 %v4487
        %4708 = vmatprep.subr.mxu0 %v4490
        %4709 = vmatpush1.msra.mxu0 %v4489
        %4710 = vmatprep.subr.mxu0 %v4492
        %4711 = vmatpush1.msra.mxu0 %v4491
        %4712 = vmatprep.subr.mxu0 %v4494
        %4713 = vmatpush1.msra.mxu0 %v4493
        %4714 = vmatprep.subr.mxu0 %v4496
        %4715 = vmatpush1.msra.mxu0 %v4495
        %4716 = vmatprep.subr.mxu0 %v4498
        %4717 = vmatpush1.msra.mxu0 %v4497
        %4718 = vmatprep.subr.mxu0 %v4500
        %4719 = vmatpush1.msra.mxu0 %v4499
        %4720 = vmatprep.subr.mxu0 %v4502
        %4721 = vmatpush1.msra.mxu0 %v4501
        %4722 = vmatprep.subr.mxu0 %v4504
        %4723 = vmatpush1.msra.mxu0 %v4503
        %4724 = vmatprep.subr.mxu0 %v4506
        %4725 = vmatpush1.msra.mxu0 %v4505
        %4726 = vmatprep.subr.mxu0 %v4508
        %4727 = vmatpush1.msra.mxu0 %v4507
        %4728 = vmatprep.subr.mxu0 %v4510
        %4729 = vmatpush1.msra.mxu0 %v4509
        %4730 = vmatprep.subr.mxu0 %v4512
        %4731 = vmatpush1.msra.mxu0 %v4511
        %4732 = vmatprep.subr.mxu0 %v4514
        %4733 = vmatpush1.msra.mxu0 %v4513
        %4734 = vmatprep.subr.mxu0 %v4516
        %4735 = vmatpush1.msra.mxu0 %v4515
        %4736 = vmatprep.subr.mxu0 %v4518
        %4737 = vmatpush1.msra.mxu0 %v4517
        %4738 = vmatprep.subr.mxu0 %v4520
        %4739 = vmatpush1.msra.mxu0 %v4519
        %4740 = vmatprep.subr.mxu0 %v4522
        %4741 = vmatpush1.msra.mxu0 %v4521
        %4742 = vmatprep.subr.mxu0 %v4524
        %4743 = vmatpush1.msra.mxu0 %v4523
        %4744 = vmatprep.subr.mxu0 %v4526
        %4745 = vmatpush1.msra.mxu0 %v4525
        %4746 = vmatprep.subr.mxu0 %v4528
        %4747 = vmatpush1.msra.mxu0 %v4527
        %4748 = vmatprep.subr.mxu0 %v4530
        %4749 = vmatpush1.msra.mxu0 %v4529
        %4750 = vmatprep.subr.mxu0 %v4532
        %4751 = vmatpush1.msra.mxu0 %v4531
        %4752 = vmatprep.subr.mxu0 %v4534
        %4753 = vmatpush1.msra.mxu0 %v4533
        %4754 = vmatprep.subr.mxu0 %v4536
        %4755 = vmatpush1.msra.mxu0 %v4535
        %4756 = vmatprep.subr.mxu0 %v4538
        %4757 = vmatpush1.msra.mxu0 %v4537
        %4758 = vmatprep.subr.mxu0 %v4540
        %4759 = vmatpush1.msra.mxu0 %v4539
        %4760 = vmatprep.mubr.f32.mxu0 %v4618
        %4761 = vmatmul.mubr.f32.gmra.mrb[0].mxu0 %v4617
        %v4762 = vpop.f32.mrb[0].mxu0
        %v4763 = vadd.f32 %v4692, %v4762
        %v4764 = vpop.f32.mrb[0].mxu0
        %v4765 = vadd.f32 %v4694, %v4764
        %4766 = vdwg.mxu0
        %v4768 = vlaneseq
        %v4769 = vshrl.u32 %v4768, 7
        %v4770 = vsub.s32 0, %v4769
        %v4771 = vrot.slane %v4606, %v4770
        %v4772 = vlaneseq
        %v4773 = vshrl.u32 %v4772, 7
        %v4774 = vsub.s32 1, %v4773
        %v4775 = vrot.slane %v4606, %v4774
        %v4778 = vmul.f32 %v4763, %v4771
        %v4779 = vmul.f32 %v4765, %v4775
        %v4781 = vlaneseq
        %v4782 = vshrl.u32 %v4781, 7
        %v4783 = vsub.s32 0, %v4782
        %v4784 = vrot.slane %v4608, %v4783
        %v4785 = vlaneseq
        %v4786 = vshrl.u32 %v4785, 7
        %v4787 = vsub.s32 1, %v4786
        %v4788 = vrot.slane %v4608, %v4787
        %v4791 = vadd.f32 %v4778, %v4784
        %v4792 = vadd.f32 %v4779, %v4788
        %v4793 = vmax.f32 %v4791, 0.0
        %v4794 = vmax.f32 %v4792, 0.0
        %v4797 = vrot.slane %v4793, 1
        %v4798 = vrot.slane %v4794, 1
        %v4801 = vmax.f32 %v4793, %v4797
        %v4802 = vmax.f32 %v4794, %v4798
        %v4803 = vld [vmem:[#allocation26] sm:$0xff]
        %v4804 = vld [vmem:[#allocation26 + $0x8] sm:$0xff]
        %v4805 = vld [vmem:[#allocation26 + $0x10] sm:$0xff]
        %v4806 = vld [vmem:[#allocation26 + $0x18] sm:$0xff]
        %v4807 = vld [vmem:[#allocation26 + $0x20] sm:$0xff]
        %v4808 = vld [vmem:[#allocation26 + $0x28] sm:$0xff]
        %v4809 = vld [vmem:[#allocation26 + $0x30] sm:$0xff]
        %v4810 = vld [vmem:[#allocation26 + $0x38] sm:$0xff]
        %v4811 = vld [vmem:[#allocation26 + $0x40] sm:$0xff]
        %v4812 = vld [vmem:[#allocation26 + $0x48] sm:$0xff]
        %v4813 = vld [vmem:[#allocation26 + $0x50] sm:$0xff]
        %v4814 = vld [vmem:[#allocation26 + $0x58] sm:$0xff]
        %v4815 = vld [vmem:[#allocation26 + $0x60] sm:$0xff]
        %v4816 = vld [vmem:[#allocation26 + $0x68] sm:$0xff]
        %v4817 = vld [vmem:[#allocation26 + $0x70] sm:$0xff]
        %v4818 = vld [vmem:[#allocation26 + $0x78] sm:$0xff]
        %v4819 = vld [vmem:[#allocation26 + $0x80] sm:$0xff]
        %v4820 = vld [vmem:[#allocation26 + $0x88] sm:$0xff]
        %v4821 = vld [vmem:[#allocation26 + $0x90] sm:$0xff]
        %v4822 = vld [vmem:[#allocation26 + $0x98] sm:$0xff]
        %v4823 = vld [vmem:[#allocation26 + $0xa0] sm:$0xff]
        %v4824 = vld [vmem:[#allocation26 + $0xa8] sm:$0xff]
        %v4825 = vld [vmem:[#allocation26 + $0xb0] sm:$0xff]
        %v4826 = vld [vmem:[#allocation26 + $0xb8] sm:$0xff]
        %v4827 = vld [vmem:[#allocation26 + $0xc0] sm:$0xff]
        %v4828 = vld [vmem:[#allocation26 + $0xc8] sm:$0xff]
        %v4829 = vld [vmem:[#allocation26 + $0xd0] sm:$0xff]
        %v4830 = vld [vmem:[#allocation26 + $0xd8] sm:$0xff]
        %v4831 = vld [vmem:[#allocation26 + $0xe0] sm:$0xff]
        %v4832 = vld [vmem:[#allocation26 + $0xe8] sm:$0xff]
        %v4833 = vld [vmem:[#allocation26 + $0xf0] sm:$0xff]
        %v4834 = vld [vmem:[#allocation26 + $0xf8] sm:$0xff]
        %v4835 = vld [vmem:[#allocation26 + $0x100] sm:$0xff]
        %v4836 = vld [vmem:[#allocation26 + $0x108] sm:$0xff]
        %v4837 = vld [vmem:[#allocation26 + $0x110] sm:$0xff]
        %v4838 = vld [vmem:[#allocation26 + $0x118] sm:$0xff]
        %v4839 = vld [vmem:[#allocation26 + $0x120] sm:$0xff]
        %v4840 = vld [vmem:[#allocation26 + $0x128] sm:$0xff]
        %v4841 = vld [vmem:[#allocation26 + $0x130] sm:$0xff]
        %v4842 = vld [vmem:[#allocation26 + $0x138] sm:$0xff]
        %v4843 = vld [vmem:[#allocation26 + $0x140] sm:$0xff]
        %v4844 = vld [vmem:[#allocation26 + $0x148] sm:$0xff]
        %v4845 = vld [vmem:[#allocation26 + $0x150] sm:$0xff]
        %v4846 = vld [vmem:[#allocation26 + $0x158] sm:$0xff]
        %v4847 = vld [vmem:[#allocation26 + $0x160] sm:$0xff]
        %v4848 = vld [vmem:[#allocation26 + $0x168] sm:$0xff]
        %v4849 = vld [vmem:[#allocation26 + $0x170] sm:$0xff]
        %v4850 = vld [vmem:[#allocation26 + $0x178] sm:$0xff]
        %v4851 = vld [vmem:[#allocation26 + $0x180] sm:$0xff]
        %v4852 = vld [vmem:[#allocation26 + $0x188] sm:$0xff]
        %v4853 = vld [vmem:[#allocation26 + $0x190] sm:$0xff]
        %v4854 = vld [vmem:[#allocation26 + $0x198] sm:$0xff]
        %v4855 = vld [vmem:[#allocation26 + $0x1a0] sm:$0xff]
        %v4856 = vld [vmem:[#allocation26 + $0x1a8] sm:$0xff]
        %v4857 = vld [vmem:[#allocation26 + $0x1b0] sm:$0xff]
        %v4858 = vld [vmem:[#allocation26 + $0x1b8] sm:$0xff]
        %v4859 = vld [vmem:[#allocation26 + $0x1c0] sm:$0xff]
        %v4860 = vld [vmem:[#allocation26 + $0x1c8] sm:$0xff]
        %v4861 = vld [vmem:[#allocation26 + $0x1d0] sm:$0xff]
        %v4862 = vld [vmem:[#allocation26 + $0x1d8] sm:$0xff]
        %v4863 = vld [vmem:[#allocation26 + $0x1e0] sm:$0xff]
        %v4864 = vld [vmem:[#allocation26 + $0x1e8] sm:$0xff]
        %v4865 = vld [vmem:[#allocation26 + $0x1f0] sm:$0xff]
        %v4866 = vld [vmem:[#allocation26 + $0x1f8] sm:$0xff]
        %s4867 = scalar_lea.vmem [#allocation26], 512
        %v4868 = vld [vmem:[%s4867] sm:$0xff]
        %v4869 = vld [vmem:[%s4867 + $0x8] sm:$0xff]
        %v4870 = vld [vmem:[%s4867 + $0x10] sm:$0xff]
        %v4871 = vld [vmem:[%s4867 + $0x18] sm:$0xff]
        %v4872 = vld [vmem:[%s4867 + $0x20] sm:$0xff]
        %v4873 = vld [vmem:[%s4867 + $0x28] sm:$0xff]
        %v4874 = vld [vmem:[%s4867 + $0x30] sm:$0xff]
        %v4875 = vld [vmem:[%s4867 + $0x38] sm:$0xff]
        %v4876 = vld [vmem:[%s4867 + $0x40] sm:$0xff]
        %v4877 = vld [vmem:[%s4867 + $0x48] sm:$0xff]
        %v4878 = vld [vmem:[%s4867 + $0x50] sm:$0xff]
        %v4879 = vld [vmem:[%s4867 + $0x58] sm:$0xff]
        %v4880 = vld [vmem:[%s4867 + $0x60] sm:$0xff]
        %v4881 = vld [vmem:[%s4867 + $0x68] sm:$0xff]
        %v4882 = vld [vmem:[%s4867 + $0x70] sm:$0xff]
        %v4883 = vld [vmem:[%s4867 + $0x78] sm:$0xff]
        %v4884 = vld [vmem:[%s4867 + $0x80] sm:$0xff]
        %v4885 = vld [vmem:[%s4867 + $0x88] sm:$0xff]
        %v4886 = vld [vmem:[%s4867 + $0x90] sm:$0xff]
        %v4887 = vld [vmem:[%s4867 + $0x98] sm:$0xff]
        %v4888 = vld [vmem:[%s4867 + $0xa0] sm:$0xff]
        %v4889 = vld [vmem:[%s4867 + $0xa8] sm:$0xff]
        %v4890 = vld [vmem:[%s4867 + $0xb0] sm:$0xff]
        %v4891 = vld [vmem:[%s4867 + $0xb8] sm:$0xff]
        %v4892 = vld [vmem:[%s4867 + $0xc0] sm:$0xff]
        %v4893 = vld [vmem:[%s4867 + $0xc8] sm:$0xff]
        %v4894 = vld [vmem:[%s4867 + $0xd0] sm:$0xff]
        %v4895 = vld [vmem:[%s4867 + $0xd8] sm:$0xff]
        %v4896 = vld [vmem:[%s4867 + $0xe0] sm:$0xff]
        %v4897 = vld [vmem:[%s4867 + $0xe8] sm:$0xff]
        %v4898 = vld [vmem:[%s4867 + $0xf0] sm:$0xff]
        %v4899 = vld [vmem:[%s4867 + $0xf8] sm:$0xff]
        %v4900 = vld [vmem:[%s4867 + $0x100] sm:$0xff]
        %v4901 = vld [vmem:[%s4867 + $0x108] sm:$0xff]
        %v4902 = vld [vmem:[%s4867 + $0x110] sm:$0xff]
        %v4903 = vld [vmem:[%s4867 + $0x118] sm:$0xff]
        %v4904 = vld [vmem:[%s4867 + $0x120] sm:$0xff]
        %v4905 = vld [vmem:[%s4867 + $0x128] sm:$0xff]
        %v4906 = vld [vmem:[%s4867 + $0x130] sm:$0xff]
        %v4907 = vld [vmem:[%s4867 + $0x138] sm:$0xff]
        %v4908 = vld [vmem:[%s4867 + $0x140] sm:$0xff]
        %v4909 = vld [vmem:[%s4867 + $0x148] sm:$0xff]
        %v4910 = vld [vmem:[%s4867 + $0x150] sm:$0xff]
        %v4911 = vld [vmem:[%s4867 + $0x158] sm:$0xff]
        %v4912 = vld [vmem:[%s4867 + $0x160] sm:$0xff]
        %v4913 = vld [vmem:[%s4867 + $0x168] sm:$0xff]
        %v4914 = vld [vmem:[%s4867 + $0x170] sm:$0xff]
        %v4915 = vld [vmem:[%s4867 + $0x178] sm:$0xff]
        %v4916 = vld [vmem:[%s4867 + $0x180] sm:$0xff]
        %v4917 = vld [vmem:[%s4867 + $0x188] sm:$0xff]
        %v4918 = vld [vmem:[%s4867 + $0x190] sm:$0xff]
        %v4919 = vld [vmem:[%s4867 + $0x198] sm:$0xff]
        %v4920 = vld [vmem:[%s4867 + $0x1a0] sm:$0xff]
        %v4921 = vld [vmem:[%s4867 + $0x1a8] sm:$0xff]
        %v4922 = vld [vmem:[%s4867 + $0x1b0] sm:$0xff]
        %v4923 = vld [vmem:[%s4867 + $0x1b8] sm:$0xff]
        %v4924 = vld [vmem:[%s4867 + $0x1c0] sm:$0xff]
        %v4925 = vld [vmem:[%s4867 + $0x1c8] sm:$0xff]
        %v4926 = vld [vmem:[%s4867 + $0x1d0] sm:$0xff]
        %v4927 = vld [vmem:[%s4867 + $0x1d8] sm:$0xff]
        %v4928 = vld [vmem:[%s4867 + $0x1e0] sm:$0xff]
        %v4929 = vld [vmem:[%s4867 + $0x1e8] sm:$0xff]
        %v4930 = vld [vmem:[%s4867 + $0x1f0] sm:$0xff]
        %v4931 = vld [vmem:[%s4867 + $0x1f8] sm:$0xff]
        %v4932 = vld [vmem:[%s51] ss:$2 sm:$0x3]
        %s4933 = scalar_lea.vmem %s51, 1
        %v4934 = vld [vmem:[%s4933] ss:$2 sm:$0x3]
        %v4937 = vrot.slane %v4801, 7
        %v4938 = vrot.slane %v4802, 7
        %v4941 = vsel %vm1817, 0.0, %v4937
        %v4942 = vsel %vm1817, 0.0, %v4938
        %v4943 = vsel %vm1833, %v4941, 0.0
        %v4944 = vsel %vm1833, %v4942, 0.0
        %v4947 = vrot.slane %v4943, 1
        %v4948 = vrot.slane %v4944, 1
        %4951 = vmatprep.subr.mxu0 %v4869
        %4952 = vmatpush1.msra.mxu0 %v4868
        %4953 = vmatprep.subr.mxu0 %v4871
        %4954 = vmatpush1.msra.mxu0 %v4870
        %4955 = vmatprep.subr.mxu0 %v4873
        %4956 = vmatpush1.msra.mxu0 %v4872
        %4957 = vmatprep.subr.mxu0 %v4875
        %4958 = vmatpush1.msra.mxu0 %v4874
        %4959 = vmatprep.subr.mxu0 %v4877
        %4960 = vmatpush1.msra.mxu0 %v4876
        %4961 = vmatprep.subr.mxu0 %v4879
        %4962 = vmatpush1.msra.mxu0 %v4878
        %4963 = vmatprep.subr.mxu0 %v4881
        %4964 = vmatpush1.msra.mxu0 %v4880
        %4965 = vmatprep.subr.mxu0 %v4883
        %4966 = vmatpush1.msra.mxu0 %v4882
        %4967 = vmatprep.subr.mxu0 %v4885
        %4968 = vmatpush1.msra.mxu0 %v4884
        %4969 = vmatprep.subr.mxu0 %v4887
        %4970 = vmatpush1.msra.mxu0 %v4886
        %4971 = vmatprep.subr.mxu0 %v4889
        %4972 = vmatpush1.msra.mxu0 %v4888
        %4973 = vmatprep.subr.mxu0 %v4891
        %4974 = vmatpush1.msra.mxu0 %v4890
        %4975 = vmatprep.subr.mxu0 %v4893
        %4976 = vmatpush1.msra.mxu0 %v4892
        %4977 = vmatprep.subr.mxu0 %v4895
        %4978 = vmatpush1.msra.mxu0 %v4894
        %4979 = vmatprep.subr.mxu0 %v4897
        %4980 = vmatpush1.msra.mxu0 %v4896
        %4981 = vmatprep.subr.mxu0 %v4899
        %4982 = vmatpush1.msra.mxu0 %v4898
        %4983 = vmatprep.subr.mxu0 %v4901
        %4984 = vmatpush1.msra.mxu0 %v4900
        %4985 = vmatprep.subr.mxu0 %v4903
        %4986 = vmatpush1.msra.mxu0 %v4902
        %4987 = vmatprep.subr.mxu0 %v4905
        %4988 = vmatpush1.msra.mxu0 %v4904
        %4989 = vmatprep.subr.mxu0 %v4907
        %4990 = vmatpush1.msra.mxu0 %v4906
        %4991 = vmatprep.subr.mxu0 %v4909
        %4992 = vmatpush1.msra.mxu0 %v4908
        %4993 = vmatprep.subr.mxu0 %v4911
        %4994 = vmatpush1.msra.mxu0 %v4910
        %4995 = vmatprep.subr.mxu0 %v4913
        %4996 = vmatpush1.msra.mxu0 %v4912
        %4997 = vmatprep.subr.mxu0 %v4915
        %4998 = vmatpush1.msra.mxu0 %v4914
        %4999 = vmatprep.subr.mxu0 %v4917
        %5000 = vmatpush1.msra.mxu0 %v4916
        %5001 = vmatprep.subr.mxu0 %v4919
        %5002 = vmatpush1.msra.mxu0 %v4918
        %5003 = vmatprep.subr.mxu0 %v4921
        %5004 = vmatpush1.msra.mxu0 %v4920
        %5005 = vmatprep.subr.mxu0 %v4923
        %5006 = vmatpush1.msra.mxu0 %v4922
        %5007 = vmatprep.subr.mxu0 %v4925
        %5008 = vmatpush1.msra.mxu0 %v4924
        %5009 = vmatprep.subr.mxu0 %v4927
        %5010 = vmatpush1.msra.mxu0 %v4926
        %5011 = vmatprep.subr.mxu0 %v4929
        %5012 = vmatpush1.msra.mxu0 %v4928
        %5013 = vmatprep.subr.mxu0 %v4931
        %5014 = vmatpush1.msra.mxu0 %v4930
        %5015 = vmatprep.mubr.f32.mxu0 %v4948
        %5016 = vmatmul.mubr.f32.gmra.mrb[0].mxu0 %v4947
        %v5017 = vpop.f32.mrb[0].mxu0
        %v5018 = vadd.f32 0.0, %v5017
        %v5019 = vpop.f32.mrb[0].mxu0
        %v5020 = vadd.f32 0.0, %v5019
        %5021 = vdwg.mxu0
        %5022 = vmatprep.subr.mxu0 %v4804
        %5023 = vmatpush1.msra.mxu0 %v4803
        %5024 = vmatprep.subr.mxu0 %v4806
        %5025 = vmatpush1.msra.mxu0 %v4805
        %5026 = vmatprep.subr.mxu0 %v4808
        %5027 = vmatpush1.msra.mxu0 %v4807
        %5028 = vmatprep.subr.mxu0 %v4810
        %5029 = vmatpush1.msra.mxu0 %v4809
        %5030 = vmatprep.subr.mxu0 %v4812
        %5031 = vmatpush1.msra.mxu0 %v4811
        %5032 = vmatprep.subr.mxu0 %v4814
        %5033 = vmatpush1.msra.mxu0 %v4813
        %5034 = vmatprep.subr.mxu0 %v4816
        %5035 = vmatpush1.msra.mxu0 %v4815
        %5036 = vmatprep.subr.mxu0 %v4818
        %5037 = vmatpush1.msra.mxu0 %v4817
        %5038 = vmatprep.subr.mxu0 %v4820
        %5039 = vmatpush1.msra.mxu0 %v4819
        %5040 = vmatprep.subr.mxu0 %v4822
        %5041 = vmatpush1.msra.mxu0 %v4821
        %5042 = vmatprep.subr.mxu0 %v4824
        %5043 = vmatpush1.msra.mxu0 %v4823
        %5044 = vmatprep.subr.mxu0 %v4826
        %5045 = vmatpush1.msra.mxu0 %v4825
        %5046 = vmatprep.subr.mxu0 %v4828
        %5047 = vmatpush1.msra.mxu0 %v4827
        %5048 = vmatprep.subr.mxu0 %v4830
        %5049 = vmatpush1.msra.mxu0 %v4829
        %5050 = vmatprep.subr.mxu0 %v4832
        %5051 = vmatpush1.msra.mxu0 %v4831
        %5052 = vmatprep.subr.mxu0 %v4834
        %5053 = vmatpush1.msra.mxu0 %v4833
        %5054 = vmatprep.subr.mxu0 %v4836
        %5055 = vmatpush1.msra.mxu0 %v4835
        %5056 = vmatprep.subr.mxu0 %v4838
        %5057 = vmatpush1.msra.mxu0 %v4837
        %5058 = vmatprep.subr.mxu0 %v4840
        %5059 = vmatpush1.msra.mxu0 %v4839
        %5060 = vmatprep.subr.mxu0 %v4842
        %5061 = vmatpush1.msra.mxu0 %v4841
        %5062 = vmatprep.subr.mxu0 %v4844
        %5063 = vmatpush1.msra.mxu0 %v4843
        %5064 = vmatprep.subr.mxu0 %v4846
        %5065 = vmatpush1.msra.mxu0 %v4845
        %5066 = vmatprep.subr.mxu0 %v4848
        %5067 = vmatpush1.msra.mxu0 %v4847
        %5068 = vmatprep.subr.mxu0 %v4850
        %5069 = vmatpush1.msra.mxu0 %v4849
        %5070 = vmatprep.subr.mxu0 %v4852
        %5071 = vmatpush1.msra.mxu0 %v4851
        %5072 = vmatprep.subr.mxu0 %v4854
        %5073 = vmatpush1.msra.mxu0 %v4853
        %5074 = vmatprep.subr.mxu0 %v4856
        %5075 = vmatpush1.msra.mxu0 %v4855
        %5076 = vmatprep.subr.mxu0 %v4858
        %5077 = vmatpush1.msra.mxu0 %v4857
        %5078 = vmatprep.subr.mxu0 %v4860
        %5079 = vmatpush1.msra.mxu0 %v4859
        %5080 = vmatprep.subr.mxu0 %v4862
        %5081 = vmatpush1.msra.mxu0 %v4861
        %5082 = vmatprep.subr.mxu0 %v4864
        %5083 = vmatpush1.msra.mxu0 %v4863
        %5084 = vmatprep.subr.mxu0 %v4866
        %5085 = vmatpush1.msra.mxu0 %v4865
        %5086 = vmatprep.mubr.f32.mxu0 %v4944
        %5087 = vmatmul.mubr.f32.gmra.mrb[0].mxu0 %v4943
        %v5088 = vpop.f32.mrb[0].mxu0
        %v5089 = vadd.f32 %v5018, %v5088
        %v5090 = vpop.f32.mrb[0].mxu0
        %v5091 = vadd.f32 %v5020, %v5090
        %5092 = vdwg.mxu0
        %v5094 = vlaneseq
        %v5095 = vshrl.u32 %v5094, 7
        %v5096 = vsub.s32 0, %v5095
        %v5097 = vrot.slane %v4932, %v5096
        %v5098 = vlaneseq
        %v5099 = vshrl.u32 %v5098, 7
        %v5100 = vsub.s32 1, %v5099
        %v5101 = vrot.slane %v4932, %v5100
        %v5104 = vmul.f32 %v5089, %v5097
        %v5105 = vmul.f32 %v5091, %v5101
        %v5107 = vlaneseq
        %v5108 = vshrl.u32 %v5107, 7
        %v5109 = vsub.s32 0, %v5108
        %v5110 = vrot.slane %v4934, %v5109
        %v5111 = vlaneseq
        %v5112 = vshrl.u32 %v5111, 7
        %v5113 = vsub.s32 1, %v5112
        %v5114 = vrot.slane %v4934, %v5113
        %v5117 = vadd.f32 %v5104, %v5110
        %v5118 = vadd.f32 %v5105, %v5114
        %v5119 = vmax.f32 %v5117, 0.0
        %v5120 = vmax.f32 %v5118, 0.0
        %v5123 = vrot.slane %v5119, 1
        %v5124 = vrot.slane %v5120, 1
        %v5127 = vmax.f32 %v5119, %v5123
        %v5128 = vmax.f32 %v5120, %v5124
        %v5129 = vld [vmem:[#allocation28] sm:$0xff]
        %v5130 = vld [vmem:[#allocation28 + $0x8] sm:$0xff]
        %v5131 = vld [vmem:[#allocation28 + $0x10] sm:$0xff]
        %v5132 = vld [vmem:[#allocation28 + $0x18] sm:$0xff]
        %v5133 = vld [vmem:[#allocation28 + $0x20] sm:$0xff]
        %v5134 = vld [vmem:[#allocation28 + $0x28] sm:$0xff]
        %v5135 = vld [vmem:[#allocation28 + $0x30] sm:$0xff]
        %v5136 = vld [vmem:[#allocation28 + $0x38] sm:$0xff]
        %v5137 = vld [vmem:[#allocation28 + $0x40] sm:$0xff]
        %v5138 = vld [vmem:[#allocation28 + $0x48] sm:$0xff]
        %v5139 = vld [vmem:[#allocation28 + $0x50] sm:$0xff]
        %v5140 = vld [vmem:[#allocation28 + $0x58] sm:$0xff]
        %v5141 = vld [vmem:[#allocation28 + $0x60] sm:$0xff]
        %v5142 = vld [vmem:[#allocation28 + $0x68] sm:$0xff]
        %v5143 = vld [vmem:[#allocation28 + $0x70] sm:$0xff]
        %v5144 = vld [vmem:[#allocation28 + $0x78] sm:$0xff]
        %v5145 = vld [vmem:[#allocation28 + $0x80] sm:$0xff]
        %v5146 = vld [vmem:[#allocation28 + $0x88] sm:$0xff]
        %v5147 = vld [vmem:[#allocation28 + $0x90] sm:$0xff]
        %v5148 = vld [vmem:[#allocation28 + $0x98] sm:$0xff]
        %v5149 = vld [vmem:[#allocation28 + $0xa0] sm:$0xff]
        %v5150 = vld [vmem:[#allocation28 + $0xa8] sm:$0xff]
        %v5151 = vld [vmem:[#allocation28 + $0xb0] sm:$0xff]
        %v5152 = vld [vmem:[#allocation28 + $0xb8] sm:$0xff]
        %v5153 = vld [vmem:[#allocation28 + $0xc0] sm:$0xff]
        %v5154 = vld [vmem:[#allocation28 + $0xc8] sm:$0xff]
        %v5155 = vld [vmem:[#allocation28 + $0xd0] sm:$0xff]
        %v5156 = vld [vmem:[#allocation28 + $0xd8] sm:$0xff]
        %v5157 = vld [vmem:[#allocation28 + $0xe0] sm:$0xff]
        %v5158 = vld [vmem:[#allocation28 + $0xe8] sm:$0xff]
        %v5159 = vld [vmem:[#allocation28 + $0xf0] sm:$0xff]
        %v5160 = vld [vmem:[#allocation28 + $0xf8] sm:$0xff]
        %v5161 = vld [vmem:[#allocation28 + $0x100] sm:$0xff]
        %v5162 = vld [vmem:[#allocation28 + $0x108] sm:$0xff]
        %v5163 = vld [vmem:[#allocation28 + $0x110] sm:$0xff]
        %v5164 = vld [vmem:[#allocation28 + $0x118] sm:$0xff]
        %v5165 = vld [vmem:[#allocation28 + $0x120] sm:$0xff]
        %v5166 = vld [vmem:[#allocation28 + $0x128] sm:$0xff]
        %v5167 = vld [vmem:[#allocation28 + $0x130] sm:$0xff]
        %v5168 = vld [vmem:[#allocation28 + $0x138] sm:$0xff]
        %v5169 = vld [vmem:[#allocation28 + $0x140] sm:$0xff]
        %v5170 = vld [vmem:[#allocation28 + $0x148] sm:$0xff]
        %v5171 = vld [vmem:[#allocation28 + $0x150] sm:$0xff]
        %v5172 = vld [vmem:[#allocation28 + $0x158] sm:$0xff]
        %v5173 = vld [vmem:[#allocation28 + $0x160] sm:$0xff]
        %v5174 = vld [vmem:[#allocation28 + $0x168] sm:$0xff]
        %v5175 = vld [vmem:[#allocation28 + $0x170] sm:$0xff]
        %v5176 = vld [vmem:[#allocation28 + $0x178] sm:$0xff]
        %v5177 = vld [vmem:[#allocation28 + $0x180] sm:$0xff]
        %v5178 = vld [vmem:[#allocation28 + $0x188] sm:$0xff]
        %v5179 = vld [vmem:[#allocation28 + $0x190] sm:$0xff]
        %v5180 = vld [vmem:[#allocation28 + $0x198] sm:$0xff]
        %v5181 = vld [vmem:[#allocation28 + $0x1a0] sm:$0xff]
        %v5182 = vld [vmem:[#allocation28 + $0x1a8] sm:$0xff]
        %v5183 = vld [vmem:[#allocation28 + $0x1b0] sm:$0xff]
        %v5184 = vld [vmem:[#allocation28 + $0x1b8] sm:$0xff]
        %v5185 = vld [vmem:[#allocation28 + $0x1c0] sm:$0xff]
        %v5186 = vld [vmem:[#allocation28 + $0x1c8] sm:$0xff]
        %v5187 = vld [vmem:[#allocation28 + $0x1d0] sm:$0xff]
        %v5188 = vld [vmem:[#allocation28 + $0x1d8] sm:$0xff]
        %v5189 = vld [vmem:[#allocation28 + $0x1e0] sm:$0xff]
        %v5190 = vld [vmem:[#allocation28 + $0x1e8] sm:$0xff]
        %v5191 = vld [vmem:[#allocation28 + $0x1f0] sm:$0xff]
        %v5192 = vld [vmem:[#allocation28 + $0x1f8] sm:$0xff]
        %s5193 = scalar_lea.vmem [#allocation28], 512
        %v5194 = vld [vmem:[%s5193] sm:$0xff]
        %v5195 = vld [vmem:[%s5193 + $0x8] sm:$0xff]
        %v5196 = vld [vmem:[%s5193 + $0x10] sm:$0xff]
        %v5197 = vld [vmem:[%s5193 + $0x18] sm:$0xff]
        %v5198 = vld [vmem:[%s5193 + $0x20] sm:$0xff]
        %v5199 = vld [vmem:[%s5193 + $0x28] sm:$0xff]
        %v5200 = vld [vmem:[%s5193 + $0x30] sm:$0xff]
        %v5201 = vld [vmem:[%s5193 + $0x38] sm:$0xff]
        %v5202 = vld [vmem:[%s5193 + $0x40] sm:$0xff]
        %v5203 = vld [vmem:[%s5193 + $0x48] sm:$0xff]
        %v5204 = vld [vmem:[%s5193 + $0x50] sm:$0xff]
        %v5205 = vld [vmem:[%s5193 + $0x58] sm:$0xff]
        %v5206 = vld [vmem:[%s5193 + $0x60] sm:$0xff]
        %v5207 = vld [vmem:[%s5193 + $0x68] sm:$0xff]
        %v5208 = vld [vmem:[%s5193 + $0x70] sm:$0xff]
        %v5209 = vld [vmem:[%s5193 + $0x78] sm:$0xff]
        %v5210 = vld [vmem:[%s5193 + $0x80] sm:$0xff]
        %v5211 = vld [vmem:[%s5193 + $0x88] sm:$0xff]
        %v5212 = vld [vmem:[%s5193 + $0x90] sm:$0xff]
        %v5213 = vld [vmem:[%s5193 + $0x98] sm:$0xff]
        %v5214 = vld [vmem:[%s5193 + $0xa0] sm:$0xff]
        %v5215 = vld [vmem:[%s5193 + $0xa8] sm:$0xff]
        %v5216 = vld [vmem:[%s5193 + $0xb0] sm:$0xff]
        %v5217 = vld [vmem:[%s5193 + $0xb8] sm:$0xff]
        %v5218 = vld [vmem:[%s5193 + $0xc0] sm:$0xff]
        %v5219 = vld [vmem:[%s5193 + $0xc8] sm:$0xff]
        %v5220 = vld [vmem:[%s5193 + $0xd0] sm:$0xff]
        %v5221 = vld [vmem:[%s5193 + $0xd8] sm:$0xff]
        %v5222 = vld [vmem:[%s5193 + $0xe0] sm:$0xff]
        %v5223 = vld [vmem:[%s5193 + $0xe8] sm:$0xff]
        %v5224 = vld [vmem:[%s5193 + $0xf0] sm:$0xff]
        %v5225 = vld [vmem:[%s5193 + $0xf8] sm:$0xff]
        %v5226 = vld [vmem:[%s5193 + $0x100] sm:$0xff]
        %v5227 = vld [vmem:[%s5193 + $0x108] sm:$0xff]
        %v5228 = vld [vmem:[%s5193 + $0x110] sm:$0xff]
        %v5229 = vld [vmem:[%s5193 + $0x118] sm:$0xff]
        %v5230 = vld [vmem:[%s5193 + $0x120] sm:$0xff]
        %v5231 = vld [vmem:[%s5193 + $0x128] sm:$0xff]
        %v5232 = vld [vmem:[%s5193 + $0x130] sm:$0xff]
        %v5233 = vld [vmem:[%s5193 + $0x138] sm:$0xff]
        %v5234 = vld [vmem:[%s5193 + $0x140] sm:$0xff]
        %v5235 = vld [vmem:[%s5193 + $0x148] sm:$0xff]
        %v5236 = vld [vmem:[%s5193 + $0x150] sm:$0xff]
        %v5237 = vld [vmem:[%s5193 + $0x158] sm:$0xff]
        %v5238 = vld [vmem:[%s5193 + $0x160] sm:$0xff]
        %v5239 = vld [vmem:[%s5193 + $0x168] sm:$0xff]
        %v5240 = vld [vmem:[%s5193 + $0x170] sm:$0xff]
        %v5241 = vld [vmem:[%s5193 + $0x178] sm:$0xff]
        %v5242 = vld [vmem:[%s5193 + $0x180] sm:$0xff]
        %v5243 = vld [vmem:[%s5193 + $0x188] sm:$0xff]
        %v5244 = vld [vmem:[%s5193 + $0x190] sm:$0xff]
        %v5245 = vld [vmem:[%s5193 + $0x198] sm:$0xff]
        %v5246 = vld [vmem:[%s5193 + $0x1a0] sm:$0xff]
        %v5247 = vld [vmem:[%s5193 + $0x1a8] sm:$0xff]
        %v5248 = vld [vmem:[%s5193 + $0x1b0] sm:$0xff]
        %v5249 = vld [vmem:[%s5193 + $0x1b8] sm:$0xff]
        %v5250 = vld [vmem:[%s5193 + $0x1c0] sm:$0xff]
        %v5251 = vld [vmem:[%s5193 + $0x1c8] sm:$0xff]
        %v5252 = vld [vmem:[%s5193 + $0x1d0] sm:$0xff]
        %v5253 = vld [vmem:[%s5193 + $0x1d8] sm:$0xff]
        %v5254 = vld [vmem:[%s5193 + $0x1e0] sm:$0xff]
        %v5255 = vld [vmem:[%s5193 + $0x1e8] sm:$0xff]
        %v5256 = vld [vmem:[%s5193 + $0x1f0] sm:$0xff]
        %v5257 = vld [vmem:[%s5193 + $0x1f8] sm:$0xff]
        %v5258 = vld [vmem:[%s55] ss:$2 sm:$0x3]
        %s5259 = scalar_lea.vmem %s55, 1
        %v5260 = vld [vmem:[%s5259] ss:$2 sm:$0x3]
        %v5263 = vrot.slane %v5127, 7
        %v5264 = vrot.slane %v5128, 7
        %v5267 = vsel %vm1817, 0.0, %v5263
        %v5268 = vsel %vm1817, 0.0, %v5264
        %v5269 = vsel %vm1833, %v5267, 0.0
        %v5270 = vsel %vm1833, %v5268, 0.0
        %v5273 = vrot.slane %v5269, 1
        %v5274 = vrot.slane %v5270, 1
        %5277 = vmatprep.subr.mxu0 %v5195
        %5278 = vmatpush1.msra.mxu0 %v5194
        %5279 = vmatprep.subr.mxu0 %v5197
        %5280 = vmatpush1.msra.mxu0 %v5196
        %5281 = vmatprep.subr.mxu0 %v5199
        %5282 = vmatpush1.msra.mxu0 %v5198
        %5283 = vmatprep.subr.mxu0 %v5201
        %5284 = vmatpush1.msra.mxu0 %v5200
        %5285 = vmatprep.subr.mxu0 %v5203
        %5286 = vmatpush1.msra.mxu0 %v5202
        %5287 = vmatprep.subr.mxu0 %v5205
        %5288 = vmatpush1.msra.mxu0 %v5204
        %5289 = vmatprep.subr.mxu0 %v5207
        %5290 = vmatpush1.msra.mxu0 %v5206
        %5291 = vmatprep.subr.mxu0 %v5209
        %5292 = vmatpush1.msra.mxu0 %v5208
        %5293 = vmatprep.subr.mxu0 %v5211
        %5294 = vmatpush1.msra.mxu0 %v5210
        %5295 = vmatprep.subr.mxu0 %v5213
        %5296 = vmatpush1.msra.mxu0 %v5212
        %5297 = vmatprep.subr.mxu0 %v5215
        %5298 = vmatpush1.msra.mxu0 %v5214
        %5299 = vmatprep.subr.mxu0 %v5217
        %5300 = vmatpush1.msra.mxu0 %v5216
        %5301 = vmatprep.subr.mxu0 %v5219
        %5302 = vmatpush1.msra.mxu0 %v5218
        %5303 = vmatprep.subr.mxu0 %v5221
        %5304 = vmatpush1.msra.mxu0 %v5220
        %5305 = vmatprep.subr.mxu0 %v5223
        %5306 = vmatpush1.msra.mxu0 %v5222
        %5307 = vmatprep.subr.mxu0 %v5225
        %5308 = vmatpush1.msra.mxu0 %v5224
        %5309 = vmatprep.subr.mxu0 %v5227
        %5310 = vmatpush1.msra.mxu0 %v5226
        %5311 = vmatprep.subr.mxu0 %v5229
        %5312 = vmatpush1.msra.mxu0 %v5228
        %5313 = vmatprep.subr.mxu0 %v5231
        %5314 = vmatpush1.msra.mxu0 %v5230
        %5315 = vmatprep.subr.mxu0 %v5233
        %5316 = vmatpush1.msra.mxu0 %v5232
        %5317 = vmatprep.subr.mxu0 %v5235
        %5318 = vmatpush1.msra.mxu0 %v5234
        %5319 = vmatprep.subr.mxu0 %v5237
        %5320 = vmatpush1.msra.mxu0 %v5236
        %5321 = vmatprep.subr.mxu0 %v5239
        %5322 = vmatpush1.msra.mxu0 %v5238
        %5323 = vmatprep.subr.mxu0 %v5241
        %5324 = vmatpush1.msra.mxu0 %v5240
        %5325 = vmatprep.subr.mxu0 %v5243
        %5326 = vmatpush1.msra.mxu0 %v5242
        %5327 = vmatprep.subr.mxu0 %v5245
        %5328 = vmatpush1.msra.mxu0 %v5244
        %5329 = vmatprep.subr.mxu0 %v5247
        %5330 = vmatpush1.msra.mxu0 %v5246
        %5331 = vmatprep.subr.mxu0 %v5249
        %5332 = vmatpush1.msra.mxu0 %v5248
        %5333 = vmatprep.subr.mxu0 %v5251
        %5334 = vmatpush1.msra.mxu0 %v5250
        %5335 = vmatprep.subr.mxu0 %v5253
        %5336 = vmatpush1.msra.mxu0 %v5252
        %5337 = vmatprep.subr.mxu0 %v5255
        %5338 = vmatpush1.msra.mxu0 %v5254
        %5339 = vmatprep.subr.mxu0 %v5257
        %5340 = vmatpush1.msra.mxu0 %v5256
        %5341 = vmatprep.mubr.f32.mxu0 %v5274
        %5342 = vmatmul.mubr.f32.gmra.mrb[0].mxu0 %v5273
        %v5343 = vpop.f32.mrb[0].mxu0
        %v5344 = vadd.f32 0.0, %v5343
        %v5345 = vpop.f32.mrb[0].mxu0
        %v5346 = vadd.f32 0.0, %v5345
        %5347 = vdwg.mxu0
        %5348 = vmatprep.subr.mxu0 %v5130
        %5349 = vmatpush1.msra.mxu0 %v5129
        %5350 = vmatprep.subr.mxu0 %v5132
        %5351 = vmatpush1.msra.mxu0 %v5131
        %5352 = vmatprep.subr.mxu0 %v5134
        %5353 = vmatpush1.msra.mxu0 %v5133
        %5354 = vmatprep.subr.mxu0 %v5136
        %5355 = vmatpush1.msra.mxu0 %v5135
        %5356 = vmatprep.subr.mxu0 %v5138
        %5357 = vmatpush1.msra.mxu0 %v5137
        %5358 = vmatprep.subr.mxu0 %v5140
        %5359 = vmatpush1.msra.mxu0 %v5139
        %5360 = vmatprep.subr.mxu0 %v5142
        %5361 = vmatpush1.msra.mxu0 %v5141
        %5362 = vmatprep.subr.mxu0 %v5144
        %5363 = vmatpush1.msra.mxu0 %v5143
        %5364 = vmatprep.subr.mxu0 %v5146
        %5365 = vmatpush1.msra.mxu0 %v5145
        %5366 = vmatprep.subr.mxu0 %v5148
        %5367 = vmatpush1.msra.mxu0 %v5147
        %5368 = vmatprep.subr.mxu0 %v5150
        %5369 = vmatpush1.msra.mxu0 %v5149
        %5370 = vmatprep.subr.mxu0 %v5152
        %5371 = vmatpush1.msra.mxu0 %v5151
        %5372 = vmatprep.subr.mxu0 %v5154
        %5373 = vmatpush1.msra.mxu0 %v5153
        %5374 = vmatprep.subr.mxu0 %v5156
        %5375 = vmatpush1.msra.mxu0 %v5155
        %5376 = vmatprep.subr.mxu0 %v5158
        %5377 = vmatpush1.msra.mxu0 %v5157
        %5378 = vmatprep.subr.mxu0 %v5160
        %5379 = vmatpush1.msra.mxu0 %v5159
        %5380 = vmatprep.subr.mxu0 %v5162
        %5381 = vmatpush1.msra.mxu0 %v5161
        %5382 = vmatprep.subr.mxu0 %v5164
        %5383 = vmatpush1.msra.mxu0 %v5163
        %5384 = vmatprep.subr.mxu0 %v5166
        %5385 = vmatpush1.msra.mxu0 %v5165
        %5386 = vmatprep.subr.mxu0 %v5168
        %5387 = vmatpush1.msra.mxu0 %v5167
        %5388 = vmatprep.subr.mxu0 %v5170
        %5389 = vmatpush1.msra.mxu0 %v5169
        %5390 = vmatprep.subr.mxu0 %v5172
        %5391 = vmatpush1.msra.mxu0 %v5171
        %5392 = vmatprep.subr.mxu0 %v5174
        %5393 = vmatpush1.msra.mxu0 %v5173
        %5394 = vmatprep.subr.mxu0 %v5176
        %5395 = vmatpush1.msra.mxu0 %v5175
        %5396 = vmatprep.subr.mxu0 %v5178
        %5397 = vmatpush1.msra.mxu0 %v5177
        %5398 = vmatprep.subr.mxu0 %v5180
        %5399 = vmatpush1.msra.mxu0 %v5179
        %5400 = vmatprep.subr.mxu0 %v5182
        %5401 = vmatpush1.msra.mxu0 %v5181
        %5402 = vmatprep.subr.mxu0 %v5184
        %5403 = vmatpush1.msra.mxu0 %v5183
        %5404 = vmatprep.subr.mxu0 %v5186
        %5405 = vmatpush1.msra.mxu0 %v5185
        %5406 = vmatprep.subr.mxu0 %v5188
        %5407 = vmatpush1.msra.mxu0 %v5187
        %5408 = vmatprep.subr.mxu0 %v5190
        %5409 = vmatpush1.msra.mxu0 %v5189
        %5410 = vmatprep.subr.mxu0 %v5192
        %5411 = vmatpush1.msra.mxu0 %v5191
        %5412 = vmatprep.mubr.f32.mxu0 %v5270
        %5413 = vmatmul.mubr.f32.gmra.mrb[0].mxu0 %v5269
        %v5414 = vpop.f32.mrb[0].mxu0
        %v5415 = vadd.f32 %v5344, %v5414
        %v5416 = vpop.f32.mrb[0].mxu0
        %v5417 = vadd.f32 %v5346, %v5416
        %5418 = vdwg.mxu0
        %v5420 = vlaneseq
        %v5421 = vshrl.u32 %v5420, 7
        %v5422 = vsub.s32 0, %v5421
        %v5423 = vrot.slane %v5258, %v5422
        %v5424 = vlaneseq
        %v5425 = vshrl.u32 %v5424, 7
        %v5426 = vsub.s32 1, %v5425
        %v5427 = vrot.slane %v5258, %v5426
        %v5430 = vmul.f32 %v5415, %v5423
        %v5431 = vmul.f32 %v5417, %v5427
        %v5433 = vlaneseq
        %v5434 = vshrl.u32 %v5433, 7
        %v5435 = vsub.s32 0, %v5434
        %v5436 = vrot.slane %v5260, %v5435
        %v5437 = vlaneseq
        %v5438 = vshrl.u32 %v5437, 7
        %v5439 = vsub.s32 1, %v5438
        %v5440 = vrot.slane %v5260, %v5439
        %v5443 = vadd.f32 %v5430, %v5436
        %v5444 = vadd.f32 %v5431, %v5440
        %v5445 = vmax.f32 %v5443, 0.0
        %v5446 = vmax.f32 %v5444, 0.0
        %v5449 = vrot.slane %v5445, 1
        %v5450 = vrot.slane %v5446, 1
        %v5453 = vmax.f32 %v5445, %v5449
        %v5454 = vmax.f32 %v5446, %v5450
        %v5455 = vld [vmem:[#allocation29] sm:$0xff]
        %v5456 = vld [vmem:[#allocation29 + $0x8] sm:$0xff]
        %v5457 = vld [vmem:[#allocation29 + $0x10] sm:$0xff]
        %v5458 = vld [vmem:[#allocation29 + $0x18] sm:$0xff]
        %v5459 = vld [vmem:[#allocation29 + $0x20] sm:$0xff]
        %v5460 = vld [vmem:[#allocation29 + $0x28] sm:$0xff]
        %v5461 = vld [vmem:[#allocation29 + $0x30] sm:$0xff]
        %v5462 = vld [vmem:[#allocation29 + $0x38] sm:$0xff]
        %v5463 = vld [vmem:[#allocation29 + $0x40] sm:$0xff]
        %v5464 = vld [vmem:[#allocation29 + $0x48] sm:$0xff]
        %v5465 = vld [vmem:[#allocation29 + $0x50] sm:$0xff]
        %v5466 = vld [vmem:[#allocation29 + $0x58] sm:$0xff]
        %v5467 = vld [vmem:[#allocation29 + $0x60] sm:$0xff]
        %v5468 = vld [vmem:[#allocation29 + $0x68] sm:$0xff]
        %v5469 = vld [vmem:[#allocation29 + $0x70] sm:$0xff]
        %v5470 = vld [vmem:[#allocation29 + $0x78] sm:$0xff]
        %v5471 = vld [vmem:[#allocation29 + $0x80] sm:$0xff]
        %v5472 = vld [vmem:[#allocation29 + $0x88] sm:$0xff]
        %v5473 = vld [vmem:[#allocation29 + $0x90] sm:$0xff]
        %v5474 = vld [vmem:[#allocation29 + $0x98] sm:$0xff]
        %v5475 = vld [vmem:[#allocation29 + $0xa0] sm:$0xff]
        %v5476 = vld [vmem:[#allocation29 + $0xa8] sm:$0xff]
        %v5477 = vld [vmem:[#allocation29 + $0xb0] sm:$0xff]
        %v5478 = vld [vmem:[#allocation29 + $0xb8] sm:$0xff]
        %v5479 = vld [vmem:[#allocation29 + $0xc0] sm:$0xff]
        %v5480 = vld [vmem:[#allocation29 + $0xc8] sm:$0xff]
        %v5481 = vld [vmem:[#allocation29 + $0xd0] sm:$0xff]
        %v5482 = vld [vmem:[#allocation29 + $0xd8] sm:$0xff]
        %v5483 = vld [vmem:[#allocation29 + $0xe0] sm:$0xff]
        %v5484 = vld [vmem:[#allocation29 + $0xe8] sm:$0xff]
        %v5485 = vld [vmem:[#allocation29 + $0xf0] sm:$0xff]
        %v5486 = vld [vmem:[#allocation29 + $0xf8] sm:$0xff]
        %v5487 = vld [vmem:[#allocation29 + $0x100] sm:$0xff]
        %v5488 = vld [vmem:[#allocation29 + $0x108] sm:$0xff]
        %v5489 = vld [vmem:[#allocation29 + $0x110] sm:$0xff]
        %v5490 = vld [vmem:[#allocation29 + $0x118] sm:$0xff]
        %v5491 = vld [vmem:[#allocation29 + $0x120] sm:$0xff]
        %v5492 = vld [vmem:[#allocation29 + $0x128] sm:$0xff]
        %v5493 = vld [vmem:[#allocation29 + $0x130] sm:$0xff]
        %v5494 = vld [vmem:[#allocation29 + $0x138] sm:$0xff]
        %v5495 = vld [vmem:[#allocation29 + $0x140] sm:$0xff]
        %v5496 = vld [vmem:[#allocation29 + $0x148] sm:$0xff]
        %v5497 = vld [vmem:[#allocation29 + $0x150] sm:$0xff]
        %v5498 = vld [vmem:[#allocation29 + $0x158] sm:$0xff]
        %v5499 = vld [vmem:[#allocation29 + $0x160] sm:$0xff]
        %v5500 = vld [vmem:[#allocation29 + $0x168] sm:$0xff]
        %v5501 = vld [vmem:[#allocation29 + $0x170] sm:$0xff]
        %v5502 = vld [vmem:[#allocation29 + $0x178] sm:$0xff]
        %v5503 = vld [vmem:[#allocation29 + $0x180] sm:$0xff]
        %v5504 = vld [vmem:[#allocation29 + $0x188] sm:$0xff]
        %v5505 = vld [vmem:[#allocation29 + $0x190] sm:$0xff]
        %v5506 = vld [vmem:[#allocation29 + $0x198] sm:$0xff]
        %v5507 = vld [vmem:[#allocation29 + $0x1a0] sm:$0xff]
        %v5508 = vld [vmem:[#allocation29 + $0x1a8] sm:$0xff]
        %v5509 = vld [vmem:[#allocation29 + $0x1b0] sm:$0xff]
        %v5510 = vld [vmem:[#allocation29 + $0x1b8] sm:$0xff]
        %v5511 = vld [vmem:[#allocation29 + $0x1c0] sm:$0xff]
        %v5512 = vld [vmem:[#allocation29 + $0x1c8] sm:$0xff]
        %v5513 = vld [vmem:[#allocation29 + $0x1d0] sm:$0xff]
        %v5514 = vld [vmem:[#allocation29 + $0x1d8] sm:$0xff]
        %v5515 = vld [vmem:[#allocation29 + $0x1e0] sm:$0xff]
        %v5516 = vld [vmem:[#allocation29 + $0x1e8] sm:$0xff]
        %v5517 = vld [vmem:[#allocation29 + $0x1f0] sm:$0xff]
        %v5518 = vld [vmem:[#allocation29 + $0x1f8] sm:$0xff]
        %s5519 = scalar_lea.vmem [#allocation29], 512
        %v5520 = vld [vmem:[%s5519] sm:$0xff]
        %v5521 = vld [vmem:[%s5519 + $0x8] sm:$0xff]
        %v5522 = vld [vmem:[%s5519 + $0x10] sm:$0xff]
        %v5523 = vld [vmem:[%s5519 + $0x18] sm:$0xff]
        %v5524 = vld [vmem:[%s5519 + $0x20] sm:$0xff]
        %v5525 = vld [vmem:[%s5519 + $0x28] sm:$0xff]
        %v5526 = vld [vmem:[%s5519 + $0x30] sm:$0xff]
        %v5527 = vld [vmem:[%s5519 + $0x38] sm:$0xff]
        %v5528 = vld [vmem:[%s5519 + $0x40] sm:$0xff]
        %v5529 = vld [vmem:[%s5519 + $0x48] sm:$0xff]
        %v5530 = vld [vmem:[%s5519 + $0x50] sm:$0xff]
        %v5531 = vld [vmem:[%s5519 + $0x58] sm:$0xff]
        %v5532 = vld [vmem:[%s5519 + $0x60] sm:$0xff]
        %v5533 = vld [vmem:[%s5519 + $0x68] sm:$0xff]
        %v5534 = vld [vmem:[%s5519 + $0x70] sm:$0xff]
        %v5535 = vld [vmem:[%s5519 + $0x78] sm:$0xff]
        %v5536 = vld [vmem:[%s5519 + $0x80] sm:$0xff]
        %v5537 = vld [vmem:[%s5519 + $0x88] sm:$0xff]
        %v5538 = vld [vmem:[%s5519 + $0x90] sm:$0xff]
        %v5539 = vld [vmem:[%s5519 + $0x98] sm:$0xff]
        %v5540 = vld [vmem:[%s5519 + $0xa0] sm:$0xff]
        %v5541 = vld [vmem:[%s5519 + $0xa8] sm:$0xff]
        %v5542 = vld [vmem:[%s5519 + $0xb0] sm:$0xff]
        %v5543 = vld [vmem:[%s5519 + $0xb8] sm:$0xff]
        %v5544 = vld [vmem:[%s5519 + $0xc0] sm:$0xff]
        %v5545 = vld [vmem:[%s5519 + $0xc8] sm:$0xff]
        %v5546 = vld [vmem:[%s5519 + $0xd0] sm:$0xff]
        %v5547 = vld [vmem:[%s5519 + $0xd8] sm:$0xff]
        %v5548 = vld [vmem:[%s5519 + $0xe0] sm:$0xff]
        %v5549 = vld [vmem:[%s5519 + $0xe8] sm:$0xff]
        %v5550 = vld [vmem:[%s5519 + $0xf0] sm:$0xff]
        %v5551 = vld [vmem:[%s5519 + $0xf8] sm:$0xff]
        %v5552 = vld [vmem:[%s5519 + $0x100] sm:$0xff]
        %v5553 = vld [vmem:[%s5519 + $0x108] sm:$0xff]
        %v5554 = vld [vmem:[%s5519 + $0x110] sm:$0xff]
        %v5555 = vld [vmem:[%s5519 + $0x118] sm:$0xff]
        %v5556 = vld [vmem:[%s5519 + $0x120] sm:$0xff]
        %v5557 = vld [vmem:[%s5519 + $0x128] sm:$0xff]
        %v5558 = vld [vmem:[%s5519 + $0x130] sm:$0xff]
        %v5559 = vld [vmem:[%s5519 + $0x138] sm:$0xff]
        %v5560 = vld [vmem:[%s5519 + $0x140] sm:$0xff]
        %v5561 = vld [vmem:[%s5519 + $0x148] sm:$0xff]
        %v5562 = vld [vmem:[%s5519 + $0x150] sm:$0xff]
        %v5563 = vld [vmem:[%s5519 + $0x158] sm:$0xff]
        %v5564 = vld [vmem:[%s5519 + $0x160] sm:$0xff]
        %v5565 = vld [vmem:[%s5519 + $0x168] sm:$0xff]
        %v5566 = vld [vmem:[%s5519 + $0x170] sm:$0xff]
        %v5567 = vld [vmem:[%s5519 + $0x178] sm:$0xff]
        %v5568 = vld [vmem:[%s5519 + $0x180] sm:$0xff]
        %v5569 = vld [vmem:[%s5519 + $0x188] sm:$0xff]
        %v5570 = vld [vmem:[%s5519 + $0x190] sm:$0xff]
        %v5571 = vld [vmem:[%s5519 + $0x198] sm:$0xff]
        %v5572 = vld [vmem:[%s5519 + $0x1a0] sm:$0xff]
        %v5573 = vld [vmem:[%s5519 + $0x1a8] sm:$0xff]
        %v5574 = vld [vmem:[%s5519 + $0x1b0] sm:$0xff]
        %v5575 = vld [vmem:[%s5519 + $0x1b8] sm:$0xff]
        %v5576 = vld [vmem:[%s5519 + $0x1c0] sm:$0xff]
        %v5577 = vld [vmem:[%s5519 + $0x1c8] sm:$0xff]
        %v5578 = vld [vmem:[%s5519 + $0x1d0] sm:$0xff]
        %v5579 = vld [vmem:[%s5519 + $0x1d8] sm:$0xff]
        %v5580 = vld [vmem:[%s5519 + $0x1e0] sm:$0xff]
        %v5581 = vld [vmem:[%s5519 + $0x1e8] sm:$0xff]
        %v5582 = vld [vmem:[%s5519 + $0x1f0] sm:$0xff]
        %v5583 = vld [vmem:[%s5519 + $0x1f8] sm:$0xff]
        %v5584 = vld [vmem:[%s59] ss:$2 sm:$0x3]
        %s5585 = scalar_lea.vmem %s59, 1
        %v5586 = vld [vmem:[%s5585] ss:$2 sm:$0x3]
        %v5589 = vrot.slane %v5453, 7
        %v5590 = vrot.slane %v5454, 7
        %v5593 = vsel %vm1817, 0.0, %v5589
        %v5594 = vsel %vm1817, 0.0, %v5590
        %v5595 = vsel %vm1833, %v5593, 0.0
        %v5596 = vsel %vm1833, %v5594, 0.0
        %v5599 = vrot.slane %v5595, 1
        %v5600 = vrot.slane %v5596, 1
        %5603 = vmatprep.subr.mxu0 %v5521
        %5604 = vmatpush1.msra.mxu0 %v5520
        %5605 = vmatprep.subr.mxu0 %v5523
        %5606 = vmatpush1.msra.mxu0 %v5522
        %5607 = vmatprep.subr.mxu0 %v5525
        %5608 = vmatpush1.msra.mxu0 %v5524
        %5609 = vmatprep.subr.mxu0 %v5527
        %5610 = vmatpush1.msra.mxu0 %v5526
        %5611 = vmatprep.subr.mxu0 %v5529
        %5612 = vmatpush1.msra.mxu0 %v5528
        %5613 = vmatprep.subr.mxu0 %v5531
        %5614 = vmatpush1.msra.mxu0 %v5530
        %5615 = vmatprep.subr.mxu0 %v5533
        %5616 = vmatpush1.msra.mxu0 %v5532
        %5617 = vmatprep.subr.mxu0 %v5535
        %5618 = vmatpush1.msra.mxu0 %v5534
        %5619 = vmatprep.subr.mxu0 %v5537
        %5620 = vmatpush1.msra.mxu0 %v5536
        %5621 = vmatprep.subr.mxu0 %v5539
        %5622 = vmatpush1.msra.mxu0 %v5538
        %5623 = vmatprep.subr.mxu0 %v5541
        %5624 = vmatpush1.msra.mxu0 %v5540
        %5625 = vmatprep.subr.mxu0 %v5543
        %5626 = vmatpush1.msra.mxu0 %v5542
        %5627 = vmatprep.subr.mxu0 %v5545
        %5628 = vmatpush1.msra.mxu0 %v5544
        %5629 = vmatprep.subr.mxu0 %v5547
        %5630 = vmatpush1.msra.mxu0 %v5546
        %5631 = vmatprep.subr.mxu0 %v5549
        %5632 = vmatpush1.msra.mxu0 %v5548
        %5633 = vmatprep.subr.mxu0 %v5551
        %5634 = vmatpush1.msra.mxu0 %v5550
        %5635 = vmatprep.subr.mxu0 %v5553
        %5636 = vmatpush1.msra.mxu0 %v5552
        %5637 = vmatprep.subr.mxu0 %v5555
        %5638 = vmatpush1.msra.mxu0 %v5554
        %5639 = vmatprep.subr.mxu0 %v5557
        %5640 = vmatpush1.msra.mxu0 %v5556
        %5641 = vmatprep.subr.mxu0 %v5559
        %5642 = vmatpush1.msra.mxu0 %v5558
        %5643 = vmatprep.subr.mxu0 %v5561
        %5644 = vmatpush1.msra.mxu0 %v5560
        %5645 = vmatprep.subr.mxu0 %v5563
        %5646 = vmatpush1.msra.mxu0 %v5562
        %5647 = vmatprep.subr.mxu0 %v5565
        %5648 = vmatpush1.msra.mxu0 %v5564
        %5649 = vmatprep.subr.mxu0 %v5567
        %5650 = vmatpush1.msra.mxu0 %v5566
        %5651 = vmatprep.subr.mxu0 %v5569
        %5652 = vmatpush1.msra.mxu0 %v5568
        %5653 = vmatprep.subr.mxu0 %v5571
        %5654 = vmatpush1.msra.mxu0 %v5570
        %5655 = vmatprep.subr.mxu0 %v5573
        %5656 = vmatpush1.msra.mxu0 %v5572
        %5657 = vmatprep.subr.mxu0 %v5575
        %5658 = vmatpush1.msra.mxu0 %v5574
        %5659 = vmatprep.subr.mxu0 %v5577
        %5660 = vmatpush1.msra.mxu0 %v5576
        %5661 = vmatprep.subr.mxu0 %v5579
        %5662 = vmatpush1.msra.mxu0 %v5578
        %5663 = vmatprep.subr.mxu0 %v5581
        %5664 = vmatpush1.msra.mxu0 %v5580
        %5665 = vmatprep.subr.mxu0 %v5583
        %5666 = vmatpush1.msra.mxu0 %v5582
        %5667 = vmatprep.mubr.f32.mxu0 %v5600
        %5668 = vmatmul.mubr.f32.gmra.mrb[0].mxu0 %v5599
        %v5669 = vpop.f32.mrb[0].mxu0
        %v5670 = vadd.f32 0.0, %v5669
        %v5671 = vpop.f32.mrb[0].mxu0
        %v5672 = vadd.f32 0.0, %v5671
        %5673 = vdwg.mxu0
        %5674 = vmatprep.subr.mxu0 %v5456
        %5675 = vmatpush1.msra.mxu0 %v5455
        %5676 = vmatprep.subr.mxu0 %v5458
        %5677 = vmatpush1.msra.mxu0 %v5457
        %5678 = vmatprep.subr.mxu0 %v5460
        %5679 = vmatpush1.msra.mxu0 %v5459
        %5680 = vmatprep.subr.mxu0 %v5462
        %5681 = vmatpush1.msra.mxu0 %v5461
        %5682 = vmatprep.subr.mxu0 %v5464
        %5683 = vmatpush1.msra.mxu0 %v5463
        %5684 = vmatprep.subr.mxu0 %v5466
        %5685 = vmatpush1.msra.mxu0 %v5465
        %5686 = vmatprep.subr.mxu0 %v5468
        %5687 = vmatpush1.msra.mxu0 %v5467
        %5688 = vmatprep.subr.mxu0 %v5470
        %5689 = vmatpush1.msra.mxu0 %v5469
        %5690 = vmatprep.subr.mxu0 %v5472
        %5691 = vmatpush1.msra.mxu0 %v5471
        %5692 = vmatprep.subr.mxu0 %v5474
        %5693 = vmatpush1.msra.mxu0 %v5473
        %5694 = vmatprep.subr.mxu0 %v5476
        %5695 = vmatpush1.msra.mxu0 %v5475
        %5696 = vmatprep.subr.mxu0 %v5478
        %5697 = vmatpush1.msra.mxu0 %v5477
        %5698 = vmatprep.subr.mxu0 %v5480
        %5699 = vmatpush1.msra.mxu0 %v5479
        %5700 = vmatprep.subr.mxu0 %v5482
        %5701 = vmatpush1.msra.mxu0 %v5481
        %5702 = vmatprep.subr.mxu0 %v5484
        %5703 = vmatpush1.msra.mxu0 %v5483
        %5704 = vmatprep.subr.mxu0 %v5486
        %5705 = vmatpush1.msra.mxu0 %v5485
        %5706 = vmatprep.subr.mxu0 %v5488
        %5707 = vmatpush1.msra.mxu0 %v5487
        %5708 = vmatprep.subr.mxu0 %v5490
        %5709 = vmatpush1.msra.mxu0 %v5489
        %5710 = vmatprep.subr.mxu0 %v5492
        %5711 = vmatpush1.msra.mxu0 %v5491
        %5712 = vmatprep.subr.mxu0 %v5494
        %5713 = vmatpush1.msra.mxu0 %v5493
        %5714 = vmatprep.subr.mxu0 %v5496
        %5715 = vmatpush1.msra.mxu0 %v5495
        %5716 = vmatprep.subr.mxu0 %v5498
        %5717 = vmatpush1.msra.mxu0 %v5497
        %5718 = vmatprep.subr.mxu0 %v5500
        %5719 = vmatpush1.msra.mxu0 %v5499
        %5720 = vmatprep.subr.mxu0 %v5502
        %5721 = vmatpush1.msra.mxu0 %v5501
        %5722 = vmatprep.subr.mxu0 %v5504
        %5723 = vmatpush1.msra.mxu0 %v5503
        %5724 = vmatprep.subr.mxu0 %v5506
        %5725 = vmatpush1.msra.mxu0 %v5505
        %5726 = vmatprep.subr.mxu0 %v5508
        %5727 = vmatpush1.msra.mxu0 %v5507
        %5728 = vmatprep.subr.mxu0 %v5510
        %5729 = vmatpush1.msra.mxu0 %v5509
        %5730 = vmatprep.subr.mxu0 %v5512
        %5731 = vmatpush1.msra.mxu0 %v5511
        %5732 = vmatprep.subr.mxu0 %v5514
        %5733 = vmatpush1.msra.mxu0 %v5513
        %5734 = vmatprep.subr.mxu0 %v5516
        %5735 = vmatpush1.msra.mxu0 %v5515
        %5736 = vmatprep.subr.mxu0 %v5518
        %5737 = vmatpush1.msra.mxu0 %v5517
        %5738 = vmatprep.mubr.f32.mxu0 %v5596
        %5739 = vmatmul.mubr.f32.gmra.mrb[0].mxu0 %v5595
        %v5740 = vpop.f32.mrb[0].mxu0
        %v5741 = vadd.f32 %v5670, %v5740
        %v5742 = vpop.f32.mrb[0].mxu0
        %v5743 = vadd.f32 %v5672, %v5742
        %5744 = vdwg.mxu0
        %v5746 = vlaneseq
        %v5747 = vshrl.u32 %v5746, 7
        %v5748 = vsub.s32 0, %v5747
        %v5749 = vrot.slane %v5584, %v5748
        %v5750 = vlaneseq
        %v5751 = vshrl.u32 %v5750, 7
        %v5752 = vsub.s32 1, %v5751
        %v5753 = vrot.slane %v5584, %v5752
        %v5756 = vmul.f32 %v5741, %v5749
        %v5757 = vmul.f32 %v5743, %v5753
        %v5759 = vlaneseq
        %v5760 = vshrl.u32 %v5759, 7
        %v5761 = vsub.s32 0, %v5760
        %v5762 = vrot.slane %v5586, %v5761
        %v5763 = vlaneseq
        %v5764 = vshrl.u32 %v5763, 7
        %v5765 = vsub.s32 1, %v5764
        %v5766 = vrot.slane %v5586, %v5765
        %v5769 = vadd.f32 %v5756, %v5762
        %v5770 = vadd.f32 %v5757, %v5766
        %v5771 = vmax.f32 %v5769, 0.0
        %v5772 = vmax.f32 %v5770, 0.0
        %v5775 = vrot.slane %v5771, 1
        %v5776 = vrot.slane %v5772, 1
        %v5779 = vmax.f32 %v5771, %v5775
        %v5780 = vmax.f32 %v5772, %v5776
        %v5781 = vld [vmem:[#allocation31] sm:$0xff]
        %v5782 = vld [vmem:[#allocation31 + $0x8] sm:$0xff]
        %v5783 = vld [vmem:[#allocation31 + $0x10] sm:$0xff]
        %v5784 = vld [vmem:[#allocation31 + $0x18] sm:$0xff]
        %v5785 = vld [vmem:[#allocation31 + $0x20] sm:$0xff]
        %v5786 = vld [vmem:[#allocation31 + $0x28] sm:$0xff]
        %v5787 = vld [vmem:[#allocation31 + $0x30] sm:$0xff]
        %v5788 = vld [vmem:[#allocation31 + $0x38] sm:$0xff]
        %v5789 = vld [vmem:[#allocation31 + $0x40] sm:$0xff]
        %v5790 = vld [vmem:[#allocation31 + $0x48] sm:$0xff]
        %v5791 = vld [vmem:[#allocation31 + $0x50] sm:$0xff]
        %v5792 = vld [vmem:[#allocation31 + $0x58] sm:$0xff]
        %v5793 = vld [vmem:[#allocation31 + $0x60] sm:$0xff]
        %v5794 = vld [vmem:[#allocation31 + $0x68] sm:$0xff]
        %v5795 = vld [vmem:[#allocation31 + $0x70] sm:$0xff]
        %v5796 = vld [vmem:[#allocation31 + $0x78] sm:$0xff]
        %v5797 = vld [vmem:[#allocation31 + $0x80] sm:$0xff]
        %v5798 = vld [vmem:[#allocation31 + $0x88] sm:$0xff]
        %v5799 = vld [vmem:[#allocation31 + $0x90] sm:$0xff]
        %v5800 = vld [vmem:[#allocation31 + $0x98] sm:$0xff]
        %v5801 = vld [vmem:[#allocation31 + $0xa0] sm:$0xff]
        %v5802 = vld [vmem:[#allocation31 + $0xa8] sm:$0xff]
        %v5803 = vld [vmem:[#allocation31 + $0xb0] sm:$0xff]
        %v5804 = vld [vmem:[#allocation31 + $0xb8] sm:$0xff]
        %v5805 = vld [vmem:[#allocation31 + $0xc0] sm:$0xff]
        %v5806 = vld [vmem:[#allocation31 + $0xc8] sm:$0xff]
        %v5807 = vld [vmem:[#allocation31 + $0xd0] sm:$0xff]
        %v5808 = vld [vmem:[#allocation31 + $0xd8] sm:$0xff]
        %v5809 = vld [vmem:[#allocation31 + $0xe0] sm:$0xff]
        %v5810 = vld [vmem:[#allocation31 + $0xe8] sm:$0xff]
        %v5811 = vld [vmem:[#allocation31 + $0xf0] sm:$0xff]
        %v5812 = vld [vmem:[#allocation31 + $0xf8] sm:$0xff]
        %v5813 = vld [vmem:[#allocation31 + $0x100] sm:$0xff]
        %v5814 = vld [vmem:[#allocation31 + $0x108] sm:$0xff]
        %v5815 = vld [vmem:[#allocation31 + $0x110] sm:$0xff]
        %v5816 = vld [vmem:[#allocation31 + $0x118] sm:$0xff]
        %v5817 = vld [vmem:[#allocation31 + $0x120] sm:$0xff]
        %v5818 = vld [vmem:[#allocation31 + $0x128] sm:$0xff]
        %v5819 = vld [vmem:[#allocation31 + $0x130] sm:$0xff]
        %v5820 = vld [vmem:[#allocation31 + $0x138] sm:$0xff]
        %v5821 = vld [vmem:[#allocation31 + $0x140] sm:$0xff]
        %v5822 = vld [vmem:[#allocation31 + $0x148] sm:$0xff]
        %v5823 = vld [vmem:[#allocation31 + $0x150] sm:$0xff]
        %v5824 = vld [vmem:[#allocation31 + $0x158] sm:$0xff]
        %v5825 = vld [vmem:[#allocation31 + $0x160] sm:$0xff]
        %v5826 = vld [vmem:[#allocation31 + $0x168] sm:$0xff]
        %v5827 = vld [vmem:[#allocation31 + $0x170] sm:$0xff]
        %v5828 = vld [vmem:[#allocation31 + $0x178] sm:$0xff]
        %v5829 = vld [vmem:[#allocation31 + $0x180] sm:$0xff]
        %v5830 = vld [vmem:[#allocation31 + $0x188] sm:$0xff]
        %v5831 = vld [vmem:[#allocation31 + $0x190] sm:$0xff]
        %v5832 = vld [vmem:[#allocation31 + $0x198] sm:$0xff]
        %v5833 = vld [vmem:[#allocation31 + $0x1a0] sm:$0xff]
        %v5834 = vld [vmem:[#allocation31 + $0x1a8] sm:$0xff]
        %v5835 = vld [vmem:[#allocation31 + $0x1b0] sm:$0xff]
        %v5836 = vld [vmem:[#allocation31 + $0x1b8] sm:$0xff]
        %v5837 = vld [vmem:[#allocation31 + $0x1c0] sm:$0xff]
        %v5838 = vld [vmem:[#allocation31 + $0x1c8] sm:$0xff]
        %v5839 = vld [vmem:[#allocation31 + $0x1d0] sm:$0xff]
        %v5840 = vld [vmem:[#allocation31 + $0x1d8] sm:$0xff]
        %v5841 = vld [vmem:[#allocation31 + $0x1e0] sm:$0xff]
        %v5842 = vld [vmem:[#allocation31 + $0x1e8] sm:$0xff]
        %v5843 = vld [vmem:[#allocation31 + $0x1f0] sm:$0xff]
        %v5844 = vld [vmem:[#allocation31 + $0x1f8] sm:$0xff]
        %s5845 = scalar_lea.vmem [#allocation31], 512
        %v5846 = vld [vmem:[%s5845] sm:$0xff]
        %v5847 = vld [vmem:[%s5845 + $0x8] sm:$0xff]
        %v5848 = vld [vmem:[%s5845 + $0x10] sm:$0xff]
        %v5849 = vld [vmem:[%s5845 + $0x18] sm:$0xff]
        %v5850 = vld [vmem:[%s5845 + $0x20] sm:$0xff]
        %v5851 = vld [vmem:[%s5845 + $0x28] sm:$0xff]
        %v5852 = vld [vmem:[%s5845 + $0x30] sm:$0xff]
        %v5853 = vld [vmem:[%s5845 + $0x38] sm:$0xff]
        %v5854 = vld [vmem:[%s5845 + $0x40] sm:$0xff]
        %v5855 = vld [vmem:[%s5845 + $0x48] sm:$0xff]
        %v5856 = vld [vmem:[%s5845 + $0x50] sm:$0xff]
        %v5857 = vld [vmem:[%s5845 + $0x58] sm:$0xff]
        %v5858 = vld [vmem:[%s5845 + $0x60] sm:$0xff]
        %v5859 = vld [vmem:[%s5845 + $0x68] sm:$0xff]
        %v5860 = vld [vmem:[%s5845 + $0x70] sm:$0xff]
        %v5861 = vld [vmem:[%s5845 + $0x78] sm:$0xff]
        %v5862 = vld [vmem:[%s5845 + $0x80] sm:$0xff]
        %v5863 = vld [vmem:[%s5845 + $0x88] sm:$0xff]
        %v5864 = vld [vmem:[%s5845 + $0x90] sm:$0xff]
        %v5865 = vld [vmem:[%s5845 + $0x98] sm:$0xff]
        %v5866 = vld [vmem:[%s5845 + $0xa0] sm:$0xff]
        %v5867 = vld [vmem:[%s5845 + $0xa8] sm:$0xff]
        %v5868 = vld [vmem:[%s5845 + $0xb0] sm:$0xff]
        %v5869 = vld [vmem:[%s5845 + $0xb8] sm:$0xff]
        %v5870 = vld [vmem:[%s5845 + $0xc0] sm:$0xff]
        %v5871 = vld [vmem:[%s5845 + $0xc8] sm:$0xff]
        %v5872 = vld [vmem:[%s5845 + $0xd0] sm:$0xff]
        %v5873 = vld [vmem:[%s5845 + $0xd8] sm:$0xff]
        %v5874 = vld [vmem:[%s5845 + $0xe0] sm:$0xff]
        %v5875 = vld [vmem:[%s5845 + $0xe8] sm:$0xff]
        %v5876 = vld [vmem:[%s5845 + $0xf0] sm:$0xff]
        %v5877 = vld [vmem:[%s5845 + $0xf8] sm:$0xff]
        %v5878 = vld [vmem:[%s5845 + $0x100] sm:$0xff]
        %v5879 = vld [vmem:[%s5845 + $0x108] sm:$0xff]
        %v5880 = vld [vmem:[%s5845 + $0x110] sm:$0xff]
        %v5881 = vld [vmem:[%s5845 + $0x118] sm:$0xff]
        %v5882 = vld [vmem:[%s5845 + $0x120] sm:$0xff]
        %v5883 = vld [vmem:[%s5845 + $0x128] sm:$0xff]
        %v5884 = vld [vmem:[%s5845 + $0x130] sm:$0xff]
        %v5885 = vld [vmem:[%s5845 + $0x138] sm:$0xff]
        %v5886 = vld [vmem:[%s5845 + $0x140] sm:$0xff]
        %v5887 = vld [vmem:[%s5845 + $0x148] sm:$0xff]
        %v5888 = vld [vmem:[%s5845 + $0x150] sm:$0xff]
        %v5889 = vld [vmem:[%s5845 + $0x158] sm:$0xff]
        %v5890 = vld [vmem:[%s5845 + $0x160] sm:$0xff]
        %v5891 = vld [vmem:[%s5845 + $0x168] sm:$0xff]
        %v5892 = vld [vmem:[%s5845 + $0x170] sm:$0xff]
        %v5893 = vld [vmem:[%s5845 + $0x178] sm:$0xff]
        %v5894 = vld [vmem:[%s5845 + $0x180] sm:$0xff]
        %v5895 = vld [vmem:[%s5845 + $0x188] sm:$0xff]
        %v5896 = vld [vmem:[%s5845 + $0x190] sm:$0xff]
        %v5897 = vld [vmem:[%s5845 + $0x198] sm:$0xff]
        %v5898 = vld [vmem:[%s5845 + $0x1a0] sm:$0xff]
        %v5899 = vld [vmem:[%s5845 + $0x1a8] sm:$0xff]
        %v5900 = vld [vmem:[%s5845 + $0x1b0] sm:$0xff]
        %v5901 = vld [vmem:[%s5845 + $0x1b8] sm:$0xff]
        %v5902 = vld [vmem:[%s5845 + $0x1c0] sm:$0xff]
        %v5903 = vld [vmem:[%s5845 + $0x1c8] sm:$0xff]
        %v5904 = vld [vmem:[%s5845 + $0x1d0] sm:$0xff]
        %v5905 = vld [vmem:[%s5845 + $0x1d8] sm:$0xff]
        %v5906 = vld [vmem:[%s5845 + $0x1e0] sm:$0xff]
        %v5907 = vld [vmem:[%s5845 + $0x1e8] sm:$0xff]
        %v5908 = vld [vmem:[%s5845 + $0x1f0] sm:$0xff]
        %v5909 = vld [vmem:[%s5845 + $0x1f8] sm:$0xff]
        %v5910 = vld [vmem:[%s63] ss:$2 sm:$0x3]
        %s5911 = scalar_lea.vmem %s63, 1
        %v5912 = vld [vmem:[%s5911] ss:$2 sm:$0x3]
        %v5915 = vrot.slane %v5779, 7
        %v5916 = vrot.slane %v5780, 7
        %v5919 = vsel %vm1817, 0.0, %v5915
        %v5920 = vsel %vm1817, 0.0, %v5916
        %v5921 = vsel %vm1833, %v5919, 0.0
        %v5922 = vsel %vm1833, %v5920, 0.0
        %v5925 = vrot.slane %v5921, 1
        %v5926 = vrot.slane %v5922, 1
        %5929 = vmatprep.subr.mxu0 %v5847
        %5930 = vmatpush1.msra.mxu0 %v5846
        %5931 = vmatprep.subr.mxu0 %v5849
        %5932 = vmatpush1.msra.mxu0 %v5848
        %5933 = vmatprep.subr.mxu0 %v5851
        %5934 = vmatpush1.msra.mxu0 %v5850
        %5935 = vmatprep.subr.mxu0 %v5853
        %5936 = vmatpush1.msra.mxu0 %v5852
        %5937 = vmatprep.subr.mxu0 %v5855
        %5938 = vmatpush1.msra.mxu0 %v5854
        %5939 = vmatprep.subr.mxu0 %v5857
        %5940 = vmatpush1.msra.mxu0 %v5856
        %5941 = vmatprep.subr.mxu0 %v5859
        %5942 = vmatpush1.msra.mxu0 %v5858
        %5943 = vmatprep.subr.mxu0 %v5861
        %5944 = vmatpush1.msra.mxu0 %v5860
        %5945 = vmatprep.subr.mxu0 %v5863
        %5946 = vmatpush1.msra.mxu0 %v5862
        %5947 = vmatprep.subr.mxu0 %v5865
        %5948 = vmatpush1.msra.mxu0 %v5864
        %5949 = vmatprep.subr.mxu0 %v5867
        %5950 = vmatpush1.msra.mxu0 %v5866
        %5951 = vmatprep.subr.mxu0 %v5869
        %5952 = vmatpush1.msra.mxu0 %v5868
        %5953 = vmatprep.subr.mxu0 %v5871
        %5954 = vmatpush1.msra.mxu0 %v5870
        %5955 = vmatprep.subr.mxu0 %v5873
        %5956 = vmatpush1.msra.mxu0 %v5872
        %5957 = vmatprep.subr.mxu0 %v5875
        %5958 = vmatpush1.msra.mxu0 %v5874
        %5959 = vmatprep.subr.mxu0 %v5877
        %5960 = vmatpush1.msra.mxu0 %v5876
        %5961 = vmatprep.subr.mxu0 %v5879
        %5962 = vmatpush1.msra.mxu0 %v5878
        %5963 = vmatprep.subr.mxu0 %v5881
        %5964 = vmatpush1.msra.mxu0 %v5880
        %5965 = vmatprep.subr.mxu0 %v5883
        %5966 = vmatpush1.msra.mxu0 %v5882
        %5967 = vmatprep.subr.mxu0 %v5885
        %5968 = vmatpush1.msra.mxu0 %v5884
        %5969 = vmatprep.subr.mxu0 %v5887
        %5970 = vmatpush1.msra.mxu0 %v5886
        %5971 = vmatprep.subr.mxu0 %v5889
        %5972 = vmatpush1.msra.mxu0 %v5888
        %5973 = vmatprep.subr.mxu0 %v5891
        %5974 = vmatpush1.msra.mxu0 %v5890
        %5975 = vmatprep.subr.mxu0 %v5893
        %5976 = vmatpush1.msra.mxu0 %v5892
        %5977 = vmatprep.subr.mxu0 %v5895
        %5978 = vmatpush1.msra.mxu0 %v5894
        %5979 = vmatprep.subr.mxu0 %v5897
        %5980 = vmatpush1.msra.mxu0 %v5896
        %5981 = vmatprep.subr.mxu0 %v5899
        %5982 = vmatpush1.msra.mxu0 %v5898
        %5983 = vmatprep.subr.mxu0 %v5901
        %5984 = vmatpush1.msra.mxu0 %v5900
        %5985 = vmatprep.subr.mxu0 %v5903
        %5986 = vmatpush1.msra.mxu0 %v5902
        %5987 = vmatprep.subr.mxu0 %v5905
        %5988 = vmatpush1.msra.mxu0 %v5904
        %5989 = vmatprep.subr.mxu0 %v5907
        %5990 = vmatpush1.msra.mxu0 %v5906
        %5991 = vmatprep.subr.mxu0 %v5909
        %5992 = vmatpush1.msra.mxu0 %v5908
        %5993 = vmatprep.mubr.f32.mxu0 %v5926
        %5994 = vmatmul.mubr.f32.gmra.mrb[0].mxu0 %v5925
        %v5995 = vpop.f32.mrb[0].mxu0
        %v5996 = vadd.f32 0.0, %v5995
        %v5997 = vpop.f32.mrb[0].mxu0
        %v5998 = vadd.f32 0.0, %v5997
        %5999 = vdwg.mxu0
        %6000 = vmatprep.subr.mxu0 %v5782
        %6001 = vmatpush1.msra.mxu0 %v5781
        %6002 = vmatprep.subr.mxu0 %v5784
        %6003 = vmatpush1.msra.mxu0 %v5783
        %6004 = vmatprep.subr.mxu0 %v5786
        %6005 = vmatpush1.msra.mxu0 %v5785
        %6006 = vmatprep.subr.mxu0 %v5788
        %6007 = vmatpush1.msra.mxu0 %v5787
        %6008 = vmatprep.subr.mxu0 %v5790
        %6009 = vmatpush1.msra.mxu0 %v5789
        %6010 = vmatprep.subr.mxu0 %v5792
        %6011 = vmatpush1.msra.mxu0 %v5791
        %6012 = vmatprep.subr.mxu0 %v5794
        %6013 = vmatpush1.msra.mxu0 %v5793
        %6014 = vmatprep.subr.mxu0 %v5796
        %6015 = vmatpush1.msra.mxu0 %v5795
        %6016 = vmatprep.subr.mxu0 %v5798
        %6017 = vmatpush1.msra.mxu0 %v5797
        %6018 = vmatprep.subr.mxu0 %v5800
        %6019 = vmatpush1.msra.mxu0 %v5799
        %6020 = vmatprep.subr.mxu0 %v5802
        %6021 = vmatpush1.msra.mxu0 %v5801
        %6022 = vmatprep.subr.mxu0 %v5804
        %6023 = vmatpush1.msra.mxu0 %v5803
        %6024 = vmatprep.subr.mxu0 %v5806
        %6025 = vmatpush1.msra.mxu0 %v5805
        %6026 = vmatprep.subr.mxu0 %v5808
        %6027 = vmatpush1.msra.mxu0 %v5807
        %6028 = vmatprep.subr.mxu0 %v5810
        %6029 = vmatpush1.msra.mxu0 %v5809
        %6030 = vmatprep.subr.mxu0 %v5812
        %6031 = vmatpush1.msra.mxu0 %v5811
        %6032 = vmatprep.subr.mxu0 %v5814
        %6033 = vmatpush1.msra.mxu0 %v5813
        %6034 = vmatprep.subr.mxu0 %v5816
        %6035 = vmatpush1.msra.mxu0 %v5815
        %6036 = vmatprep.subr.mxu0 %v5818
        %6037 = vmatpush1.msra.mxu0 %v5817
        %6038 = vmatprep.subr.mxu0 %v5820
        %6039 = vmatpush1.msra.mxu0 %v5819
        %6040 = vmatprep.subr.mxu0 %v5822
        %6041 = vmatpush1.msra.mxu0 %v5821
        %6042 = vmatprep.subr.mxu0 %v5824
        %6043 = vmatpush1.msra.mxu0 %v5823
        %6044 = vmatprep.subr.mxu0 %v5826
        %6045 = vmatpush1.msra.mxu0 %v5825
        %6046 = vmatprep.subr.mxu0 %v5828
        %6047 = vmatpush1.msra.mxu0 %v5827
        %6048 = vmatprep.subr.mxu0 %v5830
        %6049 = vmatpush1.msra.mxu0 %v5829
        %6050 = vmatprep.subr.mxu0 %v5832
        %6051 = vmatpush1.msra.mxu0 %v5831
        %6052 = vmatprep.subr.mxu0 %v5834
        %6053 = vmatpush1.msra.mxu0 %v5833
        %6054 = vmatprep.subr.mxu0 %v5836
        %6055 = vmatpush1.msra.mxu0 %v5835
        %6056 = vmatprep.subr.mxu0 %v5838
        %6057 = vmatpush1.msra.mxu0 %v5837
        %6058 = vmatprep.subr.mxu0 %v5840
        %6059 = vmatpush1.msra.mxu0 %v5839
        %6060 = vmatprep.subr.mxu0 %v5842
        %6061 = vmatpush1.msra.mxu0 %v5841
        %6062 = vmatprep.subr.mxu0 %v5844
        %6063 = vmatpush1.msra.mxu0 %v5843
        %6064 = vmatprep.mubr.f32.mxu0 %v5922
        %6065 = vmatmul.mubr.f32.gmra.mrb[0].mxu0 %v5921
        %v6066 = vpop.f32.mrb[0].mxu0
        %v6067 = vadd.f32 %v5996, %v6066
        %v6068 = vpop.f32.mrb[0].mxu0
        %v6069 = vadd.f32 %v5998, %v6068
        %6070 = vdwg.mxu0
        %v6072 = vlaneseq
        %v6073 = vshrl.u32 %v6072, 7
        %v6074 = vsub.s32 0, %v6073
        %v6075 = vrot.slane %v5910, %v6074
        %v6076 = vlaneseq
        %v6077 = vshrl.u32 %v6076, 7
        %v6078 = vsub.s32 1, %v6077
        %v6079 = vrot.slane %v5910, %v6078
        %v6082 = vmul.f32 %v6067, %v6075
        %v6083 = vmul.f32 %v6069, %v6079
        %v6085 = vlaneseq
        %v6086 = vshrl.u32 %v6085, 7
        %v6087 = vsub.s32 0, %v6086
        %v6088 = vrot.slane %v5912, %v6087
        %v6089 = vlaneseq
        %v6090 = vshrl.u32 %v6089, 7
        %v6091 = vsub.s32 1, %v6090
        %v6092 = vrot.slane %v5912, %v6091
        %v6095 = vadd.f32 %v6082, %v6088
        %v6096 = vadd.f32 %v6083, %v6092
        %v6097 = vmax.f32 %v6095, 0.0
        %v6098 = vmax.f32 %v6096, 0.0
        %v6101 = vrot.slane %v6097, 1
        %v6102 = vrot.slane %v6098, 1
        %v6105 = vmax.f32 %v6097, %v6101
        %v6106 = vmax.f32 %v6098, %v6102
        %v6107 = vld [vmem:[#allocation32] sm:$0xff]
        %v6108 = vld [vmem:[#allocation32 + $0x8] sm:$0xff]
        %v6109 = vld [vmem:[#allocation32 + $0x10] sm:$0xff]
        %v6110 = vld [vmem:[#allocation32 + $0x18] sm:$0xff]
        %v6111 = vld [vmem:[#allocation32 + $0x20] sm:$0xff]
        %v6112 = vld [vmem:[#allocation32 + $0x28] sm:$0xff]
        %v6113 = vld [vmem:[#allocation32 + $0x30] sm:$0xff]
        %v6114 = vld [vmem:[#allocation32 + $0x38] sm:$0xff]
        %v6115 = vld [vmem:[#allocation32 + $0x40] sm:$0xff]
        %v6116 = vld [vmem:[#allocation32 + $0x48] sm:$0xff]
        %v6117 = vld [vmem:[#allocation32 + $0x50] sm:$0xff]
        %v6118 = vld [vmem:[#allocation32 + $0x58] sm:$0xff]
        %v6119 = vld [vmem:[#allocation32 + $0x60] sm:$0xff]
        %v6120 = vld [vmem:[#allocation32 + $0x68] sm:$0xff]
        %v6121 = vld [vmem:[#allocation32 + $0x70] sm:$0xff]
        %v6122 = vld [vmem:[#allocation32 + $0x78] sm:$0xff]
        %v6123 = vld [vmem:[#allocation32 + $0x80] sm:$0xff]
        %v6124 = vld [vmem:[#allocation32 + $0x88] sm:$0xff]
        %v6125 = vld [vmem:[#allocation32 + $0x90] sm:$0xff]
        %v6126 = vld [vmem:[#allocation32 + $0x98] sm:$0xff]
        %v6127 = vld [vmem:[#allocation32 + $0xa0] sm:$0xff]
        %v6128 = vld [vmem:[#allocation32 + $0xa8] sm:$0xff]
        %v6129 = vld [vmem:[#allocation32 + $0xb0] sm:$0xff]
        %v6130 = vld [vmem:[#allocation32 + $0xb8] sm:$0xff]
        %v6131 = vld [vmem:[#allocation32 + $0xc0] sm:$0xff]
        %v6132 = vld [vmem:[#allocation32 + $0xc8] sm:$0xff]
        %v6133 = vld [vmem:[#allocation32 + $0xd0] sm:$0xff]
        %v6134 = vld [vmem:[#allocation32 + $0xd8] sm:$0xff]
        %v6135 = vld [vmem:[#allocation32 + $0xe0] sm:$0xff]
        %v6136 = vld [vmem:[#allocation32 + $0xe8] sm:$0xff]
        %v6137 = vld [vmem:[#allocation32 + $0xf0] sm:$0xff]
        %v6138 = vld [vmem:[#allocation32 + $0xf8] sm:$0xff]
        %v6139 = vld [vmem:[#allocation32 + $0x100] sm:$0xff]
        %v6140 = vld [vmem:[#allocation32 + $0x108] sm:$0xff]
        %v6141 = vld [vmem:[#allocation32 + $0x110] sm:$0xff]
        %v6142 = vld [vmem:[#allocation32 + $0x118] sm:$0xff]
        %v6143 = vld [vmem:[#allocation32 + $0x120] sm:$0xff]
        %v6144 = vld [vmem:[#allocation32 + $0x128] sm:$0xff]
        %v6145 = vld [vmem:[#allocation32 + $0x130] sm:$0xff]
        %v6146 = vld [vmem:[#allocation32 + $0x138] sm:$0xff]
        %v6147 = vld [vmem:[#allocation32 + $0x140] sm:$0xff]
        %v6148 = vld [vmem:[#allocation32 + $0x148] sm:$0xff]
        %v6149 = vld [vmem:[#allocation32 + $0x150] sm:$0xff]
        %v6150 = vld [vmem:[#allocation32 + $0x158] sm:$0xff]
        %v6151 = vld [vmem:[#allocation32 + $0x160] sm:$0xff]
        %v6152 = vld [vmem:[#allocation32 + $0x168] sm:$0xff]
        %v6153 = vld [vmem:[#allocation32 + $0x170] sm:$0xff]
        %v6154 = vld [vmem:[#allocation32 + $0x178] sm:$0xff]
        %v6155 = vld [vmem:[#allocation32 + $0x180] sm:$0xff]
        %v6156 = vld [vmem:[#allocation32 + $0x188] sm:$0xff]
        %v6157 = vld [vmem:[#allocation32 + $0x190] sm:$0xff]
        %v6158 = vld [vmem:[#allocation32 + $0x198] sm:$0xff]
        %v6159 = vld [vmem:[#allocation32 + $0x1a0] sm:$0xff]
        %v6160 = vld [vmem:[#allocation32 + $0x1a8] sm:$0xff]
        %v6161 = vld [vmem:[#allocation32 + $0x1b0] sm:$0xff]
        %v6162 = vld [vmem:[#allocation32 + $0x1b8] sm:$0xff]
        %v6163 = vld [vmem:[#allocation32 + $0x1c0] sm:$0xff]
        %v6164 = vld [vmem:[#allocation32 + $0x1c8] sm:$0xff]
        %v6165 = vld [vmem:[#allocation32 + $0x1d0] sm:$0xff]
        %v6166 = vld [vmem:[#allocation32 + $0x1d8] sm:$0xff]
        %v6167 = vld [vmem:[#allocation32 + $0x1e0] sm:$0xff]
        %v6168 = vld [vmem:[#allocation32 + $0x1e8] sm:$0xff]
        %v6169 = vld [vmem:[#allocation32 + $0x1f0] sm:$0xff]
        %v6170 = vld [vmem:[#allocation32 + $0x1f8] sm:$0xff]
        %s6171 = scalar_lea.vmem [#allocation32], 512
        %v6172 = vld [vmem:[%s6171] sm:$0xff]
        %v6173 = vld [vmem:[%s6171 + $0x8] sm:$0xff]
        %v6174 = vld [vmem:[%s6171 + $0x10] sm:$0xff]
        %v6175 = vld [vmem:[%s6171 + $0x18] sm:$0xff]
        %v6176 = vld [vmem:[%s6171 + $0x20] sm:$0xff]
        %v6177 = vld [vmem:[%s6171 + $0x28] sm:$0xff]
        %v6178 = vld [vmem:[%s6171 + $0x30] sm:$0xff]
        %v6179 = vld [vmem:[%s6171 + $0x38] sm:$0xff]
        %v6180 = vld [vmem:[%s6171 + $0x40] sm:$0xff]
        %v6181 = vld [vmem:[%s6171 + $0x48] sm:$0xff]
        %v6182 = vld [vmem:[%s6171 + $0x50] sm:$0xff]
        %v6183 = vld [vmem:[%s6171 + $0x58] sm:$0xff]
        %v6184 = vld [vmem:[%s6171 + $0x60] sm:$0xff]
        %v6185 = vld [vmem:[%s6171 + $0x68] sm:$0xff]
        %v6186 = vld [vmem:[%s6171 + $0x70] sm:$0xff]
        %v6187 = vld [vmem:[%s6171 + $0x78] sm:$0xff]
        %v6188 = vld [vmem:[%s6171 + $0x80] sm:$0xff]
        %v6189 = vld [vmem:[%s6171 + $0x88] sm:$0xff]
        %v6190 = vld [vmem:[%s6171 + $0x90] sm:$0xff]
        %v6191 = vld [vmem:[%s6171 + $0x98] sm:$0xff]
        %v6192 = vld [vmem:[%s6171 + $0xa0] sm:$0xff]
        %v6193 = vld [vmem:[%s6171 + $0xa8] sm:$0xff]
        %v6194 = vld [vmem:[%s6171 + $0xb0] sm:$0xff]
        %v6195 = vld [vmem:[%s6171 + $0xb8] sm:$0xff]
        %v6196 = vld [vmem:[%s6171 + $0xc0] sm:$0xff]
        %v6197 = vld [vmem:[%s6171 + $0xc8] sm:$0xff]
        %v6198 = vld [vmem:[%s6171 + $0xd0] sm:$0xff]
        %v6199 = vld [vmem:[%s6171 + $0xd8] sm:$0xff]
        %v6200 = vld [vmem:[%s6171 + $0xe0] sm:$0xff]
        %v6201 = vld [vmem:[%s6171 + $0xe8] sm:$0xff]
        %v6202 = vld [vmem:[%s6171 + $0xf0] sm:$0xff]
        %v6203 = vld [vmem:[%s6171 + $0xf8] sm:$0xff]
        %v6204 = vld [vmem:[%s6171 + $0x100] sm:$0xff]
        %v6205 = vld [vmem:[%s6171 + $0x108] sm:$0xff]
        %v6206 = vld [vmem:[%s6171 + $0x110] sm:$0xff]
        %v6207 = vld [vmem:[%s6171 + $0x118] sm:$0xff]
        %v6208 = vld [vmem:[%s6171 + $0x120] sm:$0xff]
        %v6209 = vld [vmem:[%s6171 + $0x128] sm:$0xff]
        %v6210 = vld [vmem:[%s6171 + $0x130] sm:$0xff]
        %v6211 = vld [vmem:[%s6171 + $0x138] sm:$0xff]
        %v6212 = vld [vmem:[%s6171 + $0x140] sm:$0xff]
        %v6213 = vld [vmem:[%s6171 + $0x148] sm:$0xff]
        %v6214 = vld [vmem:[%s6171 + $0x150] sm:$0xff]
        %v6215 = vld [vmem:[%s6171 + $0x158] sm:$0xff]
        %v6216 = vld [vmem:[%s6171 + $0x160] sm:$0xff]
        %v6217 = vld [vmem:[%s6171 + $0x168] sm:$0xff]
        %v6218 = vld [vmem:[%s6171 + $0x170] sm:$0xff]
        %v6219 = vld [vmem:[%s6171 + $0x178] sm:$0xff]
        %v6220 = vld [vmem:[%s6171 + $0x180] sm:$0xff]
        %v6221 = vld [vmem:[%s6171 + $0x188] sm:$0xff]
        %v6222 = vld [vmem:[%s6171 + $0x190] sm:$0xff]
        %v6223 = vld [vmem:[%s6171 + $0x198] sm:$0xff]
        %v6224 = vld [vmem:[%s6171 + $0x1a0] sm:$0xff]
        %v6225 = vld [vmem:[%s6171 + $0x1a8] sm:$0xff]
        %v6226 = vld [vmem:[%s6171 + $0x1b0] sm:$0xff]
        %v6227 = vld [vmem:[%s6171 + $0x1b8] sm:$0xff]
        %v6228 = vld [vmem:[%s6171 + $0x1c0] sm:$0xff]
        %v6229 = vld [vmem:[%s6171 + $0x1c8] sm:$0xff]
        %v6230 = vld [vmem:[%s6171 + $0x1d0] sm:$0xff]
        %v6231 = vld [vmem:[%s6171 + $0x1d8] sm:$0xff]
        %v6232 = vld [vmem:[%s6171 + $0x1e0] sm:$0xff]
        %v6233 = vld [vmem:[%s6171 + $0x1e8] sm:$0xff]
        %v6234 = vld [vmem:[%s6171 + $0x1f0] sm:$0xff]
        %v6235 = vld [vmem:[%s6171 + $0x1f8] sm:$0xff]
        %v6236 = vld [vmem:[%s67] ss:$2 sm:$0x3]
        %s6237 = scalar_lea.vmem %s67, 1
        %v6238 = vld [vmem:[%s6237] ss:$2 sm:$0x3]
        %v6241 = vrot.slane %v6105, 7
        %v6242 = vrot.slane %v6106, 7
        %v6245 = vsel %vm1817, 0.0, %v6241
        %v6246 = vsel %vm1817, 0.0, %v6242
        %v6247 = vsel %vm1833, %v6245, 0.0
        %v6248 = vsel %vm1833, %v6246, 0.0
        %v6251 = vrot.slane %v6247, 1
        %v6252 = vrot.slane %v6248, 1
        %6255 = vmatprep.subr.mxu0 %v6173
        %6256 = vmatpush1.msra.mxu0 %v6172
        %6257 = vmatprep.subr.mxu0 %v6175
        %6258 = vmatpush1.msra.mxu0 %v6174
        %6259 = vmatprep.subr.mxu0 %v6177
        %6260 = vmatpush1.msra.mxu0 %v6176
        %6261 = vmatprep.subr.mxu0 %v6179
        %6262 = vmatpush1.msra.mxu0 %v6178
        %6263 = vmatprep.subr.mxu0 %v6181
        %6264 = vmatpush1.msra.mxu0 %v6180
        %6265 = vmatprep.subr.mxu0 %v6183
        %6266 = vmatpush1.msra.mxu0 %v6182
        %6267 = vmatprep.subr.mxu0 %v6185
        %6268 = vmatpush1.msra.mxu0 %v6184
        %6269 = vmatprep.subr.mxu0 %v6187
        %6270 = vmatpush1.msra.mxu0 %v6186
        %6271 = vmatprep.subr.mxu0 %v6189
        %6272 = vmatpush1.msra.mxu0 %v6188
        %6273 = vmatprep.subr.mxu0 %v6191
        %6274 = vmatpush1.msra.mxu0 %v6190
        %6275 = vmatprep.subr.mxu0 %v6193
        %6276 = vmatpush1.msra.mxu0 %v6192
        %6277 = vmatprep.subr.mxu0 %v6195
        %6278 = vmatpush1.msra.mxu0 %v6194
        %6279 = vmatprep.subr.mxu0 %v6197
        %6280 = vmatpush1.msra.mxu0 %v6196
        %6281 = vmatprep.subr.mxu0 %v6199
        %6282 = vmatpush1.msra.mxu0 %v6198
        %6283 = vmatprep.subr.mxu0 %v6201
        %6284 = vmatpush1.msra.mxu0 %v6200
        %6285 = vmatprep.subr.mxu0 %v6203
        %6286 = vmatpush1.msra.mxu0 %v6202
        %6287 = vmatprep.subr.mxu0 %v6205
        %6288 = vmatpush1.msra.mxu0 %v6204
        %6289 = vmatprep.subr.mxu0 %v6207
        %6290 = vmatpush1.msra.mxu0 %v6206
        %6291 = vmatprep.subr.mxu0 %v6209
        %6292 = vmatpush1.msra.mxu0 %v6208
        %6293 = vmatprep.subr.mxu0 %v6211
        %6294 = vmatpush1.msra.mxu0 %v6210
        %6295 = vmatprep.subr.mxu0 %v6213
        %6296 = vmatpush1.msra.mxu0 %v6212
        %6297 = vmatprep.subr.mxu0 %v6215
        %6298 = vmatpush1.msra.mxu0 %v6214
        %6299 = vmatprep.subr.mxu0 %v6217
        %6300 = vmatpush1.msra.mxu0 %v6216
        %6301 = vmatprep.subr.mxu0 %v6219
        %6302 = vmatpush1.msra.mxu0 %v6218
        %6303 = vmatprep.subr.mxu0 %v6221
        %6304 = vmatpush1.msra.mxu0 %v6220
        %6305 = vmatprep.subr.mxu0 %v6223
        %6306 = vmatpush1.msra.mxu0 %v6222
        %6307 = vmatprep.subr.mxu0 %v6225
        %6308 = vmatpush1.msra.mxu0 %v6224
        %6309 = vmatprep.subr.mxu0 %v6227
        %6310 = vmatpush1.msra.mxu0 %v6226
        %6311 = vmatprep.subr.mxu0 %v6229
        %6312 = vmatpush1.msra.mxu0 %v6228
        %6313 = vmatprep.subr.mxu0 %v6231
        %6314 = vmatpush1.msra.mxu0 %v6230
        %6315 = vmatprep.subr.mxu0 %v6233
        %6316 = vmatpush1.msra.mxu0 %v6232
        %6317 = vmatprep.subr.mxu0 %v6235
        %6318 = vmatpush1.msra.mxu0 %v6234
        %6319 = vmatprep.mubr.f32.mxu0 %v6252
        %6320 = vmatmul.mubr.f32.gmra.mrb[0].mxu0 %v6251
        %v6321 = vpop.f32.mrb[0].mxu0
        %v6322 = vadd.f32 0.0, %v6321
        %v6323 = vpop.f32.mrb[0].mxu0
        %v6324 = vadd.f32 0.0, %v6323
        %6325 = vdwg.mxu0
        %6326 = vmatprep.subr.mxu0 %v6108
        %6327 = vmatpush1.msra.mxu0 %v6107
        %6328 = vmatprep.subr.mxu0 %v6110
        %6329 = vmatpush1.msra.mxu0 %v6109
        %6330 = vmatprep.subr.mxu0 %v6112
        %6331 = vmatpush1.msra.mxu0 %v6111
        %6332 = vmatprep.subr.mxu0 %v6114
        %6333 = vmatpush1.msra.mxu0 %v6113
        %6334 = vmatprep.subr.mxu0 %v6116
        %6335 = vmatpush1.msra.mxu0 %v6115
        %6336 = vmatprep.subr.mxu0 %v6118
        %6337 = vmatpush1.msra.mxu0 %v6117
        %6338 = vmatprep.subr.mxu0 %v6120
        %6339 = vmatpush1.msra.mxu0 %v6119
        %6340 = vmatprep.subr.mxu0 %v6122
        %6341 = vmatpush1.msra.mxu0 %v6121
        %6342 = vmatprep.subr.mxu0 %v6124
        %6343 = vmatpush1.msra.mxu0 %v6123
        %6344 = vmatprep.subr.mxu0 %v6126
        %6345 = vmatpush1.msra.mxu0 %v6125
        %6346 = vmatprep.subr.mxu0 %v6128
        %6347 = vmatpush1.msra.mxu0 %v6127
        %6348 = vmatprep.subr.mxu0 %v6130
        %6349 = vmatpush1.msra.mxu0 %v6129
        %6350 = vmatprep.subr.mxu0 %v6132
        %6351 = vmatpush1.msra.mxu0 %v6131
        %6352 = vmatprep.subr.mxu0 %v6134
        %6353 = vmatpush1.msra.mxu0 %v6133
        %6354 = vmatprep.subr.mxu0 %v6136
        %6355 = vmatpush1.msra.mxu0 %v6135
        %6356 = vmatprep.subr.mxu0 %v6138
        %6357 = vmatpush1.msra.mxu0 %v6137
        %6358 = vmatprep.subr.mxu0 %v6140
        %6359 = vmatpush1.msra.mxu0 %v6139
        %6360 = vmatprep.subr.mxu0 %v6142
        %6361 = vmatpush1.msra.mxu0 %v6141
        %6362 = vmatprep.subr.mxu0 %v6144
        %6363 = vmatpush1.msra.mxu0 %v6143
        %6364 = vmatprep.subr.mxu0 %v6146
        %6365 = vmatpush1.msra.mxu0 %v6145
        %6366 = vmatprep.subr.mxu0 %v6148
        %6367 = vmatpush1.msra.mxu0 %v6147
        %6368 = vmatprep.subr.mxu0 %v6150
        %6369 = vmatpush1.msra.mxu0 %v6149
        %6370 = vmatprep.subr.mxu0 %v6152
        %6371 = vmatpush1.msra.mxu0 %v6151
        %6372 = vmatprep.subr.mxu0 %v6154
        %6373 = vmatpush1.msra.mxu0 %v6153
        %6374 = vmatprep.subr.mxu0 %v6156
        %6375 = vmatpush1.msra.mxu0 %v6155
        %6376 = vmatprep.subr.mxu0 %v6158
        %6377 = vmatpush1.msra.mxu0 %v6157
        %6378 = vmatprep.subr.mxu0 %v6160
        %6379 = vmatpush1.msra.mxu0 %v6159
        %6380 = vmatprep.subr.mxu0 %v6162
        %6381 = vmatpush1.msra.mxu0 %v6161
        %6382 = vmatprep.subr.mxu0 %v6164
        %6383 = vmatpush1.msra.mxu0 %v6163
        %6384 = vmatprep.subr.mxu0 %v6166
        %6385 = vmatpush1.msra.mxu0 %v6165
        %6386 = vmatprep.subr.mxu0 %v6168
        %6387 = vmatpush1.msra.mxu0 %v6167
        %6388 = vmatprep.subr.mxu0 %v6170
        %6389 = vmatpush1.msra.mxu0 %v6169
        %6390 = vmatprep.mubr.f32.mxu0 %v6248
        %6391 = vmatmul.mubr.f32.gmra.mrb[0].mxu0 %v6247
        %v6392 = vpop.f32.mrb[0].mxu0
        %v6393 = vadd.f32 %v6322, %v6392
        %v6394 = vpop.f32.mrb[0].mxu0
        %v6395 = vadd.f32 %v6324, %v6394
        %6396 = vdwg.mxu0
        %v6398 = vlaneseq
        %v6399 = vshrl.u32 %v6398, 7
        %v6400 = vsub.s32 0, %v6399
        %v6401 = vrot.slane %v6236, %v6400
        %v6402 = vlaneseq
        %v6403 = vshrl.u32 %v6402, 7
        %v6404 = vsub.s32 1, %v6403
        %v6405 = vrot.slane %v6236, %v6404
        %v6408 = vmul.f32 %v6393, %v6401
        %v6409 = vmul.f32 %v6395, %v6405
        %v6411 = vlaneseq
        %v6412 = vshrl.u32 %v6411, 7
        %v6413 = vsub.s32 0, %v6412
        %v6414 = vrot.slane %v6238, %v6413
        %v6415 = vlaneseq
        %v6416 = vshrl.u32 %v6415, 7
        %v6417 = vsub.s32 1, %v6416
        %v6418 = vrot.slane %v6238, %v6417
        %v6421 = vadd.f32 %v6408, %v6414
        %v6422 = vadd.f32 %v6409, %v6418
        %v6423 = vmax.f32 %v6421, 0.0
        %v6424 = vmax.f32 %v6422, 0.0
        %v6427 = vrot.slane %v6423, 1
        %v6428 = vrot.slane %v6424, 1
        %v6431 = vmax.f32 %v6423, %v6427
        %v6432 = vmax.f32 %v6424, %v6428
        %v6433 = vld [vmem:[%s69] sm:$0xff]
        %v6434 = vld [vmem:[%s69 + $0x8] sm:$0xff]
        %v6435 = vld [vmem:[%s69 + $0x10] sm:$0xff]
        %v6436 = vld [vmem:[%s69 + $0x18] sm:$0xff]
        %v6437 = vld [vmem:[%s69 + $0x20] sm:$0xff]
        %v6438 = vld [vmem:[%s69 + $0x28] sm:$0xff]
        %v6439 = vld [vmem:[%s69 + $0x30] sm:$0xff]
        %v6440 = vld [vmem:[%s69 + $0x38] sm:$0xff]
        %v6441 = vld [vmem:[%s69 + $0x40] sm:$0xff]
        %v6442 = vld [vmem:[%s69 + $0x48] sm:$0xff]
        %v6443 = vld [vmem:[%s69 + $0x50] sm:$0xff]
        %v6444 = vld [vmem:[%s69 + $0x58] sm:$0xff]
        %v6445 = vld [vmem:[%s69 + $0x60] sm:$0xff]
        %v6446 = vld [vmem:[%s69 + $0x68] sm:$0xff]
        %v6447 = vld [vmem:[%s69 + $0x70] sm:$0xff]
        %v6448 = vld [vmem:[%s69 + $0x78] sm:$0xff]
        %v6449 = vld [vmem:[%s69 + $0x80] sm:$0xff]
        %v6450 = vld [vmem:[%s69 + $0x88] sm:$0xff]
        %v6451 = vld [vmem:[%s69 + $0x90] sm:$0xff]
        %v6452 = vld [vmem:[%s69 + $0x98] sm:$0xff]
        %v6453 = vld [vmem:[%s69 + $0xa0] sm:$0xff]
        %v6454 = vld [vmem:[%s69 + $0xa8] sm:$0xff]
        %v6455 = vld [vmem:[%s69 + $0xb0] sm:$0xff]
        %v6456 = vld [vmem:[%s69 + $0xb8] sm:$0xff]
        %v6457 = vld [vmem:[%s69 + $0xc0] sm:$0xff]
        %v6458 = vld [vmem:[%s69 + $0xc8] sm:$0xff]
        %v6459 = vld [vmem:[%s69 + $0xd0] sm:$0xff]
        %v6460 = vld [vmem:[%s69 + $0xd8] sm:$0xff]
        %v6461 = vld [vmem:[%s69 + $0xe0] sm:$0xff]
        %v6462 = vld [vmem:[%s69 + $0xe8] sm:$0xff]
        %v6463 = vld [vmem:[%s69 + $0xf0] sm:$0xff]
        %v6464 = vld [vmem:[%s69 + $0xf8] sm:$0xff]
        %v6465 = vld [vmem:[%s69 + $0x100] sm:$0xff]
        %v6466 = vld [vmem:[%s69 + $0x108] sm:$0xff]
        %v6467 = vld [vmem:[%s69 + $0x110] sm:$0xff]
        %v6468 = vld [vmem:[%s69 + $0x118] sm:$0xff]
        %v6469 = vld [vmem:[%s69 + $0x120] sm:$0xff]
        %v6470 = vld [vmem:[%s69 + $0x128] sm:$0xff]
        %v6471 = vld [vmem:[%s69 + $0x130] sm:$0xff]
        %v6472 = vld [vmem:[%s69 + $0x138] sm:$0xff]
        %v6473 = vld [vmem:[%s69 + $0x140] sm:$0xff]
        %v6474 = vld [vmem:[%s69 + $0x148] sm:$0xff]
        %v6475 = vld [vmem:[%s69 + $0x150] sm:$0xff]
        %v6476 = vld [vmem:[%s69 + $0x158] sm:$0xff]
        %v6477 = vld [vmem:[%s69 + $0x160] sm:$0xff]
        %v6478 = vld [vmem:[%s69 + $0x168] sm:$0xff]
        %v6479 = vld [vmem:[%s69 + $0x170] sm:$0xff]
        %v6480 = vld [vmem:[%s69 + $0x178] sm:$0xff]
        %v6481 = vld [vmem:[%s69 + $0x180] sm:$0xff]
        %v6482 = vld [vmem:[%s69 + $0x188] sm:$0xff]
        %v6483 = vld [vmem:[%s69 + $0x190] sm:$0xff]
        %v6484 = vld [vmem:[%s69 + $0x198] sm:$0xff]
        %v6485 = vld [vmem:[%s69 + $0x1a0] sm:$0xff]
        %v6486 = vld [vmem:[%s69 + $0x1a8] sm:$0xff]
        %v6487 = vld [vmem:[%s69 + $0x1b0] sm:$0xff]
        %v6488 = vld [vmem:[%s69 + $0x1b8] sm:$0xff]
        %v6489 = vld [vmem:[%s69 + $0x1c0] sm:$0xff]
        %v6490 = vld [vmem:[%s69 + $0x1c8] sm:$0xff]
        %v6491 = vld [vmem:[%s69 + $0x1d0] sm:$0xff]
        %v6492 = vld [vmem:[%s69 + $0x1d8] sm:$0xff]
        %v6493 = vld [vmem:[%s69 + $0x1e0] sm:$0xff]
        %v6494 = vld [vmem:[%s69 + $0x1e8] sm:$0xff]
        %v6495 = vld [vmem:[%s69 + $0x1f0] sm:$0xff]
        %v6496 = vld [vmem:[%s69 + $0x1f8] sm:$0xff]
        %v6497 = vld [vmem:[%s69 + $0x200] sm:$0xff]
        %v6498 = vld [vmem:[%s69 + $0x208] sm:$0xff]
        %v6499 = vld [vmem:[%s69 + $0x210] sm:$0xff]
        %v6500 = vld [vmem:[%s69 + $0x218] sm:$0xff]
        %v6501 = vld [vmem:[%s69 + $0x220] sm:$0xff]
        %v6502 = vld [vmem:[%s69 + $0x228] sm:$0xff]
        %v6503 = vld [vmem:[%s69 + $0x230] sm:$0xff]
        %v6504 = vld [vmem:[%s69 + $0x238] sm:$0xff]
        %v6505 = vld [vmem:[%s69 + $0x240] sm:$0xff]
        %v6506 = vld [vmem:[%s69 + $0x248] sm:$0xff]
        %v6507 = vld [vmem:[%s69 + $0x250] sm:$0xff]
        %v6508 = vld [vmem:[%s69 + $0x258] sm:$0xff]
        %v6509 = vld [vmem:[%s69 + $0x260] sm:$0xff]
        %v6510 = vld [vmem:[%s69 + $0x268] sm:$0xff]
        %v6511 = vld [vmem:[%s69 + $0x270] sm:$0xff]
        %v6512 = vld [vmem:[%s69 + $0x278] sm:$0xff]
        %v6513 = vld [vmem:[%s69 + $0x280] sm:$0xff]
        %v6514 = vld [vmem:[%s69 + $0x288] sm:$0xff]
        %v6515 = vld [vmem:[%s69 + $0x290] sm:$0xff]
        %v6516 = vld [vmem:[%s69 + $0x298] sm:$0xff]
        %v6517 = vld [vmem:[%s69 + $0x2a0] sm:$0xff]
        %v6518 = vld [vmem:[%s69 + $0x2a8] sm:$0xff]
        %v6519 = vld [vmem:[%s69 + $0x2b0] sm:$0xff]
        %v6520 = vld [vmem:[%s69 + $0x2b8] sm:$0xff]
        %v6521 = vld [vmem:[%s69 + $0x2c0] sm:$0xff]
        %v6522 = vld [vmem:[%s69 + $0x2c8] sm:$0xff]
        %v6523 = vld [vmem:[%s69 + $0x2d0] sm:$0xff]
        %v6524 = vld [vmem:[%s69 + $0x2d8] sm:$0xff]
        %v6525 = vld [vmem:[%s69 + $0x2e0] sm:$0xff]
        %v6526 = vld [vmem:[%s69 + $0x2e8] sm:$0xff]
        %v6527 = vld [vmem:[%s69 + $0x2f0] sm:$0xff]
        %v6528 = vld [vmem:[%s69 + $0x2f8] sm:$0xff]
        %v6529 = vld [vmem:[%s69 + $0x300] sm:$0xff]
        %v6530 = vld [vmem:[%s69 + $0x308] sm:$0xff]
        %v6531 = vld [vmem:[%s69 + $0x310] sm:$0xff]
        %v6532 = vld [vmem:[%s69 + $0x318] sm:$0xff]
        %v6533 = vld [vmem:[%s69 + $0x320] sm:$0xff]
        %v6534 = vld [vmem:[%s69 + $0x328] sm:$0xff]
        %v6535 = vld [vmem:[%s69 + $0x330] sm:$0xff]
        %v6536 = vld [vmem:[%s69 + $0x338] sm:$0xff]
        %v6537 = vld [vmem:[%s69 + $0x340] sm:$0xff]
        %v6538 = vld [vmem:[%s69 + $0x348] sm:$0xff]
        %v6539 = vld [vmem:[%s69 + $0x350] sm:$0xff]
        %v6540 = vld [vmem:[%s69 + $0x358] sm:$0xff]
        %v6541 = vld [vmem:[%s69 + $0x360] sm:$0xff]
        %v6542 = vld [vmem:[%s69 + $0x368] sm:$0xff]
        %v6543 = vld [vmem:[%s69 + $0x370] sm:$0xff]
        %v6544 = vld [vmem:[%s69 + $0x378] sm:$0xff]
        %v6545 = vld [vmem:[%s69 + $0x380] sm:$0xff]
        %v6546 = vld [vmem:[%s69 + $0x388] sm:$0xff]
        %v6547 = vld [vmem:[%s69 + $0x390] sm:$0xff]
        %v6548 = vld [vmem:[%s69 + $0x398] sm:$0xff]
        %v6549 = vld [vmem:[%s69 + $0x3a0] sm:$0xff]
        %v6550 = vld [vmem:[%s69 + $0x3a8] sm:$0xff]
        %v6551 = vld [vmem:[%s69 + $0x3b0] sm:$0xff]
        %v6552 = vld [vmem:[%s69 + $0x3b8] sm:$0xff]
        %v6553 = vld [vmem:[%s69 + $0x3c0] sm:$0xff]
        %v6554 = vld [vmem:[%s69 + $0x3c8] sm:$0xff]
        %v6555 = vld [vmem:[%s69 + $0x3d0] sm:$0xff]
        %v6556 = vld [vmem:[%s69 + $0x3d8] sm:$0xff]
        %v6557 = vld [vmem:[%s69 + $0x3e0] sm:$0xff]
        %v6558 = vld [vmem:[%s69 + $0x3e8] sm:$0xff]
        %v6559 = vld [vmem:[%s69 + $0x3f0] sm:$0xff]
        %v6560 = vld [vmem:[%s69 + $0x3f8] sm:$0xff]
        %s6561 = scalar_lea.vmem %s69, 1024
        %v6562 = vld [vmem:[%s6561] sm:$0xff]
        %v6563 = vld [vmem:[%s6561 + $0x8] sm:$0xff]
        %v6564 = vld [vmem:[%s6561 + $0x10] sm:$0xff]
        %v6565 = vld [vmem:[%s6561 + $0x18] sm:$0xff]
        %v6566 = vld [vmem:[%s6561 + $0x20] sm:$0xff]
        %v6567 = vld [vmem:[%s6561 + $0x28] sm:$0xff]
        %v6568 = vld [vmem:[%s6561 + $0x30] sm:$0xff]
        %v6569 = vld [vmem:[%s6561 + $0x38] sm:$0xff]
        %v6570 = vld [vmem:[%s6561 + $0x40] sm:$0xff]
        %v6571 = vld [vmem:[%s6561 + $0x48] sm:$0xff]
        %v6572 = vld [vmem:[%s6561 + $0x50] sm:$0xff]
        %v6573 = vld [vmem:[%s6561 + $0x58] sm:$0xff]
        %v6574 = vld [vmem:[%s6561 + $0x60] sm:$0xff]
        %v6575 = vld [vmem:[%s6561 + $0x68] sm:$0xff]
        %v6576 = vld [vmem:[%s6561 + $0x70] sm:$0xff]
        %v6577 = vld [vmem:[%s6561 + $0x78] sm:$0xff]
        %v6578 = vld [vmem:[%s6561 + $0x80] sm:$0xff]
        %v6579 = vld [vmem:[%s6561 + $0x88] sm:$0xff]
        %v6580 = vld [vmem:[%s6561 + $0x90] sm:$0xff]
        %v6581 = vld [vmem:[%s6561 + $0x98] sm:$0xff]
        %v6582 = vld [vmem:[%s6561 + $0xa0] sm:$0xff]
        %v6583 = vld [vmem:[%s6561 + $0xa8] sm:$0xff]
        %v6584 = vld [vmem:[%s6561 + $0xb0] sm:$0xff]
        %v6585 = vld [vmem:[%s6561 + $0xb8] sm:$0xff]
        %v6586 = vld [vmem:[%s6561 + $0xc0] sm:$0xff]
        %v6587 = vld [vmem:[%s6561 + $0xc8] sm:$0xff]
        %v6588 = vld [vmem:[%s6561 + $0xd0] sm:$0xff]
        %v6589 = vld [vmem:[%s6561 + $0xd8] sm:$0xff]
        %v6590 = vld [vmem:[%s6561 + $0xe0] sm:$0xff]
        %v6591 = vld [vmem:[%s6561 + $0xe8] sm:$0xff]
        %v6592 = vld [vmem:[%s6561 + $0xf0] sm:$0xff]
        %v6593 = vld [vmem:[%s6561 + $0xf8] sm:$0xff]
        %v6594 = vld [vmem:[%s6561 + $0x100] sm:$0xff]
        %v6595 = vld [vmem:[%s6561 + $0x108] sm:$0xff]
        %v6596 = vld [vmem:[%s6561 + $0x110] sm:$0xff]
        %v6597 = vld [vmem:[%s6561 + $0x118] sm:$0xff]
        %v6598 = vld [vmem:[%s6561 + $0x120] sm:$0xff]
        %v6599 = vld [vmem:[%s6561 + $0x128] sm:$0xff]
        %v6600 = vld [vmem:[%s6561 + $0x130] sm:$0xff]
        %v6601 = vld [vmem:[%s6561 + $0x138] sm:$0xff]
        %v6602 = vld [vmem:[%s6561 + $0x140] sm:$0xff]
        %v6603 = vld [vmem:[%s6561 + $0x148] sm:$0xff]
        %v6604 = vld [vmem:[%s6561 + $0x150] sm:$0xff]
        %v6605 = vld [vmem:[%s6561 + $0x158] sm:$0xff]
        %v6606 = vld [vmem:[%s6561 + $0x160] sm:$0xff]
        %v6607 = vld [vmem:[%s6561 + $0x168] sm:$0xff]
        %v6608 = vld [vmem:[%s6561 + $0x170] sm:$0xff]
        %v6609 = vld [vmem:[%s6561 + $0x178] sm:$0xff]
        %v6610 = vld [vmem:[%s6561 + $0x180] sm:$0xff]
        %v6611 = vld [vmem:[%s6561 + $0x188] sm:$0xff]
        %v6612 = vld [vmem:[%s6561 + $0x190] sm:$0xff]
        %v6613 = vld [vmem:[%s6561 + $0x198] sm:$0xff]
        %v6614 = vld [vmem:[%s6561 + $0x1a0] sm:$0xff]
        %v6615 = vld [vmem:[%s6561 + $0x1a8] sm:$0xff]
        %v6616 = vld [vmem:[%s6561 + $0x1b0] sm:$0xff]
        %v6617 = vld [vmem:[%s6561 + $0x1b8] sm:$0xff]
        %v6618 = vld [vmem:[%s6561 + $0x1c0] sm:$0xff]
        %v6619 = vld [vmem:[%s6561 + $0x1c8] sm:$0xff]
        %v6620 = vld [vmem:[%s6561 + $0x1d0] sm:$0xff]
        %v6621 = vld [vmem:[%s6561 + $0x1d8] sm:$0xff]
        %v6622 = vld [vmem:[%s6561 + $0x1e0] sm:$0xff]
        %v6623 = vld [vmem:[%s6561 + $0x1e8] sm:$0xff]
        %v6624 = vld [vmem:[%s6561 + $0x1f0] sm:$0xff]
        %v6625 = vld [vmem:[%s6561 + $0x1f8] sm:$0xff]
        %v6626 = vld [vmem:[%s6561 + $0x200] sm:$0xff]
        %v6627 = vld [vmem:[%s6561 + $0x208] sm:$0xff]
        %v6628 = vld [vmem:[%s6561 + $0x210] sm:$0xff]
        %v6629 = vld [vmem:[%s6561 + $0x218] sm:$0xff]
        %v6630 = vld [vmem:[%s6561 + $0x220] sm:$0xff]
        %v6631 = vld [vmem:[%s6561 + $0x228] sm:$0xff]
        %v6632 = vld [vmem:[%s6561 + $0x230] sm:$0xff]
        %v6633 = vld [vmem:[%s6561 + $0x238] sm:$0xff]
        %v6634 = vld [vmem:[%s6561 + $0x240] sm:$0xff]
        %v6635 = vld [vmem:[%s6561 + $0x248] sm:$0xff]
        %v6636 = vld [vmem:[%s6561 + $0x250] sm:$0xff]
        %v6637 = vld [vmem:[%s6561 + $0x258] sm:$0xff]
        %v6638 = vld [vmem:[%s6561 + $0x260] sm:$0xff]
        %v6639 = vld [vmem:[%s6561 + $0x268] sm:$0xff]
        %v6640 = vld [vmem:[%s6561 + $0x270] sm:$0xff]
        %v6641 = vld [vmem:[%s6561 + $0x278] sm:$0xff]
        %v6642 = vld [vmem:[%s6561 + $0x280] sm:$0xff]
        %v6643 = vld [vmem:[%s6561 + $0x288] sm:$0xff]
        %v6644 = vld [vmem:[%s6561 + $0x290] sm:$0xff]
        %v6645 = vld [vmem:[%s6561 + $0x298] sm:$0xff]
        %v6646 = vld [vmem:[%s6561 + $0x2a0] sm:$0xff]
        %v6647 = vld [vmem:[%s6561 + $0x2a8] sm:$0xff]
        %v6648 = vld [vmem:[%s6561 + $0x2b0] sm:$0xff]
        %v6649 = vld [vmem:[%s6561 + $0x2b8] sm:$0xff]
        %v6650 = vld [vmem:[%s6561 + $0x2c0] sm:$0xff]
        %v6651 = vld [vmem:[%s6561 + $0x2c8] sm:$0xff]
        %v6652 = vld [vmem:[%s6561 + $0x2d0] sm:$0xff]
        %v6653 = vld [vmem:[%s6561 + $0x2d8] sm:$0xff]
        %v6654 = vld [vmem:[%s6561 + $0x2e0] sm:$0xff]
        %v6655 = vld [vmem:[%s6561 + $0x2e8] sm:$0xff]
        %v6656 = vld [vmem:[%s6561 + $0x2f0] sm:$0xff]
        %v6657 = vld [vmem:[%s6561 + $0x2f8] sm:$0xff]
        %v6658 = vld [vmem:[%s6561 + $0x300] sm:$0xff]
        %v6659 = vld [vmem:[%s6561 + $0x308] sm:$0xff]
        %v6660 = vld [vmem:[%s6561 + $0x310] sm:$0xff]
        %v6661 = vld [vmem:[%s6561 + $0x318] sm:$0xff]
        %v6662 = vld [vmem:[%s6561 + $0x320] sm:$0xff]
        %v6663 = vld [vmem:[%s6561 + $0x328] sm:$0xff]
        %v6664 = vld [vmem:[%s6561 + $0x330] sm:$0xff]
        %v6665 = vld [vmem:[%s6561 + $0x338] sm:$0xff]
        %v6666 = vld [vmem:[%s6561 + $0x340] sm:$0xff]
        %v6667 = vld [vmem:[%s6561 + $0x348] sm:$0xff]
        %v6668 = vld [vmem:[%s6561 + $0x350] sm:$0xff]
        %v6669 = vld [vmem:[%s6561 + $0x358] sm:$0xff]
        %v6670 = vld [vmem:[%s6561 + $0x360] sm:$0xff]
        %v6671 = vld [vmem:[%s6561 + $0x368] sm:$0xff]
        %v6672 = vld [vmem:[%s6561 + $0x370] sm:$0xff]
        %v6673 = vld [vmem:[%s6561 + $0x378] sm:$0xff]
        %v6674 = vld [vmem:[%s6561 + $0x380] sm:$0xff]
        %v6675 = vld [vmem:[%s6561 + $0x388] sm:$0xff]
        %v6676 = vld [vmem:[%s6561 + $0x390] sm:$0xff]
        %v6677 = vld [vmem:[%s6561 + $0x398] sm:$0xff]
        %v6678 = vld [vmem:[%s6561 + $0x3a0] sm:$0xff]
        %v6679 = vld [vmem:[%s6561 + $0x3a8] sm:$0xff]
        %v6680 = vld [vmem:[%s6561 + $0x3b0] sm:$0xff]
        %v6681 = vld [vmem:[%s6561 + $0x3b8] sm:$0xff]
        %v6682 = vld [vmem:[%s6561 + $0x3c0] sm:$0xff]
        %v6683 = vld [vmem:[%s6561 + $0x3c8] sm:$0xff]
        %v6684 = vld [vmem:[%s6561 + $0x3d0] sm:$0xff]
        %v6685 = vld [vmem:[%s6561 + $0x3d8] sm:$0xff]
        %v6686 = vld [vmem:[%s6561 + $0x3e0] sm:$0xff]
        %v6687 = vld [vmem:[%s6561 + $0x3e8] sm:$0xff]
        %v6688 = vld [vmem:[%s6561 + $0x3f0] sm:$0xff]
        %v6689 = vld [vmem:[%s6561 + $0x3f8] sm:$0xff]
        %v6690 = vld [vmem:[%s71] ss:$2 sm:$0xf]
        %s6691 = scalar_lea.vmem %s71, 1
        %v6692 = vld [vmem:[%s6691] ss:$2 sm:$0xf]
        %v6695 = vrot.slane %v6431, 7
        %v6696 = vrot.slane %v6432, 7
        %v6699 = vsel %vm1817, 0.0, %v6695
        %v6700 = vsel %vm1817, 0.0, %v6696
        %v6701 = vsel %vm1833, %v6699, 0.0
        %v6702 = vsel %vm1833, %v6700, 0.0
        %v6705 = vrot.slane %v6701, 1
        %v6706 = vrot.slane %v6702, 1
        %6709 = vmatprep.subr.mxu0 %v6563
        %6710 = vmatpush1.msra.mxu0 %v6562
        %6711 = vmatprep.subr.mxu0 %v6567
        %6712 = vmatpush1.msra.mxu0 %v6566
        %6713 = vmatprep.subr.mxu0 %v6571
        %6714 = vmatpush1.msra.mxu0 %v6570
        %6715 = vmatprep.subr.mxu0 %v6575
        %6716 = vmatpush1.msra.mxu0 %v6574
        %6717 = vmatprep.subr.mxu0 %v6579
        %6718 = vmatpush1.msra.mxu0 %v6578
        %6719 = vmatprep.subr.mxu0 %v6583
        %6720 = vmatpush1.msra.mxu0 %v6582
        %6721 = vmatprep.subr.mxu0 %v6587
        %6722 = vmatpush1.msra.mxu0 %v6586
        %6723 = vmatprep.subr.mxu0 %v6591
        %6724 = vmatpush1.msra.mxu0 %v6590
        %6725 = vmatprep.subr.mxu0 %v6595
        %6726 = vmatpush1.msra.mxu0 %v6594
        %6727 = vmatprep.subr.mxu0 %v6599
        %6728 = vmatpush1.msra.mxu0 %v6598
        %6729 = vmatprep.subr.mxu0 %v6603
        %6730 = vmatpush1.msra.mxu0 %v6602
        %6731 = vmatprep.subr.mxu0 %v6607
        %6732 = vmatpush1.msra.mxu0 %v6606
        %6733 = vmatprep.subr.mxu0 %v6611
        %6734 = vmatpush1.msra.mxu0 %v6610
        %6735 = vmatprep.subr.mxu0 %v6615
        %6736 = vmatpush1.msra.mxu0 %v6614
        %6737 = vmatprep.subr.mxu0 %v6619
        %6738 = vmatpush1.msra.mxu0 %v6618
        %6739 = vmatprep.subr.mxu0 %v6623
        %6740 = vmatpush1.msra.mxu0 %v6622
        %6741 = vmatprep.subr.mxu0 %v6627
        %6742 = vmatpush1.msra.mxu0 %v6626
        %6743 = vmatprep.subr.mxu0 %v6631
        %6744 = vmatpush1.msra.mxu0 %v6630
        %6745 = vmatprep.subr.mxu0 %v6635
        %6746 = vmatpush1.msra.mxu0 %v6634
        %6747 = vmatprep.subr.mxu0 %v6639
        %6748 = vmatpush1.msra.mxu0 %v6638
        %6749 = vmatprep.subr.mxu0 %v6643
        %6750 = vmatpush1.msra.mxu0 %v6642
        %6751 = vmatprep.subr.mxu0 %v6647
        %6752 = vmatpush1.msra.mxu0 %v6646
        %6753 = vmatprep.subr.mxu0 %v6651
        %6754 = vmatpush1.msra.mxu0 %v6650
        %6755 = vmatprep.subr.mxu0 %v6655
        %6756 = vmatpush1.msra.mxu0 %v6654
        %6757 = vmatprep.subr.mxu0 %v6659
        %6758 = vmatpush1.msra.mxu0 %v6658
        %6759 = vmatprep.subr.mxu0 %v6663
        %6760 = vmatpush1.msra.mxu0 %v6662
        %6761 = vmatprep.subr.mxu0 %v6667
        %6762 = vmatpush1.msra.mxu0 %v6666
        %6763 = vmatprep.subr.mxu0 %v6671
        %6764 = vmatpush1.msra.mxu0 %v6670
        %6765 = vmatprep.subr.mxu0 %v6675
        %6766 = vmatpush1.msra.mxu0 %v6674
        %6767 = vmatprep.subr.mxu0 %v6679
        %6768 = vmatpush1.msra.mxu0 %v6678
        %6769 = vmatprep.subr.mxu0 %v6683
        %6770 = vmatpush1.msra.mxu0 %v6682
        %6771 = vmatprep.subr.mxu0 %v6687
        %6772 = vmatpush1.msra.mxu0 %v6686
        %6773 = vmatprep.mubr.f32.mxu0 %v6706
        %6774 = vmatmul.mubr.f32.gmra.mrb[0].mxu0 %v6705
        %v6775 = vpop.f32.mrb[0].mxu0
        %v6776 = vadd.f32 0.0, %v6775
        %v6777 = vpop.f32.mrb[0].mxu0
        %v6778 = vadd.f32 0.0, %v6777
        %6779 = vdwg.mxu0
        %6780 = vmatprep.subr.mxu0 %v6565
        %6781 = vmatpush1.msra.mxu0 %v6564
        %6782 = vmatprep.subr.mxu0 %v6569
        %6783 = vmatpush1.msra.mxu0 %v6568
        %6784 = vmatprep.subr.mxu0 %v6573
        %6785 = vmatpush1.msra.mxu0 %v6572
        %6786 = vmatprep.subr.mxu0 %v6577
        %6787 = vmatpush1.msra.mxu0 %v6576
        %6788 = vmatprep.subr.mxu0 %v6581
        %6789 = vmatpush1.msra.mxu0 %v6580
        %6790 = vmatprep.subr.mxu0 %v6585
        %6791 = vmatpush1.msra.mxu0 %v6584
        %6792 = vmatprep.subr.mxu0 %v6589
        %6793 = vmatpush1.msra.mxu0 %v6588
        %6794 = vmatprep.subr.mxu0 %v6593
        %6795 = vmatpush1.msra.mxu0 %v6592
        %6796 = vmatprep.subr.mxu0 %v6597
        %6797 = vmatpush1.msra.mxu0 %v6596
        %6798 = vmatprep.subr.mxu0 %v6601
        %6799 = vmatpush1.msra.mxu0 %v6600
        %6800 = vmatprep.subr.mxu0 %v6605
        %6801 = vmatpush1.msra.mxu0 %v6604
        %6802 = vmatprep.subr.mxu0 %v6609
        %6803 = vmatpush1.msra.mxu0 %v6608
        %6804 = vmatprep.subr.mxu0 %v6613
        %6805 = vmatpush1.msra.mxu0 %v6612
        %6806 = vmatprep.subr.mxu0 %v6617
        %6807 = vmatpush1.msra.mxu0 %v6616
        %6808 = vmatprep.subr.mxu0 %v6621
        %6809 = vmatpush1.msra.mxu0 %v6620
        %6810 = vmatprep.subr.mxu0 %v6625
        %6811 = vmatpush1.msra.mxu0 %v6624
        %6812 = vmatprep.subr.mxu0 %v6629
        %6813 = vmatpush1.msra.mxu0 %v6628
        %6814 = vmatprep.subr.mxu0 %v6633
        %6815 = vmatpush1.msra.mxu0 %v6632
        %6816 = vmatprep.subr.mxu0 %v6637
        %6817 = vmatpush1.msra.mxu0 %v6636
        %6818 = vmatprep.subr.mxu0 %v6641
        %6819 = vmatpush1.msra.mxu0 %v6640
        %6820 = vmatprep.subr.mxu0 %v6645
        %6821 = vmatpush1.msra.mxu0 %v6644
        %6822 = vmatprep.subr.mxu0 %v6649
        %6823 = vmatpush1.msra.mxu0 %v6648
        %6824 = vmatprep.subr.mxu0 %v6653
        %6825 = vmatpush1.msra.mxu0 %v6652
        %6826 = vmatprep.subr.mxu0 %v6657
        %6827 = vmatpush1.msra.mxu0 %v6656
        %6828 = vmatprep.subr.mxu0 %v6661
        %6829 = vmatpush1.msra.mxu0 %v6660
        %6830 = vmatprep.subr.mxu0 %v6665
        %6831 = vmatpush1.msra.mxu0 %v6664
        %6832 = vmatprep.subr.mxu0 %v6669
        %6833 = vmatpush1.msra.mxu0 %v6668
        %6834 = vmatprep.subr.mxu0 %v6673
        %6835 = vmatpush1.msra.mxu0 %v6672
        %6836 = vmatprep.subr.mxu0 %v6677
        %6837 = vmatpush1.msra.mxu0 %v6676
        %6838 = vmatprep.subr.mxu0 %v6681
        %6839 = vmatpush1.msra.mxu0 %v6680
        %6840 = vmatprep.subr.mxu0 %v6685
        %6841 = vmatpush1.msra.mxu0 %v6684
        %6842 = vmatprep.subr.mxu0 %v6689
        %6843 = vmatpush1.msra.mxu0 %v6688
        %6844 = vmatprep.mubr.f32.mxu0 %v6706
        %6845 = vmatmul.mubr.f32.gmra.mrb[0].mxu0 %v6705
        %v6846 = vpop.f32.mrb[0].mxu0
        %v6847 = vadd.f32 0.0, %v6846
        %v6848 = vpop.f32.mrb[0].mxu0
        %v6849 = vadd.f32 0.0, %v6848
        %6850 = vdwg.mxu0
        %6851 = vmatprep.subr.mxu0 %v6434
        %6852 = vmatpush1.msra.mxu0 %v6433
        %6853 = vmatprep.subr.mxu0 %v6438
        %6854 = vmatpush1.msra.mxu0 %v6437
        %6855 = vmatprep.subr.mxu0 %v6442
        %6856 = vmatpush1.msra.mxu0 %v6441
        %6857 = vmatprep.subr.mxu0 %v6446
        %6858 = vmatpush1.msra.mxu0 %v6445
        %6859 = vmatprep.subr.mxu0 %v6450
        %6860 = vmatpush1.msra.mxu0 %v6449
        %6861 = vmatprep.subr.mxu0 %v6454
        %6862 = vmatpush1.msra.mxu0 %v6453
        %6863 = vmatprep.subr.mxu0 %v6458
        %6864 = vmatpush1.msra.mxu0 %v6457
        %6865 = vmatprep.subr.mxu0 %v6462
        %6866 = vmatpush1.msra.mxu0 %v6461
        %6867 = vmatprep.subr.mxu0 %v6466
        %6868 = vmatpush1.msra.mxu0 %v6465
        %6869 = vmatprep.subr.mxu0 %v6470
        %6870 = vmatpush1.msra.mxu0 %v6469
        %6871 = vmatprep.subr.mxu0 %v6474
        %6872 = vmatpush1.msra.mxu0 %v6473
        %6873 = vmatprep.subr.mxu0 %v6478
        %6874 = vmatpush1.msra.mxu0 %v6477
        %6875 = vmatprep.subr.mxu0 %v6482
        %6876 = vmatpush1.msra.mxu0 %v6481
        %6877 = vmatprep.subr.mxu0 %v6486
        %6878 = vmatpush1.msra.mxu0 %v6485
        %6879 = vmatprep.subr.mxu0 %v6490
        %6880 = vmatpush1.msra.mxu0 %v6489
        %6881 = vmatprep.subr.mxu0 %v6494
        %6882 = vmatpush1.msra.mxu0 %v6493
        %6883 = vmatprep.subr.mxu0 %v6498
        %6884 = vmatpush1.msra.mxu0 %v6497
        %6885 = vmatprep.subr.mxu0 %v6502
        %6886 = vmatpush1.msra.mxu0 %v6501
        %6887 = vmatprep.subr.mxu0 %v6506
        %6888 = vmatpush1.msra.mxu0 %v6505
        %6889 = vmatprep.subr.mxu0 %v6510
        %6890 = vmatpush1.msra.mxu0 %v6509
        %6891 = vmatprep.subr.mxu0 %v6514
        %6892 = vmatpush1.msra.mxu0 %v6513
        %6893 = vmatprep.subr.mxu0 %v6518
        %6894 = vmatpush1.msra.mxu0 %v6517
        %6895 = vmatprep.subr.mxu0 %v6522
        %6896 = vmatpush1.msra.mxu0 %v6521
        %6897 = vmatprep.subr.mxu0 %v6526
        %6898 = vmatpush1.msra.mxu0 %v6525
        %6899 = vmatprep.subr.mxu0 %v6530
        %6900 = vmatpush1.msra.mxu0 %v6529
        %6901 = vmatprep.subr.mxu0 %v6534
        %6902 = vmatpush1.msra.mxu0 %v6533
        %6903 = vmatprep.subr.mxu0 %v6538
        %6904 = vmatpush1.msra.mxu0 %v6537
        %6905 = vmatprep.subr.mxu0 %v6542
        %6906 = vmatpush1.msra.mxu0 %v6541
        %6907 = vmatprep.subr.mxu0 %v6546
        %6908 = vmatpush1.msra.mxu0 %v6545
        %6909 = vmatprep.subr.mxu0 %v6550
        %6910 = vmatpush1.msra.mxu0 %v6549
        %6911 = vmatprep.subr.mxu0 %v6554
        %6912 = vmatpush1.msra.mxu0 %v6553
        %6913 = vmatprep.subr.mxu0 %v6558
        %6914 = vmatpush1.msra.mxu0 %v6557
        %6915 = vmatprep.mubr.f32.mxu0 %v6702
        %6916 = vmatmul.mubr.f32.gmra.mrb[0].mxu0 %v6701
        %v6917 = vpop.f32.mrb[0].mxu0
        %v6918 = vadd.f32 %v6776, %v6917
        %v6919 = vpop.f32.mrb[0].mxu0
        %v6920 = vadd.f32 %v6778, %v6919
        %6921 = vdwg.mxu0
        %6922 = vmatprep.subr.mxu0 %v6436
        %6923 = vmatpush1.msra.mxu0 %v6435
        %6924 = vmatprep.subr.mxu0 %v6440
        %6925 = vmatpush1.msra.mxu0 %v6439
        %6926 = vmatprep.subr.mxu0 %v6444
        %6927 = vmatpush1.msra.mxu0 %v6443
        %6928 = vmatprep.subr.mxu0 %v6448
        %6929 = vmatpush1.msra.mxu0 %v6447
        %6930 = vmatprep.subr.mxu0 %v6452
        %6931 = vmatpush1.msra.mxu0 %v6451
        %6932 = vmatprep.subr.mxu0 %v6456
        %6933 = vmatpush1.msra.mxu0 %v6455
        %6934 = vmatprep.subr.mxu0 %v6460
        %6935 = vmatpush1.msra.mxu0 %v6459
        %6936 = vmatprep.subr.mxu0 %v6464
        %6937 = vmatpush1.msra.mxu0 %v6463
        %6938 = vmatprep.subr.mxu0 %v6468
        %6939 = vmatpush1.msra.mxu0 %v6467
        %6940 = vmatprep.subr.mxu0 %v6472
        %6941 = vmatpush1.msra.mxu0 %v6471
        %6942 = vmatprep.subr.mxu0 %v6476
        %6943 = vmatpush1.msra.mxu0 %v6475
        %6944 = vmatprep.subr.mxu0 %v6480
        %6945 = vmatpush1.msra.mxu0 %v6479
        %6946 = vmatprep.subr.mxu0 %v6484
        %6947 = vmatpush1.msra.mxu0 %v6483
        %6948 = vmatprep.subr.mxu0 %v6488
        %6949 = vmatpush1.msra.mxu0 %v6487
        %6950 = vmatprep.subr.mxu0 %v6492
        %6951 = vmatpush1.msra.mxu0 %v6491
        %6952 = vmatprep.subr.mxu0 %v6496
        %6953 = vmatpush1.msra.mxu0 %v6495
        %6954 = vmatprep.subr.mxu0 %v6500
        %6955 = vmatpush1.msra.mxu0 %v6499
        %6956 = vmatprep.subr.mxu0 %v6504
        %6957 = vmatpush1.msra.mxu0 %v6503
        %6958 = vmatprep.subr.mxu0 %v6508
        %6959 = vmatpush1.msra.mxu0 %v6507
        %6960 = vmatprep.subr.mxu0 %v6512
        %6961 = vmatpush1.msra.mxu0 %v6511
        %6962 = vmatprep.subr.mxu0 %v6516
        %6963 = vmatpush1.msra.mxu0 %v6515
        %6964 = vmatprep.subr.mxu0 %v6520
        %6965 = vmatpush1.msra.mxu0 %v6519
        %6966 = vmatprep.subr.mxu0 %v6524
        %6967 = vmatpush1.msra.mxu0 %v6523
        %6968 = vmatprep.subr.mxu0 %v6528
        %6969 = vmatpush1.msra.mxu0 %v6527
        %6970 = vmatprep.subr.mxu0 %v6532
        %6971 = vmatpush1.msra.mxu0 %v6531
        %6972 = vmatprep.subr.mxu0 %v6536
        %6973 = vmatpush1.msra.mxu0 %v6535
        %6974 = vmatprep.subr.mxu0 %v6540
        %6975 = vmatpush1.msra.mxu0 %v6539
        %6976 = vmatprep.subr.mxu0 %v6544
        %6977 = vmatpush1.msra.mxu0 %v6543
        %6978 = vmatprep.subr.mxu0 %v6548
        %6979 = vmatpush1.msra.mxu0 %v6547
        %6980 = vmatprep.subr.mxu0 %v6552
        %6981 = vmatpush1.msra.mxu0 %v6551
        %6982 = vmatprep.subr.mxu0 %v6556
        %6983 = vmatpush1.msra.mxu0 %v6555
        %6984 = vmatprep.subr.mxu0 %v6560
        %6985 = vmatpush1.msra.mxu0 %v6559
        %6986 = vmatprep.mubr.f32.mxu0 %v6702
        %6987 = vmatmul.mubr.f32.gmra.mrb[0].mxu0 %v6701
        %v6988 = vpop.f32.mrb[0].mxu0
        %v6989 = vadd.f32 %v6847, %v6988
        %v6990 = vpop.f32.mrb[0].mxu0
        %v6991 = vadd.f32 %v6849, %v6990
        %6992 = vdwg.mxu0
        %v6994 = vlaneseq
        %v6995 = vshrl.u32 %v6994, 7
        %v6996 = vsub.s32 0, %v6995
        %v6997 = vrot.slane %v6690, %v6996
        %v6998 = vlaneseq
        %v6999 = vshrl.u32 %v6998, 7
        %v7000 = vsub.s32 1, %v6999
        %v7001 = vrot.slane %v6690, %v7000
        %v7002 = vlaneseq
        %v7003 = vshrl.u32 %v7002, 7
        %v7004 = vsub.s32 2, %v7003
        %v7005 = vrot.slane %v6690, %v7004
        %v7006 = vlaneseq
        %v7007 = vshrl.u32 %v7006, 7
        %v7008 = vsub.s32 3, %v7007
        %v7009 = vrot.slane %v6690, %v7008
        %v7014 = vmul.f32 %v6918, %v6997
        %v7015 = vmul.f32 %v6920, %v7001
        %v7016 = vmul.f32 %v6989, %v7005
        %v7017 = vmul.f32 %v6991, %v7009
        %v7019 = vlaneseq
        %v7020 = vshrl.u32 %v7019, 7
        %v7021 = vsub.s32 0, %v7020
        %v7022 = vrot.slane %v6692, %v7021
        %v7023 = vlaneseq
        %v7024 = vshrl.u32 %v7023, 7
        %v7025 = vsub.s32 1, %v7024
        %v7026 = vrot.slane %v6692, %v7025
        %v7027 = vlaneseq
        %v7028 = vshrl.u32 %v7027, 7
        %v7029 = vsub.s32 2, %v7028
        %v7030 = vrot.slane %v6692, %v7029
        %v7031 = vlaneseq
        %v7032 = vshrl.u32 %v7031, 7
        %v7033 = vsub.s32 3, %v7032
        %v7034 = vrot.slane %v6692, %v7033
        %v7039 = vadd.f32 %v7014, %v7022
        %v7040 = vadd.f32 %v7015, %v7026
        %v7041 = vadd.f32 %v7016, %v7030
        %v7042 = vadd.f32 %v7017, %v7034
        %v7043 = vmax.f32 %v7039, 0.0
        %v7044 = vmax.f32 %v7040, 0.0
        %v7045 = vmax.f32 %v7041, 0.0
        %v7046 = vmax.f32 %v7042, 0.0
        %v7051 = vrot.slane %v7043, 1
        %v7052 = vrot.slane %v7044, 1
        %v7053 = vrot.slane %v7045, 1
        %v7054 = vrot.slane %v7046, 1
        %v7059 = vmax.f32 %v7043, %v7051
        %v7060 = vmax.f32 %v7044, %v7052
        %v7061 = vmax.f32 %v7045, %v7053
        %v7062 = vmax.f32 %v7046, %v7054
        %v7063 = vld [vmem:[#allocation34] sm:$0xff]
        %v7064 = vld [vmem:[#allocation34 + $0x8] sm:$0xff]
        %v7065 = vld [vmem:[#allocation34 + $0x10] sm:$0xff]
        %v7066 = vld [vmem:[#allocation34 + $0x18] sm:$0xff]
        %v7067 = vld [vmem:[#allocation34 + $0x20] sm:$0xff]
        %v7068 = vld [vmem:[#allocation34 + $0x28] sm:$0xff]
        %v7069 = vld [vmem:[#allocation34 + $0x30] sm:$0xff]
        %v7070 = vld [vmem:[#allocation34 + $0x38] sm:$0xff]
        %v7071 = vld [vmem:[#allocation34 + $0x40] sm:$0xff]
        %v7072 = vld [vmem:[#allocation34 + $0x48] sm:$0xff]
        %v7073 = vld [vmem:[#allocation34 + $0x50] sm:$0xff]
        %v7074 = vld [vmem:[#allocation34 + $0x58] sm:$0xff]
        %v7075 = vld [vmem:[#allocation34 + $0x60] sm:$0xff]
        %v7076 = vld [vmem:[#allocation34 + $0x68] sm:$0xff]
        %v7077 = vld [vmem:[#allocation34 + $0x70] sm:$0xff]
        %v7078 = vld [vmem:[#allocation34 + $0x78] sm:$0xff]
        %v7079 = vld [vmem:[#allocation34 + $0x80] sm:$0xff]
        %v7080 = vld [vmem:[#allocation34 + $0x88] sm:$0xff]
        %v7081 = vld [vmem:[#allocation34 + $0x90] sm:$0xff]
        %v7082 = vld [vmem:[#allocation34 + $0x98] sm:$0xff]
        %v7083 = vld [vmem:[#allocation34 + $0xa0] sm:$0xff]
        %v7084 = vld [vmem:[#allocation34 + $0xa8] sm:$0xff]
        %v7085 = vld [vmem:[#allocation34 + $0xb0] sm:$0xff]
        %v7086 = vld [vmem:[#allocation34 + $0xb8] sm:$0xff]
        %v7087 = vld [vmem:[#allocation34 + $0xc0] sm:$0xff]
        %v7088 = vld [vmem:[#allocation34 + $0xc8] sm:$0xff]
        %v7089 = vld [vmem:[#allocation34 + $0xd0] sm:$0xff]
        %v7090 = vld [vmem:[#allocation34 + $0xd8] sm:$0xff]
        %v7091 = vld [vmem:[#allocation34 + $0xe0] sm:$0xff]
        %v7092 = vld [vmem:[#allocation34 + $0xe8] sm:$0xff]
        %v7093 = vld [vmem:[#allocation34 + $0xf0] sm:$0xff]
        %v7094 = vld [vmem:[#allocation34 + $0xf8] sm:$0xff]
        %v7095 = vld [vmem:[#allocation34 + $0x100] sm:$0xff]
        %v7096 = vld [vmem:[#allocation34 + $0x108] sm:$0xff]
        %v7097 = vld [vmem:[#allocation34 + $0x110] sm:$0xff]
        %v7098 = vld [vmem:[#allocation34 + $0x118] sm:$0xff]
        %v7099 = vld [vmem:[#allocation34 + $0x120] sm:$0xff]
        %v7100 = vld [vmem:[#allocation34 + $0x128] sm:$0xff]
        %v7101 = vld [vmem:[#allocation34 + $0x130] sm:$0xff]
        %v7102 = vld [vmem:[#allocation34 + $0x138] sm:$0xff]
        %v7103 = vld [vmem:[#allocation34 + $0x140] sm:$0xff]
        %v7104 = vld [vmem:[#allocation34 + $0x148] sm:$0xff]
        %v7105 = vld [vmem:[#allocation34 + $0x150] sm:$0xff]
        %v7106 = vld [vmem:[#allocation34 + $0x158] sm:$0xff]
        %v7107 = vld [vmem:[#allocation34 + $0x160] sm:$0xff]
        %v7108 = vld [vmem:[#allocation34 + $0x168] sm:$0xff]
        %v7109 = vld [vmem:[#allocation34 + $0x170] sm:$0xff]
        %v7110 = vld [vmem:[#allocation34 + $0x178] sm:$0xff]
        %v7111 = vld [vmem:[#allocation34 + $0x180] sm:$0xff]
        %v7112 = vld [vmem:[#allocation34 + $0x188] sm:$0xff]
        %v7113 = vld [vmem:[#allocation34 + $0x190] sm:$0xff]
        %v7114 = vld [vmem:[#allocation34 + $0x198] sm:$0xff]
        %v7115 = vld [vmem:[#allocation34 + $0x1a0] sm:$0xff]
        %v7116 = vld [vmem:[#allocation34 + $0x1a8] sm:$0xff]
        %v7117 = vld [vmem:[#allocation34 + $0x1b0] sm:$0xff]
        %v7118 = vld [vmem:[#allocation34 + $0x1b8] sm:$0xff]
        %v7119 = vld [vmem:[#allocation34 + $0x1c0] sm:$0xff]
        %v7120 = vld [vmem:[#allocation34 + $0x1c8] sm:$0xff]
        %v7121 = vld [vmem:[#allocation34 + $0x1d0] sm:$0xff]
        %v7122 = vld [vmem:[#allocation34 + $0x1d8] sm:$0xff]
        %v7123 = vld [vmem:[#allocation34 + $0x1e0] sm:$0xff]
        %v7124 = vld [vmem:[#allocation34 + $0x1e8] sm:$0xff]
        %v7125 = vld [vmem:[#allocation34 + $0x1f0] sm:$0xff]
        %v7126 = vld [vmem:[#allocation34 + $0x1f8] sm:$0xff]
        %v7127 = vld [vmem:[#allocation34 + $0x200] sm:$0xff]
        %v7128 = vld [vmem:[#allocation34 + $0x208] sm:$0xff]
        %v7129 = vld [vmem:[#allocation34 + $0x210] sm:$0xff]
        %v7130 = vld [vmem:[#allocation34 + $0x218] sm:$0xff]
        %v7131 = vld [vmem:[#allocation34 + $0x220] sm:$0xff]
        %v7132 = vld [vmem:[#allocation34 + $0x228] sm:$0xff]
        %v7133 = vld [vmem:[#allocation34 + $0x230] sm:$0xff]
        %v7134 = vld [vmem:[#allocation34 + $0x238] sm:$0xff]
        %v7135 = vld [vmem:[#allocation34 + $0x240] sm:$0xff]
        %v7136 = vld [vmem:[#allocation34 + $0x248] sm:$0xff]
        %v7137 = vld [vmem:[#allocation34 + $0x250] sm:$0xff]
        %v7138 = vld [vmem:[#allocation34 + $0x258] sm:$0xff]
        %v7139 = vld [vmem:[#allocation34 + $0x260] sm:$0xff]
        %v7140 = vld [vmem:[#allocation34 + $0x268] sm:$0xff]
        %v7141 = vld [vmem:[#allocation34 + $0x270] sm:$0xff]
        %v7142 = vld [vmem:[#allocation34 + $0x278] sm:$0xff]
        %v7143 = vld [vmem:[#allocation34 + $0x280] sm:$0xff]
        %v7144 = vld [vmem:[#allocation34 + $0x288] sm:$0xff]
        %v7145 = vld [vmem:[#allocation34 + $0x290] sm:$0xff]
        %v7146 = vld [vmem:[#allocation34 + $0x298] sm:$0xff]
        %v7147 = vld [vmem:[#allocation34 + $0x2a0] sm:$0xff]
        %v7148 = vld [vmem:[#allocation34 + $0x2a8] sm:$0xff]
        %v7149 = vld [vmem:[#allocation34 + $0x2b0] sm:$0xff]
        %v7150 = vld [vmem:[#allocation34 + $0x2b8] sm:$0xff]
        %v7151 = vld [vmem:[#allocation34 + $0x2c0] sm:$0xff]
        %v7152 = vld [vmem:[#allocation34 + $0x2c8] sm:$0xff]
        %v7153 = vld [vmem:[#allocation34 + $0x2d0] sm:$0xff]
        %v7154 = vld [vmem:[#allocation34 + $0x2d8] sm:$0xff]
        %v7155 = vld [vmem:[#allocation34 + $0x2e0] sm:$0xff]
        %v7156 = vld [vmem:[#allocation34 + $0x2e8] sm:$0xff]
        %v7157 = vld [vmem:[#allocation34 + $0x2f0] sm:$0xff]
        %v7158 = vld [vmem:[#allocation34 + $0x2f8] sm:$0xff]
        %v7159 = vld [vmem:[#allocation34 + $0x300] sm:$0xff]
        %v7160 = vld [vmem:[#allocation34 + $0x308] sm:$0xff]
        %v7161 = vld [vmem:[#allocation34 + $0x310] sm:$0xff]
        %v7162 = vld [vmem:[#allocation34 + $0x318] sm:$0xff]
        %v7163 = vld [vmem:[#allocation34 + $0x320] sm:$0xff]
        %v7164 = vld [vmem:[#allocation34 + $0x328] sm:$0xff]
        %v7165 = vld [vmem:[#allocation34 + $0x330] sm:$0xff]
        %v7166 = vld [vmem:[#allocation34 + $0x338] sm:$0xff]
        %v7167 = vld [vmem:[#allocation34 + $0x340] sm:$0xff]
        %v7168 = vld [vmem:[#allocation34 + $0x348] sm:$0xff]
        %v7169 = vld [vmem:[#allocation34 + $0x350] sm:$0xff]
        %v7170 = vld [vmem:[#allocation34 + $0x358] sm:$0xff]
        %v7171 = vld [vmem:[#allocation34 + $0x360] sm:$0xff]
        %v7172 = vld [vmem:[#allocation34 + $0x368] sm:$0xff]
        %v7173 = vld [vmem:[#allocation34 + $0x370] sm:$0xff]
        %v7174 = vld [vmem:[#allocation34 + $0x378] sm:$0xff]
        %v7175 = vld [vmem:[#allocation34 + $0x380] sm:$0xff]
        %v7176 = vld [vmem:[#allocation34 + $0x388] sm:$0xff]
        %v7177 = vld [vmem:[#allocation34 + $0x390] sm:$0xff]
        %v7178 = vld [vmem:[#allocation34 + $0x398] sm:$0xff]
        %v7179 = vld [vmem:[#allocation34 + $0x3a0] sm:$0xff]
        %v7180 = vld [vmem:[#allocation34 + $0x3a8] sm:$0xff]
        %v7181 = vld [vmem:[#allocation34 + $0x3b0] sm:$0xff]
        %v7182 = vld [vmem:[#allocation34 + $0x3b8] sm:$0xff]
        %v7183 = vld [vmem:[#allocation34 + $0x3c0] sm:$0xff]
        %v7184 = vld [vmem:[#allocation34 + $0x3c8] sm:$0xff]
        %v7185 = vld [vmem:[#allocation34 + $0x3d0] sm:$0xff]
        %v7186 = vld [vmem:[#allocation34 + $0x3d8] sm:$0xff]
        %v7187 = vld [vmem:[#allocation34 + $0x3e0] sm:$0xff]
        %v7188 = vld [vmem:[#allocation34 + $0x3e8] sm:$0xff]
        %v7189 = vld [vmem:[#allocation34 + $0x3f0] sm:$0xff]
        %v7190 = vld [vmem:[#allocation34 + $0x3f8] sm:$0xff]
        %v7191 = vld [vmem:[#allocation34 + $0x400] sm:$0xff]
        %v7192 = vld [vmem:[#allocation34 + $0x408] sm:$0xff]
        %v7193 = vld [vmem:[#allocation34 + $0x410] sm:$0xff]
        %v7194 = vld [vmem:[#allocation34 + $0x418] sm:$0xff]
        %v7195 = vld [vmem:[#allocation34 + $0x420] sm:$0xff]
        %v7196 = vld [vmem:[#allocation34 + $0x428] sm:$0xff]
        %v7197 = vld [vmem:[#allocation34 + $0x430] sm:$0xff]
        %v7198 = vld [vmem:[#allocation34 + $0x438] sm:$0xff]
        %v7199 = vld [vmem:[#allocation34 + $0x440] sm:$0xff]
        %v7200 = vld [vmem:[#allocation34 + $0x448] sm:$0xff]
        %v7201 = vld [vmem:[#allocation34 + $0x450] sm:$0xff]
        %v7202 = vld [vmem:[#allocation34 + $0x458] sm:$0xff]
        %v7203 = vld [vmem:[#allocation34 + $0x460] sm:$0xff]
        %v7204 = vld [vmem:[#allocation34 + $0x468] sm:$0xff]
        %v7205 = vld [vmem:[#allocation34 + $0x470] sm:$0xff]
        %v7206 = vld [vmem:[#allocation34 + $0x478] sm:$0xff]
        %v7207 = vld [vmem:[#allocation34 + $0x480] sm:$0xff]
        %v7208 = vld [vmem:[#allocation34 + $0x488] sm:$0xff]
        %v7209 = vld [vmem:[#allocation34 + $0x490] sm:$0xff]
        %v7210 = vld [vmem:[#allocation34 + $0x498] sm:$0xff]
        %v7211 = vld [vmem:[#allocation34 + $0x4a0] sm:$0xff]
        %v7212 = vld [vmem:[#allocation34 + $0x4a8] sm:$0xff]
        %v7213 = vld [vmem:[#allocation34 + $0x4b0] sm:$0xff]
        %v7214 = vld [vmem:[#allocation34 + $0x4b8] sm:$0xff]
        %v7215 = vld [vmem:[#allocation34 + $0x4c0] sm:$0xff]
        %v7216 = vld [vmem:[#allocation34 + $0x4c8] sm:$0xff]
        %v7217 = vld [vmem:[#allocation34 + $0x4d0] sm:$0xff]
        %v7218 = vld [vmem:[#allocation34 + $0x4d8] sm:$0xff]
        %v7219 = vld [vmem:[#allocation34 + $0x4e0] sm:$0xff]
        %v7220 = vld [vmem:[#allocation34 + $0x4e8] sm:$0xff]
        %v7221 = vld [vmem:[#allocation34 + $0x4f0] sm:$0xff]
        %v7222 = vld [vmem:[#allocation34 + $0x4f8] sm:$0xff]
        %v7223 = vld [vmem:[#allocation34 + $0x500] sm:$0xff]
        %v7224 = vld [vmem:[#allocation34 + $0x508] sm:$0xff]
        %v7225 = vld [vmem:[#allocation34 + $0x510] sm:$0xff]
        %v7226 = vld [vmem:[#allocation34 + $0x518] sm:$0xff]
        %v7227 = vld [vmem:[#allocation34 + $0x520] sm:$0xff]
        %v7228 = vld [vmem:[#allocation34 + $0x528] sm:$0xff]
        %v7229 = vld [vmem:[#allocation34 + $0x530] sm:$0xff]
        %v7230 = vld [vmem:[#allocation34 + $0x538] sm:$0xff]
        %v7231 = vld [vmem:[#allocation34 + $0x540] sm:$0xff]
        %v7232 = vld [vmem:[#allocation34 + $0x548] sm:$0xff]
        %v7233 = vld [vmem:[#allocation34 + $0x550] sm:$0xff]
        %v7234 = vld [vmem:[#allocation34 + $0x558] sm:$0xff]
        %v7235 = vld [vmem:[#allocation34 + $0x560] sm:$0xff]
        %v7236 = vld [vmem:[#allocation34 + $0x568] sm:$0xff]
        %v7237 = vld [vmem:[#allocation34 + $0x570] sm:$0xff]
        %v7238 = vld [vmem:[#allocation34 + $0x578] sm:$0xff]
        %v7239 = vld [vmem:[#allocation34 + $0x580] sm:$0xff]
        %v7240 = vld [vmem:[#allocation34 + $0x588] sm:$0xff]
        %v7241 = vld [vmem:[#allocation34 + $0x590] sm:$0xff]
        %v7242 = vld [vmem:[#allocation34 + $0x598] sm:$0xff]
        %v7243 = vld [vmem:[#allocation34 + $0x5a0] sm:$0xff]
        %v7244 = vld [vmem:[#allocation34 + $0x5a8] sm:$0xff]
        %v7245 = vld [vmem:[#allocation34 + $0x5b0] sm:$0xff]
        %v7246 = vld [vmem:[#allocation34 + $0x5b8] sm:$0xff]
        %v7247 = vld [vmem:[#allocation34 + $0x5c0] sm:$0xff]
        %v7248 = vld [vmem:[#allocation34 + $0x5c8] sm:$0xff]
        %v7249 = vld [vmem:[#allocation34 + $0x5d0] sm:$0xff]
        %v7250 = vld [vmem:[#allocation34 + $0x5d8] sm:$0xff]
        %v7251 = vld [vmem:[#allocation34 + $0x5e0] sm:$0xff]
        %v7252 = vld [vmem:[#allocation34 + $0x5e8] sm:$0xff]
        %v7253 = vld [vmem:[#allocation34 + $0x5f0] sm:$0xff]
        %v7254 = vld [vmem:[#allocation34 + $0x5f8] sm:$0xff]
        %v7255 = vld [vmem:[#allocation34 + $0x600] sm:$0xff]
        %v7256 = vld [vmem:[#allocation34 + $0x608] sm:$0xff]
        %v7257 = vld [vmem:[#allocation34 + $0x610] sm:$0xff]
        %v7258 = vld [vmem:[#allocation34 + $0x618] sm:$0xff]
        %v7259 = vld [vmem:[#allocation34 + $0x620] sm:$0xff]
        %v7260 = vld [vmem:[#allocation34 + $0x628] sm:$0xff]
        %v7261 = vld [vmem:[#allocation34 + $0x630] sm:$0xff]
        %v7262 = vld [vmem:[#allocation34 + $0x638] sm:$0xff]
        %v7263 = vld [vmem:[#allocation34 + $0x640] sm:$0xff]
        %v7264 = vld [vmem:[#allocation34 + $0x648] sm:$0xff]
        %v7265 = vld [vmem:[#allocation34 + $0x650] sm:$0xff]
        %v7266 = vld [vmem:[#allocation34 + $0x658] sm:$0xff]
        %v7267 = vld [vmem:[#allocation34 + $0x660] sm:$0xff]
        %v7268 = vld [vmem:[#allocation34 + $0x668] sm:$0xff]
        %v7269 = vld [vmem:[#allocation34 + $0x670] sm:$0xff]
        %v7270 = vld [vmem:[#allocation34 + $0x678] sm:$0xff]
        %v7271 = vld [vmem:[#allocation34 + $0x680] sm:$0xff]
        %v7272 = vld [vmem:[#allocation34 + $0x688] sm:$0xff]
        %v7273 = vld [vmem:[#allocation34 + $0x690] sm:$0xff]
        %v7274 = vld [vmem:[#allocation34 + $0x698] sm:$0xff]
        %v7275 = vld [vmem:[#allocation34 + $0x6a0] sm:$0xff]
        %v7276 = vld [vmem:[#allocation34 + $0x6a8] sm:$0xff]
        %v7277 = vld [vmem:[#allocation34 + $0x6b0] sm:$0xff]
        %v7278 = vld [vmem:[#allocation34 + $0x6b8] sm:$0xff]
        %v7279 = vld [vmem:[#allocation34 + $0x6c0] sm:$0xff]
        %v7280 = vld [vmem:[#allocation34 + $0x6c8] sm:$0xff]
        %v7281 = vld [vmem:[#allocation34 + $0x6d0] sm:$0xff]
        %v7282 = vld [vmem:[#allocation34 + $0x6d8] sm:$0xff]
        %v7283 = vld [vmem:[#allocation34 + $0x6e0] sm:$0xff]
        %v7284 = vld [vmem:[#allocation34 + $0x6e8] sm:$0xff]
        %v7285 = vld [vmem:[#allocation34 + $0x6f0] sm:$0xff]
        %v7286 = vld [vmem:[#allocation34 + $0x6f8] sm:$0xff]
        %v7287 = vld [vmem:[#allocation34 + $0x700] sm:$0xff]
        %v7288 = vld [vmem:[#allocation34 + $0x708] sm:$0xff]
        %v7289 = vld [vmem:[#allocation34 + $0x710] sm:$0xff]
        %v7290 = vld [vmem:[#allocation34 + $0x718] sm:$0xff]
        %v7291 = vld [vmem:[#allocation34 + $0x720] sm:$0xff]
        %v7292 = vld [vmem:[#allocation34 + $0x728] sm:$0xff]
        %v7293 = vld [vmem:[#allocation34 + $0x730] sm:$0xff]
        %v7294 = vld [vmem:[#allocation34 + $0x738] sm:$0xff]
        %v7295 = vld [vmem:[#allocation34 + $0x740] sm:$0xff]
        %v7296 = vld [vmem:[#allocation34 + $0x748] sm:$0xff]
        %v7297 = vld [vmem:[#allocation34 + $0x750] sm:$0xff]
        %v7298 = vld [vmem:[#allocation34 + $0x758] sm:$0xff]
        %v7299 = vld [vmem:[#allocation34 + $0x760] sm:$0xff]
        %v7300 = vld [vmem:[#allocation34 + $0x768] sm:$0xff]
        %v7301 = vld [vmem:[#allocation34 + $0x770] sm:$0xff]
        %v7302 = vld [vmem:[#allocation34 + $0x778] sm:$0xff]
        %v7303 = vld [vmem:[#allocation34 + $0x780] sm:$0xff]
        %v7304 = vld [vmem:[#allocation34 + $0x788] sm:$0xff]
        %v7305 = vld [vmem:[#allocation34 + $0x790] sm:$0xff]
        %v7306 = vld [vmem:[#allocation34 + $0x798] sm:$0xff]
        %v7307 = vld [vmem:[#allocation34 + $0x7a0] sm:$0xff]
        %v7308 = vld [vmem:[#allocation34 + $0x7a8] sm:$0xff]
        %v7309 = vld [vmem:[#allocation34 + $0x7b0] sm:$0xff]
        %v7310 = vld [vmem:[#allocation34 + $0x7b8] sm:$0xff]
        %v7311 = vld [vmem:[#allocation34 + $0x7c0] sm:$0xff]
        %v7312 = vld [vmem:[#allocation34 + $0x7c8] sm:$0xff]
        %v7313 = vld [vmem:[#allocation34 + $0x7d0] sm:$0xff]
        %v7314 = vld [vmem:[#allocation34 + $0x7d8] sm:$0xff]
        %v7315 = vld [vmem:[#allocation34 + $0x7e0] sm:$0xff]
        %v7316 = vld [vmem:[#allocation34 + $0x7e8] sm:$0xff]
        %v7317 = vld [vmem:[#allocation34 + $0x7f0] sm:$0xff]
        %v7318 = vld [vmem:[#allocation34 + $0x7f8] sm:$0xff]
        %v7319 = vld [vmem:[%s75] sm:$0xf]
        %v7321 = vlaneseq
        %v7322 = vshrl.u32 %v7321, 7
        %v7323 = vsub.s32 0, %v7322
        %v7324 = vrot.slane %v7319, %v7323
        %v7325 = vlaneseq
        %v7326 = vshrl.u32 %v7325, 7
        %v7327 = vsub.s32 1, %v7326
        %v7328 = vrot.slane %v7319, %v7327
        %v7329 = vlaneseq
        %v7330 = vshrl.u32 %v7329, 7
        %v7331 = vsub.s32 2, %v7330
        %v7332 = vrot.slane %v7319, %v7331
        %v7333 = vlaneseq
        %v7334 = vshrl.u32 %v7333, 7
        %v7335 = vsub.s32 3, %v7334
        %v7336 = vrot.slane %v7319, %v7335
        %7341 = vmatprep.subr.mxu0 %v7064
        %7342 = vmatpush1.msra.mxu0 %v7063
        %7343 = vmatprep.subr.mxu0 %v7068
        %7344 = vmatpush1.msra.mxu0 %v7067
        %7345 = vmatprep.subr.mxu0 %v7072
        %7346 = vmatpush1.msra.mxu0 %v7071
        %7347 = vmatprep.subr.mxu0 %v7076
        %7348 = vmatpush1.msra.mxu0 %v7075
        %7349 = vmatprep.subr.mxu0 %v7080
        %7350 = vmatpush1.msra.mxu0 %v7079
        %7351 = vmatprep.subr.mxu0 %v7084
        %7352 = vmatpush1.msra.mxu0 %v7083
        %7353 = vmatprep.subr.mxu0 %v7088
        %7354 = vmatpush1.msra.mxu0 %v7087
        %7355 = vmatprep.subr.mxu0 %v7092
        %7356 = vmatpush1.msra.mxu0 %v7091
        %7357 = vmatprep.subr.mxu0 %v7096
        %7358 = vmatpush1.msra.mxu0 %v7095
        %7359 = vmatprep.subr.mxu0 %v7100
        %7360 = vmatpush1.msra.mxu0 %v7099
        %7361 = vmatprep.subr.mxu0 %v7104
        %7362 = vmatpush1.msra.mxu0 %v7103
        %7363 = vmatprep.subr.mxu0 %v7108
        %7364 = vmatpush1.msra.mxu0 %v7107
        %7365 = vmatprep.subr.mxu0 %v7112
        %7366 = vmatpush1.msra.mxu0 %v7111
        %7367 = vmatprep.subr.mxu0 %v7116
        %7368 = vmatpush1.msra.mxu0 %v7115
        %7369 = vmatprep.subr.mxu0 %v7120
        %7370 = vmatpush1.msra.mxu0 %v7119
        %7371 = vmatprep.subr.mxu0 %v7124
        %7372 = vmatpush1.msra.mxu0 %v7123
        %7373 = vmatprep.subr.mxu0 %v7128
        %7374 = vmatpush1.msra.mxu0 %v7127
        %7375 = vmatprep.subr.mxu0 %v7132
        %7376 = vmatpush1.msra.mxu0 %v7131
        %7377 = vmatprep.subr.mxu0 %v7136
        %7378 = vmatpush1.msra.mxu0 %v7135
        %7379 = vmatprep.subr.mxu0 %v7140
        %7380 = vmatpush1.msra.mxu0 %v7139
        %7381 = vmatprep.subr.mxu0 %v7144
        %7382 = vmatpush1.msra.mxu0 %v7143
        %7383 = vmatprep.subr.mxu0 %v7148
        %7384 = vmatpush1.msra.mxu0 %v7147
        %7385 = vmatprep.subr.mxu0 %v7152
        %7386 = vmatpush1.msra.mxu0 %v7151
        %7387 = vmatprep.subr.mxu0 %v7156
        %7388 = vmatpush1.msra.mxu0 %v7155
        %7389 = vmatprep.subr.mxu0 %v7160
        %7390 = vmatpush1.msra.mxu0 %v7159
        %7391 = vmatprep.subr.mxu0 %v7164
        %7392 = vmatpush1.msra.mxu0 %v7163
        %7393 = vmatprep.subr.mxu0 %v7168
        %7394 = vmatpush1.msra.mxu0 %v7167
        %7395 = vmatprep.subr.mxu0 %v7172
        %7396 = vmatpush1.msra.mxu0 %v7171
        %7397 = vmatprep.subr.mxu0 %v7176
        %7398 = vmatpush1.msra.mxu0 %v7175
        %7399 = vmatprep.subr.mxu0 %v7180
        %7400 = vmatpush1.msra.mxu0 %v7179
        %7401 = vmatprep.subr.mxu0 %v7184
        %7402 = vmatpush1.msra.mxu0 %v7183
        %7403 = vmatprep.subr.mxu0 %v7188
        %7404 = vmatpush1.msra.mxu0 %v7187
        %7405 = vmatprep.mubr.f32.mxu0 %v7060
        %7406 = vmatmul.mubr.f32.gmra.mrb[0].mxu0 %v7059
        %v7407 = vpop.f32.mrb[0].mxu0
        %v7408 = vadd.f32 %v7324, %v7407
        %v7409 = vpop.f32.mrb[0].mxu0
        %v7410 = vadd.f32 %v7328, %v7409
        %7411 = vdwg.mxu0
        %7412 = vmatprep.subr.mxu0 %v7192
        %7413 = vmatpush1.msra.mxu0 %v7191
        %7414 = vmatprep.subr.mxu0 %v7196
        %7415 = vmatpush1.msra.mxu0 %v7195
        %7416 = vmatprep.subr.mxu0 %v7200
        %7417 = vmatpush1.msra.mxu0 %v7199
        %7418 = vmatprep.subr.mxu0 %v7204
        %7419 = vmatpush1.msra.mxu0 %v7203
        %7420 = vmatprep.subr.mxu0 %v7208
        %7421 = vmatpush1.msra.mxu0 %v7207
        %7422 = vmatprep.subr.mxu0 %v7212
        %7423 = vmatpush1.msra.mxu0 %v7211
        %7424 = vmatprep.subr.mxu0 %v7216
        %7425 = vmatpush1.msra.mxu0 %v7215
        %7426 = vmatprep.subr.mxu0 %v7220
        %7427 = vmatpush1.msra.mxu0 %v7219
        %7428 = vmatprep.subr.mxu0 %v7224
        %7429 = vmatpush1.msra.mxu0 %v7223
        %7430 = vmatprep.subr.mxu0 %v7228
        %7431 = vmatpush1.msra.mxu0 %v7227
        %7432 = vmatprep.subr.mxu0 %v7232
        %7433 = vmatpush1.msra.mxu0 %v7231
        %7434 = vmatprep.subr.mxu0 %v7236
        %7435 = vmatpush1.msra.mxu0 %v7235
        %7436 = vmatprep.subr.mxu0 %v7240
        %7437 = vmatpush1.msra.mxu0 %v7239
        %7438 = vmatprep.subr.mxu0 %v7244
        %7439 = vmatpush1.msra.mxu0 %v7243
        %7440 = vmatprep.subr.mxu0 %v7248
        %7441 = vmatpush1.msra.mxu0 %v7247
        %7442 = vmatprep.subr.mxu0 %v7252
        %7443 = vmatpush1.msra.mxu0 %v7251
        %7444 = vmatprep.subr.mxu0 %v7256
        %7445 = vmatpush1.msra.mxu0 %v7255
        %7446 = vmatprep.subr.mxu0 %v7260
        %7447 = vmatpush1.msra.mxu0 %v7259
        %7448 = vmatprep.subr.mxu0 %v7264
        %7449 = vmatpush1.msra.mxu0 %v7263
        %7450 = vmatprep.subr.mxu0 %v7268
        %7451 = vmatpush1.msra.mxu0 %v7267
        %7452 = vmatprep.subr.mxu0 %v7272
        %7453 = vmatpush1.msra.mxu0 %v7271
        %7454 = vmatprep.subr.mxu0 %v7276
        %7455 = vmatpush1.msra.mxu0 %v7275
        %7456 = vmatprep.subr.mxu0 %v7280
        %7457 = vmatpush1.msra.mxu0 %v7279
        %7458 = vmatprep.subr.mxu0 %v7284
        %7459 = vmatpush1.msra.mxu0 %v7283
        %7460 = vmatprep.subr.mxu0 %v7288
        %7461 = vmatpush1.msra.mxu0 %v7287
        %7462 = vmatprep.subr.mxu0 %v7292
        %7463 = vmatpush1.msra.mxu0 %v7291
        %7464 = vmatprep.subr.mxu0 %v7296
        %7465 = vmatpush1.msra.mxu0 %v7295
        %7466 = vmatprep.subr.mxu0 %v7300
        %7467 = vmatpush1.msra.mxu0 %v7299
        %7468 = vmatprep.subr.mxu0 %v7304
        %7469 = vmatpush1.msra.mxu0 %v7303
        %7470 = vmatprep.subr.mxu0 %v7308
        %7471 = vmatpush1.msra.mxu0 %v7307
        %7472 = vmatprep.subr.mxu0 %v7312
        %7473 = vmatpush1.msra.mxu0 %v7311
        %7474 = vmatprep.subr.mxu0 %v7316
        %7475 = vmatpush1.msra.mxu0 %v7315
        %7476 = vmatprep.mubr.f32.mxu0 %v7062
        %7477 = vmatmul.mubr.f32.gmra.mrb[0].mxu0 %v7061
        %v7478 = vpop.f32.mrb[0].mxu0
        %v7479 = vadd.f32 %v7408, %v7478
        %v7480 = vpop.f32.mrb[0].mxu0
        %v7481 = vadd.f32 %v7410, %v7480
        %7482 = vdwg.mxu0
        %7483 = vmatprep.subr.mxu0 %v7066
        %7484 = vmatpush1.msra.mxu0 %v7065
        %7485 = vmatprep.subr.mxu0 %v7070
        %7486 = vmatpush1.msra.mxu0 %v7069
        %7487 = vmatprep.subr.mxu0 %v7074
        %7488 = vmatpush1.msra.mxu0 %v7073
        %7489 = vmatprep.subr.mxu0 %v7078
        %7490 = vmatpush1.msra.mxu0 %v7077
        %7491 = vmatprep.subr.mxu0 %v7082
        %7492 = vmatpush1.msra.mxu0 %v7081
        %7493 = vmatprep.subr.mxu0 %v7086
        %7494 = vmatpush1.msra.mxu0 %v7085
        %7495 = vmatprep.subr.mxu0 %v7090
        %7496 = vmatpush1.msra.mxu0 %v7089
        %7497 = vmatprep.subr.mxu0 %v7094
        %7498 = vmatpush1.msra.mxu0 %v7093
        %7499 = vmatprep.subr.mxu0 %v7098
        %7500 = vmatpush1.msra.mxu0 %v7097
        %7501 = vmatprep.subr.mxu0 %v7102
        %7502 = vmatpush1.msra.mxu0 %v7101
        %7503 = vmatprep.subr.mxu0 %v7106
        %7504 = vmatpush1.msra.mxu0 %v7105
        %7505 = vmatprep.subr.mxu0 %v7110
        %7506 = vmatpush1.msra.mxu0 %v7109
        %7507 = vmatprep.subr.mxu0 %v7114
        %7508 = vmatpush1.msra.mxu0 %v7113
        %7509 = vmatprep.subr.mxu0 %v7118
        %7510 = vmatpush1.msra.mxu0 %v7117
        %7511 = vmatprep.subr.mxu0 %v7122
        %7512 = vmatpush1.msra.mxu0 %v7121
        %7513 = vmatprep.subr.mxu0 %v7126
        %7514 = vmatpush1.msra.mxu0 %v7125
        %7515 = vmatprep.subr.mxu0 %v7130
        %7516 = vmatpush1.msra.mxu0 %v7129
        %7517 = vmatprep.subr.mxu0 %v7134
        %7518 = vmatpush1.msra.mxu0 %v7133
        %7519 = vmatprep.subr.mxu0 %v7138
        %7520 = vmatpush1.msra.mxu0 %v7137
        %7521 = vmatprep.subr.mxu0 %v7142
        %7522 = vmatpush1.msra.mxu0 %v7141
        %7523 = vmatprep.subr.mxu0 %v7146
        %7524 = vmatpush1.msra.mxu0 %v7145
        %7525 = vmatprep.subr.mxu0 %v7150
        %7526 = vmatpush1.msra.mxu0 %v7149
        %7527 = vmatprep.subr.mxu0 %v7154
        %7528 = vmatpush1.msra.mxu0 %v7153
        %7529 = vmatprep.subr.mxu0 %v7158
        %7530 = vmatpush1.msra.mxu0 %v7157
        %7531 = vmatprep.subr.mxu0 %v7162
        %7532 = vmatpush1.msra.mxu0 %v7161
        %7533 = vmatprep.subr.mxu0 %v7166
        %7534 = vmatpush1.msra.mxu0 %v7165
        %7535 = vmatprep.subr.mxu0 %v7170
        %7536 = vmatpush1.msra.mxu0 %v7169
        %7537 = vmatprep.subr.mxu0 %v7174
        %7538 = vmatpush1.msra.mxu0 %v7173
        %7539 = vmatprep.subr.mxu0 %v7178
        %7540 = vmatpush1.msra.mxu0 %v7177
        %7541 = vmatprep.subr.mxu0 %v7182
        %7542 = vmatpush1.msra.mxu0 %v7181
        %7543 = vmatprep.subr.mxu0 %v7186
        %7544 = vmatpush1.msra.mxu0 %v7185
        %7545 = vmatprep.subr.mxu0 %v7190
        %7546 = vmatpush1.msra.mxu0 %v7189
        %7547 = vmatprep.mubr.f32.mxu0 %v7060
        %7548 = vmatmul.mubr.f32.gmra.mrb[0].mxu0 %v7059
        %v7549 = vpop.f32.mrb[0].mxu0
        %v7550 = vadd.f32 %v7332, %v7549
        %v7551 = vpop.f32.mrb[0].mxu0
        %v7552 = vadd.f32 %v7336, %v7551
        %7553 = vdwg.mxu0
        %7554 = vmatprep.subr.mxu0 %v7194
        %7555 = vmatpush1.msra.mxu0 %v7193
        %7556 = vmatprep.subr.mxu0 %v7198
        %7557 = vmatpush1.msra.mxu0 %v7197
        %7558 = vmatprep.subr.mxu0 %v7202
        %7559 = vmatpush1.msra.mxu0 %v7201
        %7560 = vmatprep.subr.mxu0 %v7206
        %7561 = vmatpush1.msra.mxu0 %v7205
        %7562 = vmatprep.subr.mxu0 %v7210
        %7563 = vmatpush1.msra.mxu0 %v7209
        %7564 = vmatprep.subr.mxu0 %v7214
        %7565 = vmatpush1.msra.mxu0 %v7213
        %7566 = vmatprep.subr.mxu0 %v7218
        %7567 = vmatpush1.msra.mxu0 %v7217
        %7568 = vmatprep.subr.mxu0 %v7222
        %7569 = vmatpush1.msra.mxu0 %v7221
        %7570 = vmatprep.subr.mxu0 %v7226
        %7571 = vmatpush1.msra.mxu0 %v7225
        %7572 = vmatprep.subr.mxu0 %v7230
        %7573 = vmatpush1.msra.mxu0 %v7229
        %7574 = vmatprep.subr.mxu0 %v7234
        %7575 = vmatpush1.msra.mxu0 %v7233
        %7576 = vmatprep.subr.mxu0 %v7238
        %7577 = vmatpush1.msra.mxu0 %v7237
        %7578 = vmatprep.subr.mxu0 %v7242
        %7579 = vmatpush1.msra.mxu0 %v7241
        %7580 = vmatprep.subr.mxu0 %v7246
        %7581 = vmatpush1.msra.mxu0 %v7245
        %7582 = vmatprep.subr.mxu0 %v7250
        %7583 = vmatpush1.msra.mxu0 %v7249
        %7584 = vmatprep.subr.mxu0 %v7254
        %7585 = vmatpush1.msra.mxu0 %v7253
        %7586 = vmatprep.subr.mxu0 %v7258
        %7587 = vmatpush1.msra.mxu0 %v7257
        %7588 = vmatprep.subr.mxu0 %v7262
        %7589 = vmatpush1.msra.mxu0 %v7261
        %7590 = vmatprep.subr.mxu0 %v7266
        %7591 = vmatpush1.msra.mxu0 %v7265
        %7592 = vmatprep.subr.mxu0 %v7270
        %7593 = vmatpush1.msra.mxu0 %v7269
        %7594 = vmatprep.subr.mxu0 %v7274
        %7595 = vmatpush1.msra.mxu0 %v7273
        %7596 = vmatprep.subr.mxu0 %v7278
        %7597 = vmatpush1.msra.mxu0 %v7277
        %7598 = vmatprep.subr.mxu0 %v7282
        %7599 = vmatpush1.msra.mxu0 %v7281
        %7600 = vmatprep.subr.mxu0 %v7286
        %7601 = vmatpush1.msra.mxu0 %v7285
        %7602 = vmatprep.subr.mxu0 %v7290
        %7603 = vmatpush1.msra.mxu0 %v7289
        %7604 = vmatprep.subr.mxu0 %v7294
        %7605 = vmatpush1.msra.mxu0 %v7293
        %7606 = vmatprep.subr.mxu0 %v7298
        %7607 = vmatpush1.msra.mxu0 %v7297
        %7608 = vmatprep.subr.mxu0 %v7302
        %7609 = vmatpush1.msra.mxu0 %v7301
        %7610 = vmatprep.subr.mxu0 %v7306
        %7611 = vmatpush1.msra.mxu0 %v7305
        %7612 = vmatprep.subr.mxu0 %v7310
        %7613 = vmatpush1.msra.mxu0 %v7309
        %7614 = vmatprep.subr.mxu0 %v7314
        %7615 = vmatpush1.msra.mxu0 %v7313
        %7616 = vmatprep.subr.mxu0 %v7318
        %7617 = vmatpush1.msra.mxu0 %v7317
        %7618 = vmatprep.mubr.f32.mxu0 %v7062
        %7619 = vmatmul.mubr.f32.gmra.mrb[0].mxu0 %v7061
        %v7620 = vpop.f32.mrb[0].mxu0
        %v7621 = vadd.f32 %v7550, %v7620
        %v7622 = vpop.f32.mrb[0].mxu0
        %v7623 = vadd.f32 %v7552, %v7622
        %7624 = vdwg.mxu0
        %v7625 = vld [vmem:[%s77] sm:$0xff]
        %v7626 = vld [vmem:[%s77 + $0x8] sm:$0xff]
        %v7627 = vld [vmem:[%s77 + $0x10] sm:$0xff]
        %v7628 = vld [vmem:[%s77 + $0x18] sm:$0xff]
        %v7629 = vld [vmem:[%s77 + $0x20] sm:$0xff]
        %v7630 = vld [vmem:[%s77 + $0x28] sm:$0xff]
        %v7631 = vld [vmem:[%s77 + $0x30] sm:$0xff]
        %v7632 = vld [vmem:[%s77 + $0x38] sm:$0xff]
        %v7633 = vld [vmem:[%s77 + $0x40] sm:$0xff]
        %v7634 = vld [vmem:[%s77 + $0x48] sm:$0xff]
        %v7635 = vld [vmem:[%s77 + $0x50] sm:$0xff]
        %v7636 = vld [vmem:[%s77 + $0x58] sm:$0xff]
        %v7637 = vld [vmem:[%s77 + $0x60] sm:$0xff]
        %v7638 = vld [vmem:[%s77 + $0x68] sm:$0xff]
        %v7639 = vld [vmem:[%s77 + $0x70] sm:$0xff]
        %v7640 = vld [vmem:[%s77 + $0x78] sm:$0xff]
        %v7641 = vld [vmem:[%s77 + $0x80] sm:$0xff]
        %v7642 = vld [vmem:[%s77 + $0x88] sm:$0xff]
        %v7643 = vld [vmem:[%s77 + $0x90] sm:$0xff]
        %v7644 = vld [vmem:[%s77 + $0x98] sm:$0xff]
        %v7645 = vld [vmem:[%s77 + $0xa0] sm:$0xff]
        %v7646 = vld [vmem:[%s77 + $0xa8] sm:$0xff]
        %v7647 = vld [vmem:[%s77 + $0xb0] sm:$0xff]
        %v7648 = vld [vmem:[%s77 + $0xb8] sm:$0xff]
        %v7649 = vld [vmem:[%s77 + $0xc0] sm:$0xff]
        %v7650 = vld [vmem:[%s77 + $0xc8] sm:$0xff]
        %v7651 = vld [vmem:[%s77 + $0xd0] sm:$0xff]
        %v7652 = vld [vmem:[%s77 + $0xd8] sm:$0xff]
        %v7653 = vld [vmem:[%s77 + $0xe0] sm:$0xff]
        %v7654 = vld [vmem:[%s77 + $0xe8] sm:$0xff]
        %v7655 = vld [vmem:[%s77 + $0xf0] sm:$0xff]
        %v7656 = vld [vmem:[%s77 + $0xf8] sm:$0xff]
        %v7657 = vld [vmem:[%s77 + $0x100] sm:$0xff]
        %v7658 = vld [vmem:[%s77 + $0x108] sm:$0xff]
        %v7659 = vld [vmem:[%s77 + $0x110] sm:$0xff]
        %v7660 = vld [vmem:[%s77 + $0x118] sm:$0xff]
        %v7661 = vld [vmem:[%s77 + $0x120] sm:$0xff]
        %v7662 = vld [vmem:[%s77 + $0x128] sm:$0xff]
        %v7663 = vld [vmem:[%s77 + $0x130] sm:$0xff]
        %v7664 = vld [vmem:[%s77 + $0x138] sm:$0xff]
        %v7665 = vld [vmem:[%s77 + $0x140] sm:$0xff]
        %v7666 = vld [vmem:[%s77 + $0x148] sm:$0xff]
        %v7667 = vld [vmem:[%s77 + $0x150] sm:$0xff]
        %v7668 = vld [vmem:[%s77 + $0x158] sm:$0xff]
        %v7669 = vld [vmem:[%s77 + $0x160] sm:$0xff]
        %v7670 = vld [vmem:[%s77 + $0x168] sm:$0xff]
        %v7671 = vld [vmem:[%s77 + $0x170] sm:$0xff]
        %v7672 = vld [vmem:[%s77 + $0x178] sm:$0xff]
        %v7673 = vld [vmem:[%s77 + $0x180] sm:$0xff]
        %v7674 = vld [vmem:[%s77 + $0x188] sm:$0xff]
        %v7675 = vld [vmem:[%s77 + $0x190] sm:$0xff]
        %v7676 = vld [vmem:[%s77 + $0x198] sm:$0xff]
        %v7677 = vld [vmem:[%s77 + $0x1a0] sm:$0xff]
        %v7678 = vld [vmem:[%s77 + $0x1a8] sm:$0xff]
        %v7679 = vld [vmem:[%s77 + $0x1b0] sm:$0xff]
        %v7680 = vld [vmem:[%s77 + $0x1b8] sm:$0xff]
        %v7681 = vld [vmem:[%s77 + $0x1c0] sm:$0xff]
        %v7682 = vld [vmem:[%s77 + $0x1c8] sm:$0xff]
        %v7683 = vld [vmem:[%s77 + $0x1d0] sm:$0xff]
        %v7684 = vld [vmem:[%s77 + $0x1d8] sm:$0xff]
        %v7685 = vld [vmem:[%s77 + $0x1e0] sm:$0xff]
        %v7686 = vld [vmem:[%s77 + $0x1e8] sm:$0xff]
        %v7687 = vld [vmem:[%s77 + $0x1f0] sm:$0xff]
        %v7688 = vld [vmem:[%s77 + $0x1f8] sm:$0xff]
        %v7689 = vld [vmem:[%s79] sm:$0x1]
        %7690 = vmatprep.subr.mxu0 0.0
        %7691 = vmatpush1.msra.mxu0 %v7625
        %7692 = vmatprep.subr.mxu0 0.0
        %7693 = vmatpush1.msra.mxu0 %v7626
        %7694 = vmatprep.subr.mxu0 0.0
        %7695 = vmatpush1.msra.mxu0 %v7627
        %7696 = vmatprep.subr.mxu0 0.0
        %7697 = vmatpush1.msra.mxu0 %v7628
        %7698 = vmatprep.subr.mxu0 0.0
        %7699 = vmatpush1.msra.mxu0 %v7629
        %7700 = vmatprep.subr.mxu0 0.0
        %7701 = vmatpush1.msra.mxu0 %v7630
        %7702 = vmatprep.subr.mxu0 0.0
        %7703 = vmatpush1.msra.mxu0 %v7631
        %7704 = vmatprep.subr.mxu0 0.0
        %7705 = vmatpush1.msra.mxu0 %v7632
        %7706 = vmatprep.subr.mxu0 0.0
        %7707 = vmatpush1.msra.mxu0 %v7633
        %7708 = vmatprep.subr.mxu0 0.0
        %7709 = vmatpush1.msra.mxu0 %v7634
        %7710 = vmatprep.subr.mxu0 0.0
        %7711 = vmatpush1.msra.mxu0 %v7635
        %7712 = vmatprep.subr.mxu0 0.0
        %7713 = vmatpush1.msra.mxu0 %v7636
        %7714 = vmatprep.subr.mxu0 0.0
        %7715 = vmatpush1.msra.mxu0 %v7637
        %7716 = vmatprep.subr.mxu0 0.0
        %7717 = vmatpush1.msra.mxu0 %v7638
        %7718 = vmatprep.subr.mxu0 0.0
        %7719 = vmatpush1.msra.mxu0 %v7639
        %7720 = vmatprep.subr.mxu0 0.0
        %7721 = vmatpush1.msra.mxu0 %v7640
        %7722 = vmatprep.subr.mxu0 0.0
        %7723 = vmatpush1.msra.mxu0 %v7641
        %7724 = vmatprep.subr.mxu0 0.0
        %7725 = vmatpush1.msra.mxu0 %v7642
        %7726 = vmatprep.subr.mxu0 0.0
        %7727 = vmatpush1.msra.mxu0 %v7643
        %7728 = vmatprep.subr.mxu0 0.0
        %7729 = vmatpush1.msra.mxu0 %v7644
        %7730 = vmatprep.subr.mxu0 0.0
        %7731 = vmatpush1.msra.mxu0 %v7645
        %7732 = vmatprep.subr.mxu0 0.0
        %7733 = vmatpush1.msra.mxu0 %v7646
        %7734 = vmatprep.subr.mxu0 0.0
        %7735 = vmatpush1.msra.mxu0 %v7647
        %7736 = vmatprep.subr.mxu0 0.0
        %7737 = vmatpush1.msra.mxu0 %v7648
        %7738 = vmatprep.subr.mxu0 0.0
        %7739 = vmatpush1.msra.mxu0 %v7649
        %7740 = vmatprep.subr.mxu0 0.0
        %7741 = vmatpush1.msra.mxu0 %v7650
        %7742 = vmatprep.subr.mxu0 0.0
        %7743 = vmatpush1.msra.mxu0 %v7651
        %7744 = vmatprep.subr.mxu0 0.0
        %7745 = vmatpush1.msra.mxu0 %v7652
        %7746 = vmatprep.subr.mxu0 0.0
        %7747 = vmatpush1.msra.mxu0 %v7653
        %7748 = vmatprep.subr.mxu0 0.0
        %7749 = vmatpush1.msra.mxu0 %v7654
        %7750 = vmatprep.subr.mxu0 0.0
        %7751 = vmatpush1.msra.mxu0 %v7655
        %7752 = vmatprep.subr.mxu0 0.0
        %7753 = vmatpush1.msra.mxu0 %v7656
        %7754 = vmatprep.mubr.f32.mxu0 %v7481
        %7755 = vmatmul.mubr.f32.gmra.mrb[0].mxu0 %v7479
        %v7756 = vpop.f32.mrb[0].mxu0
        %v7757 = vadd.f32 %v7689, %v7756
        %v7758 = vpop.f32.mrb[0].mxu0
        %7759 = vdwg.mxu0
        %7760 = vmatprep.subr.mxu0 0.0
        %7761 = vmatpush1.msra.mxu0 %v7657
        %7762 = vmatprep.subr.mxu0 0.0
        %7763 = vmatpush1.msra.mxu0 %v7658
        %7764 = vmatprep.subr.mxu0 0.0
        %7765 = vmatpush1.msra.mxu0 %v7659
        %7766 = vmatprep.subr.mxu0 0.0
        %7767 = vmatpush1.msra.mxu0 %v7660
        %7768 = vmatprep.subr.mxu0 0.0
        %7769 = vmatpush1.msra.mxu0 %v7661
        %7770 = vmatprep.subr.mxu0 0.0
        %7771 = vmatpush1.msra.mxu0 %v7662
        %7772 = vmatprep.subr.mxu0 0.0
        %7773 = vmatpush1.msra.mxu0 %v7663
        %7774 = vmatprep.subr.mxu0 0.0
        %7775 = vmatpush1.msra.mxu0 %v7664
        %7776 = vmatprep.subr.mxu0 0.0
        %7777 = vmatpush1.msra.mxu0 %v7665
        %7778 = vmatprep.subr.mxu0 0.0
        %7779 = vmatpush1.msra.mxu0 %v7666
        %7780 = vmatprep.subr.mxu0 0.0
        %7781 = vmatpush1.msra.mxu0 %v7667
        %7782 = vmatprep.subr.mxu0 0.0
        %7783 = vmatpush1.msra.mxu0 %v7668
        %7784 = vmatprep.subr.mxu0 0.0
        %7785 = vmatpush1.msra.mxu0 %v7669
        %7786 = vmatprep.subr.mxu0 0.0
        %7787 = vmatpush1.msra.mxu0 %v7670
        %7788 = vmatprep.subr.mxu0 0.0
        %7789 = vmatpush1.msra.mxu0 %v7671
        %7790 = vmatprep.subr.mxu0 0.0
        %7791 = vmatpush1.msra.mxu0 %v7672
        %7792 = vmatprep.subr.mxu0 0.0
        %7793 = vmatpush1.msra.mxu0 %v7673
        %7794 = vmatprep.subr.mxu0 0.0
        %7795 = vmatpush1.msra.mxu0 %v7674
        %7796 = vmatprep.subr.mxu0 0.0
        %7797 = vmatpush1.msra.mxu0 %v7675
        %7798 = vmatprep.subr.mxu0 0.0
        %7799 = vmatpush1.msra.mxu0 %v7676
        %7800 = vmatprep.subr.mxu0 0.0
        %7801 = vmatpush1.msra.mxu0 %v7677
        %7802 = vmatprep.subr.mxu0 0.0
        %7803 = vmatpush1.msra.mxu0 %v7678
        %7804 = vmatprep.subr.mxu0 0.0
        %7805 = vmatpush1.msra.mxu0 %v7679
        %7806 = vmatprep.subr.mxu0 0.0
        %7807 = vmatpush1.msra.mxu0 %v7680
        %7808 = vmatprep.subr.mxu0 0.0
        %7809 = vmatpush1.msra.mxu0 %v7681
        %7810 = vmatprep.subr.mxu0 0.0
        %7811 = vmatpush1.msra.mxu0 %v7682
        %7812 = vmatprep.subr.mxu0 0.0
        %7813 = vmatpush1.msra.mxu0 %v7683
        %7814 = vmatprep.subr.mxu0 0.0
        %7815 = vmatpush1.msra.mxu0 %v7684
        %7816 = vmatprep.subr.mxu0 0.0
        %7817 = vmatpush1.msra.mxu0 %v7685
        %7818 = vmatprep.subr.mxu0 0.0
        %7819 = vmatpush1.msra.mxu0 %v7686
        %7820 = vmatprep.subr.mxu0 0.0
        %7821 = vmatpush1.msra.mxu0 %v7687
        %7822 = vmatprep.subr.mxu0 0.0
        %7823 = vmatpush1.msra.mxu0 %v7688
        %7824 = vmatprep.mubr.f32.mxu0 %v7623
        %7825 = vmatmul.mubr.f32.gmra.mrb[0].mxu0 %v7621
        %v7826 = vpop.f32.mrb[0].mxu0
        %v7827 = vadd.f32 %v7757, %v7826
        %v7828 = vpop.f32.mrb[0].mxu0
        %7829 = vdwg.mxu0
        %v7830 = vsub.f32 0.0, %v7827
        %v7831 = vmul.f32 %v7830, 1.442695
        %v7832 = vpow.pop %v7831
        %v7833 = vadd.f32 %v7832, 1.0
        %v7834 = vrcp.pop %v7833
        %v7835 = vmul.f32 1.0, %v7834
        %7836 = vst [vmem:[%s1510] sm:$0x1] %v7835
        %s7837 = sand.u32 %s964, 1
        %s7838 = scalar_lea.sflag [#allocation4], %s7837
        %s7839 = sand.u32 %s964, 1
        %s7840 = scalar_lea.vmem [#allocation35], %s7839
        // Predicated region
        $region265: #{model_forward.1} parent=179 // pred_check
          %p7841 = pneg %p974
        $region266: #{model_forward.1} parent=179 // pred_check_branch
          %7843 = sbr.rel (%p7841) target = $region268
        $region267: #{model_forward.1} parent=179 // pred_region
          %s7845 = ssub.s32 16, 16
          %7846 = vsyncadd %s7838, %s7845
          %s7847 = smul.addr %s106, 16
          %s7848 = scalar_lea.hbm %s81, %s7847
          %s7850 = sshll.u32 %s7840, 4
          %s7851 = int_to_ptr.vmem [resolvable:$true] %s7850
          %7853 = dma.vmem_to_hbm [thread:$0]  %s7851, 16, %s7848, %s7838
        $region268: #{model_forward.1} parent=179 // pred_fallthru
          _
      $region180: #{model_forward.1} parent=5 // pred_fallthru
        _
      %p7854 = scmp.le.s32.totalorder 2, %s101
      // Predicated region
      $region269: #{model_forward.1} parent=5 // pred_check
        %p7855 = pneg %p7854
      $region270: #{model_forward.1} parent=5 // pred_check_branch
        %7857 = sbr.rel (%p7855) target = $region272
      $region271: #{model_forward.1} parent=5 // pred_region
        %s7858 = ssub.s32 %s101, 2
        // Predicated region
        $region273: #{model_forward.1} parent=271 // pred_check
          %p7859 = pneg %p980
        $region274: #{model_forward.1} parent=271 // pred_check_branch
          %7861 = sbr.rel (%p7859) target = $region276
        $region275: #{model_forward.1} parent=271 // pred_region
          %s7862 = sand.u32 %s965, 1
          %s7863 = scalar_lea.sflag [#allocation4], %s7862
          %s7864 = sand.u32 %s965, 1
          %s7865 = scalar_lea.vmem [#allocation35], %s7864
          %7866 = dma.done %s7863, 16
        $region276: #{model_forward.1} parent=271 // pred_fallthru
          _
      $region272: #{model_forward.1} parent=5 // pred_fallthru
        _
    $region6: #{model_forward.1} parent=1 // loop_footer
      %s105 = sadd.s32 1, %s101
    $region7: #{model_forward.1} parent=1 // loop_footer_branch
      %100 = sbr.rel target = $region3
    $region8: #{model_forward.1} parent=1 // loop_exit
      _
    %7867 = vsyncpa [#allocation3], 1
    %s7868 = scalar_lea.sflag [#allocation3], 1
    %7869 = vsyncpa %s7868, 1
    %7870 = vsyncpa [#allocation6], 1
    %7871 = vsyncpa [#allocation9], 1
    %7872 = vsyncpa [#allocation12], 1
    %7873 = vsyncpa [#allocation15], 1
    %7874 = vsyncpa [#allocation18], 1
    %7875 = vsyncpa [#allocation21], 1
    %7876 = vsyncpa [#allocation24], 1
    %7877 = vsyncpa [#allocation27], 1
    %7878 = vsyncpa [#allocation30], 1
    %7879 = vsyncpa [#allocation33], 1
    %7880 = vsyncpa [#allocation4], 1
    %s7881 = scalar_lea.sflag [#allocation4], 1
    %7882 = vsyncpa %s7881, 1

</llo_original>
